<compile_context>
chip_gen: v5e
topology: v5e:2x2
jax: 0.10.0
libtpu: 0.0.40
codegen_flags: <defaults>
</compile_context>

<pallas_src>
import functools

import jax
import jax.numpy as jnp
from jax import lax
from jax.experimental import pallas as pl
from jax.experimental.pallas import tpu as pltpu


def attention_block_kernel(x_ref, gamma_ref, beta_ref, gmat_ref, qkv_w_ref,
                           qkv_b_ref, ah_w_ref, ah_b_ref, o_ref,
                           qkv_scr, attn_scr, *, num_heads, eps, t_block):
    f32 = jnp.float32
    bf16 = jnp.bfloat16

    x = x_ref[0]                              # (C, L) float32
    C, L = x.shape
    ch = C // num_heads

    # ---- GroupNorm(num_groups, C), native (C, L) layout, two-pass f32 ----
    # Per-channel lane reductions -> (C, 1); the tiny cross-channel combine
    # inside each group is a constant (C, C) group-averaging matvec (gmat has
    # 1/(gs*L) for same-group channel pairs), so the big tile never needs a
    # sublane-splitting reshape/relayout.
    s = jnp.sum(x, axis=1, keepdims=True)                                # (C,1)
    mean_c = jnp.dot(gmat_ref[...], s, preferred_element_type=f32)       # (C,1)
    d = x - mean_c
    sq = jnp.sum(d * d, axis=1, keepdims=True)                           # (C,1)
    var_c = jnp.dot(gmat_ref[...], sq, preferred_element_type=f32)       # (C,1)
    h = d * lax.rsqrt(var_c + eps) * gamma_ref[...] + beta_ref[...]

    # ---- qkv 1x1 conv: bf16 weights (q rows pre-scaled) @ bf16 h, f32 acc ----
    qkv = jnp.dot(qkv_w_ref[...], h.astype(bf16), preferred_element_type=f32)
    qkv_scr[...] = (qkv + qkv_b_ref[...]).astype(bf16)   # single bf16 downcast

    n_t = L // t_block

    # ---- multi-head attention; key axis tiled via fori_loop ----
    # num_heads is small and static; heads write disjoint sublane slices.
    for hd in range(num_heads):
        base = hd * 3 * ch
        q = qkv_scr[pl.ds(base, ch), :]                 # (ch, L) bf16, scaled

        def kv_block(tb, oh):
            t0 = pl.multiple_of(tb * t_block, t_block)
            k_b = qkv_scr[pl.ds(base + ch, ch), pl.ds(t0, t_block)]      # (ch,Tb)
            v_b = qkv_scr[pl.ds(base + 2 * ch, ch), pl.ds(t0, t_block)]  # (ch,Tb)
            # Transposed scores: att_t[t, s] = sum_c k[c, t] * q_scaled[c, s]
            att_t = lax.dot_general(k_b, q, (((0,), (0,)), ((), ())),
                                    preferred_element_type=f32)          # (Tb,L)
            # Reference applies nn.Softmax(dim=1) over (b, s, t): normalize
            # over the *query* axis s == last axis of att_t.  Each row of
            # att_t holds all s values, so per-key-block softmax is exact and
            # per-block outputs simply accumulate.
            att_t = jnp.exp(att_t - jnp.max(att_t, axis=-1, keepdims=True))
            att_t = att_t * pl.reciprocal(
                jnp.sum(att_t, axis=-1, keepdims=True), approx=True)
            # oh[c, s] += sum_t v[c, t] * att_t[t, s]  (natural orientation)
            return oh + jnp.dot(v_b, att_t.astype(bf16),
                                preferred_element_type=f32)

        oh = lax.fori_loop(0, n_t, kv_block, jnp.zeros((ch, L), f32))
        attn_scr[pl.ds(hd * ch, ch), :] = oh.astype(bf16)

    # ---- single merged output 1x1 conv (contraction depth C) + residual ----
    y = jnp.dot(ah_w_ref[...], attn_scr[...], preferred_element_type=f32)
    # TODO(synk): non-identity skip 1x1 conv (out_channels != in_channels) not
    # implemented; the module default (identity skip) is assumed.
    o_ref[0] = x + y + ah_b_ref[...]


def _tpu_vmem_capacity_bytes(default=64 * 1024 * 1024):
    try:
        info = pltpu.get_tpu_info()
        cap = getattr(info, "vmem_capacity_bytes", None)
        return int(cap) if cap else default
    except Exception:
        return default   # conservative (v7x-sized) fallback


def attention_block_pallas(x_nchw, gamma, beta, qkv_w, qkv_b, ah_w, ah_b, *,
                           num_heads, num_groups=32, eps=1e-5, t_block=None):
    B, C, H, W = x_nchw.shape
    L = H * W
    C3 = 3 * C
    assert C % num_groups == 0 and C % num_heads == 0
    ch = C // num_heads
    gs = C // num_groups

    vmem_cap = _tpu_vmem_capacity_bytes()
    if t_block is None:
        # Largest lane-aligned tile that divides L; keep the f32 score panel
        # smaller on VMEM-constrained chips (v7x: 64 MiB) at large L.
        t_cap = 256 if (vmem_cap < (96 << 20) and L >= 2048) else 512
        t_block = next((t for t in (512, 256, 128) if t <= t_cap and L % t == 0),
                       L)
    assert L % t_block == 0

    x_ncl = x_nchw.reshape(B, C, L).astype(jnp.float32)
    gamma2 = jnp.asarray(gamma, jnp.float32).reshape(C, 1)
    beta2 = jnp.asarray(beta, jnp.float32).reshape(C, 1)

    # Constant group-averaging matrix for the GroupNorm cross-channel combine.
    gids = jnp.arange(C) // gs
    gmat = (gids[:, None] == gids[None, :]).astype(jnp.float32) / float(gs * L)

    # Fold the attention scale 1/sqrt(ch) into the q rows of the qkv conv
    # weight/bias (one-time weight transform); ship weights in bf16.
    scale = 1.0 / (ch ** 0.5)
    rows = jnp.arange(C3)
    q_row = (rows % (3 * ch)) < ch
    row_scale = jnp.where(q_row, scale, 1.0).astype(jnp.float32)
    qkv_w2 = (jnp.asarray(qkv_w, jnp.float32) * row_scale[:, None]).astype(
        jnp.bfloat16)                                            # (3C, C) bf16
    qkv_b2 = (jnp.asarray(qkv_b, jnp.float32) * row_scale).reshape(C3, 1)  # f32
    ah_w2 = jnp.asarray(ah_w, jnp.float32).astype(jnp.bfloat16)  # (C_out, C_in)
    ah_b2 = jnp.asarray(ah_b, jnp.float32).reshape(C, 1)

    kernel = functools.partial(attention_block_kernel, num_heads=num_heads,
                               eps=eps, t_block=t_block)

    vmem_limit = min(int(vmem_cap * 3 // 4), 100 * 1024 * 1024)

    def build(single_buffer_weights):
        def const_spec(shape):
            # Constant-index weights: a single VMEM buffer is enough (their
            # block never changes across grid steps).
            if single_buffer_weights:
                return pl.BlockSpec(shape, lambda b: (0, 0),
                                    pipeline_mode=pl.Buffered(1))
            return pl.BlockSpec(shape, lambda b: (0, 0))

        return pl.pallas_call(
            kernel,
            out_shape=jax.ShapeDtypeStruct((B, C, L), jnp.float32),
            grid_spec=pltpu.PrefetchScalarGridSpec(
                num_scalar_prefetch=0,
                # grid=(B,) with "parallel": keep B even for v7x's 2 TCs.
                grid=(B,),
                in_specs=[
                    pl.BlockSpec((1, C, L), lambda b: (b, 0, 0)),  # x
                    const_spec((C, 1)),      # GroupNorm gamma (f32)
                    const_spec((C, 1)),      # GroupNorm beta  (f32)
                    const_spec((C, C)),      # group-averaging matrix (f32)
                    const_spec((C3, C)),     # qkv conv weight (bf16, q scaled)
                    const_spec((C3, 1)),     # qkv conv bias (f32, q scaled)
                    const_spec((C, C)),      # output conv weight (bf16)
                    const_spec((C, 1)),      # output conv bias (f32)
                ],
                out_specs=pl.BlockSpec((1, C, L), lambda b: (b, 0, 0)),
                scratch_shapes=[
                    pltpu.VMEM((C3, L), jnp.bfloat16),   # bf16 qkv buffer
                    pltpu.VMEM((C, L), jnp.bfloat16),    # concatenated heads
                ],
            ),
            compiler_params=pltpu.CompilerParams(
                dimension_semantics=("parallel",),
                vmem_limit_bytes=vmem_limit),
        )

    args = (x_ncl, gamma2, beta2, gmat, qkv_w2, qkv_b2, ah_w2, ah_b2)
    try:
        out = jax.block_until_ready(build(True)(*args))
    except Exception:
        # Fallback for JAX builds without per-operand buffer counts.
        out = jax.block_until_ready(build(False)(*args))
    return out.reshape(B, C, H, W)


def attention_block_reference(x_nchw, gamma, beta, qkv_w, qkv_b, ah_w, ah_b, *,
                              num_heads, num_groups=32, eps=1e-5):
    """Pure-JAX f32 reference reproducing the PyTorch forward semantics."""
    B, C, H, W = x_nchw.shape
    L = H * W
    x = x_nchw.reshape(B, C, L)
    gs = C // num_groups
    xg = x.reshape(B, num_groups, gs * L)
    mean = xg.mean(axis=2, keepdims=True)
    var = ((xg - mean) ** 2).mean(axis=2, keepdims=True)
    xn = ((xg - mean) / jnp.sqrt(var + eps)).reshape(B, C, L)
    h = xn * gamma.reshape(1, C, 1) + beta.reshape(1, C, 1)
    qkv = jnp.einsum('oc,bcl->bol', qkv_w, h) + qkv_b.reshape(1, -1, 1)
    ch = C // num_heads
    qkv_h = qkv.reshape(B * num_heads, 3 * ch, L)
    q, k, v = qkv_h[:, :ch], qkv_h[:, ch:2 * ch], qkv_h[:, 2 * ch:]
    att = jnp.einsum('bcs,bct->bst', q, k) * (1.0 / jnp.sqrt(ch))
    att = jax.nn.softmax(att, axis=1)   # softmax over query axis (dim=1)
    attn = jnp.einsum('bst,bct->bcs', att, v).reshape(B, C, L)
    y = jnp.einsum('oc,bcl->bol', ah_w, attn) + ah_b.reshape(1, -1, 1)
    return (x + y).reshape(B, C, H, W)


if __name__ == "__main__":
    # Small shapes consistent with the module: GroupNorm(32, C) => C % 32 == 0.
    # L = 16*16 = 256 keeps the lane dim a multiple of 128 (dense stores);
    # B = 2 keeps both v7x TensorCores busy.
    B, C, H, W = 2, 64, 16, 16
    num_heads = 4          # attention_ch_per_head = 16
    num_groups = 32

    key = jax.random.PRNGKey(0)
    k_x, k_g, k_b, k_qw, k_qb, k_aw, k_ab = jax.random.split(key, 7)

    x = jax.random.normal(k_x, (B, C, H, W), dtype=jnp.float32)
    gamma = 1.0 + 0.1 * jax.random.normal(k_g, (C,), dtype=jnp.float32)
    beta = 0.1 * jax.random.normal(k_b, (C,), dtype=jnp.float32)
    qkv_w = 0.05 * jax.random.normal(k_qw, (3 * C, C), dtype=jnp.float32)
    qkv_b = 0.05 * jax.random.normal(k_qb, (3 * C,), dtype=jnp.float32)
    ah_w = 0.05 * jax.random.normal(k_aw, (C, C), dtype=jnp.float32)
    ah_b = 0.05 * jax.random.normal(k_ab, (C,), dtype=jnp.float32)

    # t_block=128 exercises the multi-block key-axis fori_loop path.
    out = attention_block_pallas(
        x, gamma, beta, qkv_w, qkv_b, ah_w, ah_b,
        num_heads=num_heads, num_groups=num_groups, t_block=128)
    out = jax.block_until_ready(out)

    ref = attention_block_reference(
        x, gamma, beta, qkv_w, qkv_b, ah_w, ah_b,
        num_heads=num_heads, num_groups=num_groups)

    assert out.shape == (B, C, H, W)
    # bf16 MXU matmuls (f32 accumulation) -> loosened tolerance vs f32 reference.
    err = jnp.max(jnp.abs(out - ref))
    assert jnp.allclose(out, ref, atol=1e-2, rtol=1e-2), f"max abs err {err}"
    print("KERNEL_OK")
</pallas_src>

<mosaic_0001>
module attributes {stable_mosaic.version = 11 : i64} {
  func.func @attention_block_kernel(%arg0: i32, %arg1: memref<1x64x256xf32, #tpu.memory_space<vmem>>, %arg2: memref<64x1xf32, #tpu.memory_space<vmem>>, %arg3: memref<64x1xf32, #tpu.memory_space<vmem>>, %arg4: memref<64x64xf32, #tpu.memory_space<vmem>>, %arg5: memref<192x64xbf16, #tpu.memory_space<vmem>>, %arg6: memref<192x1xf32, #tpu.memory_space<vmem>>, %arg7: memref<64x64xbf16, #tpu.memory_space<vmem>>, %arg8: memref<64x1xf32, #tpu.memory_space<vmem>>, %arg9: memref<1x64x256xf32, #tpu.memory_space<vmem>>, %arg10: memref<192x256xbf16, #tpu.memory_space<vmem>>, %arg11: memref<64x256xbf16, #tpu.memory_space<vmem>>) attributes {dimension_semantics = [#tpu.dimension_semantics<parallel>], iteration_bounds = array<i64: 2>, scalar_prefetch = 0 : i64, scratch_operands = 2 : i64, tpu.core_type = #tpu.core_type<tc>, window_params = [{transform_indices = @transform_0, window_bounds = array<i64: 1, 64, 256>}, {pipeline_mode = #tpu.pipeline_mode<synchronous>, transform_indices = @transform_1, window_bounds = array<i64: 64, 1>}, {pipeline_mode = #tpu.pipeline_mode<synchronous>, transform_indices = @transform_2, window_bounds = array<i64: 64, 1>}, {pipeline_mode = #tpu.pipeline_mode<synchronous>, transform_indices = @transform_3, window_bounds = array<i64: 64, 64>}, {pipeline_mode = #tpu.pipeline_mode<synchronous>, transform_indices = @transform_4, window_bounds = array<i64: 192, 64>}, {pipeline_mode = #tpu.pipeline_mode<synchronous>, transform_indices = @transform_5, window_bounds = array<i64: 192, 1>}, {pipeline_mode = #tpu.pipeline_mode<synchronous>, transform_indices = @transform_6, window_bounds = array<i64: 64, 64>}, {pipeline_mode = #tpu.pipeline_mode<synchronous>, transform_indices = @transform_7, window_bounds = array<i64: 64, 1>}, {transform_indices = @transform_8, window_bounds = array<i64: 1, 64, 256>}]} {
    %c0 = arith.constant 0 : index
    %c0_0 = arith.constant 0 : index
    %c0_1 = arith.constant 0 : index
    %0 = vector.load %arg1[%c0, %c0_0, %c0_1] : memref<1x64x256xf32, #tpu.memory_space<vmem>>, vector<1x64x256xf32>
    %1 = vector.shape_cast %0 : vector<1x64x256xf32> to vector<64x256xf32>
    %cst = arith.constant dense<0.000000e+00> : vector<64xf32>
    %2 = vector.multi_reduction <add>, %1, %cst [1] : vector<64x256xf32> to vector<64xf32>
    %3 = vector.shape_cast %2 : vector<64xf32> to vector<64x1xf32>
    %c0_2 = arith.constant 0 : index
    %c0_3 = arith.constant 0 : index
    %4 = vector.load %arg4[%c0_2, %c0_3] : memref<64x64xf32, #tpu.memory_space<vmem>>, vector<64x64xf32>
    %cst_4 = arith.constant dense<0.000000e+00> : vector<64x1xf32>
    %5 = tpu.matmul %4, %3, %cst_4 {dimension_numbers = #tpu.dot_dimension_numbers<[1], [0], [0], [1], [0, 0, 1, 1], [], []>} : vector<64x64xf32>, vector<64x1xf32>, vector<64x1xf32> -> vector<64x1xf32>
    %6 = vector.broadcast %5 : vector<64x1xf32> to vector<64x256xf32>
    %7 = arith.subf %1, %6 : vector<64x256xf32>
    %8 = arith.mulf %7, %7 : vector<64x256xf32>
    %cst_5 = arith.constant dense<0.000000e+00> : vector<64xf32>
    %9 = vector.multi_reduction <add>, %8, %cst_5 [1] : vector<64x256xf32> to vector<64xf32>
    %10 = vector.shape_cast %9 : vector<64xf32> to vector<64x1xf32>
    %c0_6 = arith.constant 0 : index
    %c0_7 = arith.constant 0 : index
    %11 = vector.load %arg4[%c0_6, %c0_7] : memref<64x64xf32, #tpu.memory_space<vmem>>, vector<64x64xf32>
    %cst_8 = arith.constant dense<0.000000e+00> : vector<64x1xf32>
    %12 = tpu.matmul %11, %10, %cst_8 {dimension_numbers = #tpu.dot_dimension_numbers<[1], [0], [0], [1], [0, 0, 1, 1], [], []>} : vector<64x64xf32>, vector<64x1xf32>, vector<64x1xf32> -> vector<64x1xf32>
    %cst_9 = arith.constant 9.99999974E-6 : f32
    %13 = vector.broadcast %cst_9 : f32 to vector<64x1xf32>
    %14 = arith.addf %12, %13 : vector<64x1xf32>
    %15 = math.rsqrt %14 : vector<64x1xf32>
    %16 = vector.broadcast %15 : vector<64x1xf32> to vector<64x256xf32>
    %17 = arith.mulf %7, %16 : vector<64x256xf32>
    %c0_10 = arith.constant 0 : index
    %c0_11 = arith.constant 0 : index
    %18 = vector.load %arg2[%c0_10, %c0_11] : memref<64x1xf32, #tpu.memory_space<vmem>>, vector<64x1xf32>
    %19 = vector.broadcast %18 : vector<64x1xf32> to vector<64x256xf32>
    %20 = arith.mulf %17, %19 : vector<64x256xf32>
    %c0_12 = arith.constant 0 : index
    %c0_13 = arith.constant 0 : index
    %21 = vector.load %arg3[%c0_12, %c0_13] : memref<64x1xf32, #tpu.memory_space<vmem>>, vector<64x1xf32>
    %22 = vector.broadcast %21 : vector<64x1xf32> to vector<64x256xf32>
    %23 = arith.addf %20, %22 : vector<64x256xf32>
    %c0_14 = arith.constant 0 : index
    %c0_15 = arith.constant 0 : index
    %24 = vector.load %arg5[%c0_14, %c0_15] : memref<192x64xbf16, #tpu.memory_space<vmem>>, vector<192x64xbf16>
    %25 = arith.truncf %23 : vector<64x256xf32> to vector<64x256xbf16>
    %cst_16 = arith.constant dense<0.000000e+00> : vector<192x256xf32>
    %26 = tpu.matmul %24, %25, %cst_16 {dimension_numbers = #tpu.dot_dimension_numbers<[1], [0], [0], [1], [0, 0, 1, 1], [], []>} : vector<192x64xbf16>, vector<64x256xbf16>, vector<192x256xf32> -> vector<192x256xf32>
    %c0_17 = arith.constant 0 : index
    %c0_18 = arith.constant 0 : index
    %27 = vector.load %arg6[%c0_17, %c0_18] : memref<192x1xf32, #tpu.memory_space<vmem>>, vector<192x1xf32>
    %28 = vector.broadcast %27 : vector<192x1xf32> to vector<192x256xf32>
    %29 = arith.addf %26, %28 : vector<192x256xf32>
    %30 = arith.truncf %29 : vector<192x256xf32> to vector<192x256xbf16>
    %c0_19 = arith.constant 0 : index
    %c0_20 = arith.constant 0 : index
    %31 = vector.load %arg10[%c0_19, %c0_20] : memref<192x256xbf16, #tpu.memory_space<vmem>>, vector<192x256xbf16>
    tpu.vector_store %arg10[%c0_19, %c0_20], %30 {strides = array<i32>} : memref<192x256xbf16, #tpu.memory_space<vmem>>, vector<192x256xbf16>,
    %c0_21 = arith.constant 0 : index
    %c0_22 = arith.constant 0 : index
    %32 = vector.load %arg10[%c0_21, %c0_22] : memref<192x256xbf16, #tpu.memory_space<vmem>>, vector<16x256xbf16>
    %cst_23 = arith.constant 0.000000e+00 : f32
    %33 = vector.broadcast %cst_23 : f32 to vector<16x256xf32>
    %c0_i32 = arith.constant 0 : i32
    %c2_i32 = arith.constant 2 : i32
    %34 = arith.addi %c0_i32, %c2_i32 : i32
    %c1_i32 = arith.constant 1 : i32
    %35 = scf.for %arg12 = %c0_i32 to %34 step %c1_i32 iter_args(%arg13 = %33) -> (vector<16x256xf32>)  : i32 {
      %c128_i32 = arith.constant 128 : i32
      %66 = arith.muli %arg12, %c128_i32 : i32
      %67 = tpu.assume_multiple %66, 128 : i32
      %c16_59 = arith.constant 16 : index
      %68 = arith.index_cast %67 : i32 to index
      %69 = vector.load %arg10[%c16_59, %68] : memref<192x256xbf16, #tpu.memory_space<vmem>>, vector<16x128xbf16>
      %c32_60 = arith.constant 32 : index
      %70 = arith.index_cast %67 : i32 to index
      %71 = vector.load %arg10[%c32_60, %70] : memref<192x256xbf16, #tpu.memory_space<vmem>>, vector<16x128xbf16>
      %cst_61 = arith.constant dense<0.000000e+00> : vector<128x256xf32>
      %72 = tpu.matmul %69, %32, %cst_61 {dimension_numbers = #tpu.dot_dimension_numbers<[0], [0], [1], [1], [0, 1, 1, 1], [], []>} : vector<16x128xbf16>, vector<16x256xbf16>, vector<128x256xf32> -> vector<128x256xf32>
      %cst_62 = arith.constant dense<0xFF800000> : vector<128xf32>
      %73 = vector.multi_reduction <maximumf>, %72, %cst_62 [1] : vector<128x256xf32> to vector<128xf32>
      %74 = vector.shape_cast %73 : vector<128xf32> to vector<128x1xf32>
      %75 = vector.broadcast %74 : vector<128x1xf32> to vector<128x256xf32>
      %76 = arith.subf %72, %75 : vector<128x256xf32>
      %77 = math.exp %76 : vector<128x256xf32>
      %cst_63 = arith.constant dense<0.000000e+00> : vector<128xf32>
      %78 = vector.multi_reduction <add>, %77, %cst_63 [1] : vector<128x256xf32> to vector<128xf32>
      %79 = vector.shape_cast %78 : vector<128xf32> to vector<128x1xf32>
      %80 = tpu.reciprocal %79 {approx = true} : vector<128x1xf32> -> vector<128x1xf32>
      %81 = vector.broadcast %80 : vector<128x1xf32> to vector<128x256xf32>
      %82 = arith.mulf %77, %81 : vector<128x256xf32>
      %83 = arith.truncf %82 : vector<128x256xf32> to vector<128x256xbf16>
      %cst_64 = arith.constant dense<0.000000e+00> : vector<16x256xf32>
      %84 = tpu.matmul %71, %83, %cst_64 {dimension_numbers = #tpu.dot_dimension_numbers<[1], [0], [0], [1], [0, 0, 1, 1], [], []>} : vector<16x128xbf16>, vector<128x256xbf16>, vector<16x256xf32> -> vector<16x256xf32>
      %85 = arith.addf %arg13, %84 : vector<16x256xf32>
      scf.yield %85 : vector<16x256xf32>
    }
    %c2_i32_24 = arith.constant 2 : i32
    %36 = arith.truncf %35 : vector<16x256xf32> to vector<16x256xbf16>
    %c0_25 = arith.constant 0 : index
    %c0_26 = arith.constant 0 : index
    %37 = vector.load %arg11[%c0_25, %c0_26] : memref<64x256xbf16, #tpu.memory_space<vmem>>, vector<16x256xbf16>
    tpu.vector_store %arg11[%c0_25, %c0_26], %36 {strides = array<i32>} : memref<64x256xbf16, #tpu.memory_space<vmem>>, vector<16x256xbf16>,
    %c48 = arith.constant 48 : index
    %c0_27 = arith.constant 0 : index
    %38 = vector.load %arg10[%c48, %c0_27] : memref<192x256xbf16, #tpu.memory_space<vmem>>, vector<16x256xbf16>
    %cst_28 = arith.constant 0.000000e+00 : f32
    %39 = vector.broadcast %cst_28 : f32 to vector<16x256xf32>
    %c0_i32_29 = arith.constant 0 : i32
    %c2_i32_30 = arith.constant 2 : i32
    %40 = arith.addi %c0_i32_29, %c2_i32_30 : i32
    %c1_i32_31 = arith.constant 1 : i32
    %41 = scf.for %arg12 = %c0_i32_29 to %40 step %c1_i32_31 iter_args(%arg13 = %39) -> (vector<16x256xf32>)  : i32 {
      %c128_i32 = arith.constant 128 : i32
      %66 = arith.muli %arg12, %c128_i32 : i32
      %67 = tpu.assume_multiple %66, 128 : i32
      %c64 = arith.constant 64 : index
      %68 = arith.index_cast %67 : i32 to index
      %69 = vector.load %arg10[%c64, %68] : memref<192x256xbf16, #tpu.memory_space<vmem>>, vector<16x128xbf16>
      %c80 = arith.constant 80 : index
      %70 = arith.index_cast %67 : i32 to index
      %71 = vector.load %arg10[%c80, %70] : memref<192x256xbf16, #tpu.memory_space<vmem>>, vector<16x128xbf16>
      %cst_59 = arith.constant dense<0.000000e+00> : vector<128x256xf32>
      %72 = tpu.matmul %69, %38, %cst_59 {dimension_numbers = #tpu.dot_dimension_numbers<[0], [0], [1], [1], [0, 1, 1, 1], [], []>} : vector<16x128xbf16>, vector<16x256xbf16>, vector<128x256xf32> -> vector<128x256xf32>
      %cst_60 = arith.constant dense<0xFF800000> : vector<128xf32>
      %73 = vector.multi_reduction <maximumf>, %72, %cst_60 [1] : vector<128x256xf32> to vector<128xf32>
      %74 = vector.shape_cast %73 : vector<128xf32> to vector<128x1xf32>
      %75 = vector.broadcast %74 : vector<128x1xf32> to vector<128x256xf32>
      %76 = arith.subf %72, %75 : vector<128x256xf32>
      %77 = math.exp %76 : vector<128x256xf32>
      %cst_61 = arith.constant dense<0.000000e+00> : vector<128xf32>
      %78 = vector.multi_reduction <add>, %77, %cst_61 [1] : vector<128x256xf32> to vector<128xf32>
      %79 = vector.shape_cast %78 : vector<128xf32> to vector<128x1xf32>
      %80 = tpu.reciprocal %79 {approx = true} : vector<128x1xf32> -> vector<128x1xf32>
      %81 = vector.broadcast %80 : vector<128x1xf32> to vector<128x256xf32>
      %82 = arith.mulf %77, %81 : vector<128x256xf32>
      %83 = arith.truncf %82 : vector<128x256xf32> to vector<128x256xbf16>
      %cst_62 = arith.constant dense<0.000000e+00> : vector<16x256xf32>
      %84 = tpu.matmul %71, %83, %cst_62 {dimension_numbers = #tpu.dot_dimension_numbers<[1], [0], [0], [1], [0, 0, 1, 1], [], []>} : vector<16x128xbf16>, vector<128x256xbf16>, vector<16x256xf32> -> vector<16x256xf32>
      %85 = arith.addf %arg13, %84 : vector<16x256xf32>
      scf.yield %85 : vector<16x256xf32>
    }
    %c2_i32_32 = arith.constant 2 : i32
    %42 = arith.truncf %41 : vector<16x256xf32> to vector<16x256xbf16>
    %c16 = arith.constant 16 : index
    %c0_33 = arith.constant 0 : index
    %43 = vector.load %arg11[%c16, %c0_33] : memref<64x256xbf16, #tpu.memory_space<vmem>>, vector<16x256xbf16>
    tpu.vector_store %arg11[%c16, %c0_33], %42 {strides = array<i32>} : memref<64x256xbf16, #tpu.memory_space<vmem>>, vector<16x256xbf16>,
    %c96 = arith.constant 96 : index
    %c0_34 = arith.constant 0 : index
    %44 = vector.load %arg10[%c96, %c0_34] : memref<192x256xbf16, #tpu.memory_space<vmem>>, vector<16x256xbf16>
    %cst_35 = arith.constant 0.000000e+00 : f32
    %45 = vector.broadcast %cst_35 : f32 to vector<16x256xf32>
    %c0_i32_36 = arith.constant 0 : i32
    %c2_i32_37 = arith.constant 2 : i32
    %46 = arith.addi %c0_i32_36, %c2_i32_37 : i32
    %c1_i32_38 = arith.constant 1 : i32
    %47 = scf.for %arg12 = %c0_i32_36 to %46 step %c1_i32_38 iter_args(%arg13 = %45) -> (vector<16x256xf32>)  : i32 {
      %c128_i32 = arith.constant 128 : i32
      %66 = arith.muli %arg12, %c128_i32 : i32
      %67 = tpu.assume_multiple %66, 128 : i32
      %c112 = arith.constant 112 : index
      %68 = arith.index_cast %67 : i32 to index
      %69 = vector.load %arg10[%c112, %68] : memref<192x256xbf16, #tpu.memory_space<vmem>>, vector<16x128xbf16>
      %c128 = arith.constant 128 : index
      %70 = arith.index_cast %67 : i32 to index
      %71 = vector.load %arg10[%c128, %70] : memref<192x256xbf16, #tpu.memory_space<vmem>>, vector<16x128xbf16>
      %cst_59 = arith.constant dense<0.000000e+00> : vector<128x256xf32>
      %72 = tpu.matmul %69, %44, %cst_59 {dimension_numbers = #tpu.dot_dimension_numbers<[0], [0], [1], [1], [0, 1, 1, 1], [], []>} : vector<16x128xbf16>, vector<16x256xbf16>, vector<128x256xf32> -> vector<128x256xf32>
      %cst_60 = arith.constant dense<0xFF800000> : vector<128xf32>
      %73 = vector.multi_reduction <maximumf>, %72, %cst_60 [1] : vector<128x256xf32> to vector<128xf32>
      %74 = vector.shape_cast %73 : vector<128xf32> to vector<128x1xf32>
      %75 = vector.broadcast %74 : vector<128x1xf32> to vector<128x256xf32>
      %76 = arith.subf %72, %75 : vector<128x256xf32>
      %77 = math.exp %76 : vector<128x256xf32>
      %cst_61 = arith.constant dense<0.000000e+00> : vector<128xf32>
      %78 = vector.multi_reduction <add>, %77, %cst_61 [1] : vector<128x256xf32> to vector<128xf32>
      %79 = vector.shape_cast %78 : vector<128xf32> to vector<128x1xf32>
      %80 = tpu.reciprocal %79 {approx = true} : vector<128x1xf32> -> vector<128x1xf32>
      %81 = vector.broadcast %80 : vector<128x1xf32> to vector<128x256xf32>
      %82 = arith.mulf %77, %81 : vector<128x256xf32>
      %83 = arith.truncf %82 : vector<128x256xf32> to vector<128x256xbf16>
      %cst_62 = arith.constant dense<0.000000e+00> : vector<16x256xf32>
      %84 = tpu.matmul %71, %83, %cst_62 {dimension_numbers = #tpu.dot_dimension_numbers<[1], [0], [0], [1], [0, 0, 1, 1], [], []>} : vector<16x128xbf16>, vector<128x256xbf16>, vector<16x256xf32> -> vector<16x256xf32>
      %85 = arith.addf %arg13, %84 : vector<16x256xf32>
      scf.yield %85 : vector<16x256xf32>
    }
    %c2_i32_39 = arith.constant 2 : i32
    %48 = arith.truncf %47 : vector<16x256xf32> to vector<16x256xbf16>
    %c32 = arith.constant 32 : index
    %c0_40 = arith.constant 0 : index
    %49 = vector.load %arg11[%c32, %c0_40] : memref<64x256xbf16, #tpu.memory_space<vmem>>, vector<16x256xbf16>
    tpu.vector_store %arg11[%c32, %c0_40], %48 {strides = array<i32>} : memref<64x256xbf16, #tpu.memory_space<vmem>>, vector<16x256xbf16>,
    %c144 = arith.constant 144 : index
    %c0_41 = arith.constant 0 : index
    %50 = vector.load %arg10[%c144, %c0_41] : memref<192x256xbf16, #tpu.memory_space<vmem>>, vector<16x256xbf16>
    %cst_42 = arith.constant 0.000000e+00 : f32
    %51 = vector.broadcast %cst_42 : f32 to vector<16x256xf32>
    %c0_i32_43 = arith.constant 0 : i32
    %c2_i32_44 = arith.constant 2 : i32
    %52 = arith.addi %c0_i32_43, %c2_i32_44 : i32
    %c1_i32_45 = arith.constant 1 : i32
    %53 = scf.for %arg12 = %c0_i32_43 to %52 step %c1_i32_45 iter_args(%arg13 = %51) -> (vector<16x256xf32>)  : i32 {
      %c128_i32 = arith.constant 128 : i32
      %66 = arith.muli %arg12, %c128_i32 : i32
      %67 = tpu.assume_multiple %66, 128 : i32
      %c160 = arith.constant 160 : index
      %68 = arith.index_cast %67 : i32 to index
      %69 = vector.load %arg10[%c160, %68] : memref<192x256xbf16, #tpu.memory_space<vmem>>, vector<16x128xbf16>
      %c176 = arith.constant 176 : index
      %70 = arith.index_cast %67 : i32 to index
      %71 = vector.load %arg10[%c176, %70] : memref<192x256xbf16, #tpu.memory_space<vmem>>, vector<16x128xbf16>
      %cst_59 = arith.constant dense<0.000000e+00> : vector<128x256xf32>
      %72 = tpu.matmul %69, %50, %cst_59 {dimension_numbers = #tpu.dot_dimension_numbers<[0], [0], [1], [1], [0, 1, 1, 1], [], []>} : vector<16x128xbf16>, vector<16x256xbf16>, vector<128x256xf32> -> vector<128x256xf32>
      %cst_60 = arith.constant dense<0xFF800000> : vector<128xf32>
      %73 = vector.multi_reduction <maximumf>, %72, %cst_60 [1] : vector<128x256xf32> to vector<128xf32>
      %74 = vector.shape_cast %73 : vector<128xf32> to vector<128x1xf32>
      %75 = vector.broadcast %74 : vector<128x1xf32> to vector<128x256xf32>
      %76 = arith.subf %72, %75 : vector<128x256xf32>
      %77 = math.exp %76 : vector<128x256xf32>
      %cst_61 = arith.constant dense<0.000000e+00> : vector<128xf32>
      %78 = vector.multi_reduction <add>, %77, %cst_61 [1] : vector<128x256xf32> to vector<128xf32>
      %79 = vector.shape_cast %78 : vector<128xf32> to vector<128x1xf32>
      %80 = tpu.reciprocal %79 {approx = true} : vector<128x1xf32> -> vector<128x1xf32>
      %81 = vector.broadcast %80 : vector<128x1xf32> to vector<128x256xf32>
      %82 = arith.mulf %77, %81 : vector<128x256xf32>
      %83 = arith.truncf %82 : vector<128x256xf32> to vector<128x256xbf16>
      %cst_62 = arith.constant dense<0.000000e+00> : vector<16x256xf32>
      %84 = tpu.matmul %71, %83, %cst_62 {dimension_numbers = #tpu.dot_dimension_numbers<[1], [0], [0], [1], [0, 0, 1, 1], [], []>} : vector<16x128xbf16>, vector<128x256xbf16>, vector<16x256xf32> -> vector<16x256xf32>
      %85 = arith.addf %arg13, %84 : vector<16x256xf32>
      scf.yield %85 : vector<16x256xf32>
    }
    %c2_i32_46 = arith.constant 2 : i32
    %54 = arith.truncf %53 : vector<16x256xf32> to vector<16x256xbf16>
    %c48_47 = arith.constant 48 : index
    %c0_48 = arith.constant 0 : index
    %55 = vector.load %arg11[%c48_47, %c0_48] : memref<64x256xbf16, #tpu.memory_space<vmem>>, vector<16x256xbf16>
    tpu.vector_store %arg11[%c48_47, %c0_48], %54 {strides = array<i32>} : memref<64x256xbf16, #tpu.memory_space<vmem>>, vector<16x256xbf16>,
    %c0_49 = arith.constant 0 : index
    %c0_50 = arith.constant 0 : index
    %56 = vector.load %arg7[%c0_49, %c0_50] : memref<64x64xbf16, #tpu.memory_space<vmem>>, vector<64x64xbf16>
    %c0_51 = arith.constant 0 : index
    %c0_52 = arith.constant 0 : index
    %57 = vector.load %arg11[%c0_51, %c0_52] : memref<64x256xbf16, #tpu.memory_space<vmem>>, vector<64x256xbf16>
    %cst_53 = arith.constant dense<0.000000e+00> : vector<64x256xf32>
    %58 = tpu.matmul %56, %57, %cst_53 {dimension_numbers = #tpu.dot_dimension_numbers<[1], [0], [0], [1], [0, 0, 1, 1], [], []>} : vector<64x64xbf16>, vector<64x256xbf16>, vector<64x256xf32> -> vector<64x256xf32>
    %59 = arith.addf %1, %58 : vector<64x256xf32>
    %c0_54 = arith.constant 0 : index
    %c0_55 = arith.constant 0 : index
    %60 = vector.load %arg8[%c0_54, %c0_55] : memref<64x1xf32, #tpu.memory_space<vmem>>, vector<64x1xf32>
    %61 = vector.broadcast %60 : vector<64x1xf32> to vector<64x256xf32>
    %62 = arith.addf %59, %61 : vector<64x256xf32>
    %c0_56 = arith.constant 0 : index
    %c0_57 = arith.constant 0 : index
    %c0_58 = arith.constant 0 : index
    %63 = vector.load %arg9[%c0_56, %c0_57, %c0_58] : memref<1x64x256xf32, #tpu.memory_space<vmem>>, vector<1x64x256xf32>
    %64 = vector.shape_cast %63 : vector<1x64x256xf32> to vector<64x256xf32>
    %65 = vector.shape_cast %62 : vector<64x256xf32> to vector<1x64x256xf32>
    tpu.vector_store %arg9[%c0_56, %c0_57, %c0_58], %65 {strides = array<i32>} : memref<1x64x256xf32, #tpu.memory_space<vmem>>, vector<1x64x256xf32>,
    return
  }
  func.func @transform_0(%arg0: i32) -> (i32, i32, i32) {
    %c0_i32 = arith.constant 0 : i32
    %c0_i32_0 = arith.constant 0 : i32
    %c0_i32_1 = arith.constant 0 : i32
    return %arg0, %c0_i32, %c0_i32_0 : i32, i32, i32
  }
  func.func @transform_1(%arg0: i32) -> (i32, i32) {
    %c0_i32 = arith.constant 0 : i32
    %c0_i32_0 = arith.constant 0 : i32
    %c0_i32_1 = arith.constant 0 : i32
    return %c0_i32, %c0_i32_0 : i32, i32
  }
  func.func @transform_2(%arg0: i32) -> (i32, i32) {
    %c0_i32 = arith.constant 0 : i32
    %c0_i32_0 = arith.constant 0 : i32
    %c0_i32_1 = arith.constant 0 : i32
    return %c0_i32, %c0_i32_0 : i32, i32
  }
  func.func @transform_3(%arg0: i32) -> (i32, i32) {
    %c0_i32 = arith.constant 0 : i32
    %c0_i32_0 = arith.constant 0 : i32
    %c0_i32_1 = arith.constant 0 : i32
    return %c0_i32, %c0_i32_0 : i32, i32
  }
  func.func @transform_4(%arg0: i32) -> (i32, i32) {
    %c0_i32 = arith.constant 0 : i32
    %c0_i32_0 = arith.constant 0 : i32
    %c0_i32_1 = arith.constant 0 : i32
    return %c0_i32, %c0_i32_0 : i32, i32
  }
  func.func @transform_5(%arg0: i32) -> (i32, i32) {
    %c0_i32 = arith.constant 0 : i32
    %c0_i32_0 = arith.constant 0 : i32
    %c0_i32_1 = arith.constant 0 : i32
    return %c0_i32, %c0_i32_0 : i32, i32
  }
  func.func @transform_6(%arg0: i32) -> (i32, i32) {
    %c0_i32 = arith.constant 0 : i32
    %c0_i32_0 = arith.constant 0 : i32
    %c0_i32_1 = arith.constant 0 : i32
    return %c0_i32, %c0_i32_0 : i32, i32
  }
  func.func @transform_7(%arg0: i32) -> (i32, i32) {
    %c0_i32 = arith.constant 0 : i32
    %c0_i32_0 = arith.constant 0 : i32
    %c0_i32_1 = arith.constant 0 : i32
    return %c0_i32, %c0_i32_0 : i32, i32
  }
  func.func @transform_8(%arg0: i32) -> (i32, i32, i32) {
    %c0_i32 = arith.constant 0 : i32
    %c0_i32_0 = arith.constant 0 : i32
    %c0_i32_1 = arith.constant 0 : i32
    return %arg0, %c0_i32, %c0_i32_0 : i32, i32, i32
  }
}

module attributes {stable_mosaic.version = 11 : i64} {
  func.func @attention_block_kernel(%arg0: i32, %arg1: memref<1x64x256xf32, #tpu.memory_space<vmem>>, %arg2: memref<64x1xf32, #tpu.memory_space<vmem>>, %arg3: memref<64x1xf32, #tpu.memory_space<vmem>>, %arg4: memref<64x64xf32, #tpu.memory_space<vmem>>, %arg5: memref<192x64xbf16, #tpu.memory_space<vmem>>, %arg6: memref<192x1xf32, #tpu.memory_space<vmem>>, %arg7: memref<64x64xbf16, #tpu.memory_space<vmem>>, %arg8: memref<64x1xf32, #tpu.memory_space<vmem>>, %arg9: memref<1x64x256xf32, #tpu.memory_space<vmem>>, %arg10: memref<192x256xbf16, #tpu.memory_space<vmem>>, %arg11: memref<64x256xbf16, #tpu.memory_space<vmem>>) attributes {dimension_semantics = [#tpu.dimension_semantics<parallel>], iteration_bounds = array<i64: 2>, scalar_prefetch = 0 : i64, scratch_operands = 2 : i64, tpu.core_type = #tpu.core_type<tc>, window_params = [{transform_indices = @transform_0, window_bounds = array<i64: 1, 64, 256>}, {pipeline_mode = #tpu.pipeline_mode<synchronous>, transform_indices = @transform_1, window_bounds = array<i64: 64, 1>}, {pipeline_mode = #tpu.pipeline_mode<synchronous>, transform_indices = @transform_2, window_bounds = array<i64: 64, 1>}, {pipeline_mode = #tpu.pipeline_mode<synchronous>, transform_indices = @transform_3, window_bounds = array<i64: 64, 64>}, {pipeline_mode = #tpu.pipeline_mode<synchronous>, transform_indices = @transform_4, window_bounds = array<i64: 192, 64>}, {pipeline_mode = #tpu.pipeline_mode<synchronous>, transform_indices = @transform_5, window_bounds = array<i64: 192, 1>}, {pipeline_mode = #tpu.pipeline_mode<synchronous>, transform_indices = @transform_6, window_bounds = array<i64: 64, 64>}, {pipeline_mode = #tpu.pipeline_mode<synchronous>, transform_indices = @transform_7, window_bounds = array<i64: 64, 1>}, {transform_indices = @transform_8, window_bounds = array<i64: 1, 64, 256>}]} {
    %c0 = arith.constant 0 : index
    %c0_0 = arith.constant 0 : index
    %c0_1 = arith.constant 0 : index
    %0 = vector.load %arg1[%c0, %c0_0, %c0_1] : memref<1x64x256xf32, #tpu.memory_space<vmem>>, vector<1x64x256xf32>
    %1 = vector.shape_cast %0 : vector<1x64x256xf32> to vector<64x256xf32>
    %cst = arith.constant dense<0.000000e+00> : vector<64xf32>
    %2 = vector.multi_reduction <add>, %1, %cst [1] : vector<64x256xf32> to vector<64xf32>
    %3 = vector.shape_cast %2 : vector<64xf32> to vector<64x1xf32>
    %c0_2 = arith.constant 0 : index
    %c0_3 = arith.constant 0 : index
    %4 = vector.load %arg4[%c0_2, %c0_3] : memref<64x64xf32, #tpu.memory_space<vmem>>, vector<64x64xf32>
    %cst_4 = arith.constant dense<0.000000e+00> : vector<64x1xf32>
    %5 = tpu.matmul %4, %3, %cst_4 {dimension_numbers = #tpu.dot_dimension_numbers<[1], [0], [0], [1], [0, 0, 1, 1], [], []>} : vector<64x64xf32>, vector<64x1xf32>, vector<64x1xf32> -> vector<64x1xf32>
    %6 = vector.broadcast %5 : vector<64x1xf32> to vector<64x256xf32>
    %7 = arith.subf %1, %6 : vector<64x256xf32>
    %8 = arith.mulf %7, %7 : vector<64x256xf32>
    %cst_5 = arith.constant dense<0.000000e+00> : vector<64xf32>
    %9 = vector.multi_reduction <add>, %8, %cst_5 [1] : vector<64x256xf32> to vector<64xf32>
    %10 = vector.shape_cast %9 : vector<64xf32> to vector<64x1xf32>
    %c0_6 = arith.constant 0 : index
    %c0_7 = arith.constant 0 : index
    %11 = vector.load %arg4[%c0_6, %c0_7] : memref<64x64xf32, #tpu.memory_space<vmem>>, vector<64x64xf32>
    %cst_8 = arith.constant dense<0.000000e+00> : vector<64x1xf32>
    %12 = tpu.matmul %11, %10, %cst_8 {dimension_numbers = #tpu.dot_dimension_numbers<[1], [0], [0], [1], [0, 0, 1, 1], [], []>} : vector<64x64xf32>, vector<64x1xf32>, vector<64x1xf32> -> vector<64x1xf32>
    %cst_9 = arith.constant 9.99999974E-6 : f32
    %13 = vector.broadcast %cst_9 : f32 to vector<64x1xf32>
    %14 = arith.addf %12, %13 : vector<64x1xf32>
    %15 = math.rsqrt %14 : vector<64x1xf32>
    %16 = vector.broadcast %15 : vector<64x1xf32> to vector<64x256xf32>
    %17 = arith.mulf %7, %16 : vector<64x256xf32>
    %c0_10 = arith.constant 0 : index
    %c0_11 = arith.constant 0 : index
    %18 = vector.load %arg2[%c0_10, %c0_11] : memref<64x1xf32, #tpu.memory_space<vmem>>, vector<64x1xf32>
    %19 = vector.broadcast %18 : vector<64x1xf32> to vector<64x256xf32>
    %20 = arith.mulf %17, %19 : vector<64x256xf32>
    %c0_12 = arith.constant 0 : index
    %c0_13 = arith.constant 0 : index
    %21 = vector.load %arg3[%c0_12, %c0_13] : memref<64x1xf32, #tpu.memory_space<vmem>>, vector<64x1xf32>
    %22 = vector.broadcast %21 : vector<64x1xf32> to vector<64x256xf32>
    %23 = arith.addf %20, %22 : vector<64x256xf32>
    %c0_14 = arith.constant 0 : index
    %c0_15 = arith.constant 0 : index
    %24 = vector.load %arg5[%c0_14, %c0_15] : memref<192x64xbf16, #tpu.memory_space<vmem>>, vector<192x64xbf16>
    %25 = arith.truncf %23 : vector<64x256xf32> to vector<64x256xbf16>
    %cst_16 = arith.constant dense<0.000000e+00> : vector<192x256xf32>
    %26 = tpu.matmul %24, %25, %cst_16 {dimension_numbers = #tpu.dot_dimension_numbers<[1], [0], [0], [1], [0, 0, 1, 1], [], []>} : vector<192x64xbf16>, vector<64x256xbf16>, vector<192x256xf32> -> vector<192x256xf32>
    %c0_17 = arith.constant 0 : index
    %c0_18 = arith.constant 0 : index
    %27 = vector.load %arg6[%c0_17, %c0_18] : memref<192x1xf32, #tpu.memory_space<vmem>>, vector<192x1xf32>
    %28 = vector.broadcast %27 : vector<192x1xf32> to vector<192x256xf32>
    %29 = arith.addf %26, %28 : vector<192x256xf32>
    %30 = arith.truncf %29 : vector<192x256xf32> to vector<192x256xbf16>
    %c0_19 = arith.constant 0 : index
    %c0_20 = arith.constant 0 : index
    %31 = vector.load %arg10[%c0_19, %c0_20] : memref<192x256xbf16, #tpu.memory_space<vmem>>, vector<192x256xbf16>
    tpu.vector_store %arg10[%c0_19, %c0_20], %30 {strides = array<i32>} : memref<192x256xbf16, #tpu.memory_space<vmem>>, vector<192x256xbf16>,
    %c0_21 = arith.constant 0 : index
    %c0_22 = arith.constant 0 : index
    %32 = vector.load %arg10[%c0_21, %c0_22] : memref<192x256xbf16, #tpu.memory_space<vmem>>, vector<16x256xbf16>
    %cst_23 = arith.constant 0.000000e+00 : f32
    %33 = vector.broadcast %cst_23 : f32 to vector<16x256xf32>
    %c0_i32 = arith.constant 0 : i32
    %c2_i32 = arith.constant 2 : i32
    %34 = arith.addi %c0_i32, %c2_i32 : i32
    %c1_i32 = arith.constant 1 : i32
    %35 = scf.for %arg12 = %c0_i32 to %34 step %c1_i32 iter_args(%arg13 = %33) -> (vector<16x256xf32>)  : i32 {
      %c128_i32 = arith.constant 128 : i32
      %66 = arith.muli %arg12, %c128_i32 : i32
      %67 = tpu.assume_multiple %66, 128 : i32
      %c16_59 = arith.constant 16 : index
      %68 = arith.index_cast %67 : i32 to index
      %69 = vector.load %arg10[%c16_59, %68] : memref<192x256xbf16, #tpu.memory_space<vmem>>, vector<16x128xbf16>
      %c32_60 = arith.constant 32 : index
      %70 = arith.index_cast %67 : i32 to index
      %71 = vector.load %arg10[%c32_60, %70] : memref<192x256xbf16, #tpu.memory_space<vmem>>, vector<16x128xbf16>
      %cst_61 = arith.constant dense<0.000000e+00> : vector<128x256xf32>
      %72 = tpu.matmul %69, %32, %cst_61 {dimension_numbers = #tpu.dot_dimension_numbers<[0], [0], [1], [1], [0, 1, 1, 1], [], []>} : vector<16x128xbf16>, vector<16x256xbf16>, vector<128x256xf32> -> vector<128x256xf32>
      %cst_62 = arith.constant dense<0xFF800000> : vector<128xf32>
      %73 = vector.multi_reduction <maximumf>, %72, %cst_62 [1] : vector<128x256xf32> to vector<128xf32>
      %74 = vector.shape_cast %73 : vector<128xf32> to vector<128x1xf32>
      %75 = vector.broadcast %74 : vector<128x1xf32> to vector<128x256xf32>
      %76 = arith.subf %72, %75 : vector<128x256xf32>
      %77 = math.exp %76 : vector<128x256xf32>
      %cst_63 = arith.constant dense<0.000000e+00> : vector<128xf32>
      %78 = vector.multi_reduction <add>, %77, %cst_63 [1] : vector<128x256xf32> to vector<128xf32>
      %79 = vector.shape_cast %78 : vector<128xf32> to vector<128x1xf32>
      %80 = tpu.reciprocal %79 {approx = true} : vector<128x1xf32> -> vector<128x1xf32>
      %81 = vector.broadcast %80 : vector<128x1xf32> to vector<128x256xf32>
      %82 = arith.mulf %77, %81 : vector<128x256xf32>
      %83 = arith.truncf %82 : vector<128x256xf32> to vector<128x256xbf16>
      %cst_64 = arith.constant dense<0.000000e+00> : vector<16x256xf32>
      %84 = tpu.matmul %71, %83, %cst_64 {dimension_numbers = #tpu.dot_dimension_numbers<[1], [0], [0], [1], [0, 0, 1, 1], [], []>} : vector<16x128xbf16>, vector<128x256xbf16>, vector<16x256xf32> -> vector<16x256xf32>
      %85 = arith.addf %arg13, %84 : vector<16x256xf32>
      scf.yield %85 : vector<16x256xf32>
    }
    %c2_i32_24 = arith.constant 2 : i32
    %36 = arith.truncf %35 : vector<16x256xf32> to vector<16x256xbf16>
    %c0_25 = arith.constant 0 : index
    %c0_26 = arith.constant 0 : index
    %37 = vector.load %arg11[%c0_25, %c0_26] : memref<64x256xbf16, #tpu.memory_space<vmem>>, vector<16x256xbf16>
    tpu.vector_store %arg11[%c0_25, %c0_26], %36 {strides = array<i32>} : memref<64x256xbf16, #tpu.memory_space<vmem>>, vector<16x256xbf16>,
    %c48 = arith.constant 48 : index
    %c0_27 = arith.constant 0 : index
    %38 = vector.load %arg10[%c48, %c0_27] : memref<192x256xbf16, #tpu.memory_space<vmem>>, vector<16x256xbf16>
    %cst_28 = arith.constant 0.000000e+00 : f32
    %39 = vector.broadcast %cst_28 : f32 to vector<16x256xf32>
    %c0_i32_29 = arith.constant 0 : i32
    %c2_i32_30 = arith.constant 2 : i32
    %40 = arith.addi %c0_i32_29, %c2_i32_30 : i32
    %c1_i32_31 = arith.constant 1 : i32
    %41 = scf.for %arg12 = %c0_i32_29 to %40 step %c1_i32_31 iter_args(%arg13 = %39) -> (vector<16x256xf32>)  : i32 {
      %c128_i32 = arith.constant 128 : i32
      %66 = arith.muli %arg12, %c128_i32 : i32
      %67 = tpu.assume_multiple %66, 128 : i32
      %c64 = arith.constant 64 : index
      %68 = arith.index_cast %67 : i32 to index
      %69 = vector.load %arg10[%c64, %68] : memref<192x256xbf16, #tpu.memory_space<vmem>>, vector<16x128xbf16>
      %c80 = arith.constant 80 : index
      %70 = arith.index_cast %67 : i32 to index
      %71 = vector.load %arg10[%c80, %70] : memref<192x256xbf16, #tpu.memory_space<vmem>>, vector<16x128xbf16>
      %cst_59 = arith.constant dense<0.000000e+00> : vector<128x256xf32>
      %72 = tpu.matmul %69, %38, %cst_59 {dimension_numbers = #tpu.dot_dimension_numbers<[0], [0], [1], [1], [0, 1, 1, 1], [], []>} : vector<16x128xbf16>, vector<16x256xbf16>, vector<128x256xf32> -> vector<128x256xf32>
      %cst_60 = arith.constant dense<0xFF800000> : vector<128xf32>
      %73 = vector.multi_reduction <maximumf>, %72, %cst_60 [1] : vector<128x256xf32> to vector<128xf32>
      %74 = vector.shape_cast %73 : vector<128xf32> to vector<128x1xf32>
      %75 = vector.broadcast %74 : vector<128x1xf32> to vector<128x256xf32>
      %76 = arith.subf %72, %75 : vector<128x256xf32>
      %77 = math.exp %76 : vector<128x256xf32>
      %cst_61 = arith.constant dense<0.000000e+00> : vector<128xf32>
      %78 = vector.multi_reduction <add>, %77, %cst_61 [1] : vector<128x256xf32> to vector<128xf32>
      %79 = vector.shape_cast %78 : vector<128xf32> to vector<128x1xf32>
      %80 = tpu.reciprocal %79 {approx = true} : vector<128x1xf32> -> vector<128x1xf32>
      %81 = vector.broadcast %80 : vector<128x1xf32> to vector<128x256xf32>
      %82 = arith.mulf %77, %81 : vector<128x256xf32>
      %83 = arith.truncf %82 : vector<128x256xf32> to vector<128x256xbf16>
      %cst_62 = arith.constant dense<0.000000e+00> : vector<16x256xf32>
      %84 = tpu.matmul %71, %83, %cst_62 {dimension_numbers = #tpu.dot_dimension_numbers<[1], [0], [0], [1], [0, 0, 1, 1], [], []>} : vector<16x128xbf16>, vector<128x256xbf16>, vector<16x256xf32> -> vector<16x256xf32>
      %85 = arith.addf %arg13, %84 : vector<16x256xf32>
      scf.yield %85 : vector<16x256xf32>
    }
    %c2_i32_32 = arith.constant 2 : i32
    %42 = arith.truncf %41 : vector<16x256xf32> to vector<16x256xbf16>
    %c16 = arith.constant 16 : index
    %c0_33 = arith.constant 0 : index
    %43 = vector.load %arg11[%c16, %c0_33] : memref<64x256xbf16, #tpu.memory_space<vmem>>, vector<16x256xbf16>
    tpu.vector_store %arg11[%c16, %c0_33], %42 {strides = array<i32>} : memref<64x256xbf16, #tpu.memory_space<vmem>>, vector<16x256xbf16>,
    %c96 = arith.constant 96 : index
    %c0_34 = arith.constant 0 : index
    %44 = vector.load %arg10[%c96, %c0_34] : memref<192x256xbf16, #tpu.memory_space<vmem>>, vector<16x256xbf16>
    %cst_35 = arith.constant 0.000000e+00 : f32
    %45 = vector.broadcast %cst_35 : f32 to vector<16x256xf32>
    %c0_i32_36 = arith.constant 0 : i32
    %c2_i32_37 = arith.constant 2 : i32
    %46 = arith.addi %c0_i32_36, %c2_i32_37 : i32
    %c1_i32_38 = arith.constant 1 : i32
    %47 = scf.for %arg12 = %c0_i32_36 to %46 step %c1_i32_38 iter_args(%arg13 = %45) -> (vector<16x256xf32>)  : i32 {
      %c128_i32 = arith.constant 128 : i32
      %66 = arith.muli %arg12, %c128_i32 : i32
      %67 = tpu.assume_multiple %66, 128 : i32
      %c112 = arith.constant 112 : index
      %68 = arith.index_cast %67 : i32 to index
      %69 = vector.load %arg10[%c112, %68] : memref<192x256xbf16, #tpu.memory_space<vmem>>, vector<16x128xbf16>
      %c128 = arith.constant 128 : index
      %70 = arith.index_cast %67 : i32 to index
      %71 = vector.load %arg10[%c128, %70] : memref<192x256xbf16, #tpu.memory_space<vmem>>, vector<16x128xbf16>
      %cst_59 = arith.constant dense<0.000000e+00> : vector<128x256xf32>
      %72 = tpu.matmul %69, %44, %cst_59 {dimension_numbers = #tpu.dot_dimension_numbers<[0], [0], [1], [1], [0, 1, 1, 1], [], []>} : vector<16x128xbf16>, vector<16x256xbf16>, vector<128x256xf32> -> vector<128x256xf32>
      %cst_60 = arith.constant dense<0xFF800000> : vector<128xf32>
      %73 = vector.multi_reduction <maximumf>, %72, %cst_60 [1] : vector<128x256xf32> to vector<128xf32>
      %74 = vector.shape_cast %73 : vector<128xf32> to vector<128x1xf32>
      %75 = vector.broadcast %74 : vector<128x1xf32> to vector<128x256xf32>
      %76 = arith.subf %72, %75 : vector<128x256xf32>
      %77 = math.exp %76 : vector<128x256xf32>
      %cst_61 = arith.constant dense<0.000000e+00> : vector<128xf32>
      %78 = vector.multi_reduction <add>, %77, %cst_61 [1] : vector<128x256xf32> to vector<128xf32>
      %79 = vector.shape_cast %78 : vector<128xf32> to vector<128x1xf32>
      %80 = tpu.reciprocal %79 {approx = true} : vector<128x1xf32> -> vector<128x1xf32>
      %81 = vector.broadcast %80 : vector<128x1xf32> to vector<128x256xf32>
      %82 = arith.mulf %77, %81 : vector<128x256xf32>
      %83 = arith.truncf %82 : vector<128x256xf32> to vector<128x256xbf16>
      %cst_62 = arith.constant dense<0.000000e+00> : vector<16x256xf32>
      %84 = tpu.matmul %71, %83, %cst_62 {dimension_numbers = #tpu.dot_dimension_numbers<[1], [0], [0], [1], [0, 0, 1, 1], [], []>} : vector<16x128xbf16>, vector<128x256xbf16>, vector<16x256xf32> -> vector<16x256xf32>
      %85 = arith.addf %arg13, %84 : vector<16x256xf32>
      scf.yield %85 : vector<16x256xf32>
    }
    %c2_i32_39 = arith.constant 2 : i32
    %48 = arith.truncf %47 : vector<16x256xf32> to vector<16x256xbf16>
    %c32 = arith.constant 32 : index
    %c0_40 = arith.constant 0 : index
    %49 = vector.load %arg11[%c32, %c0_40] : memref<64x256xbf16, #tpu.memory_space<vmem>>, vector<16x256xbf16>
    tpu.vector_store %arg11[%c32, %c0_40], %48 {strides = array<i32>} : memref<64x256xbf16, #tpu.memory_space<vmem>>, vector<16x256xbf16>,
    %c144 = arith.constant 144 : index
    %c0_41 = arith.constant 0 : index
    %50 = vector.load %arg10[%c144, %c0_41] : memref<192x256xbf16, #tpu.memory_space<vmem>>, vector<16x256xbf16>
    %cst_42 = arith.constant 0.000000e+00 : f32
    %51 = vector.broadcast %cst_42 : f32 to vector<16x256xf32>
    %c0_i32_43 = arith.constant 0 : i32
    %c2_i32_44 = arith.constant 2 : i32
    %52 = arith.addi %c0_i32_43, %c2_i32_44 : i32
    %c1_i32_45 = arith.constant 1 : i32
    %53 = scf.for %arg12 = %c0_i32_43 to %52 step %c1_i32_45 iter_args(%arg13 = %51) -> (vector<16x256xf32>)  : i32 {
      %c128_i32 = arith.constant 128 : i32
      %66 = arith.muli %arg12, %c128_i32 : i32
      %67 = tpu.assume_multiple %66, 128 : i32
      %c160 = arith.constant 160 : index
      %68 = arith.index_cast %67 : i32 to index
      %69 = vector.load %arg10[%c160, %68] : memref<192x256xbf16, #tpu.memory_space<vmem>>, vector<16x128xbf16>
      %c176 = arith.constant 176 : index
      %70 = arith.index_cast %67 : i32 to index
      %71 = vector.load %arg10[%c176, %70] : memref<192x256xbf16, #tpu.memory_space<vmem>>, vector<16x128xbf16>
      %cst_59 = arith.constant dense<0.000000e+00> : vector<128x256xf32>
      %72 = tpu.matmul %69, %50, %cst_59 {dimension_numbers = #tpu.dot_dimension_numbers<[0], [0], [1], [1], [0, 1, 1, 1], [], []>} : vector<16x128xbf16>, vector<16x256xbf16>, vector<128x256xf32> -> vector<128x256xf32>
      %cst_60 = arith.constant dense<0xFF800000> : vector<128xf32>
      %73 = vector.multi_reduction <maximumf>, %72, %cst_60 [1] : vector<128x256xf32> to vector<128xf32>
      %74 = vector.shape_cast %73 : vector<128xf32> to vector<128x1xf32>
      %75 = vector.broadcast %74 : vector<128x1xf32> to vector<128x256xf32>
      %76 = arith.subf %72, %75 : vector<128x256xf32>
      %77 = math.exp %76 : vector<128x256xf32>
      %cst_61 = arith.constant dense<0.000000e+00> : vector<128xf32>
      %78 = vector.multi_reduction <add>, %77, %cst_61 [1] : vector<128x256xf32> to vector<128xf32>
      %79 = vector.shape_cast %78 : vector<128xf32> to vector<128x1xf32>
      %80 = tpu.reciprocal %79 {approx = true} : vector<128x1xf32> -> vector<128x1xf32>
      %81 = vector.broadcast %80 : vector<128x1xf32> to vector<128x256xf32>
      %82 = arith.mulf %77, %81 : vector<128x256xf32>
      %83 = arith.truncf %82 : vector<128x256xf32> to vector<128x256xbf16>
      %cst_62 = arith.constant dense<0.000000e+00> : vector<16x256xf32>
      %84 = tpu.matmul %71, %83, %cst_62 {dimension_numbers = #tpu.dot_dimension_numbers<[1], [0], [0], [1], [0, 0, 1, 1], [], []>} : vector<16x128xbf16>, vector<128x256xbf16>, vector<16x256xf32> -> vector<16x256xf32>
      %85 = arith.addf %arg13, %84 : vector<16x256xf32>
      scf.yield %85 : vector<16x256xf32>
    }
    %c2_i32_46 = arith.constant 2 : i32
    %54 = arith.truncf %53 : vector<16x256xf32> to vector<16x256xbf16>
    %c48_47 = arith.constant 48 : index
    %c0_48 = arith.constant 0 : index
    %55 = vector.load %arg11[%c48_47, %c0_48] : memref<64x256xbf16, #tpu.memory_space<vmem>>, vector<16x256xbf16>
    tpu.vector_store %arg11[%c48_47, %c0_48], %54 {strides = array<i32>} : memref<64x256xbf16, #tpu.memory_space<vmem>>, vector<16x256xbf16>,
    %c0_49 = arith.constant 0 : index
    %c0_50 = arith.constant 0 : index
    %56 = vector.load %arg7[%c0_49, %c0_50] : memref<64x64xbf16, #tpu.memory_space<vmem>>, vector<64x64xbf16>
    %c0_51 = arith.constant 0 : index
    %c0_52 = arith.constant 0 : index
    %57 = vector.load %arg11[%c0_51, %c0_52] : memref<64x256xbf16, #tpu.memory_space<vmem>>, vector<64x256xbf16>
    %cst_53 = arith.constant dense<0.000000e+00> : vector<64x256xf32>
    %58 = tpu.matmul %56, %57, %cst_53 {dimension_numbers = #tpu.dot_dimension_numbers<[1], [0], [0], [1], [0, 0, 1, 1], [], []>} : vector<64x64xbf16>, vector<64x256xbf16>, vector<64x256xf32> -> vector<64x256xf32>
    %59 = arith.addf %1, %58 : vector<64x256xf32>
    %c0_54 = arith.constant 0 : index
    %c0_55 = arith.constant 0 : index
    %60 = vector.load %arg8[%c0_54, %c0_55] : memref<64x1xf32, #tpu.memory_space<vmem>>, vector<64x1xf32>
    %61 = vector.broadcast %60 : vector<64x1xf32> to vector<64x256xf32>
    %62 = arith.addf %59, %61 : vector<64x256xf32>
    %c0_56 = arith.constant 0 : index
    %c0_57 = arith.constant 0 : index
    %c0_58 = arith.constant 0 : index
    %63 = vector.load %arg9[%c0_56, %c0_57, %c0_58] : memref<1x64x256xf32, #tpu.memory_space<vmem>>, vector<1x64x256xf32>
    %64 = vector.shape_cast %63 : vector<1x64x256xf32> to vector<64x256xf32>
    %65 = vector.shape_cast %62 : vector<64x256xf32> to vector<1x64x256xf32>
    tpu.vector_store %arg9[%c0_56, %c0_57, %c0_58], %65 {strides = array<i32>} : memref<1x64x256xf32, #tpu.memory_space<vmem>>, vector<1x64x256xf32>,
    return
  }
  func.func @transform_0(%arg0: i32) -> (i32, i32, i32) {
    %c0_i32 = arith.constant 0 : i32
    %c0_i32_0 = arith.constant 0 : i32
    %c0_i32_1 = arith.constant 0 : i32
    return %arg0, %c0_i32, %c0_i32_0 : i32, i32, i32
  }
  func.func @transform_1(%arg0: i32) -> (i32, i32) {
    %c0_i32 = arith.constant 0 : i32
    %c0_i32_0 = arith.constant 0 : i32
    %c0_i32_1 = arith.constant 0 : i32
    return %c0_i32, %c0_i32_0 : i32, i32
  }
  func.func @transform_2(%arg0: i32) -> (i32, i32) {
    %c0_i32 = arith.constant 0 : i32
    %c0_i32_0 = arith.constant 0 : i32
    %c0_i32_1 = arith.constant 0 : i32
    return %c0_i32, %c0_i32_0 : i32, i32
  }
  func.func @transform_3(%arg0: i32) -> (i32, i32) {
    %c0_i32 = arith.constant 0 : i32
    %c0_i32_0 = arith.constant 0 : i32
    %c0_i32_1 = arith.constant 0 : i32
    return %c0_i32, %c0_i32_0 : i32, i32
  }
  func.func @transform_4(%arg0: i32) -> (i32, i32) {
    %c0_i32 = arith.constant 0 : i32
    %c0_i32_0 = arith.constant 0 : i32
    %c0_i32_1 = arith.constant 0 : i32
    return %c0_i32, %c0_i32_0 : i32, i32
  }
  func.func @transform_5(%arg0: i32) -> (i32, i32) {
    %c0_i32 = arith.constant 0 : i32
    %c0_i32_0 = arith.constant 0 : i32
    %c0_i32_1 = arith.constant 0 : i32
    return %c0_i32, %c0_i32_0 : i32, i32
  }
  func.func @transform_6(%arg0: i32) -> (i32, i32) {
    %c0_i32 = arith.constant 0 : i32
    %c0_i32_0 = arith.constant 0 : i32
    %c0_i32_1 = arith.constant 0 : i32
    return %c0_i32, %c0_i32_0 : i32, i32
  }
  func.func @transform_7(%arg0: i32) -> (i32, i32) {
    %c0_i32 = arith.constant 0 : i32
    %c0_i32_0 = arith.constant 0 : i32
    %c0_i32_1 = arith.constant 0 : i32
    return %c0_i32, %c0_i32_0 : i32, i32
  }
  func.func @transform_8(%arg0: i32) -> (i32, i32, i32) {
    %c0_i32 = arith.constant 0 : i32
    %c0_i32_0 = arith.constant 0 : i32
    %c0_i32_1 = arith.constant 0 : i32
    return %arg0, %c0_i32, %c0_i32_0 : i32, i32, i32
  }
}

</mosaic_0001>

<llo_original>
// kernel: tpu_custom_call.1
$region0: #{tpu_custom_call.1}
  #allocation0 [shape = 'u32[]', space=smem, size = 0x4, offset = 0x4, fixed_abs, tag = 'smem constant byte address 0x4 - core index']
  #allocation1 [shape = 'u32[72,128]{1,0:T(1,128)}', space=vmem, size = 0x9000, scoped, tag = 'internal scratch']
  #allocation2 [shape = 'bf16[192,256]{1,0:T(8,128)(2,1)}', space=vmem, size = 0x18000, scoped, tag = 'scratch operand']
  #allocation3 [shape = 'bf16[64,256]{1,0:T(8,128)(2,1)}', space=vmem, size = 0x8000, scoped, tag = 'scratch operand']
  %s0 = inlined_call_operand.vmem [shape: f32[2,64,256], index: 0, kind: input, shape index: {}]
  %s1 = inlined_call_operand.vmem [shape: f32[64,1], index: 1, kind: input, shape index: {}]
  %s2 = inlined_call_operand.vmem [shape: f32[64,1], index: 2, kind: input, shape index: {}]
  %s3 = inlined_call_operand.vmem [shape: f32[64,64], index: 3, kind: input, shape index: {}]
  %s4 = inlined_call_operand.vmem [shape: bf16[192,64], index: 4, kind: input, shape index: {}]
  %s5 = inlined_call_operand.vmem [shape: f32[192,1], index: 5, kind: input, shape index: {}]
  %s6 = inlined_call_operand.vmem [shape: bf16[64,64], index: 6, kind: input, shape index: {}]
  %s7 = inlined_call_operand.vmem [shape: f32[64,1], index: 7, kind: input, shape index: {}]
  %s8 = inlined_call_operand.hbm [shape: f32[2,64,256], index: 8, kind: output, shape index: {}]
  %s9 = sld [smem:[#allocation0]]
  $region93: #{tpu_custom_call.1} parent=0
    _
  %s11 = ssub.s32 1, %s9
  %s12 = scalar_select 0, %s11, %s9
  $region1: #{tpu_custom_call.1} parent=0
    #allocation4 [shape = 'u8[131072]{0}', space=vmem, size = 0x20000, scoped, tag = 'output window, operand 0']
    #allocation5 [shape = 's32[2]{0}', space=sflag, size = 0x8, scoped, tag = 'scoped memory for tpu_custom_call.1']
    %13 = vsyncpa [#allocation5], 0
    %s14 = scalar_lea.sflag [#allocation5], 1
    %15 = vsyncpa %s14, 0
    loop: start=0, step=1, limit=4
    $region2: #{tpu_custom_call.1} parent=1 // loop_pre_header
      _
    $region3: #{tpu_custom_call.1} parent=1 // loop_header
      %s17 = sphi 0, %s21
      %p18 = scmp.ge.s32.totalorder %s17, 4
      %s27 = sphi 0, %s29
      %s30 = sphi 0, %s27
      %s31 = sphi 0, %s30
      %s47 = sphi 0, %s31
      %s51 = sphi 0, %s51
      %s53 = sphi 0, %s51
      %s54 = sphi 0, %s53
      %s68 = sphi 0, %s54
      %s72 = sphi 0, %s72
      %s74 = sphi 0, %s72
      %s75 = sphi 0, %s74
      %s89 = sphi 0, %s75
      %s93 = sphi 0, %s93
      %s95 = sphi 0, %s93
      %s96 = sphi 0, %s95
      %s110 = sphi 0, %s96
      %s114 = sphi 0, %s114
      %s116 = sphi 0, %s114
      %s117 = sphi 0, %s116
      %s131 = sphi 0, %s117
      %s135 = sphi 0, %s135
      %s137 = sphi 0, %s135
      %s138 = sphi 0, %s137
      %s152 = sphi 0, %s138
      %s156 = sphi 0, %s156
      %s158 = sphi 0, %s156
      %s159 = sphi 0, %s158
      %s173 = sphi 0, %s159
      %s177 = sphi 0, %s177
      %s179 = sphi 0, %s177
      %s180 = sphi 0, %s179
      %s194 = sphi 0, %s180
      %s200 = sphi 0, %s202
      %s203 = sphi 0, %s200
      %s204 = sphi 0, %s203
      %s220 = sphi 0, %s204
    $region4: #{tpu_custom_call.1} parent=1 // loop_header_branch
      %20 = sbr.rel (%p18) target = $region8
    $region5: #{tpu_custom_call.1} parent=1 // loop_body
      %s22 = ssub.s32 %s17, 1
      %s23 = ssub.s32 %s17, 2
      %s24 = sadd.s32 %s17, 1
      %s25 = ssub.s32 %s17, %s24
      %p26 = scmp.eq.s32.totalorder %s25, 0
      %s28 = sadd.s32 %s27, 1
      %s29 = scalar_select %p26, %s27, %s28
      %p32 = pneg %p26
      %p33 = scmp.eq.s32.totalorder %s17, 1
      %p34 = por %p32, %p33
      %p35 = scmp.ne.s32.totalorder %s27, %s30
      %p36 = scmp.eq.s32.totalorder %s17, 0
      %p37 = por %p35, %p36
      %p38 = scmp.ne.s32.totalorder %s27, %s30
      %p39 = scmp.eq.s32.totalorder %s22, 1
      %p40 = por %p38, %p39
      %p41 = scmp.ne.s32.totalorder %s30, %s31
      %p42 = scmp.eq.s32.totalorder %s22, 0
      %p43 = por %p41, %p42
      %p44 = scmp.ne.s32.totalorder %s30, %s31
      %p45 = scmp.eq.s32.totalorder %s23, 1
      %p46 = por %p44, %p45
      %p48 = scmp.ne.s32.totalorder %s31, %s47
      %p49 = scmp.eq.s32.totalorder %s23, 0
      %p50 = por %p48, %p49
      %s52 = sadd.s32 %s51, 1
      %p55 = scmp.eq.s32.totalorder %s17, 1
      %p56 = scmp.ne.s32.totalorder %s51, %s53
      %p57 = scmp.eq.s32.totalorder %s17, 0
      %p58 = por %p56, %p57
      %p59 = scmp.ne.s32.totalorder %s51, %s53
      %p60 = scmp.eq.s32.totalorder %s22, 1
      %p61 = por %p59, %p60
      %p62 = scmp.ne.s32.totalorder %s53, %s54
      %p63 = scmp.eq.s32.totalorder %s22, 0
      %p64 = por %p62, %p63
      %p65 = scmp.ne.s32.totalorder %s53, %s54
      %p66 = scmp.eq.s32.totalorder %s23, 1
      %p67 = por %p65, %p66
      %p69 = scmp.ne.s32.totalorder %s54, %s68
      %p70 = scmp.eq.s32.totalorder %s23, 0
      %p71 = por %p69, %p70
      %s73 = sadd.s32 %s72, 1
      %p76 = scmp.eq.s32.totalorder %s17, 1
      %p77 = scmp.ne.s32.totalorder %s72, %s74
      %p78 = scmp.eq.s32.totalorder %s17, 0
      %p79 = por %p77, %p78
      %p80 = scmp.ne.s32.totalorder %s72, %s74
      %p81 = scmp.eq.s32.totalorder %s22, 1
      %p82 = por %p80, %p81
      %p83 = scmp.ne.s32.totalorder %s74, %s75
      %p84 = scmp.eq.s32.totalorder %s22, 0
      %p85 = por %p83, %p84
      %p86 = scmp.ne.s32.totalorder %s74, %s75
      %p87 = scmp.eq.s32.totalorder %s23, 1
      %p88 = por %p86, %p87
      %p90 = scmp.ne.s32.totalorder %s75, %s89
      %p91 = scmp.eq.s32.totalorder %s23, 0
      %p92 = por %p90, %p91
      %s94 = sadd.s32 %s93, 1
      %p97 = scmp.eq.s32.totalorder %s17, 1
      %p98 = scmp.ne.s32.totalorder %s93, %s95
      %p99 = scmp.eq.s32.totalorder %s17, 0
      %p100 = por %p98, %p99
      %p101 = scmp.ne.s32.totalorder %s93, %s95
      %p102 = scmp.eq.s32.totalorder %s22, 1
      %p103 = por %p101, %p102
      %p104 = scmp.ne.s32.totalorder %s95, %s96
      %p105 = scmp.eq.s32.totalorder %s22, 0
      %p106 = por %p104, %p105
      %p107 = scmp.ne.s32.totalorder %s95, %s96
      %p108 = scmp.eq.s32.totalorder %s23, 1
      %p109 = por %p107, %p108
      %p111 = scmp.ne.s32.totalorder %s96, %s110
      %p112 = scmp.eq.s32.totalorder %s23, 0
      %p113 = por %p111, %p112
      %s115 = sadd.s32 %s114, 1
      %p118 = scmp.eq.s32.totalorder %s17, 1
      %p119 = scmp.ne.s32.totalorder %s114, %s116
      %p120 = scmp.eq.s32.totalorder %s17, 0
      %p121 = por %p119, %p120
      %p122 = scmp.ne.s32.totalorder %s114, %s116
      %p123 = scmp.eq.s32.totalorder %s22, 1
      %p124 = por %p122, %p123
      %p125 = scmp.ne.s32.totalorder %s116, %s117
      %p126 = scmp.eq.s32.totalorder %s22, 0
      %p127 = por %p125, %p126
      %p128 = scmp.ne.s32.totalorder %s116, %s117
      %p129 = scmp.eq.s32.totalorder %s23, 1
      %p130 = por %p128, %p129
      %p132 = scmp.ne.s32.totalorder %s117, %s131
      %p133 = scmp.eq.s32.totalorder %s23, 0
      %p134 = por %p132, %p133
      %s136 = sadd.s32 %s135, 1
      %p139 = scmp.eq.s32.totalorder %s17, 1
      %p140 = scmp.ne.s32.totalorder %s135, %s137
      %p141 = scmp.eq.s32.totalorder %s17, 0
      %p142 = por %p140, %p141
      %p143 = scmp.ne.s32.totalorder %s135, %s137
      %p144 = scmp.eq.s32.totalorder %s22, 1
      %p145 = por %p143, %p144
      %p146 = scmp.ne.s32.totalorder %s137, %s138
      %p147 = scmp.eq.s32.totalorder %s22, 0
      %p148 = por %p146, %p147
      %p149 = scmp.ne.s32.totalorder %s137, %s138
      %p150 = scmp.eq.s32.totalorder %s23, 1
      %p151 = por %p149, %p150
      %p153 = scmp.ne.s32.totalorder %s138, %s152
      %p154 = scmp.eq.s32.totalorder %s23, 0
      %p155 = por %p153, %p154
      %s157 = sadd.s32 %s156, 1
      %p160 = scmp.eq.s32.totalorder %s17, 1
      %p161 = scmp.ne.s32.totalorder %s156, %s158
      %p162 = scmp.eq.s32.totalorder %s17, 0
      %p163 = por %p161, %p162
      %p164 = scmp.ne.s32.totalorder %s156, %s158
      %p165 = scmp.eq.s32.totalorder %s22, 1
      %p166 = por %p164, %p165
      %p167 = scmp.ne.s32.totalorder %s158, %s159
      %p168 = scmp.eq.s32.totalorder %s22, 0
      %p169 = por %p167, %p168
      %p170 = scmp.ne.s32.totalorder %s158, %s159
      %p171 = scmp.eq.s32.totalorder %s23, 1
      %p172 = por %p170, %p171
      %p174 = scmp.ne.s32.totalorder %s159, %s173
      %p175 = scmp.eq.s32.totalorder %s23, 0
      %p176 = por %p174, %p175
      %s178 = sadd.s32 %s177, 1
      %p181 = scmp.eq.s32.totalorder %s17, 1
      %p182 = scmp.ne.s32.totalorder %s177, %s179
      %p183 = scmp.eq.s32.totalorder %s17, 0
      %p184 = por %p182, %p183
      %p185 = scmp.ne.s32.totalorder %s177, %s179
      %p186 = scmp.eq.s32.totalorder %s22, 1
      %p187 = por %p185, %p186
      %p188 = scmp.ne.s32.totalorder %s179, %s180
      %p189 = scmp.eq.s32.totalorder %s22, 0
      %p190 = por %p188, %p189
      %p191 = scmp.ne.s32.totalorder %s179, %s180
      %p192 = scmp.eq.s32.totalorder %s23, 1
      %p193 = por %p191, %p192
      %p195 = scmp.ne.s32.totalorder %s180, %s194
      %p196 = scmp.eq.s32.totalorder %s23, 0
      %p197 = por %p195, %p196
      %s198 = ssub.s32 %s17, %s24
      %p199 = scmp.eq.s32.totalorder %s198, 0
      %s201 = sadd.s32 %s200, 1
      %s202 = scalar_select %p199, %s200, %s201
      %p205 = pneg %p199
      %p206 = scmp.eq.s32.totalorder %s17, 1
      %p207 = por %p205, %p206
      %p208 = scmp.ne.s32.totalorder %s200, %s203
      %p209 = scmp.eq.s32.totalorder %s17, 0
      %p210 = por %p208, %p209
      %p211 = scmp.ne.s32.totalorder %s200, %s203
      %p212 = scmp.eq.s32.totalorder %s22, 1
      %p213 = por %p211, %p212
      %p214 = scmp.ne.s32.totalorder %s203, %s204
      %p215 = scmp.eq.s32.totalorder %s22, 0
      %p216 = por %p214, %p215
      %p217 = scmp.ne.s32.totalorder %s203, %s204
      %p218 = scmp.eq.s32.totalorder %s23, 1
      %p219 = por %p217, %p218
      %p221 = scmp.ne.s32.totalorder %s204, %s220
      %p222 = scmp.eq.s32.totalorder %s23, 0
      %p223 = por %p221, %p222
      %p224 = scmp.le.s32.totalorder 1, %s17
      %p225 = scmp.lt.s32.totalorder %s17, 3
      %p226 = pnand %p224, %p225
      %p227 = pneg %p226
      // Predicated region
      $region9: #{tpu_custom_call.1} parent=5 // pred_check
        _
      $region10: #{tpu_custom_call.1} parent=5 // pred_check_branch
        %229 = sbr.rel (%p226) target = $region12
      $region11: #{tpu_custom_call.1} parent=5 // pred_region
        %s230 = ssub.s32 %s17, 1
        // Predicated region
        $region13: #{tpu_custom_call.1} parent=11 // pred_check
          %p231 = pneg %p64
        $region14: #{tpu_custom_call.1} parent=11 // pred_check_branch
          %233 = sbr.rel (%p231) target = $region16
        $region15: #{tpu_custom_call.1} parent=11 // pred_region
          _
        $region16: #{tpu_custom_call.1} parent=11 // pred_fallthru
          _
        // Predicated region
        $region17: #{tpu_custom_call.1} parent=11 // pred_check
          %p234 = pneg %p85
        $region18: #{tpu_custom_call.1} parent=11 // pred_check_branch
          %236 = sbr.rel (%p234) target = $region20
        $region19: #{tpu_custom_call.1} parent=11 // pred_region
          _
        $region20: #{tpu_custom_call.1} parent=11 // pred_fallthru
          _
        // Predicated region
        $region21: #{tpu_custom_call.1} parent=11 // pred_check
          %p237 = pneg %p106
        $region22: #{tpu_custom_call.1} parent=11 // pred_check_branch
          %239 = sbr.rel (%p237) target = $region24
        $region23: #{tpu_custom_call.1} parent=11 // pred_region
          _
        $region24: #{tpu_custom_call.1} parent=11 // pred_fallthru
          _
        // Predicated region
        $region25: #{tpu_custom_call.1} parent=11 // pred_check
          %p240 = pneg %p127
        $region26: #{tpu_custom_call.1} parent=11 // pred_check_branch
          %242 = sbr.rel (%p240) target = $region28
        $region27: #{tpu_custom_call.1} parent=11 // pred_region
          _
        $region28: #{tpu_custom_call.1} parent=11 // pred_fallthru
          _
        // Predicated region
        $region29: #{tpu_custom_call.1} parent=11 // pred_check
          %p243 = pneg %p148
        $region30: #{tpu_custom_call.1} parent=11 // pred_check_branch
          %245 = sbr.rel (%p243) target = $region32
        $region31: #{tpu_custom_call.1} parent=11 // pred_region
          _
        $region32: #{tpu_custom_call.1} parent=11 // pred_fallthru
          _
        // Predicated region
        $region33: #{tpu_custom_call.1} parent=11 // pred_check
          %p246 = pneg %p169
        $region34: #{tpu_custom_call.1} parent=11 // pred_check_branch
          %248 = sbr.rel (%p246) target = $region36
        $region35: #{tpu_custom_call.1} parent=11 // pred_region
          _
        $region36: #{tpu_custom_call.1} parent=11 // pred_fallthru
          _
        // Predicated region
        $region37: #{tpu_custom_call.1} parent=11 // pred_check
          %p249 = pneg %p190
        $region38: #{tpu_custom_call.1} parent=11 // pred_check_branch
          %251 = sbr.rel (%p249) target = $region40
        $region39: #{tpu_custom_call.1} parent=11 // pred_region
          _
        $region40: #{tpu_custom_call.1} parent=11 // pred_fallthru
          _
      $region12: #{tpu_custom_call.1} parent=5 // pred_fallthru
        _
      %p252 = scmp.lt.s32.totalorder %s17, 2
      // Predicated region
      $region41: #{tpu_custom_call.1} parent=5 // pred_check
        %p253 = pneg %p252
      $region42: #{tpu_custom_call.1} parent=5 // pred_check_branch
        %255 = sbr.rel (%p253) target = $region44
      $region43: #{tpu_custom_call.1} parent=5 // pred_region
        // Predicated region
        $region45: #{tpu_custom_call.1} parent=43 // pred_check
          %p256 = pneg %p37
        $region46: #{tpu_custom_call.1} parent=43 // pred_check_branch
          %258 = sbr.rel (%p256) target = $region48
        $region47: #{tpu_custom_call.1} parent=43 // pred_region
          %p259 = scmp.lt.s32.totalorder %s17, 1
          %s260 = scalar_select %p259, %s17, 1
          %s261 = smul.addr %s260, 16
          %s262 = smul.addr %s261, 8
          %s263 = scalar_lea.vmem %s0, %s262
        $region48: #{tpu_custom_call.1} parent=43 // pred_fallthru
          _
      $region44: #{tpu_custom_call.1} parent=5 // pred_fallthru
        _
      %p264 = scmp.le.s32.totalorder 1, %s17
      %p265 = scmp.lt.s32.totalorder %s17, 3
      %p266 = pnand %p264, %p265
      %p267 = pneg %p266
      // Predicated region
      $region49: #{tpu_custom_call.1} parent=5 // pred_check
        _
      $region50: #{tpu_custom_call.1} parent=5 // pred_check_branch
        %269 = sbr.rel (%p266) target = $region52
      $region51: #{tpu_custom_call.1} parent=5 // pred_region
        %s270 = ssub.s32 %s17, 1
        %p271 = scmp.lt.s32.totalorder %s22, 1
        %s272 = scalar_select %p271, %s22, 1
        %s273 = smul.addr %s272, 16
        %s274 = smul.addr %s273, 8
        %s275 = scalar_lea.vmem %s0, %s274
        %p276 = pneg %p43
        %p277 = pneg %p40
        %p278 = pneg %p64
        %p279 = pneg %p61
        %p280 = pneg %p85
        %p281 = pneg %p82
        %p282 = pneg %p106
        %p283 = pneg %p103
        %p284 = pneg %p127
        %p285 = pneg %p124
        %p286 = pneg %p148
        %p287 = pneg %p145
        %p288 = pneg %p169
        %p289 = pneg %p166
        %p290 = pneg %p190
        %p291 = pneg %p187
        %p292 = pneg %p216
        %p293 = pneg %p213
        %s294 = sand.u32 %s203, 1
        %s295 = scalar_lea.sflag [#allocation5], %s294
        %s296 = sand.u32 %s203, 1
        %s297 = smul.addr %s296, 128
        %s298 = scalar_lea.vmem [#allocation4], %s297
        %p299 = scmp.lt.s32.totalorder %s22, 1
        %s300 = scalar_select %p299, %s22, 1
        %s301 = smul.addr %s300, 16
        %s302 = smul.addr %s301, 8
        %s303 = scalar_lea.vmem %s0, %s302
        %v305 = vld [vmem:[%s303] sm:$0xff]
        %v306 = vld [vmem:[%s303 + $0x8] sm:$0xff]
        %v307 = vld [vmem:[%s303 + $0x10] sm:$0xff]
        %v308 = vld [vmem:[%s303 + $0x18] sm:$0xff]
        %v309 = vld [vmem:[%s303 + $0x20] sm:$0xff]
        %v310 = vld [vmem:[%s303 + $0x28] sm:$0xff]
        %v311 = vld [vmem:[%s303 + $0x30] sm:$0xff]
        %v312 = vld [vmem:[%s303 + $0x38] sm:$0xff]
        %v313 = vld [vmem:[%s303 + $0x40] sm:$0xff]
        %v314 = vld [vmem:[%s303 + $0x48] sm:$0xff]
        %v315 = vld [vmem:[%s303 + $0x50] sm:$0xff]
        %v316 = vld [vmem:[%s303 + $0x58] sm:$0xff]
        %v317 = vld [vmem:[%s303 + $0x60] sm:$0xff]
        %v318 = vld [vmem:[%s303 + $0x68] sm:$0xff]
        %v319 = vld [vmem:[%s303 + $0x70] sm:$0xff]
        %v320 = vld [vmem:[%s303 + $0x78] sm:$0xff]
        %v321 = vadd.f32 %v305, %v306
        %322 = vadd.xlane.f32.xlu0 %v321
        %v323 = vpop.xlane.xlu0 %322
        %v324 = vadd.f32 %v307, %v308
        %325 = vadd.xlane.f32.xlu0 %v324
        %v326 = vpop.xlane.xlu0 %325
        %v327 = vadd.f32 %v309, %v310
        %328 = vadd.xlane.f32.xlu0 %v327
        %v329 = vpop.xlane.xlu0 %328
        %v330 = vadd.f32 %v311, %v312
        %331 = vadd.xlane.f32.xlu0 %v330
        %v332 = vpop.xlane.xlu0 %331
        %v333 = vadd.f32 %v313, %v314
        %334 = vadd.xlane.f32.xlu0 %v333
        %v335 = vpop.xlane.xlu0 %334
        %v336 = vadd.f32 %v315, %v316
        %337 = vadd.xlane.f32.xlu0 %v336
        %v338 = vpop.xlane.xlu0 %337
        %v339 = vadd.f32 %v317, %v318
        %340 = vadd.xlane.f32.xlu0 %v339
        %v341 = vpop.xlane.xlu0 %340
        %v342 = vadd.f32 %v319, %v320
        %343 = vadd.xlane.f32.xlu0 %v342
        %v344 = vpop.xlane.xlu0 %343
        %v345 = vld [vmem:[%s3] sm:$0xff]
        %v346 = vld [vmem:[%s3 + $0x8] sm:$0xff]
        %v347 = vld [vmem:[%s3 + $0x10] sm:$0xff]
        %v348 = vld [vmem:[%s3 + $0x18] sm:$0xff]
        %v349 = vld [vmem:[%s3 + $0x20] sm:$0xff]
        %v350 = vld [vmem:[%s3 + $0x28] sm:$0xff]
        %v351 = vld [vmem:[%s3 + $0x30] sm:$0xff]
        %v352 = vld [vmem:[%s3 + $0x38] sm:$0xff]
        %vm353 = vcmask 523264
        %v355 = vsel %vm353, %v345, 0
        %v358 = vsel %vm353, %v346, 0
        %v361 = vsel %vm353, %v347, 0
        %v364 = vsel %vm353, %v348, 0
        %v367 = vsel %vm353, %v349, 0
        %v370 = vsel %vm353, %v350, 0
        %v373 = vsel %vm353, %v351, 0
        %v376 = vsel %vm353, %v352, 0
        %378 = vmatpush.msra.mxu0 0.0
        %379 = vmatpush.msra.mxu0 0.0
        %380 = vmatpush.msra.mxu0 0.0
        %381 = vmatpush.msra.mxu0 0.0
        %382 = vmatpush.msra.mxu0 0.0
        %383 = vmatpush.msra.mxu0 0.0
        %384 = vmatpush.msra.mxu0 0.0
        %385 = vmatpush.msra.mxu0 0.0
        %386 = vmatpush.msra.mxu0 %v344
        %387 = vmatpush.msra.mxu0 %v341
        %388 = vmatpush.msra.mxu0 %v338
        %389 = vmatpush.msra.mxu0 %v335
        %390 = vmatpush.msra.mxu0 %v332
        %391 = vmatpush.msra.mxu0 %v329
        %392 = vmatpush.msra.mxu0 %v326
        %393 = vmatpush.msra.mxu0 %v323
        %394 = vmatmul.f32.gmra.mxu0 %v355
        %v395 = vpop.f32.mrf.mxu0
        %v396 = vadd.f32 0.0, %v395
        %397 = vmatmul.f32.gmra.mxu0 %v358
        %v398 = vpop.f32.mrf.mxu0
        %v399 = vadd.f32 0.0, %v398
        %400 = vmatmul.f32.gmra.mxu0 %v361
        %v401 = vpop.f32.mrf.mxu0
        %v402 = vadd.f32 0.0, %v401
        %403 = vmatmul.f32.gmra.mxu0 %v364
        %v404 = vpop.f32.mrf.mxu0
        %v405 = vadd.f32 0.0, %v404
        %406 = vmatmul.f32.gmra.mxu0 %v367
        %v407 = vpop.f32.mrf.mxu0
        %v408 = vadd.f32 0.0, %v407
        %409 = vmatmul.f32.gmra.mxu0 %v370
        %v410 = vpop.f32.mrf.mxu0
        %v411 = vadd.f32 0.0, %v410
        %412 = vmatmul.f32.gmra.mxu0 %v373
        %v413 = vpop.f32.mrf.mxu0
        %v414 = vadd.f32 0.0, %v413
        %415 = vmatmul.f32.gmra.mxu0 %v376
        %v416 = vpop.f32.mrf.mxu0
        %v417 = vadd.f32 0.0, %v416
        %418 = vdwg.mxu0
        %420 = vset.pattern.permute.xlu0 0
        %421 = vperm.xlu0 %420, %v396
        %v422 = vpop.permute.xlu0 %421
        %425 = vset.pattern.permute.xlu0 0
        %426 = vperm.xlu0 %425, %v399
        %v427 = vpop.permute.xlu0 %426
        %430 = vset.pattern.permute.xlu0 0
        %431 = vperm.xlu0 %430, %v402
        %v432 = vpop.permute.xlu0 %431
        %435 = vset.pattern.permute.xlu0 0
        %436 = vperm.xlu0 %435, %v405
        %v437 = vpop.permute.xlu0 %436
        %440 = vset.pattern.permute.xlu0 0
        %441 = vperm.xlu0 %440, %v408
        %v442 = vpop.permute.xlu0 %441
        %445 = vset.pattern.permute.xlu0 0
        %446 = vperm.xlu0 %445, %v411
        %v447 = vpop.permute.xlu0 %446
        %450 = vset.pattern.permute.xlu0 0
        %451 = vperm.xlu0 %450, %v414
        %v452 = vpop.permute.xlu0 %451
        %455 = vset.pattern.permute.xlu0 0
        %456 = vperm.xlu0 %455, %v417
        %v457 = vpop.permute.xlu0 %456
        %v459 = vsub.f32 %v305, %v422
        %v460 = vsub.f32 %v306, %v422
        %v461 = vsub.f32 %v307, %v427
        %v462 = vsub.f32 %v308, %v427
        %v463 = vsub.f32 %v309, %v432
        %v464 = vsub.f32 %v310, %v432
        %v465 = vsub.f32 %v311, %v437
        %v466 = vsub.f32 %v312, %v437
        %v467 = vsub.f32 %v313, %v442
        %v468 = vsub.f32 %v314, %v442
        %v469 = vsub.f32 %v315, %v447
        %v470 = vsub.f32 %v316, %v447
        %v471 = vsub.f32 %v317, %v452
        %v472 = vsub.f32 %v318, %v452
        %v473 = vsub.f32 %v319, %v457
        %v474 = vsub.f32 %v320, %v457
        %v475 = vmul.f32 %v459, %v459
        %v476 = vmul.f32 %v460, %v460
        %v477 = vmul.f32 %v461, %v461
        %v478 = vmul.f32 %v462, %v462
        %v479 = vmul.f32 %v463, %v463
        %v480 = vmul.f32 %v464, %v464
        %v481 = vmul.f32 %v465, %v465
        %v482 = vmul.f32 %v466, %v466
        %v483 = vmul.f32 %v467, %v467
        %v484 = vmul.f32 %v468, %v468
        %v485 = vmul.f32 %v469, %v469
        %v486 = vmul.f32 %v470, %v470
        %v487 = vmul.f32 %v471, %v471
        %v488 = vmul.f32 %v472, %v472
        %v489 = vmul.f32 %v473, %v473
        %v490 = vmul.f32 %v474, %v474
        %v491 = vadd.f32 %v475, %v476
        %492 = vadd.xlane.f32.xlu0 %v491
        %v493 = vpop.xlane.xlu0 %492
        %v494 = vadd.f32 %v477, %v478
        %495 = vadd.xlane.f32.xlu0 %v494
        %v496 = vpop.xlane.xlu0 %495
        %v497 = vadd.f32 %v479, %v480
        %498 = vadd.xlane.f32.xlu0 %v497
        %v499 = vpop.xlane.xlu0 %498
        %v500 = vadd.f32 %v481, %v482
        %501 = vadd.xlane.f32.xlu0 %v500
        %v502 = vpop.xlane.xlu0 %501
        %v503 = vadd.f32 %v483, %v484
        %504 = vadd.xlane.f32.xlu0 %v503
        %v505 = vpop.xlane.xlu0 %504
        %v506 = vadd.f32 %v485, %v486
        %507 = vadd.xlane.f32.xlu0 %v506
        %v508 = vpop.xlane.xlu0 %507
        %v509 = vadd.f32 %v487, %v488
        %510 = vadd.xlane.f32.xlu0 %v509
        %v511 = vpop.xlane.xlu0 %510
        %v512 = vadd.f32 %v489, %v490
        %513 = vadd.xlane.f32.xlu0 %v512
        %v514 = vpop.xlane.xlu0 %513
        %515 = vmatpush.msra.mxu0 0.0
        %516 = vmatpush.msra.mxu0 0.0
        %517 = vmatpush.msra.mxu0 0.0
        %518 = vmatpush.msra.mxu0 0.0
        %519 = vmatpush.msra.mxu0 0.0
        %520 = vmatpush.msra.mxu0 0.0
        %521 = vmatpush.msra.mxu0 0.0
        %522 = vmatpush.msra.mxu0 0.0
        %523 = vmatpush.msra.mxu0 %v514
        %524 = vmatpush.msra.mxu0 %v511
        %525 = vmatpush.msra.mxu0 %v508
        %526 = vmatpush.msra.mxu0 %v505
        %527 = vmatpush.msra.mxu0 %v502
        %528 = vmatpush.msra.mxu0 %v499
        %529 = vmatpush.msra.mxu0 %v496
        %530 = vmatpush.msra.mxu0 %v493
        %531 = vmatmul.f32.gmra.mxu0 %v355
        %v532 = vpop.f32.mrf.mxu0
        %v533 = vadd.f32 1e-05, %v532
        %534 = vmatmul.f32.gmra.mxu0 %v358
        %v535 = vpop.f32.mrf.mxu0
        %v536 = vadd.f32 1e-05, %v535
        %537 = vmatmul.f32.gmra.mxu0 %v361
        %v538 = vpop.f32.mrf.mxu0
        %v539 = vadd.f32 1e-05, %v538
        %540 = vmatmul.f32.gmra.mxu0 %v364
        %v541 = vpop.f32.mrf.mxu0
        %v542 = vadd.f32 1e-05, %v541
        %543 = vmatmul.f32.gmra.mxu0 %v367
        %v544 = vpop.f32.mrf.mxu0
        %v545 = vadd.f32 1e-05, %v544
        %546 = vmatmul.f32.gmra.mxu0 %v370
        %v547 = vpop.f32.mrf.mxu0
        %v548 = vadd.f32 1e-05, %v547
        %549 = vmatmul.f32.gmra.mxu0 %v373
        %v550 = vpop.f32.mrf.mxu0
        %v551 = vadd.f32 1e-05, %v550
        %552 = vmatmul.f32.gmra.mxu0 %v376
        %v553 = vpop.f32.mrf.mxu0
        %v554 = vadd.f32 1e-05, %v553
        %555 = vdwg.mxu0
        %v556 = vrsqrt.pop %v533
        %v557 = vmul.f32 %v556, %v533
        %v558 = vmul.f32 %v557, %v556
        %v559 = vmul.f32 0.5, %v558
        %v560 = vsub.f32 1.5, %v559
        %v561 = vmul.f32 %v556, %v560
        %vm562 = vweird.f32 %v533
        %vm563 = vweird.f32 %v556
        %vm564 = vmor %vm562, %vm563
        %v565 = vsel %vm564, %v556, %v561
        %v566 = vrsqrt.pop %v536
        %v567 = vmul.f32 %v566, %v536
        %v568 = vmul.f32 %v567, %v566
        %v569 = vmul.f32 0.5, %v568
        %v570 = vsub.f32 1.5, %v569
        %v571 = vmul.f32 %v566, %v570
        %vm572 = vweird.f32 %v536
        %vm573 = vweird.f32 %v566
        %vm574 = vmor %vm572, %vm573
        %v575 = vsel %vm574, %v566, %v571
        %v576 = vrsqrt.pop %v539
        %v577 = vmul.f32 %v576, %v539
        %v578 = vmul.f32 %v577, %v576
        %v579 = vmul.f32 0.5, %v578
        %v580 = vsub.f32 1.5, %v579
        %v581 = vmul.f32 %v576, %v580
        %vm582 = vweird.f32 %v539
        %vm583 = vweird.f32 %v576
        %vm584 = vmor %vm582, %vm583
        %v585 = vsel %vm584, %v576, %v581
        %v586 = vrsqrt.pop %v542
        %v587 = vmul.f32 %v586, %v542
        %v588 = vmul.f32 %v587, %v586
        %v589 = vmul.f32 0.5, %v588
        %v590 = vsub.f32 1.5, %v589
        %v591 = vmul.f32 %v586, %v590
        %vm592 = vweird.f32 %v542
        %vm593 = vweird.f32 %v586
        %vm594 = vmor %vm592, %vm593
        %v595 = vsel %vm594, %v586, %v591
        %v596 = vrsqrt.pop %v545
        %v597 = vmul.f32 %v596, %v545
        %v598 = vmul.f32 %v597, %v596
        %v599 = vmul.f32 0.5, %v598
        %v600 = vsub.f32 1.5, %v599
        %v601 = vmul.f32 %v596, %v600
        %vm602 = vweird.f32 %v545
        %vm603 = vweird.f32 %v596
        %vm604 = vmor %vm602, %vm603
        %v605 = vsel %vm604, %v596, %v601
        %v606 = vrsqrt.pop %v548
        %v607 = vmul.f32 %v606, %v548
        %v608 = vmul.f32 %v607, %v606
        %v609 = vmul.f32 0.5, %v608
        %v610 = vsub.f32 1.5, %v609
        %v611 = vmul.f32 %v606, %v610
        %vm612 = vweird.f32 %v548
        %vm613 = vweird.f32 %v606
        %vm614 = vmor %vm612, %vm613
        %v615 = vsel %vm614, %v606, %v611
        %v616 = vrsqrt.pop %v551
        %v617 = vmul.f32 %v616, %v551
        %v618 = vmul.f32 %v617, %v616
        %v619 = vmul.f32 0.5, %v618
        %v620 = vsub.f32 1.5, %v619
        %v621 = vmul.f32 %v616, %v620
        %vm622 = vweird.f32 %v551
        %vm623 = vweird.f32 %v616
        %vm624 = vmor %vm622, %vm623
        %v625 = vsel %vm624, %v616, %v621
        %v626 = vrsqrt.pop %v554
        %v627 = vmul.f32 %v626, %v554
        %v628 = vmul.f32 %v627, %v626
        %v629 = vmul.f32 0.5, %v628
        %v630 = vsub.f32 1.5, %v629
        %v631 = vmul.f32 %v626, %v630
        %vm632 = vweird.f32 %v554
        %vm633 = vweird.f32 %v626
        %vm634 = vmor %vm632, %vm633
        %v635 = vsel %vm634, %v626, %v631
        %637 = vset.pattern.permute.xlu0 0
        %638 = vperm.xlu0 %637, %v565
        %v639 = vpop.permute.xlu0 %638
        %642 = vset.pattern.permute.xlu0 0
        %643 = vperm.xlu0 %642, %v575
        %v644 = vpop.permute.xlu0 %643
        %647 = vset.pattern.permute.xlu0 0
        %648 = vperm.xlu0 %647, %v585
        %v649 = vpop.permute.xlu0 %648
        %652 = vset.pattern.permute.xlu0 0
        %653 = vperm.xlu0 %652, %v595
        %v654 = vpop.permute.xlu0 %653
        %657 = vset.pattern.permute.xlu0 0
        %658 = vperm.xlu0 %657, %v605
        %v659 = vpop.permute.xlu0 %658
        %662 = vset.pattern.permute.xlu0 0
        %663 = vperm.xlu0 %662, %v615
        %v664 = vpop.permute.xlu0 %663
        %667 = vset.pattern.permute.xlu0 0
        %668 = vperm.xlu0 %667, %v625
        %v669 = vpop.permute.xlu0 %668
        %672 = vset.pattern.permute.xlu0 0
        %673 = vperm.xlu0 %672, %v635
        %v674 = vpop.permute.xlu0 %673
        %v676 = vmul.f32 %v459, %v639
        %v677 = vmul.f32 %v460, %v639
        %v678 = vmul.f32 %v461, %v644
        %v679 = vmul.f32 %v462, %v644
        %v680 = vmul.f32 %v463, %v649
        %v681 = vmul.f32 %v464, %v649
        %v682 = vmul.f32 %v465, %v654
        %v683 = vmul.f32 %v466, %v654
        %v684 = vmul.f32 %v467, %v659
        %v685 = vmul.f32 %v468, %v659
        %v686 = vmul.f32 %v469, %v664
        %v687 = vmul.f32 %v470, %v664
        %v688 = vmul.f32 %v471, %v669
        %v689 = vmul.f32 %v472, %v669
        %v690 = vmul.f32 %v473, %v674
        %v691 = vmul.f32 %v474, %v674
        %v692 = vld [vmem:[%s1] sm:$0xff]
        %v693 = vld [vmem:[%s1 + $0x8] sm:$0xff]
        %v694 = vld [vmem:[%s1 + $0x10] sm:$0xff]
        %v695 = vld [vmem:[%s1 + $0x18] sm:$0xff]
        %v696 = vld [vmem:[%s1 + $0x20] sm:$0xff]
        %v697 = vld [vmem:[%s1 + $0x28] sm:$0xff]
        %v698 = vld [vmem:[%s1 + $0x30] sm:$0xff]
        %v699 = vld [vmem:[%s1 + $0x38] sm:$0xff]
        %701 = vset.pattern.permute.xlu0 0
        %702 = vperm.xlu0 %701, %v692
        %v703 = vpop.permute.xlu0 %702
        %706 = vset.pattern.permute.xlu0 0
        %707 = vperm.xlu0 %706, %v693
        %v708 = vpop.permute.xlu0 %707
        %711 = vset.pattern.permute.xlu0 0
        %712 = vperm.xlu0 %711, %v694
        %v713 = vpop.permute.xlu0 %712
        %716 = vset.pattern.permute.xlu0 0
        %717 = vperm.xlu0 %716, %v695
        %v718 = vpop.permute.xlu0 %717
        %721 = vset.pattern.permute.xlu0 0
        %722 = vperm.xlu0 %721, %v696
        %v723 = vpop.permute.xlu0 %722
        %726 = vset.pattern.permute.xlu0 0
        %727 = vperm.xlu0 %726, %v697
        %v728 = vpop.permute.xlu0 %727
        %731 = vset.pattern.permute.xlu0 0
        %732 = vperm.xlu0 %731, %v698
        %v733 = vpop.permute.xlu0 %732
        %736 = vset.pattern.permute.xlu0 0
        %737 = vperm.xlu0 %736, %v699
        %v738 = vpop.permute.xlu0 %737
        %v740 = vmul.f32 %v676, %v703
        %v741 = vmul.f32 %v677, %v703
        %v742 = vmul.f32 %v678, %v708
        %v743 = vmul.f32 %v679, %v708
        %v744 = vmul.f32 %v680, %v713
        %v745 = vmul.f32 %v681, %v713
        %v746 = vmul.f32 %v682, %v718
        %v747 = vmul.f32 %v683, %v718
        %v748 = vmul.f32 %v684, %v723
        %v749 = vmul.f32 %v685, %v723
        %v750 = vmul.f32 %v686, %v728
        %v751 = vmul.f32 %v687, %v728
        %v752 = vmul.f32 %v688, %v733
        %v753 = vmul.f32 %v689, %v733
        %v754 = vmul.f32 %v690, %v738
        %v755 = vmul.f32 %v691, %v738
        %v756 = vld [vmem:[%s2] sm:$0xff]
        %v757 = vld [vmem:[%s2 + $0x8] sm:$0xff]
        %v758 = vld [vmem:[%s2 + $0x10] sm:$0xff]
        %v759 = vld [vmem:[%s2 + $0x18] sm:$0xff]
        %v760 = vld [vmem:[%s2 + $0x20] sm:$0xff]
        %v761 = vld [vmem:[%s2 + $0x28] sm:$0xff]
        %v762 = vld [vmem:[%s2 + $0x30] sm:$0xff]
        %v763 = vld [vmem:[%s2 + $0x38] sm:$0xff]
        %765 = vset.pattern.permute.xlu0 0
        %766 = vperm.xlu0 %765, %v756
        %v767 = vpop.permute.xlu0 %766
        %770 = vset.pattern.permute.xlu0 0
        %771 = vperm.xlu0 %770, %v757
        %v772 = vpop.permute.xlu0 %771
        %775 = vset.pattern.permute.xlu0 0
        %776 = vperm.xlu0 %775, %v758
        %v777 = vpop.permute.xlu0 %776
        %780 = vset.pattern.permute.xlu0 0
        %781 = vperm.xlu0 %780, %v759
        %v782 = vpop.permute.xlu0 %781
        %785 = vset.pattern.permute.xlu0 0
        %786 = vperm.xlu0 %785, %v760
        %v787 = vpop.permute.xlu0 %786
        %790 = vset.pattern.permute.xlu0 0
        %791 = vperm.xlu0 %790, %v761
        %v792 = vpop.permute.xlu0 %791
        %795 = vset.pattern.permute.xlu0 0
        %796 = vperm.xlu0 %795, %v762
        %v797 = vpop.permute.xlu0 %796
        %800 = vset.pattern.permute.xlu0 0
        %801 = vperm.xlu0 %800, %v763
        %v802 = vpop.permute.xlu0 %801
        %v804 = vadd.f32 %v740, %v767
        %v805 = vadd.f32 %v741, %v767
        %v806 = vadd.f32 %v742, %v772
        %v807 = vadd.f32 %v743, %v772
        %v808 = vadd.f32 %v744, %v777
        %v809 = vadd.f32 %v745, %v777
        %v810 = vadd.f32 %v746, %v782
        %v811 = vadd.f32 %v747, %v782
        %v812 = vadd.f32 %v748, %v787
        %v813 = vadd.f32 %v749, %v787
        %v814 = vadd.f32 %v750, %v792
        %v815 = vadd.f32 %v751, %v792
        %v816 = vadd.f32 %v752, %v797
        %v817 = vadd.f32 %v753, %v797
        %v818 = vadd.f32 %v754, %v802
        %v819 = vadd.f32 %v755, %v802
        %v820 = vld [vmem:[%s4] sm:$0xf]
        %v821 = vld [vmem:[%s4 + $0x4] sm:$0xf]
        %v822 = vld [vmem:[%s4 + $0x8] sm:$0xf]
        %v823 = vld [vmem:[%s4 + $0xc] sm:$0xf]
        %v824 = vld [vmem:[%s4 + $0x10] sm:$0xf]
        %v825 = vld [vmem:[%s4 + $0x14] sm:$0xf]
        %v826 = vld [vmem:[%s4 + $0x18] sm:$0xf]
        %v827 = vld [vmem:[%s4 + $0x1c] sm:$0xf]
        %v828 = vld [vmem:[%s4 + $0x20] sm:$0xf]
        %v829 = vld [vmem:[%s4 + $0x24] sm:$0xf]
        %v830 = vld [vmem:[%s4 + $0x28] sm:$0xf]
        %v831 = vld [vmem:[%s4 + $0x2c] sm:$0xf]
        %v832 = vld [vmem:[%s4 + $0x30] sm:$0xf]
        %v833 = vld [vmem:[%s4 + $0x34] sm:$0xf]
        %v834 = vld [vmem:[%s4 + $0x38] sm:$0xf]
        %v835 = vld [vmem:[%s4 + $0x3c] sm:$0xf]
        %v836 = vld [vmem:[%s4 + $0x40] sm:$0xf]
        %v837 = vld [vmem:[%s4 + $0x44] sm:$0xf]
        %v838 = vld [vmem:[%s4 + $0x48] sm:$0xf]
        %v839 = vld [vmem:[%s4 + $0x4c] sm:$0xf]
        %v840 = vld [vmem:[%s4 + $0x50] sm:$0xf]
        %v841 = vld [vmem:[%s4 + $0x54] sm:$0xf]
        %v842 = vld [vmem:[%s4 + $0x58] sm:$0xf]
        %v843 = vld [vmem:[%s4 + $0x5c] sm:$0xf]
        %v844 = vpack.c.bf16 %v806, %v804
        %v845 = vpack.c.bf16 %v807, %v805
        %v846 = vpack.c.bf16 %v810, %v808
        %v847 = vpack.c.bf16 %v811, %v809
        %v848 = vpack.c.bf16 %v814, %v812
        %v849 = vpack.c.bf16 %v815, %v813
        %v850 = vpack.c.bf16 %v818, %v816
        %v851 = vpack.c.bf16 %v819, %v817
        %v852 = vld [vmem:[%s5] sm:$0xff]
        %v853 = vld [vmem:[%s5 + $0x8] sm:$0xff]
        %v854 = vld [vmem:[%s5 + $0x10] sm:$0xff]
        %v855 = vld [vmem:[%s5 + $0x18] sm:$0xff]
        %v856 = vld [vmem:[%s5 + $0x20] sm:$0xff]
        %v857 = vld [vmem:[%s5 + $0x28] sm:$0xff]
        %v858 = vld [vmem:[%s5 + $0x30] sm:$0xff]
        %v859 = vld [vmem:[%s5 + $0x38] sm:$0xff]
        %v860 = vld [vmem:[%s5 + $0x40] sm:$0xff]
        %v861 = vld [vmem:[%s5 + $0x48] sm:$0xff]
        %v862 = vld [vmem:[%s5 + $0x50] sm:$0xff]
        %v863 = vld [vmem:[%s5 + $0x58] sm:$0xff]
        %v864 = vld [vmem:[%s5 + $0x60] sm:$0xff]
        %v865 = vld [vmem:[%s5 + $0x68] sm:$0xff]
        %v866 = vld [vmem:[%s5 + $0x70] sm:$0xff]
        %v867 = vld [vmem:[%s5 + $0x78] sm:$0xff]
        %v868 = vld [vmem:[%s5 + $0x80] sm:$0xff]
        %v869 = vld [vmem:[%s5 + $0x88] sm:$0xff]
        %v870 = vld [vmem:[%s5 + $0x90] sm:$0xff]
        %v871 = vld [vmem:[%s5 + $0x98] sm:$0xff]
        %v872 = vld [vmem:[%s5 + $0xa0] sm:$0xff]
        %v873 = vld [vmem:[%s5 + $0xa8] sm:$0xff]
        %v874 = vld [vmem:[%s5 + $0xb0] sm:$0xff]
        %v875 = vld [vmem:[%s5 + $0xb8] sm:$0xff]
        %877 = vset.pattern.permute.xlu0 0
        %878 = vperm.xlu0 %877, %v852
        %v879 = vpop.permute.xlu0 %878
        %882 = vset.pattern.permute.xlu0 0
        %883 = vperm.xlu0 %882, %v853
        %v884 = vpop.permute.xlu0 %883
        %887 = vset.pattern.permute.xlu0 0
        %888 = vperm.xlu0 %887, %v854
        %v889 = vpop.permute.xlu0 %888
        %892 = vset.pattern.permute.xlu0 0
        %893 = vperm.xlu0 %892, %v855
        %v894 = vpop.permute.xlu0 %893
        %897 = vset.pattern.permute.xlu0 0
        %898 = vperm.xlu0 %897, %v856
        %v899 = vpop.permute.xlu0 %898
        %902 = vset.pattern.permute.xlu0 0
        %903 = vperm.xlu0 %902, %v857
        %v904 = vpop.permute.xlu0 %903
        %907 = vset.pattern.permute.xlu0 0
        %908 = vperm.xlu0 %907, %v858
        %v909 = vpop.permute.xlu0 %908
        %912 = vset.pattern.permute.xlu0 0
        %913 = vperm.xlu0 %912, %v859
        %v914 = vpop.permute.xlu0 %913
        %917 = vset.pattern.permute.xlu0 0
        %918 = vperm.xlu0 %917, %v860
        %v919 = vpop.permute.xlu0 %918
        %922 = vset.pattern.permute.xlu0 0
        %923 = vperm.xlu0 %922, %v861
        %v924 = vpop.permute.xlu0 %923
        %927 = vset.pattern.permute.xlu0 0
        %928 = vperm.xlu0 %927, %v862
        %v929 = vpop.permute.xlu0 %928
        %932 = vset.pattern.permute.xlu0 0
        %933 = vperm.xlu0 %932, %v863
        %v934 = vpop.permute.xlu0 %933
        %937 = vset.pattern.permute.xlu0 0
        %938 = vperm.xlu0 %937, %v864
        %v939 = vpop.permute.xlu0 %938
        %942 = vset.pattern.permute.xlu0 0
        %943 = vperm.xlu0 %942, %v865
        %v944 = vpop.permute.xlu0 %943
        %947 = vset.pattern.permute.xlu0 0
        %948 = vperm.xlu0 %947, %v866
        %v949 = vpop.permute.xlu0 %948
        %952 = vset.pattern.permute.xlu0 0
        %953 = vperm.xlu0 %952, %v867
        %v954 = vpop.permute.xlu0 %953
        %957 = vset.pattern.permute.xlu0 0
        %958 = vperm.xlu0 %957, %v868
        %v959 = vpop.permute.xlu0 %958
        %962 = vset.pattern.permute.xlu0 0
        %963 = vperm.xlu0 %962, %v869
        %v964 = vpop.permute.xlu0 %963
        %967 = vset.pattern.permute.xlu0 0
        %968 = vperm.xlu0 %967, %v870
        %v969 = vpop.permute.xlu0 %968
        %972 = vset.pattern.permute.xlu0 0
        %973 = vperm.xlu0 %972, %v871
        %v974 = vpop.permute.xlu0 %973
        %977 = vset.pattern.permute.xlu0 0
        %978 = vperm.xlu0 %977, %v872
        %v979 = vpop.permute.xlu0 %978
        %982 = vset.pattern.permute.xlu0 0
        %983 = vperm.xlu0 %982, %v873
        %v984 = vpop.permute.xlu0 %983
        %987 = vset.pattern.permute.xlu0 0
        %988 = vperm.xlu0 %987, %v874
        %v989 = vpop.permute.xlu0 %988
        %992 = vset.pattern.permute.xlu0 0
        %993 = vperm.xlu0 %992, %v875
        %v994 = vpop.permute.xlu0 %993
        %v1020 = vunpack.c.l.b16 %v820
        %v1021 = vunpack.c.l.b16 %v821
        %v1022 = vunpack.c.l.b16 %v822
        %v1023 = vunpack.c.l.b16 %v823
        %v1024 = vunpack.c.l.b16 %v824
        %v1025 = vunpack.c.l.b16 %v825
        %v1026 = vunpack.c.l.b16 %v826
        %v1027 = vunpack.c.l.b16 %v827
        %v1028 = vunpack.c.l.b16 %v828
        %v1029 = vunpack.c.l.b16 %v829
        %v1030 = vunpack.c.l.b16 %v830
        %v1031 = vunpack.c.l.b16 %v831
        %v1032 = vunpack.c.l.b16 %v832
        %v1033 = vunpack.c.l.b16 %v833
        %v1034 = vunpack.c.l.b16 %v834
        %v1035 = vunpack.c.l.b16 %v835
        %v1036 = vunpack.c.l.b16 %v836
        %v1037 = vunpack.c.l.b16 %v837
        %v1038 = vunpack.c.l.b16 %v838
        %v1039 = vunpack.c.l.b16 %v839
        %v1040 = vunpack.c.l.b16 %v840
        %v1041 = vunpack.c.l.b16 %v841
        %v1042 = vunpack.c.l.b16 %v842
        %v1043 = vunpack.c.l.b16 %v843
        %v1044 = vpack.c.b16 %v1021, %v1020
        %v1045 = vpack.c.b16 %v1023, %v1022
        %v1046 = vpack.c.b16 %v1025, %v1024
        %v1047 = vpack.c.b16 %v1027, %v1026
        %v1048 = vpack.c.b16 %v1029, %v1028
        %v1049 = vpack.c.b16 %v1031, %v1030
        %v1050 = vpack.c.b16 %v1033, %v1032
        %v1051 = vpack.c.b16 %v1035, %v1034
        %v1052 = vpack.c.b16 %v1037, %v1036
        %v1053 = vpack.c.b16 %v1039, %v1038
        %v1054 = vpack.c.b16 %v1041, %v1040
        %v1055 = vpack.c.b16 %v1043, %v1042
        %v1057 = vsel %vm353, %v1044, 0
        %v1060 = vsel %vm353, %v1045, 0
        %v1063 = vsel %vm353, %v1046, 0
        %v1066 = vsel %vm353, %v1047, 0
        %v1069 = vsel %vm353, %v1048, 0
        %v1072 = vsel %vm353, %v1049, 0
        %v1075 = vsel %vm353, %v1050, 0
        %v1078 = vsel %vm353, %v1051, 0
        %v1081 = vsel %vm353, %v1052, 0
        %v1084 = vsel %vm353, %v1053, 0
        %v1087 = vsel %vm353, %v1054, 0
        %v1090 = vsel %vm353, %v1055, 0
        %1092 = vmatpush.bf16.msra.mxu0 0
        %1093 = vmatpush.bf16.msra.mxu0 0
        %1094 = vmatpush.bf16.msra.mxu0 0
        %1095 = vmatpush.bf16.msra.mxu0 0
        %1096 = vmatpush.bf16.msra.mxu0 %v850
        %1097 = vmatpush.bf16.msra.mxu0 %v848
        %1098 = vmatpush.bf16.msra.mxu0 %v846
        %1099 = vmatpush.bf16.msra.mxu0 %v844
        %1100 = vmatmul.bf16.gmra.mxu0 %v1057
        %v1101 = vpop.f32.mrf.mxu0
        %v1102 = vadd.f32 %v879, %v1101
        %v1103 = vpop.f32.mrf.mxu0
        %v1104 = vadd.f32 %v884, %v1103
        %1105 = vmatmul.bf16.gmra.mxu0 %v1060
        %v1106 = vpop.f32.mrf.mxu0
        %v1107 = vadd.f32 %v889, %v1106
        %v1108 = vpop.f32.mrf.mxu0
        %v1109 = vadd.f32 %v894, %v1108
        %1110 = vmatmul.bf16.gmra.mxu0 %v1063
        %v1111 = vpop.f32.mrf.mxu0
        %v1112 = vadd.f32 %v899, %v1111
        %v1113 = vpop.f32.mrf.mxu0
        %v1114 = vadd.f32 %v904, %v1113
        %1115 = vmatmul.bf16.gmra.mxu0 %v1066
        %v1116 = vpop.f32.mrf.mxu0
        %v1117 = vadd.f32 %v909, %v1116
        %v1118 = vpop.f32.mrf.mxu0
        %v1119 = vadd.f32 %v914, %v1118
        %1120 = vmatmul.bf16.gmra.mxu0 %v1069
        %v1121 = vpop.f32.mrf.mxu0
        %v1122 = vadd.f32 %v919, %v1121
        %v1123 = vpop.f32.mrf.mxu0
        %v1124 = vadd.f32 %v924, %v1123
        %1125 = vmatmul.bf16.gmra.mxu0 %v1072
        %v1126 = vpop.f32.mrf.mxu0
        %v1127 = vadd.f32 %v929, %v1126
        %v1128 = vpop.f32.mrf.mxu0
        %v1129 = vadd.f32 %v934, %v1128
        %1130 = vmatmul.bf16.gmra.mxu0 %v1075
        %v1131 = vpop.f32.mrf.mxu0
        %v1132 = vadd.f32 %v939, %v1131
        %v1133 = vpop.f32.mrf.mxu0
        %v1134 = vadd.f32 %v944, %v1133
        %1135 = vmatmul.bf16.gmra.mxu0 %v1078
        %v1136 = vpop.f32.mrf.mxu0
        %v1137 = vadd.f32 %v949, %v1136
        %v1138 = vpop.f32.mrf.mxu0
        %v1139 = vadd.f32 %v954, %v1138
        %1140 = vmatmul.bf16.gmra.mxu0 %v1081
        %v1141 = vpop.f32.mrf.mxu0
        %v1142 = vadd.f32 %v959, %v1141
        %v1143 = vpop.f32.mrf.mxu0
        %v1144 = vadd.f32 %v964, %v1143
        %1145 = vmatmul.bf16.gmra.mxu0 %v1084
        %v1146 = vpop.f32.mrf.mxu0
        %v1147 = vadd.f32 %v969, %v1146
        %v1148 = vpop.f32.mrf.mxu0
        %v1149 = vadd.f32 %v974, %v1148
        %1150 = vmatmul.bf16.gmra.mxu0 %v1087
        %v1151 = vpop.f32.mrf.mxu0
        %v1152 = vadd.f32 %v979, %v1151
        %v1153 = vpop.f32.mrf.mxu0
        %v1154 = vadd.f32 %v984, %v1153
        %1155 = vmatmul.bf16.gmra.mxu0 %v1090
        %v1156 = vpop.f32.mrf.mxu0
        %v1157 = vadd.f32 %v989, %v1156
        %v1158 = vpop.f32.mrf.mxu0
        %v1159 = vadd.f32 %v994, %v1158
        %1160 = vdwg.mxu0
        %1161 = vmatpush.bf16.msra.mxu0 0
        %1162 = vmatpush.bf16.msra.mxu0 0
        %1163 = vmatpush.bf16.msra.mxu0 0
        %1164 = vmatpush.bf16.msra.mxu0 0
        %1165 = vmatpush.bf16.msra.mxu0 %v851
        %1166 = vmatpush.bf16.msra.mxu0 %v849
        %1167 = vmatpush.bf16.msra.mxu0 %v847
        %1168 = vmatpush.bf16.msra.mxu0 %v845
        %1169 = vmatmul.bf16.gmra.mxu0 %v1057
        %v1170 = vpop.f32.mrf.mxu0
        %v1171 = vadd.f32 %v879, %v1170
        %v1172 = vpop.f32.mrf.mxu0
        %v1173 = vadd.f32 %v884, %v1172
        %1174 = vmatmul.bf16.gmra.mxu0 %v1060
        %v1175 = vpop.f32.mrf.mxu0
        %v1176 = vadd.f32 %v889, %v1175
        %v1177 = vpop.f32.mrf.mxu0
        %v1178 = vadd.f32 %v894, %v1177
        %1179 = vmatmul.bf16.gmra.mxu0 %v1063
        %v1180 = vpop.f32.mrf.mxu0
        %v1181 = vadd.f32 %v899, %v1180
        %v1182 = vpop.f32.mrf.mxu0
        %v1183 = vadd.f32 %v904, %v1182
        %1184 = vmatmul.bf16.gmra.mxu0 %v1066
        %v1185 = vpop.f32.mrf.mxu0
        %v1186 = vadd.f32 %v909, %v1185
        %v1187 = vpop.f32.mrf.mxu0
        %v1188 = vadd.f32 %v914, %v1187
        %1189 = vmatmul.bf16.gmra.mxu0 %v1069
        %v1190 = vpop.f32.mrf.mxu0
        %v1191 = vadd.f32 %v919, %v1190
        %v1192 = vpop.f32.mrf.mxu0
        %v1193 = vadd.f32 %v924, %v1192
        %1194 = vmatmul.bf16.gmra.mxu0 %v1072
        %v1195 = vpop.f32.mrf.mxu0
        %v1196 = vadd.f32 %v929, %v1195
        %v1197 = vpop.f32.mrf.mxu0
        %v1198 = vadd.f32 %v934, %v1197
        %1199 = vmatmul.bf16.gmra.mxu0 %v1075
        %v1200 = vpop.f32.mrf.mxu0
        %v1201 = vadd.f32 %v939, %v1200
        %v1202 = vpop.f32.mrf.mxu0
        %v1203 = vadd.f32 %v944, %v1202
        %1204 = vmatmul.bf16.gmra.mxu0 %v1078
        %v1205 = vpop.f32.mrf.mxu0
        %v1206 = vadd.f32 %v949, %v1205
        %v1207 = vpop.f32.mrf.mxu0
        %v1208 = vadd.f32 %v954, %v1207
        %1209 = vmatmul.bf16.gmra.mxu0 %v1081
        %v1210 = vpop.f32.mrf.mxu0
        %v1211 = vadd.f32 %v959, %v1210
        %v1212 = vpop.f32.mrf.mxu0
        %v1213 = vadd.f32 %v964, %v1212
        %1214 = vmatmul.bf16.gmra.mxu0 %v1084
        %v1215 = vpop.f32.mrf.mxu0
        %v1216 = vadd.f32 %v969, %v1215
        %v1217 = vpop.f32.mrf.mxu0
        %v1218 = vadd.f32 %v974, %v1217
        %1219 = vmatmul.bf16.gmra.mxu0 %v1087
        %v1220 = vpop.f32.mrf.mxu0
        %v1221 = vadd.f32 %v979, %v1220
        %v1222 = vpop.f32.mrf.mxu0
        %v1223 = vadd.f32 %v984, %v1222
        %1224 = vmatmul.bf16.gmra.mxu0 %v1090
        %v1225 = vpop.f32.mrf.mxu0
        %v1226 = vadd.f32 %v989, %v1225
        %v1227 = vpop.f32.mrf.mxu0
        %v1228 = vadd.f32 %v994, %v1227
        %1229 = vdwg.mxu0
        %v1230 = vpack.c.bf16 %v1171, %v1102
        %v1231 = vpack.c.bf16 %v1173, %v1104
        %v1232 = vpack.c.bf16 %v1176, %v1107
        %v1233 = vpack.c.bf16 %v1178, %v1109
        %v1234 = vpack.c.bf16 %v1181, %v1112
        %v1235 = vpack.c.bf16 %v1183, %v1114
        %v1236 = vpack.c.bf16 %v1186, %v1117
        %v1237 = vpack.c.bf16 %v1188, %v1119
        %v1238 = vpack.c.bf16 %v1191, %v1122
        %v1239 = vpack.c.bf16 %v1193, %v1124
        %v1240 = vpack.c.bf16 %v1196, %v1127
        %v1241 = vpack.c.bf16 %v1198, %v1129
        %v1242 = vpack.c.bf16 %v1201, %v1132
        %v1243 = vpack.c.bf16 %v1203, %v1134
        %v1244 = vpack.c.bf16 %v1206, %v1137
        %v1245 = vpack.c.bf16 %v1208, %v1139
        %v1246 = vpack.c.bf16 %v1211, %v1142
        %v1247 = vpack.c.bf16 %v1213, %v1144
        %v1248 = vpack.c.bf16 %v1216, %v1147
        %v1249 = vpack.c.bf16 %v1218, %v1149
        %v1250 = vpack.c.bf16 %v1221, %v1152
        %v1251 = vpack.c.bf16 %v1223, %v1154
        %v1252 = vpack.c.bf16 %v1226, %v1157
        %v1253 = vpack.c.bf16 %v1228, %v1159
        %1254 = vst [vmem:[#allocation2] sm:$0xff] %v1230
        %1255 = vst [vmem:[#allocation2 + $0x8] sm:$0xff] %v1231
        %1256 = vst [vmem:[#allocation2 + $0x10] sm:$0xff] %v1232
        %1257 = vst [vmem:[#allocation2 + $0x18] sm:$0xff] %v1233
        %1258 = vst [vmem:[#allocation2 + $0x20] sm:$0xff] %v1234
        %1259 = vst [vmem:[#allocation2 + $0x28] sm:$0xff] %v1235
        %1260 = vst [vmem:[#allocation2 + $0x30] sm:$0xff] %v1236
        %1261 = vst [vmem:[#allocation2 + $0x38] sm:$0xff] %v1237
        %1262 = vst [vmem:[#allocation2 + $0x40] sm:$0xff] %v1238
        %1263 = vst [vmem:[#allocation2 + $0x48] sm:$0xff] %v1239
        %1264 = vst [vmem:[#allocation2 + $0x50] sm:$0xff] %v1240
        %1265 = vst [vmem:[#allocation2 + $0x58] sm:$0xff] %v1241
        %1266 = vst [vmem:[#allocation2 + $0x60] sm:$0xff] %v1242
        %1267 = vst [vmem:[#allocation2 + $0x68] sm:$0xff] %v1243
        %1268 = vst [vmem:[#allocation2 + $0x70] sm:$0xff] %v1244
        %1269 = vst [vmem:[#allocation2 + $0x78] sm:$0xff] %v1245
        %1270 = vst [vmem:[#allocation2 + $0x80] sm:$0xff] %v1246
        %1271 = vst [vmem:[#allocation2 + $0x88] sm:$0xff] %v1247
        %1272 = vst [vmem:[#allocation2 + $0x90] sm:$0xff] %v1248
        %1273 = vst [vmem:[#allocation2 + $0x98] sm:$0xff] %v1249
        %1274 = vst [vmem:[#allocation2 + $0xa0] sm:$0xff] %v1250
        %1275 = vst [vmem:[#allocation2 + $0xa8] sm:$0xff] %v1251
        %1276 = vst [vmem:[#allocation2 + $0xb0] sm:$0xff] %v1252
        %1277 = vst [vmem:[#allocation2 + $0xb8] sm:$0xff] %v1253
        %v1278 = vld [vmem:[#allocation2] sm:$0xff]
        %v1279 = vld [vmem:[#allocation2 + $0x8] sm:$0xff]
        loop: start=0, step=1, limit=2
        $region53: #{tpu_custom_call.1} parent=51 // loop_pre_header
          _
        $region54: #{tpu_custom_call.1} parent=51 // loop_header
          %s1281 = sphi 0, %s1285
          %p1282 = scmp.ge.s32.totalorder %s1281, 2
          %v1286 = vphi 0.0, %v1744
          %v1287 = vphi 0.0, %v1745
          %v1288 = vphi 0.0, %v1746
          %v1289 = vphi 0.0, %v1747
        $region55: #{tpu_custom_call.1} parent=51 // loop_header_branch
          %1284 = sbr.rel (%p1282) target = $region59
        $region56: #{tpu_custom_call.1} parent=51 // loop_body
          %s1290 = smul.u32 %s1281, 128
          %s1291 = sshra.s32 %s1290, 7
          %s1292 = sand.u32 %s1290, 127
          %s1293 = smul.addr %s1291, 4
          %s1294 = scalar_lea.vmem [#allocation2], %s1293
          %v1295 = vld [vmem:[%s1294 + $0x10] sm:$0xf]
          %v1296 = vld [vmem:[%s1294 + $0x18] sm:$0xf]
          %v1297 = vld [vmem:[%s1294 + $0x20] sm:$0xf]
          %v1298 = vld [vmem:[%s1294 + $0x28] sm:$0xf]
          %v1301 = vunpack.c.l.b16 %v1295
          %v1302 = vunpack.c.l.b16 %v1296
          %v1303 = vpack.c.b16 %v1302, %v1301
          %1305 = vxpose.xlu0.c.b16.start [1/8] %v1303, 128
          %1306 = vxpose.xlu0.c.b16.cont [2/8] 0, 128
          %1307 = vxpose.xlu0.c.b16.cont [3/8] 0, 128
          %1308 = vxpose.xlu0.c.b16.cont [4/8] 0, 128
          %1309 = vxpose.xlu0.c.b16.cont [5/8] 0, 128
          %1310 = vxpose.xlu0.c.b16.cont [6/8] 0, 128
          %1311 = vxpose.xlu0.c.b16.cont [7/8] 0, 128
          %1312 = vxpose.xlu0.c.b16.end [8/8] 0, 128
          %v1313 = vpop.trf.xlu0
          %v1314 = vpop.trf.xlu0
          %v1315 = vpop.trf.xlu0
          %v1316 = vpop.trf.xlu0
          %v1317 = vpop.trf.xlu0
          %v1318 = vpop.trf.xlu0
          %v1319 = vpop.trf.xlu0
          %v1320 = vpop.trf.xlu0
          %v1323 = vunpack.c.l.b16 %v1278
          %v1324 = vunpack.c.h.b16 %v1278
          %v1325 = vunpack.c.l.b16 %v1279
          %v1326 = vunpack.c.h.b16 %v1279
          %v1327 = vpack.c.b16 %v1325, %v1323
          %v1328 = vpack.c.b16 %v1326, %v1324
          %vm1331 = vcmask 130048
          %v1333 = vsel %vm1331, %v1313, 0
          %v1336 = vsel %vm1331, %v1314, 0
          %v1339 = vsel %vm1331, %v1315, 0
          %v1342 = vsel %vm1331, %v1316, 0
          %v1345 = vsel %vm1331, %v1317, 0
          %v1348 = vsel %vm1331, %v1318, 0
          %v1351 = vsel %vm1331, %v1319, 0
          %v1354 = vsel %vm1331, %v1320, 0
          %1356 = vmatpush.bf16.msra.mxu0 0
          %1357 = vmatpush.bf16.msra.mxu0 0
          %1358 = vmatpush.bf16.msra.mxu0 0
          %1359 = vmatpush.bf16.msra.mxu0 0
          %1360 = vmatpush.bf16.msra.mxu0 0
          %1361 = vmatpush.bf16.msra.mxu0 0
          %1362 = vmatpush.bf16.msra.mxu0 0
          %1363 = vmatpush.bf16.msra.mxu0 %v1327
          %1364 = vmatmul.bf16.gmra.mxu0 %v1333
          %v1365 = vpop.f32.mrf.mxu0
          %v1366 = vadd.f32 0.0, %v1365
          %v1367 = vpop.f32.mrf.mxu0
          %v1368 = vadd.f32 0.0, %v1367
          %1369 = vmatmul.bf16.gmra.mxu0 %v1336
          %v1370 = vpop.f32.mrf.mxu0
          %v1371 = vadd.f32 0.0, %v1370
          %v1372 = vpop.f32.mrf.mxu0
          %v1373 = vadd.f32 0.0, %v1372
          %1374 = vmatmul.bf16.gmra.mxu0 %v1339
          %v1375 = vpop.f32.mrf.mxu0
          %v1376 = vadd.f32 0.0, %v1375
          %v1377 = vpop.f32.mrf.mxu0
          %v1378 = vadd.f32 0.0, %v1377
          %1379 = vmatmul.bf16.gmra.mxu0 %v1342
          %v1380 = vpop.f32.mrf.mxu0
          %v1381 = vadd.f32 0.0, %v1380
          %v1382 = vpop.f32.mrf.mxu0
          %v1383 = vadd.f32 0.0, %v1382
          %1384 = vmatmul.bf16.gmra.mxu0 %v1345
          %v1385 = vpop.f32.mrf.mxu0
          %v1386 = vadd.f32 0.0, %v1385
          %v1387 = vpop.f32.mrf.mxu0
          %v1388 = vadd.f32 0.0, %v1387
          %1389 = vmatmul.bf16.gmra.mxu0 %v1348
          %v1390 = vpop.f32.mrf.mxu0
          %v1391 = vadd.f32 0.0, %v1390
          %v1392 = vpop.f32.mrf.mxu0
          %v1393 = vadd.f32 0.0, %v1392
          %1394 = vmatmul.bf16.gmra.mxu0 %v1351
          %v1395 = vpop.f32.mrf.mxu0
          %v1396 = vadd.f32 0.0, %v1395
          %v1397 = vpop.f32.mrf.mxu0
          %v1398 = vadd.f32 0.0, %v1397
          %1399 = vmatmul.bf16.gmra.mxu0 %v1354
          %v1400 = vpop.f32.mrf.mxu0
          %v1401 = vadd.f32 0.0, %v1400
          %v1402 = vpop.f32.mrf.mxu0
          %v1403 = vadd.f32 0.0, %v1402
          %1404 = vdwg.mxu0
          %1405 = vmatpush.bf16.msra.mxu0 0
          %1406 = vmatpush.bf16.msra.mxu0 0
          %1407 = vmatpush.bf16.msra.mxu0 0
          %1408 = vmatpush.bf16.msra.mxu0 0
          %1409 = vmatpush.bf16.msra.mxu0 0
          %1410 = vmatpush.bf16.msra.mxu0 0
          %1411 = vmatpush.bf16.msra.mxu0 0
          %1412 = vmatpush.bf16.msra.mxu0 %v1328
          %1413 = vmatmul.bf16.gmra.mxu0 %v1333
          %v1414 = vpop.f32.mrf.mxu0
          %v1415 = vadd.f32 0.0, %v1414
          %v1416 = vpop.f32.mrf.mxu0
          %v1417 = vadd.f32 0.0, %v1416
          %1418 = vmatmul.bf16.gmra.mxu0 %v1336
          %v1419 = vpop.f32.mrf.mxu0
          %v1420 = vadd.f32 0.0, %v1419
          %v1421 = vpop.f32.mrf.mxu0
          %v1422 = vadd.f32 0.0, %v1421
          %1423 = vmatmul.bf16.gmra.mxu0 %v1339
          %v1424 = vpop.f32.mrf.mxu0
          %v1425 = vadd.f32 0.0, %v1424
          %v1426 = vpop.f32.mrf.mxu0
          %v1427 = vadd.f32 0.0, %v1426
          %1428 = vmatmul.bf16.gmra.mxu0 %v1342
          %v1429 = vpop.f32.mrf.mxu0
          %v1430 = vadd.f32 0.0, %v1429
          %v1431 = vpop.f32.mrf.mxu0
          %v1432 = vadd.f32 0.0, %v1431
          %1433 = vmatmul.bf16.gmra.mxu0 %v1345
          %v1434 = vpop.f32.mrf.mxu0
          %v1435 = vadd.f32 0.0, %v1434
          %v1436 = vpop.f32.mrf.mxu0
          %v1437 = vadd.f32 0.0, %v1436
          %1438 = vmatmul.bf16.gmra.mxu0 %v1348
          %v1439 = vpop.f32.mrf.mxu0
          %v1440 = vadd.f32 0.0, %v1439
          %v1441 = vpop.f32.mrf.mxu0
          %v1442 = vadd.f32 0.0, %v1441
          %1443 = vmatmul.bf16.gmra.mxu0 %v1351
          %v1444 = vpop.f32.mrf.mxu0
          %v1445 = vadd.f32 0.0, %v1444
          %v1446 = vpop.f32.mrf.mxu0
          %v1447 = vadd.f32 0.0, %v1446
          %1448 = vmatmul.bf16.gmra.mxu0 %v1354
          %v1449 = vpop.f32.mrf.mxu0
          %v1450 = vadd.f32 0.0, %v1449
          %v1451 = vpop.f32.mrf.mxu0
          %v1452 = vadd.f32 0.0, %v1451
          %1453 = vdwg.mxu0
          %v1454 = vmax.f32 %v1366, %v1415
          %1455 = vmax.xlane.f32.xlu0 %v1454
          %v1456 = vpop.xlane.xlu0 %1455
          %v1457 = vmax.f32 %v1368, %v1417
          %1458 = vmax.xlane.f32.xlu0 %v1457
          %v1459 = vpop.xlane.xlu0 %1458
          %v1460 = vmax.f32 %v1371, %v1420
          %1461 = vmax.xlane.f32.xlu0 %v1460
          %v1462 = vpop.xlane.xlu0 %1461
          %v1463 = vmax.f32 %v1373, %v1422
          %1464 = vmax.xlane.f32.xlu0 %v1463
          %v1465 = vpop.xlane.xlu0 %1464
          %v1466 = vmax.f32 %v1376, %v1425
          %1467 = vmax.xlane.f32.xlu0 %v1466
          %v1468 = vpop.xlane.xlu0 %1467
          %v1469 = vmax.f32 %v1378, %v1427
          %1470 = vmax.xlane.f32.xlu0 %v1469
          %v1471 = vpop.xlane.xlu0 %1470
          %v1472 = vmax.f32 %v1381, %v1430
          %1473 = vmax.xlane.f32.xlu0 %v1472
          %v1474 = vpop.xlane.xlu0 %1473
          %v1475 = vmax.f32 %v1383, %v1432
          %1476 = vmax.xlane.f32.xlu0 %v1475
          %v1477 = vpop.xlane.xlu0 %1476
          %v1478 = vmax.f32 %v1386, %v1435
          %1479 = vmax.xlane.f32.xlu0 %v1478
          %v1480 = vpop.xlane.xlu0 %1479
          %v1481 = vmax.f32 %v1388, %v1437
          %1482 = vmax.xlane.f32.xlu0 %v1481
          %v1483 = vpop.xlane.xlu0 %1482
          %v1484 = vmax.f32 %v1391, %v1440
          %1485 = vmax.xlane.f32.xlu0 %v1484
          %v1486 = vpop.xlane.xlu0 %1485
          %v1487 = vmax.f32 %v1393, %v1442
          %1488 = vmax.xlane.f32.xlu0 %v1487
          %v1489 = vpop.xlane.xlu0 %1488
          %v1490 = vmax.f32 %v1396, %v1445
          %1491 = vmax.xlane.f32.xlu0 %v1490
          %v1492 = vpop.xlane.xlu0 %1491
          %v1493 = vmax.f32 %v1398, %v1447
          %1494 = vmax.xlane.f32.xlu0 %v1493
          %v1495 = vpop.xlane.xlu0 %1494
          %v1496 = vmax.f32 %v1401, %v1450
          %1497 = vmax.xlane.f32.xlu0 %v1496
          %v1498 = vpop.xlane.xlu0 %1497
          %v1499 = vmax.f32 %v1403, %v1452
          %1500 = vmax.xlane.f32.xlu0 %v1499
          %v1501 = vpop.xlane.xlu0 %1500
          %v1502 = vsub.f32 %v1366, %v1456
          %v1503 = vsub.f32 %v1415, %v1456
          %v1504 = vsub.f32 %v1368, %v1459
          %v1505 = vsub.f32 %v1417, %v1459
          %v1506 = vsub.f32 %v1371, %v1462
          %v1507 = vsub.f32 %v1420, %v1462
          %v1508 = vsub.f32 %v1373, %v1465
          %v1509 = vsub.f32 %v1422, %v1465
          %v1510 = vsub.f32 %v1376, %v1468
          %v1511 = vsub.f32 %v1425, %v1468
          %v1512 = vsub.f32 %v1378, %v1471
          %v1513 = vsub.f32 %v1427, %v1471
          %v1514 = vsub.f32 %v1381, %v1474
          %v1515 = vsub.f32 %v1430, %v1474
          %v1516 = vsub.f32 %v1383, %v1477
          %v1517 = vsub.f32 %v1432, %v1477
          %v1518 = vsub.f32 %v1386, %v1480
          %v1519 = vsub.f32 %v1435, %v1480
          %v1520 = vsub.f32 %v1388, %v1483
          %v1521 = vsub.f32 %v1437, %v1483
          %v1522 = vsub.f32 %v1391, %v1486
          %v1523 = vsub.f32 %v1440, %v1486
          %v1524 = vsub.f32 %v1393, %v1489
          %v1525 = vsub.f32 %v1442, %v1489
          %v1526 = vsub.f32 %v1396, %v1492
          %v1527 = vsub.f32 %v1445, %v1492
          %v1528 = vsub.f32 %v1398, %v1495
          %v1529 = vsub.f32 %v1447, %v1495
          %v1530 = vsub.f32 %v1401, %v1498
          %v1531 = vsub.f32 %v1450, %v1498
          %v1532 = vsub.f32 %v1403, %v1501
          %v1533 = vsub.f32 %v1452, %v1501
          %v1534 = vmul.f32 %v1502, 1.442695
          %v1535 = vpow.pop %v1534
          %v1536 = vmul.f32 %v1503, 1.442695
          %v1537 = vpow.pop %v1536
          %v1538 = vmul.f32 %v1504, 1.442695
          %v1539 = vpow.pop %v1538
          %v1540 = vmul.f32 %v1505, 1.442695
          %v1541 = vpow.pop %v1540
          %v1542 = vmul.f32 %v1506, 1.442695
          %v1543 = vpow.pop %v1542
          %v1544 = vmul.f32 %v1507, 1.442695
          %v1545 = vpow.pop %v1544
          %v1546 = vmul.f32 %v1508, 1.442695
          %v1547 = vpow.pop %v1546
          %v1548 = vmul.f32 %v1509, 1.442695
          %v1549 = vpow.pop %v1548
          %v1550 = vmul.f32 %v1510, 1.442695
          %v1551 = vpow.pop %v1550
          %v1552 = vmul.f32 %v1511, 1.442695
          %v1553 = vpow.pop %v1552
          %v1554 = vmul.f32 %v1512, 1.442695
          %v1555 = vpow.pop %v1554
          %v1556 = vmul.f32 %v1513, 1.442695
          %v1557 = vpow.pop %v1556
          %v1558 = vmul.f32 %v1514, 1.442695
          %v1559 = vpow.pop %v1558
          %v1560 = vmul.f32 %v1515, 1.442695
          %v1561 = vpow.pop %v1560
          %v1562 = vmul.f32 %v1516, 1.442695
          %v1563 = vpow.pop %v1562
          %v1564 = vmul.f32 %v1517, 1.442695
          %v1565 = vpow.pop %v1564
          %v1566 = vmul.f32 %v1518, 1.442695
          %v1567 = vpow.pop %v1566
          %v1568 = vmul.f32 %v1519, 1.442695
          %v1569 = vpow.pop %v1568
          %v1570 = vmul.f32 %v1520, 1.442695
          %v1571 = vpow.pop %v1570
          %v1572 = vmul.f32 %v1521, 1.442695
          %v1573 = vpow.pop %v1572
          %v1574 = vmul.f32 %v1522, 1.442695
          %v1575 = vpow.pop %v1574
          %v1576 = vmul.f32 %v1523, 1.442695
          %v1577 = vpow.pop %v1576
          %v1578 = vmul.f32 %v1524, 1.442695
          %v1579 = vpow.pop %v1578
          %v1580 = vmul.f32 %v1525, 1.442695
          %v1581 = vpow.pop %v1580
          %v1582 = vmul.f32 %v1526, 1.442695
          %v1583 = vpow.pop %v1582
          %v1584 = vmul.f32 %v1527, 1.442695
          %v1585 = vpow.pop %v1584
          %v1586 = vmul.f32 %v1528, 1.442695
          %v1587 = vpow.pop %v1586
          %v1588 = vmul.f32 %v1529, 1.442695
          %v1589 = vpow.pop %v1588
          %v1590 = vmul.f32 %v1530, 1.442695
          %v1591 = vpow.pop %v1590
          %v1592 = vmul.f32 %v1531, 1.442695
          %v1593 = vpow.pop %v1592
          %v1594 = vmul.f32 %v1532, 1.442695
          %v1595 = vpow.pop %v1594
          %v1596 = vmul.f32 %v1533, 1.442695
          %v1597 = vpow.pop %v1596
          %v1598 = vadd.f32 %v1535, %v1537
          %1599 = vadd.xlane.f32.xlu0 %v1598
          %v1600 = vpop.xlane.xlu0 %1599
          %v1601 = vadd.f32 %v1539, %v1541
          %1602 = vadd.xlane.f32.xlu0 %v1601
          %v1603 = vpop.xlane.xlu0 %1602
          %v1604 = vadd.f32 %v1543, %v1545
          %1605 = vadd.xlane.f32.xlu0 %v1604
          %v1606 = vpop.xlane.xlu0 %1605
          %v1607 = vadd.f32 %v1547, %v1549
          %1608 = vadd.xlane.f32.xlu0 %v1607
          %v1609 = vpop.xlane.xlu0 %1608
          %v1610 = vadd.f32 %v1551, %v1553
          %1611 = vadd.xlane.f32.xlu0 %v1610
          %v1612 = vpop.xlane.xlu0 %1611
          %v1613 = vadd.f32 %v1555, %v1557
          %1614 = vadd.xlane.f32.xlu0 %v1613
          %v1615 = vpop.xlane.xlu0 %1614
          %v1616 = vadd.f32 %v1559, %v1561
          %1617 = vadd.xlane.f32.xlu0 %v1616
          %v1618 = vpop.xlane.xlu0 %1617
          %v1619 = vadd.f32 %v1563, %v1565
          %1620 = vadd.xlane.f32.xlu0 %v1619
          %v1621 = vpop.xlane.xlu0 %1620
          %v1622 = vadd.f32 %v1567, %v1569
          %1623 = vadd.xlane.f32.xlu0 %v1622
          %v1624 = vpop.xlane.xlu0 %1623
          %v1625 = vadd.f32 %v1571, %v1573
          %1626 = vadd.xlane.f32.xlu0 %v1625
          %v1627 = vpop.xlane.xlu0 %1626
          %v1628 = vadd.f32 %v1575, %v1577
          %1629 = vadd.xlane.f32.xlu0 %v1628
          %v1630 = vpop.xlane.xlu0 %1629
          %v1631 = vadd.f32 %v1579, %v1581
          %1632 = vadd.xlane.f32.xlu0 %v1631
          %v1633 = vpop.xlane.xlu0 %1632
          %v1634 = vadd.f32 %v1583, %v1585
          %1635 = vadd.xlane.f32.xlu0 %v1634
          %v1636 = vpop.xlane.xlu0 %1635
          %v1637 = vadd.f32 %v1587, %v1589
          %1638 = vadd.xlane.f32.xlu0 %v1637
          %v1639 = vpop.xlane.xlu0 %1638
          %v1640 = vadd.f32 %v1591, %v1593
          %1641 = vadd.xlane.f32.xlu0 %v1640
          %v1642 = vpop.xlane.xlu0 %1641
          %v1643 = vadd.f32 %v1595, %v1597
          %1644 = vadd.xlane.f32.xlu0 %v1643
          %v1645 = vpop.xlane.xlu0 %1644
          %v1646 = vrcp.pop %v1600
          %v1647 = vrcp.pop %v1603
          %v1648 = vrcp.pop %v1606
          %v1649 = vrcp.pop %v1609
          %v1650 = vrcp.pop %v1612
          %v1651 = vrcp.pop %v1615
          %v1652 = vrcp.pop %v1618
          %v1653 = vrcp.pop %v1621
          %v1654 = vrcp.pop %v1624
          %v1655 = vrcp.pop %v1627
          %v1656 = vrcp.pop %v1630
          %v1657 = vrcp.pop %v1633
          %v1658 = vrcp.pop %v1636
          %v1659 = vrcp.pop %v1639
          %v1660 = vrcp.pop %v1642
          %v1661 = vrcp.pop %v1645
          %v1662 = vmul.f32 %v1535, %v1646
          %v1663 = vmul.f32 %v1537, %v1646
          %v1664 = vmul.f32 %v1539, %v1647
          %v1665 = vmul.f32 %v1541, %v1647
          %v1666 = vmul.f32 %v1543, %v1648
          %v1667 = vmul.f32 %v1545, %v1648
          %v1668 = vmul.f32 %v1547, %v1649
          %v1669 = vmul.f32 %v1549, %v1649
          %v1670 = vmul.f32 %v1551, %v1650
          %v1671 = vmul.f32 %v1553, %v1650
          %v1672 = vmul.f32 %v1555, %v1651
          %v1673 = vmul.f32 %v1557, %v1651
          %v1674 = vmul.f32 %v1559, %v1652
          %v1675 = vmul.f32 %v1561, %v1652
          %v1676 = vmul.f32 %v1563, %v1653
          %v1677 = vmul.f32 %v1565, %v1653
          %v1678 = vmul.f32 %v1567, %v1654
          %v1679 = vmul.f32 %v1569, %v1654
          %v1680 = vmul.f32 %v1571, %v1655
          %v1681 = vmul.f32 %v1573, %v1655
          %v1682 = vmul.f32 %v1575, %v1656
          %v1683 = vmul.f32 %v1577, %v1656
          %v1684 = vmul.f32 %v1579, %v1657
          %v1685 = vmul.f32 %v1581, %v1657
          %v1686 = vmul.f32 %v1583, %v1658
          %v1687 = vmul.f32 %v1585, %v1658
          %v1688 = vmul.f32 %v1587, %v1659
          %v1689 = vmul.f32 %v1589, %v1659
          %v1690 = vmul.f32 %v1591, %v1660
          %v1691 = vmul.f32 %v1593, %v1660
          %v1692 = vmul.f32 %v1595, %v1661
          %v1693 = vmul.f32 %v1597, %v1661
          %v1694 = vpack.c.bf16 %v1664, %v1662
          %v1695 = vpack.c.bf16 %v1665, %v1663
          %v1696 = vpack.c.bf16 %v1668, %v1666
          %v1697 = vpack.c.bf16 %v1669, %v1667
          %v1698 = vpack.c.bf16 %v1672, %v1670
          %v1699 = vpack.c.bf16 %v1673, %v1671
          %v1700 = vpack.c.bf16 %v1676, %v1674
          %v1701 = vpack.c.bf16 %v1677, %v1675
          %v1702 = vpack.c.bf16 %v1680, %v1678
          %v1703 = vpack.c.bf16 %v1681, %v1679
          %v1704 = vpack.c.bf16 %v1684, %v1682
          %v1705 = vpack.c.bf16 %v1685, %v1683
          %v1706 = vpack.c.bf16 %v1688, %v1686
          %v1707 = vpack.c.bf16 %v1689, %v1687
          %v1708 = vpack.c.bf16 %v1692, %v1690
          %v1709 = vpack.c.bf16 %v1693, %v1691
          %v1712 = vunpack.c.l.b16 %v1297
          %v1713 = vunpack.c.l.b16 %v1298
          %v1714 = vpack.c.b16 %v1713, %v1712
          %1716 = vmatpush.bf16.msra.mxu0 %v1708
          %1717 = vmatpush.bf16.msra.mxu0 %v1706
          %1718 = vmatpush.bf16.msra.mxu0 %v1704
          %1719 = vmatpush.bf16.msra.mxu0 %v1702
          %1720 = vmatpush.bf16.msra.mxu0 %v1700
          %1721 = vmatpush.bf16.msra.mxu0 %v1698
          %1722 = vmatpush.bf16.msra.mxu0 %v1696
          %1723 = vmatpush.bf16.msra.mxu0 %v1694
          %1724 = vmatmul.bf16.gmra.mxu0 %v1714
          %v1725 = vpop.f32.mrf.mxu0
          %v1726 = vadd.f32 0.0, %v1725
          %v1727 = vpop.f32.mrf.mxu0
          %v1728 = vadd.f32 0.0, %v1727
          %1729 = vdwg.mxu0
          %1730 = vmatpush.bf16.msra.mxu0 %v1709
          %1731 = vmatpush.bf16.msra.mxu0 %v1707
          %1732 = vmatpush.bf16.msra.mxu0 %v1705
          %1733 = vmatpush.bf16.msra.mxu0 %v1703
          %1734 = vmatpush.bf16.msra.mxu0 %v1701
          %1735 = vmatpush.bf16.msra.mxu0 %v1699
          %1736 = vmatpush.bf16.msra.mxu0 %v1697
          %1737 = vmatpush.bf16.msra.mxu0 %v1695
          %1738 = vmatmul.bf16.gmra.mxu0 %v1714
          %v1739 = vpop.f32.mrf.mxu0
          %v1740 = vadd.f32 0.0, %v1739
          %v1741 = vpop.f32.mrf.mxu0
          %v1742 = vadd.f32 0.0, %v1741
          %1743 = vdwg.mxu0
          %v1744 = vadd.f32 %v1286, %v1726
          %v1745 = vadd.f32 %v1287, %v1740
          %v1746 = vadd.f32 %v1288, %v1728
          %v1747 = vadd.f32 %v1289, %v1742
        $region57: #{tpu_custom_call.1} parent=51 // loop_footer
          %s1285 = sadd.s32 1, %s1281
        $region58: #{tpu_custom_call.1} parent=51 // loop_footer_branch
          %1280 = sbr.rel target = $region54
        $region59: #{tpu_custom_call.1} parent=51 // loop_exit
          _
        %v1748 = vpack.c.bf16 %v1287, %v1286
        %v1749 = vpack.c.bf16 %v1289, %v1288
        %1750 = vst [vmem:[#allocation3] sm:$0xff] %v1748
        %1751 = vst [vmem:[#allocation3 + $0x8] sm:$0xff] %v1749
        %v1752 = vld [vmem:[#allocation2 + $0x30] sm:$0xff]
        %v1753 = vld [vmem:[#allocation2 + $0x38] sm:$0xff]
        loop: start=0, step=1, limit=2
        $region60: #{tpu_custom_call.1} parent=51 // loop_pre_header
          _
        $region61: #{tpu_custom_call.1} parent=51 // loop_header
          %s1755 = sphi 0, %s1759
          %p1756 = scmp.ge.s32.totalorder %s1755, 2
          %v1760 = vphi 0.0, %v2218
          %v1761 = vphi 0.0, %v2219
          %v1762 = vphi 0.0, %v2220
          %v1763 = vphi 0.0, %v2221
        $region62: #{tpu_custom_call.1} parent=51 // loop_header_branch
          %1758 = sbr.rel (%p1756) target = $region66
        $region63: #{tpu_custom_call.1} parent=51 // loop_body
          %s1764 = smul.u32 %s1755, 128
          %s1765 = sshra.s32 %s1764, 7
          %s1766 = sand.u32 %s1764, 127
          %s1767 = smul.addr %s1765, 4
          %s1768 = scalar_lea.vmem [#allocation2], %s1767
          %v1769 = vld [vmem:[%s1768 + $0x40] sm:$0xf]
          %v1770 = vld [vmem:[%s1768 + $0x48] sm:$0xf]
          %v1771 = vld [vmem:[%s1768 + $0x50] sm:$0xf]
          %v1772 = vld [vmem:[%s1768 + $0x58] sm:$0xf]
          %v1775 = vunpack.c.l.b16 %v1769
          %v1776 = vunpack.c.l.b16 %v1770
          %v1777 = vpack.c.b16 %v1776, %v1775
          %1779 = vxpose.xlu0.c.b16.start [1/8] %v1777, 128
          %1780 = vxpose.xlu0.c.b16.cont [2/8] 0, 128
          %1781 = vxpose.xlu0.c.b16.cont [3/8] 0, 128
          %1782 = vxpose.xlu0.c.b16.cont [4/8] 0, 128
          %1783 = vxpose.xlu0.c.b16.cont [5/8] 0, 128
          %1784 = vxpose.xlu0.c.b16.cont [6/8] 0, 128
          %1785 = vxpose.xlu0.c.b16.cont [7/8] 0, 128
          %1786 = vxpose.xlu0.c.b16.end [8/8] 0, 128
          %v1787 = vpop.trf.xlu0
          %v1788 = vpop.trf.xlu0
          %v1789 = vpop.trf.xlu0
          %v1790 = vpop.trf.xlu0
          %v1791 = vpop.trf.xlu0
          %v1792 = vpop.trf.xlu0
          %v1793 = vpop.trf.xlu0
          %v1794 = vpop.trf.xlu0
          %v1797 = vunpack.c.l.b16 %v1752
          %v1798 = vunpack.c.h.b16 %v1752
          %v1799 = vunpack.c.l.b16 %v1753
          %v1800 = vunpack.c.h.b16 %v1753
          %v1801 = vpack.c.b16 %v1799, %v1797
          %v1802 = vpack.c.b16 %v1800, %v1798
          %vm1805 = vcmask 130048
          %v1807 = vsel %vm1805, %v1787, 0
          %v1810 = vsel %vm1805, %v1788, 0
          %v1813 = vsel %vm1805, %v1789, 0
          %v1816 = vsel %vm1805, %v1790, 0
          %v1819 = vsel %vm1805, %v1791, 0
          %v1822 = vsel %vm1805, %v1792, 0
          %v1825 = vsel %vm1805, %v1793, 0
          %v1828 = vsel %vm1805, %v1794, 0
          %1830 = vmatpush.bf16.msra.mxu0 0
          %1831 = vmatpush.bf16.msra.mxu0 0
          %1832 = vmatpush.bf16.msra.mxu0 0
          %1833 = vmatpush.bf16.msra.mxu0 0
          %1834 = vmatpush.bf16.msra.mxu0 0
          %1835 = vmatpush.bf16.msra.mxu0 0
          %1836 = vmatpush.bf16.msra.mxu0 0
          %1837 = vmatpush.bf16.msra.mxu0 %v1801
          %1838 = vmatmul.bf16.gmra.mxu0 %v1807
          %v1839 = vpop.f32.mrf.mxu0
          %v1840 = vadd.f32 0.0, %v1839
          %v1841 = vpop.f32.mrf.mxu0
          %v1842 = vadd.f32 0.0, %v1841
          %1843 = vmatmul.bf16.gmra.mxu0 %v1810
          %v1844 = vpop.f32.mrf.mxu0
          %v1845 = vadd.f32 0.0, %v1844
          %v1846 = vpop.f32.mrf.mxu0
          %v1847 = vadd.f32 0.0, %v1846
          %1848 = vmatmul.bf16.gmra.mxu0 %v1813
          %v1849 = vpop.f32.mrf.mxu0
          %v1850 = vadd.f32 0.0, %v1849
          %v1851 = vpop.f32.mrf.mxu0
          %v1852 = vadd.f32 0.0, %v1851
          %1853 = vmatmul.bf16.gmra.mxu0 %v1816
          %v1854 = vpop.f32.mrf.mxu0
          %v1855 = vadd.f32 0.0, %v1854
          %v1856 = vpop.f32.mrf.mxu0
          %v1857 = vadd.f32 0.0, %v1856
          %1858 = vmatmul.bf16.gmra.mxu0 %v1819
          %v1859 = vpop.f32.mrf.mxu0
          %v1860 = vadd.f32 0.0, %v1859
          %v1861 = vpop.f32.mrf.mxu0
          %v1862 = vadd.f32 0.0, %v1861
          %1863 = vmatmul.bf16.gmra.mxu0 %v1822
          %v1864 = vpop.f32.mrf.mxu0
          %v1865 = vadd.f32 0.0, %v1864
          %v1866 = vpop.f32.mrf.mxu0
          %v1867 = vadd.f32 0.0, %v1866
          %1868 = vmatmul.bf16.gmra.mxu0 %v1825
          %v1869 = vpop.f32.mrf.mxu0
          %v1870 = vadd.f32 0.0, %v1869
          %v1871 = vpop.f32.mrf.mxu0
          %v1872 = vadd.f32 0.0, %v1871
          %1873 = vmatmul.bf16.gmra.mxu0 %v1828
          %v1874 = vpop.f32.mrf.mxu0
          %v1875 = vadd.f32 0.0, %v1874
          %v1876 = vpop.f32.mrf.mxu0
          %v1877 = vadd.f32 0.0, %v1876
          %1878 = vdwg.mxu0
          %1879 = vmatpush.bf16.msra.mxu0 0
          %1880 = vmatpush.bf16.msra.mxu0 0
          %1881 = vmatpush.bf16.msra.mxu0 0
          %1882 = vmatpush.bf16.msra.mxu0 0
          %1883 = vmatpush.bf16.msra.mxu0 0
          %1884 = vmatpush.bf16.msra.mxu0 0
          %1885 = vmatpush.bf16.msra.mxu0 0
          %1886 = vmatpush.bf16.msra.mxu0 %v1802
          %1887 = vmatmul.bf16.gmra.mxu0 %v1807
          %v1888 = vpop.f32.mrf.mxu0
          %v1889 = vadd.f32 0.0, %v1888
          %v1890 = vpop.f32.mrf.mxu0
          %v1891 = vadd.f32 0.0, %v1890
          %1892 = vmatmul.bf16.gmra.mxu0 %v1810
          %v1893 = vpop.f32.mrf.mxu0
          %v1894 = vadd.f32 0.0, %v1893
          %v1895 = vpop.f32.mrf.mxu0
          %v1896 = vadd.f32 0.0, %v1895
          %1897 = vmatmul.bf16.gmra.mxu0 %v1813
          %v1898 = vpop.f32.mrf.mxu0
          %v1899 = vadd.f32 0.0, %v1898
          %v1900 = vpop.f32.mrf.mxu0
          %v1901 = vadd.f32 0.0, %v1900
          %1902 = vmatmul.bf16.gmra.mxu0 %v1816
          %v1903 = vpop.f32.mrf.mxu0
          %v1904 = vadd.f32 0.0, %v1903
          %v1905 = vpop.f32.mrf.mxu0
          %v1906 = vadd.f32 0.0, %v1905
          %1907 = vmatmul.bf16.gmra.mxu0 %v1819
          %v1908 = vpop.f32.mrf.mxu0
          %v1909 = vadd.f32 0.0, %v1908
          %v1910 = vpop.f32.mrf.mxu0
          %v1911 = vadd.f32 0.0, %v1910
          %1912 = vmatmul.bf16.gmra.mxu0 %v1822
          %v1913 = vpop.f32.mrf.mxu0
          %v1914 = vadd.f32 0.0, %v1913
          %v1915 = vpop.f32.mrf.mxu0
          %v1916 = vadd.f32 0.0, %v1915
          %1917 = vmatmul.bf16.gmra.mxu0 %v1825
          %v1918 = vpop.f32.mrf.mxu0
          %v1919 = vadd.f32 0.0, %v1918
          %v1920 = vpop.f32.mrf.mxu0
          %v1921 = vadd.f32 0.0, %v1920
          %1922 = vmatmul.bf16.gmra.mxu0 %v1828
          %v1923 = vpop.f32.mrf.mxu0
          %v1924 = vadd.f32 0.0, %v1923
          %v1925 = vpop.f32.mrf.mxu0
          %v1926 = vadd.f32 0.0, %v1925
          %1927 = vdwg.mxu0
          %v1928 = vmax.f32 %v1840, %v1889
          %1929 = vmax.xlane.f32.xlu0 %v1928
          %v1930 = vpop.xlane.xlu0 %1929
          %v1931 = vmax.f32 %v1842, %v1891
          %1932 = vmax.xlane.f32.xlu0 %v1931
          %v1933 = vpop.xlane.xlu0 %1932
          %v1934 = vmax.f32 %v1845, %v1894
          %1935 = vmax.xlane.f32.xlu0 %v1934
          %v1936 = vpop.xlane.xlu0 %1935
          %v1937 = vmax.f32 %v1847, %v1896
          %1938 = vmax.xlane.f32.xlu0 %v1937
          %v1939 = vpop.xlane.xlu0 %1938
          %v1940 = vmax.f32 %v1850, %v1899
          %1941 = vmax.xlane.f32.xlu0 %v1940
          %v1942 = vpop.xlane.xlu0 %1941
          %v1943 = vmax.f32 %v1852, %v1901
          %1944 = vmax.xlane.f32.xlu0 %v1943
          %v1945 = vpop.xlane.xlu0 %1944
          %v1946 = vmax.f32 %v1855, %v1904
          %1947 = vmax.xlane.f32.xlu0 %v1946
          %v1948 = vpop.xlane.xlu0 %1947
          %v1949 = vmax.f32 %v1857, %v1906
          %1950 = vmax.xlane.f32.xlu0 %v1949
          %v1951 = vpop.xlane.xlu0 %1950
          %v1952 = vmax.f32 %v1860, %v1909
          %1953 = vmax.xlane.f32.xlu0 %v1952
          %v1954 = vpop.xlane.xlu0 %1953
          %v1955 = vmax.f32 %v1862, %v1911
          %1956 = vmax.xlane.f32.xlu0 %v1955
          %v1957 = vpop.xlane.xlu0 %1956
          %v1958 = vmax.f32 %v1865, %v1914
          %1959 = vmax.xlane.f32.xlu0 %v1958
          %v1960 = vpop.xlane.xlu0 %1959
          %v1961 = vmax.f32 %v1867, %v1916
          %1962 = vmax.xlane.f32.xlu0 %v1961
          %v1963 = vpop.xlane.xlu0 %1962
          %v1964 = vmax.f32 %v1870, %v1919
          %1965 = vmax.xlane.f32.xlu0 %v1964
          %v1966 = vpop.xlane.xlu0 %1965
          %v1967 = vmax.f32 %v1872, %v1921
          %1968 = vmax.xlane.f32.xlu0 %v1967
          %v1969 = vpop.xlane.xlu0 %1968
          %v1970 = vmax.f32 %v1875, %v1924
          %1971 = vmax.xlane.f32.xlu0 %v1970
          %v1972 = vpop.xlane.xlu0 %1971
          %v1973 = vmax.f32 %v1877, %v1926
          %1974 = vmax.xlane.f32.xlu0 %v1973
          %v1975 = vpop.xlane.xlu0 %1974
          %v1976 = vsub.f32 %v1840, %v1930
          %v1977 = vsub.f32 %v1889, %v1930
          %v1978 = vsub.f32 %v1842, %v1933
          %v1979 = vsub.f32 %v1891, %v1933
          %v1980 = vsub.f32 %v1845, %v1936
          %v1981 = vsub.f32 %v1894, %v1936
          %v1982 = vsub.f32 %v1847, %v1939
          %v1983 = vsub.f32 %v1896, %v1939
          %v1984 = vsub.f32 %v1850, %v1942
          %v1985 = vsub.f32 %v1899, %v1942
          %v1986 = vsub.f32 %v1852, %v1945
          %v1987 = vsub.f32 %v1901, %v1945
          %v1988 = vsub.f32 %v1855, %v1948
          %v1989 = vsub.f32 %v1904, %v1948
          %v1990 = vsub.f32 %v1857, %v1951
          %v1991 = vsub.f32 %v1906, %v1951
          %v1992 = vsub.f32 %v1860, %v1954
          %v1993 = vsub.f32 %v1909, %v1954
          %v1994 = vsub.f32 %v1862, %v1957
          %v1995 = vsub.f32 %v1911, %v1957
          %v1996 = vsub.f32 %v1865, %v1960
          %v1997 = vsub.f32 %v1914, %v1960
          %v1998 = vsub.f32 %v1867, %v1963
          %v1999 = vsub.f32 %v1916, %v1963
          %v2000 = vsub.f32 %v1870, %v1966
          %v2001 = vsub.f32 %v1919, %v1966
          %v2002 = vsub.f32 %v1872, %v1969
          %v2003 = vsub.f32 %v1921, %v1969
          %v2004 = vsub.f32 %v1875, %v1972
          %v2005 = vsub.f32 %v1924, %v1972
          %v2006 = vsub.f32 %v1877, %v1975
          %v2007 = vsub.f32 %v1926, %v1975
          %v2008 = vmul.f32 %v1976, 1.442695
          %v2009 = vpow.pop %v2008
          %v2010 = vmul.f32 %v1977, 1.442695
          %v2011 = vpow.pop %v2010
          %v2012 = vmul.f32 %v1978, 1.442695
          %v2013 = vpow.pop %v2012
          %v2014 = vmul.f32 %v1979, 1.442695
          %v2015 = vpow.pop %v2014
          %v2016 = vmul.f32 %v1980, 1.442695
          %v2017 = vpow.pop %v2016
          %v2018 = vmul.f32 %v1981, 1.442695
          %v2019 = vpow.pop %v2018
          %v2020 = vmul.f32 %v1982, 1.442695
          %v2021 = vpow.pop %v2020
          %v2022 = vmul.f32 %v1983, 1.442695
          %v2023 = vpow.pop %v2022
          %v2024 = vmul.f32 %v1984, 1.442695
          %v2025 = vpow.pop %v2024
          %v2026 = vmul.f32 %v1985, 1.442695
          %v2027 = vpow.pop %v2026
          %v2028 = vmul.f32 %v1986, 1.442695
          %v2029 = vpow.pop %v2028
          %v2030 = vmul.f32 %v1987, 1.442695
          %v2031 = vpow.pop %v2030
          %v2032 = vmul.f32 %v1988, 1.442695
          %v2033 = vpow.pop %v2032
          %v2034 = vmul.f32 %v1989, 1.442695
          %v2035 = vpow.pop %v2034
          %v2036 = vmul.f32 %v1990, 1.442695
          %v2037 = vpow.pop %v2036
          %v2038 = vmul.f32 %v1991, 1.442695
          %v2039 = vpow.pop %v2038
          %v2040 = vmul.f32 %v1992, 1.442695
          %v2041 = vpow.pop %v2040
          %v2042 = vmul.f32 %v1993, 1.442695
          %v2043 = vpow.pop %v2042
          %v2044 = vmul.f32 %v1994, 1.442695
          %v2045 = vpow.pop %v2044
          %v2046 = vmul.f32 %v1995, 1.442695
          %v2047 = vpow.pop %v2046
          %v2048 = vmul.f32 %v1996, 1.442695
          %v2049 = vpow.pop %v2048
          %v2050 = vmul.f32 %v1997, 1.442695
          %v2051 = vpow.pop %v2050
          %v2052 = vmul.f32 %v1998, 1.442695
          %v2053 = vpow.pop %v2052
          %v2054 = vmul.f32 %v1999, 1.442695
          %v2055 = vpow.pop %v2054
          %v2056 = vmul.f32 %v2000, 1.442695
          %v2057 = vpow.pop %v2056
          %v2058 = vmul.f32 %v2001, 1.442695
          %v2059 = vpow.pop %v2058
          %v2060 = vmul.f32 %v2002, 1.442695
          %v2061 = vpow.pop %v2060
          %v2062 = vmul.f32 %v2003, 1.442695
          %v2063 = vpow.pop %v2062
          %v2064 = vmul.f32 %v2004, 1.442695
          %v2065 = vpow.pop %v2064
          %v2066 = vmul.f32 %v2005, 1.442695
          %v2067 = vpow.pop %v2066
          %v2068 = vmul.f32 %v2006, 1.442695
          %v2069 = vpow.pop %v2068
          %v2070 = vmul.f32 %v2007, 1.442695
          %v2071 = vpow.pop %v2070
          %v2072 = vadd.f32 %v2009, %v2011
          %2073 = vadd.xlane.f32.xlu0 %v2072
          %v2074 = vpop.xlane.xlu0 %2073
          %v2075 = vadd.f32 %v2013, %v2015
          %2076 = vadd.xlane.f32.xlu0 %v2075
          %v2077 = vpop.xlane.xlu0 %2076
          %v2078 = vadd.f32 %v2017, %v2019
          %2079 = vadd.xlane.f32.xlu0 %v2078
          %v2080 = vpop.xlane.xlu0 %2079
          %v2081 = vadd.f32 %v2021, %v2023
          %2082 = vadd.xlane.f32.xlu0 %v2081
          %v2083 = vpop.xlane.xlu0 %2082
          %v2084 = vadd.f32 %v2025, %v2027
          %2085 = vadd.xlane.f32.xlu0 %v2084
          %v2086 = vpop.xlane.xlu0 %2085
          %v2087 = vadd.f32 %v2029, %v2031
          %2088 = vadd.xlane.f32.xlu0 %v2087
          %v2089 = vpop.xlane.xlu0 %2088
          %v2090 = vadd.f32 %v2033, %v2035
          %2091 = vadd.xlane.f32.xlu0 %v2090
          %v2092 = vpop.xlane.xlu0 %2091
          %v2093 = vadd.f32 %v2037, %v2039
          %2094 = vadd.xlane.f32.xlu0 %v2093
          %v2095 = vpop.xlane.xlu0 %2094
          %v2096 = vadd.f32 %v2041, %v2043
          %2097 = vadd.xlane.f32.xlu0 %v2096
          %v2098 = vpop.xlane.xlu0 %2097
          %v2099 = vadd.f32 %v2045, %v2047
          %2100 = vadd.xlane.f32.xlu0 %v2099
          %v2101 = vpop.xlane.xlu0 %2100
          %v2102 = vadd.f32 %v2049, %v2051
          %2103 = vadd.xlane.f32.xlu0 %v2102
          %v2104 = vpop.xlane.xlu0 %2103
          %v2105 = vadd.f32 %v2053, %v2055
          %2106 = vadd.xlane.f32.xlu0 %v2105
          %v2107 = vpop.xlane.xlu0 %2106
          %v2108 = vadd.f32 %v2057, %v2059
          %2109 = vadd.xlane.f32.xlu0 %v2108
          %v2110 = vpop.xlane.xlu0 %2109
          %v2111 = vadd.f32 %v2061, %v2063
          %2112 = vadd.xlane.f32.xlu0 %v2111
          %v2113 = vpop.xlane.xlu0 %2112
          %v2114 = vadd.f32 %v2065, %v2067
          %2115 = vadd.xlane.f32.xlu0 %v2114
          %v2116 = vpop.xlane.xlu0 %2115
          %v2117 = vadd.f32 %v2069, %v2071
          %2118 = vadd.xlane.f32.xlu0 %v2117
          %v2119 = vpop.xlane.xlu0 %2118
          %v2120 = vrcp.pop %v2074
          %v2121 = vrcp.pop %v2077
          %v2122 = vrcp.pop %v2080
          %v2123 = vrcp.pop %v2083
          %v2124 = vrcp.pop %v2086
          %v2125 = vrcp.pop %v2089
          %v2126 = vrcp.pop %v2092
          %v2127 = vrcp.pop %v2095
          %v2128 = vrcp.pop %v2098
          %v2129 = vrcp.pop %v2101
          %v2130 = vrcp.pop %v2104
          %v2131 = vrcp.pop %v2107
          %v2132 = vrcp.pop %v2110
          %v2133 = vrcp.pop %v2113
          %v2134 = vrcp.pop %v2116
          %v2135 = vrcp.pop %v2119
          %v2136 = vmul.f32 %v2009, %v2120
          %v2137 = vmul.f32 %v2011, %v2120
          %v2138 = vmul.f32 %v2013, %v2121
          %v2139 = vmul.f32 %v2015, %v2121
          %v2140 = vmul.f32 %v2017, %v2122
          %v2141 = vmul.f32 %v2019, %v2122
          %v2142 = vmul.f32 %v2021, %v2123
          %v2143 = vmul.f32 %v2023, %v2123
          %v2144 = vmul.f32 %v2025, %v2124
          %v2145 = vmul.f32 %v2027, %v2124
          %v2146 = vmul.f32 %v2029, %v2125
          %v2147 = vmul.f32 %v2031, %v2125
          %v2148 = vmul.f32 %v2033, %v2126
          %v2149 = vmul.f32 %v2035, %v2126
          %v2150 = vmul.f32 %v2037, %v2127
          %v2151 = vmul.f32 %v2039, %v2127
          %v2152 = vmul.f32 %v2041, %v2128
          %v2153 = vmul.f32 %v2043, %v2128
          %v2154 = vmul.f32 %v2045, %v2129
          %v2155 = vmul.f32 %v2047, %v2129
          %v2156 = vmul.f32 %v2049, %v2130
          %v2157 = vmul.f32 %v2051, %v2130
          %v2158 = vmul.f32 %v2053, %v2131
          %v2159 = vmul.f32 %v2055, %v2131
          %v2160 = vmul.f32 %v2057, %v2132
          %v2161 = vmul.f32 %v2059, %v2132
          %v2162 = vmul.f32 %v2061, %v2133
          %v2163 = vmul.f32 %v2063, %v2133
          %v2164 = vmul.f32 %v2065, %v2134
          %v2165 = vmul.f32 %v2067, %v2134
          %v2166 = vmul.f32 %v2069, %v2135
          %v2167 = vmul.f32 %v2071, %v2135
          %v2168 = vpack.c.bf16 %v2138, %v2136
          %v2169 = vpack.c.bf16 %v2139, %v2137
          %v2170 = vpack.c.bf16 %v2142, %v2140
          %v2171 = vpack.c.bf16 %v2143, %v2141
          %v2172 = vpack.c.bf16 %v2146, %v2144
          %v2173 = vpack.c.bf16 %v2147, %v2145
          %v2174 = vpack.c.bf16 %v2150, %v2148
          %v2175 = vpack.c.bf16 %v2151, %v2149
          %v2176 = vpack.c.bf16 %v2154, %v2152
          %v2177 = vpack.c.bf16 %v2155, %v2153
          %v2178 = vpack.c.bf16 %v2158, %v2156
          %v2179 = vpack.c.bf16 %v2159, %v2157
          %v2180 = vpack.c.bf16 %v2162, %v2160
          %v2181 = vpack.c.bf16 %v2163, %v2161
          %v2182 = vpack.c.bf16 %v2166, %v2164
          %v2183 = vpack.c.bf16 %v2167, %v2165
          %v2186 = vunpack.c.l.b16 %v1771
          %v2187 = vunpack.c.l.b16 %v1772
          %v2188 = vpack.c.b16 %v2187, %v2186
          %2190 = vmatpush.bf16.msra.mxu0 %v2182
          %2191 = vmatpush.bf16.msra.mxu0 %v2180
          %2192 = vmatpush.bf16.msra.mxu0 %v2178
          %2193 = vmatpush.bf16.msra.mxu0 %v2176
          %2194 = vmatpush.bf16.msra.mxu0 %v2174
          %2195 = vmatpush.bf16.msra.mxu0 %v2172
          %2196 = vmatpush.bf16.msra.mxu0 %v2170
          %2197 = vmatpush.bf16.msra.mxu0 %v2168
          %2198 = vmatmul.bf16.gmra.mxu0 %v2188
          %v2199 = vpop.f32.mrf.mxu0
          %v2200 = vadd.f32 0.0, %v2199
          %v2201 = vpop.f32.mrf.mxu0
          %v2202 = vadd.f32 0.0, %v2201
          %2203 = vdwg.mxu0
          %2204 = vmatpush.bf16.msra.mxu0 %v2183
          %2205 = vmatpush.bf16.msra.mxu0 %v2181
          %2206 = vmatpush.bf16.msra.mxu0 %v2179
          %2207 = vmatpush.bf16.msra.mxu0 %v2177
          %2208 = vmatpush.bf16.msra.mxu0 %v2175
          %2209 = vmatpush.bf16.msra.mxu0 %v2173
          %2210 = vmatpush.bf16.msra.mxu0 %v2171
          %2211 = vmatpush.bf16.msra.mxu0 %v2169
          %2212 = vmatmul.bf16.gmra.mxu0 %v2188
          %v2213 = vpop.f32.mrf.mxu0
          %v2214 = vadd.f32 0.0, %v2213
          %v2215 = vpop.f32.mrf.mxu0
          %v2216 = vadd.f32 0.0, %v2215
          %2217 = vdwg.mxu0
          %v2218 = vadd.f32 %v1760, %v2200
          %v2219 = vadd.f32 %v1761, %v2214
          %v2220 = vadd.f32 %v1762, %v2202
          %v2221 = vadd.f32 %v1763, %v2216
        $region64: #{tpu_custom_call.1} parent=51 // loop_footer
          %s1759 = sadd.s32 1, %s1755
        $region65: #{tpu_custom_call.1} parent=51 // loop_footer_branch
          %1754 = sbr.rel target = $region61
        $region66: #{tpu_custom_call.1} parent=51 // loop_exit
          _
        %v2222 = vpack.c.bf16 %v1761, %v1760
        %v2223 = vpack.c.bf16 %v1763, %v1762
        %2224 = vst [vmem:[#allocation3 + $0x10] sm:$0xff] %v2222
        %2225 = vst [vmem:[#allocation3 + $0x18] sm:$0xff] %v2223
        %v2226 = vld [vmem:[#allocation2 + $0x60] sm:$0xff]
        %v2227 = vld [vmem:[#allocation2 + $0x68] sm:$0xff]
        loop: start=0, step=1, limit=2
        $region67: #{tpu_custom_call.1} parent=51 // loop_pre_header
          _
        $region68: #{tpu_custom_call.1} parent=51 // loop_header
          %s2229 = sphi 0, %s2233
          %p2230 = scmp.ge.s32.totalorder %s2229, 2
          %v2234 = vphi 0.0, %v2692
          %v2235 = vphi 0.0, %v2693
          %v2236 = vphi 0.0, %v2694
          %v2237 = vphi 0.0, %v2695
        $region69: #{tpu_custom_call.1} parent=51 // loop_header_branch
          %2232 = sbr.rel (%p2230) target = $region73
        $region70: #{tpu_custom_call.1} parent=51 // loop_body
          %s2238 = smul.u32 %s2229, 128
          %s2239 = sshra.s32 %s2238, 7
          %s2240 = sand.u32 %s2238, 127
          %s2241 = smul.addr %s2239, 4
          %s2242 = scalar_lea.vmem [#allocation2], %s2241
          %v2243 = vld [vmem:[%s2242 + $0x70] sm:$0xf]
          %v2244 = vld [vmem:[%s2242 + $0x78] sm:$0xf]
          %v2245 = vld [vmem:[%s2242 + $0x80] sm:$0xf]
          %v2246 = vld [vmem:[%s2242 + $0x88] sm:$0xf]
          %v2249 = vunpack.c.l.b16 %v2243
          %v2250 = vunpack.c.l.b16 %v2244
          %v2251 = vpack.c.b16 %v2250, %v2249
          %2253 = vxpose.xlu0.c.b16.start [1/8] %v2251, 128
          %2254 = vxpose.xlu0.c.b16.cont [2/8] 0, 128
          %2255 = vxpose.xlu0.c.b16.cont [3/8] 0, 128
          %2256 = vxpose.xlu0.c.b16.cont [4/8] 0, 128
          %2257 = vxpose.xlu0.c.b16.cont [5/8] 0, 128
          %2258 = vxpose.xlu0.c.b16.cont [6/8] 0, 128
          %2259 = vxpose.xlu0.c.b16.cont [7/8] 0, 128
          %2260 = vxpose.xlu0.c.b16.end [8/8] 0, 128
          %v2261 = vpop.trf.xlu0
          %v2262 = vpop.trf.xlu0
          %v2263 = vpop.trf.xlu0
          %v2264 = vpop.trf.xlu0
          %v2265 = vpop.trf.xlu0
          %v2266 = vpop.trf.xlu0
          %v2267 = vpop.trf.xlu0
          %v2268 = vpop.trf.xlu0
          %v2271 = vunpack.c.l.b16 %v2226
          %v2272 = vunpack.c.h.b16 %v2226
          %v2273 = vunpack.c.l.b16 %v2227
          %v2274 = vunpack.c.h.b16 %v2227
          %v2275 = vpack.c.b16 %v2273, %v2271
          %v2276 = vpack.c.b16 %v2274, %v2272
          %vm2279 = vcmask 130048
          %v2281 = vsel %vm2279, %v2261, 0
          %v2284 = vsel %vm2279, %v2262, 0
          %v2287 = vsel %vm2279, %v2263, 0
          %v2290 = vsel %vm2279, %v2264, 0
          %v2293 = vsel %vm2279, %v2265, 0
          %v2296 = vsel %vm2279, %v2266, 0
          %v2299 = vsel %vm2279, %v2267, 0
          %v2302 = vsel %vm2279, %v2268, 0
          %2304 = vmatpush.bf16.msra.mxu0 0
          %2305 = vmatpush.bf16.msra.mxu0 0
          %2306 = vmatpush.bf16.msra.mxu0 0
          %2307 = vmatpush.bf16.msra.mxu0 0
          %2308 = vmatpush.bf16.msra.mxu0 0
          %2309 = vmatpush.bf16.msra.mxu0 0
          %2310 = vmatpush.bf16.msra.mxu0 0
          %2311 = vmatpush.bf16.msra.mxu0 %v2275
          %2312 = vmatmul.bf16.gmra.mxu0 %v2281
          %v2313 = vpop.f32.mrf.mxu0
          %v2314 = vadd.f32 0.0, %v2313
          %v2315 = vpop.f32.mrf.mxu0
          %v2316 = vadd.f32 0.0, %v2315
          %2317 = vmatmul.bf16.gmra.mxu0 %v2284
          %v2318 = vpop.f32.mrf.mxu0
          %v2319 = vadd.f32 0.0, %v2318
          %v2320 = vpop.f32.mrf.mxu0
          %v2321 = vadd.f32 0.0, %v2320
          %2322 = vmatmul.bf16.gmra.mxu0 %v2287
          %v2323 = vpop.f32.mrf.mxu0
          %v2324 = vadd.f32 0.0, %v2323
          %v2325 = vpop.f32.mrf.mxu0
          %v2326 = vadd.f32 0.0, %v2325
          %2327 = vmatmul.bf16.gmra.mxu0 %v2290
          %v2328 = vpop.f32.mrf.mxu0
          %v2329 = vadd.f32 0.0, %v2328
          %v2330 = vpop.f32.mrf.mxu0
          %v2331 = vadd.f32 0.0, %v2330
          %2332 = vmatmul.bf16.gmra.mxu0 %v2293
          %v2333 = vpop.f32.mrf.mxu0
          %v2334 = vadd.f32 0.0, %v2333
          %v2335 = vpop.f32.mrf.mxu0
          %v2336 = vadd.f32 0.0, %v2335
          %2337 = vmatmul.bf16.gmra.mxu0 %v2296
          %v2338 = vpop.f32.mrf.mxu0
          %v2339 = vadd.f32 0.0, %v2338
          %v2340 = vpop.f32.mrf.mxu0
          %v2341 = vadd.f32 0.0, %v2340
          %2342 = vmatmul.bf16.gmra.mxu0 %v2299
          %v2343 = vpop.f32.mrf.mxu0
          %v2344 = vadd.f32 0.0, %v2343
          %v2345 = vpop.f32.mrf.mxu0
          %v2346 = vadd.f32 0.0, %v2345
          %2347 = vmatmul.bf16.gmra.mxu0 %v2302
          %v2348 = vpop.f32.mrf.mxu0
          %v2349 = vadd.f32 0.0, %v2348
          %v2350 = vpop.f32.mrf.mxu0
          %v2351 = vadd.f32 0.0, %v2350
          %2352 = vdwg.mxu0
          %2353 = vmatpush.bf16.msra.mxu0 0
          %2354 = vmatpush.bf16.msra.mxu0 0
          %2355 = vmatpush.bf16.msra.mxu0 0
          %2356 = vmatpush.bf16.msra.mxu0 0
          %2357 = vmatpush.bf16.msra.mxu0 0
          %2358 = vmatpush.bf16.msra.mxu0 0
          %2359 = vmatpush.bf16.msra.mxu0 0
          %2360 = vmatpush.bf16.msra.mxu0 %v2276
          %2361 = vmatmul.bf16.gmra.mxu0 %v2281
          %v2362 = vpop.f32.mrf.mxu0
          %v2363 = vadd.f32 0.0, %v2362
          %v2364 = vpop.f32.mrf.mxu0
          %v2365 = vadd.f32 0.0, %v2364
          %2366 = vmatmul.bf16.gmra.mxu0 %v2284
          %v2367 = vpop.f32.mrf.mxu0
          %v2368 = vadd.f32 0.0, %v2367
          %v2369 = vpop.f32.mrf.mxu0
          %v2370 = vadd.f32 0.0, %v2369
          %2371 = vmatmul.bf16.gmra.mxu0 %v2287
          %v2372 = vpop.f32.mrf.mxu0
          %v2373 = vadd.f32 0.0, %v2372
          %v2374 = vpop.f32.mrf.mxu0
          %v2375 = vadd.f32 0.0, %v2374
          %2376 = vmatmul.bf16.gmra.mxu0 %v2290
          %v2377 = vpop.f32.mrf.mxu0
          %v2378 = vadd.f32 0.0, %v2377
          %v2379 = vpop.f32.mrf.mxu0
          %v2380 = vadd.f32 0.0, %v2379
          %2381 = vmatmul.bf16.gmra.mxu0 %v2293
          %v2382 = vpop.f32.mrf.mxu0
          %v2383 = vadd.f32 0.0, %v2382
          %v2384 = vpop.f32.mrf.mxu0
          %v2385 = vadd.f32 0.0, %v2384
          %2386 = vmatmul.bf16.gmra.mxu0 %v2296
          %v2387 = vpop.f32.mrf.mxu0
          %v2388 = vadd.f32 0.0, %v2387
          %v2389 = vpop.f32.mrf.mxu0
          %v2390 = vadd.f32 0.0, %v2389
          %2391 = vmatmul.bf16.gmra.mxu0 %v2299
          %v2392 = vpop.f32.mrf.mxu0
          %v2393 = vadd.f32 0.0, %v2392
          %v2394 = vpop.f32.mrf.mxu0
          %v2395 = vadd.f32 0.0, %v2394
          %2396 = vmatmul.bf16.gmra.mxu0 %v2302
          %v2397 = vpop.f32.mrf.mxu0
          %v2398 = vadd.f32 0.0, %v2397
          %v2399 = vpop.f32.mrf.mxu0
          %v2400 = vadd.f32 0.0, %v2399
          %2401 = vdwg.mxu0
          %v2402 = vmax.f32 %v2314, %v2363
          %2403 = vmax.xlane.f32.xlu0 %v2402
          %v2404 = vpop.xlane.xlu0 %2403
          %v2405 = vmax.f32 %v2316, %v2365
          %2406 = vmax.xlane.f32.xlu0 %v2405
          %v2407 = vpop.xlane.xlu0 %2406
          %v2408 = vmax.f32 %v2319, %v2368
          %2409 = vmax.xlane.f32.xlu0 %v2408
          %v2410 = vpop.xlane.xlu0 %2409
          %v2411 = vmax.f32 %v2321, %v2370
          %2412 = vmax.xlane.f32.xlu0 %v2411
          %v2413 = vpop.xlane.xlu0 %2412
          %v2414 = vmax.f32 %v2324, %v2373
          %2415 = vmax.xlane.f32.xlu0 %v2414
          %v2416 = vpop.xlane.xlu0 %2415
          %v2417 = vmax.f32 %v2326, %v2375
          %2418 = vmax.xlane.f32.xlu0 %v2417
          %v2419 = vpop.xlane.xlu0 %2418
          %v2420 = vmax.f32 %v2329, %v2378
          %2421 = vmax.xlane.f32.xlu0 %v2420
          %v2422 = vpop.xlane.xlu0 %2421
          %v2423 = vmax.f32 %v2331, %v2380
          %2424 = vmax.xlane.f32.xlu0 %v2423
          %v2425 = vpop.xlane.xlu0 %2424
          %v2426 = vmax.f32 %v2334, %v2383
          %2427 = vmax.xlane.f32.xlu0 %v2426
          %v2428 = vpop.xlane.xlu0 %2427
          %v2429 = vmax.f32 %v2336, %v2385
          %2430 = vmax.xlane.f32.xlu0 %v2429
          %v2431 = vpop.xlane.xlu0 %2430
          %v2432 = vmax.f32 %v2339, %v2388
          %2433 = vmax.xlane.f32.xlu0 %v2432
          %v2434 = vpop.xlane.xlu0 %2433
          %v2435 = vmax.f32 %v2341, %v2390
          %2436 = vmax.xlane.f32.xlu0 %v2435
          %v2437 = vpop.xlane.xlu0 %2436
          %v2438 = vmax.f32 %v2344, %v2393
          %2439 = vmax.xlane.f32.xlu0 %v2438
          %v2440 = vpop.xlane.xlu0 %2439
          %v2441 = vmax.f32 %v2346, %v2395
          %2442 = vmax.xlane.f32.xlu0 %v2441
          %v2443 = vpop.xlane.xlu0 %2442
          %v2444 = vmax.f32 %v2349, %v2398
          %2445 = vmax.xlane.f32.xlu0 %v2444
          %v2446 = vpop.xlane.xlu0 %2445
          %v2447 = vmax.f32 %v2351, %v2400
          %2448 = vmax.xlane.f32.xlu0 %v2447
          %v2449 = vpop.xlane.xlu0 %2448
          %v2450 = vsub.f32 %v2314, %v2404
          %v2451 = vsub.f32 %v2363, %v2404
          %v2452 = vsub.f32 %v2316, %v2407
          %v2453 = vsub.f32 %v2365, %v2407
          %v2454 = vsub.f32 %v2319, %v2410
          %v2455 = vsub.f32 %v2368, %v2410
          %v2456 = vsub.f32 %v2321, %v2413
          %v2457 = vsub.f32 %v2370, %v2413
          %v2458 = vsub.f32 %v2324, %v2416
          %v2459 = vsub.f32 %v2373, %v2416
          %v2460 = vsub.f32 %v2326, %v2419
          %v2461 = vsub.f32 %v2375, %v2419
          %v2462 = vsub.f32 %v2329, %v2422
          %v2463 = vsub.f32 %v2378, %v2422
          %v2464 = vsub.f32 %v2331, %v2425
          %v2465 = vsub.f32 %v2380, %v2425
          %v2466 = vsub.f32 %v2334, %v2428
          %v2467 = vsub.f32 %v2383, %v2428
          %v2468 = vsub.f32 %v2336, %v2431
          %v2469 = vsub.f32 %v2385, %v2431
          %v2470 = vsub.f32 %v2339, %v2434
          %v2471 = vsub.f32 %v2388, %v2434
          %v2472 = vsub.f32 %v2341, %v2437
          %v2473 = vsub.f32 %v2390, %v2437
          %v2474 = vsub.f32 %v2344, %v2440
          %v2475 = vsub.f32 %v2393, %v2440
          %v2476 = vsub.f32 %v2346, %v2443
          %v2477 = vsub.f32 %v2395, %v2443
          %v2478 = vsub.f32 %v2349, %v2446
          %v2479 = vsub.f32 %v2398, %v2446
          %v2480 = vsub.f32 %v2351, %v2449
          %v2481 = vsub.f32 %v2400, %v2449
          %v2482 = vmul.f32 %v2450, 1.442695
          %v2483 = vpow.pop %v2482
          %v2484 = vmul.f32 %v2451, 1.442695
          %v2485 = vpow.pop %v2484
          %v2486 = vmul.f32 %v2452, 1.442695
          %v2487 = vpow.pop %v2486
          %v2488 = vmul.f32 %v2453, 1.442695
          %v2489 = vpow.pop %v2488
          %v2490 = vmul.f32 %v2454, 1.442695
          %v2491 = vpow.pop %v2490
          %v2492 = vmul.f32 %v2455, 1.442695
          %v2493 = vpow.pop %v2492
          %v2494 = vmul.f32 %v2456, 1.442695
          %v2495 = vpow.pop %v2494
          %v2496 = vmul.f32 %v2457, 1.442695
          %v2497 = vpow.pop %v2496
          %v2498 = vmul.f32 %v2458, 1.442695
          %v2499 = vpow.pop %v2498
          %v2500 = vmul.f32 %v2459, 1.442695
          %v2501 = vpow.pop %v2500
          %v2502 = vmul.f32 %v2460, 1.442695
          %v2503 = vpow.pop %v2502
          %v2504 = vmul.f32 %v2461, 1.442695
          %v2505 = vpow.pop %v2504
          %v2506 = vmul.f32 %v2462, 1.442695
          %v2507 = vpow.pop %v2506
          %v2508 = vmul.f32 %v2463, 1.442695
          %v2509 = vpow.pop %v2508
          %v2510 = vmul.f32 %v2464, 1.442695
          %v2511 = vpow.pop %v2510
          %v2512 = vmul.f32 %v2465, 1.442695
          %v2513 = vpow.pop %v2512
          %v2514 = vmul.f32 %v2466, 1.442695
          %v2515 = vpow.pop %v2514
          %v2516 = vmul.f32 %v2467, 1.442695
          %v2517 = vpow.pop %v2516
          %v2518 = vmul.f32 %v2468, 1.442695
          %v2519 = vpow.pop %v2518
          %v2520 = vmul.f32 %v2469, 1.442695
          %v2521 = vpow.pop %v2520
          %v2522 = vmul.f32 %v2470, 1.442695
          %v2523 = vpow.pop %v2522
          %v2524 = vmul.f32 %v2471, 1.442695
          %v2525 = vpow.pop %v2524
          %v2526 = vmul.f32 %v2472, 1.442695
          %v2527 = vpow.pop %v2526
          %v2528 = vmul.f32 %v2473, 1.442695
          %v2529 = vpow.pop %v2528
          %v2530 = vmul.f32 %v2474, 1.442695
          %v2531 = vpow.pop %v2530
          %v2532 = vmul.f32 %v2475, 1.442695
          %v2533 = vpow.pop %v2532
          %v2534 = vmul.f32 %v2476, 1.442695
          %v2535 = vpow.pop %v2534
          %v2536 = vmul.f32 %v2477, 1.442695
          %v2537 = vpow.pop %v2536
          %v2538 = vmul.f32 %v2478, 1.442695
          %v2539 = vpow.pop %v2538
          %v2540 = vmul.f32 %v2479, 1.442695
          %v2541 = vpow.pop %v2540
          %v2542 = vmul.f32 %v2480, 1.442695
          %v2543 = vpow.pop %v2542
          %v2544 = vmul.f32 %v2481, 1.442695
          %v2545 = vpow.pop %v2544
          %v2546 = vadd.f32 %v2483, %v2485
          %2547 = vadd.xlane.f32.xlu0 %v2546
          %v2548 = vpop.xlane.xlu0 %2547
          %v2549 = vadd.f32 %v2487, %v2489
          %2550 = vadd.xlane.f32.xlu0 %v2549
          %v2551 = vpop.xlane.xlu0 %2550
          %v2552 = vadd.f32 %v2491, %v2493
          %2553 = vadd.xlane.f32.xlu0 %v2552
          %v2554 = vpop.xlane.xlu0 %2553
          %v2555 = vadd.f32 %v2495, %v2497
          %2556 = vadd.xlane.f32.xlu0 %v2555
          %v2557 = vpop.xlane.xlu0 %2556
          %v2558 = vadd.f32 %v2499, %v2501
          %2559 = vadd.xlane.f32.xlu0 %v2558
          %v2560 = vpop.xlane.xlu0 %2559
          %v2561 = vadd.f32 %v2503, %v2505
          %2562 = vadd.xlane.f32.xlu0 %v2561
          %v2563 = vpop.xlane.xlu0 %2562
          %v2564 = vadd.f32 %v2507, %v2509
          %2565 = vadd.xlane.f32.xlu0 %v2564
          %v2566 = vpop.xlane.xlu0 %2565
          %v2567 = vadd.f32 %v2511, %v2513
          %2568 = vadd.xlane.f32.xlu0 %v2567
          %v2569 = vpop.xlane.xlu0 %2568
          %v2570 = vadd.f32 %v2515, %v2517
          %2571 = vadd.xlane.f32.xlu0 %v2570
          %v2572 = vpop.xlane.xlu0 %2571
          %v2573 = vadd.f32 %v2519, %v2521
          %2574 = vadd.xlane.f32.xlu0 %v2573
          %v2575 = vpop.xlane.xlu0 %2574
          %v2576 = vadd.f32 %v2523, %v2525
          %2577 = vadd.xlane.f32.xlu0 %v2576
          %v2578 = vpop.xlane.xlu0 %2577
          %v2579 = vadd.f32 %v2527, %v2529
          %2580 = vadd.xlane.f32.xlu0 %v2579
          %v2581 = vpop.xlane.xlu0 %2580
          %v2582 = vadd.f32 %v2531, %v2533
          %2583 = vadd.xlane.f32.xlu0 %v2582
          %v2584 = vpop.xlane.xlu0 %2583
          %v2585 = vadd.f32 %v2535, %v2537
          %2586 = vadd.xlane.f32.xlu0 %v2585
          %v2587 = vpop.xlane.xlu0 %2586
          %v2588 = vadd.f32 %v2539, %v2541
          %2589 = vadd.xlane.f32.xlu0 %v2588
          %v2590 = vpop.xlane.xlu0 %2589
          %v2591 = vadd.f32 %v2543, %v2545
          %2592 = vadd.xlane.f32.xlu0 %v2591
          %v2593 = vpop.xlane.xlu0 %2592
          %v2594 = vrcp.pop %v2548
          %v2595 = vrcp.pop %v2551
          %v2596 = vrcp.pop %v2554
          %v2597 = vrcp.pop %v2557
          %v2598 = vrcp.pop %v2560
          %v2599 = vrcp.pop %v2563
          %v2600 = vrcp.pop %v2566
          %v2601 = vrcp.pop %v2569
          %v2602 = vrcp.pop %v2572
          %v2603 = vrcp.pop %v2575
          %v2604 = vrcp.pop %v2578
          %v2605 = vrcp.pop %v2581
          %v2606 = vrcp.pop %v2584
          %v2607 = vrcp.pop %v2587
          %v2608 = vrcp.pop %v2590
          %v2609 = vrcp.pop %v2593
          %v2610 = vmul.f32 %v2483, %v2594
          %v2611 = vmul.f32 %v2485, %v2594
          %v2612 = vmul.f32 %v2487, %v2595
          %v2613 = vmul.f32 %v2489, %v2595
          %v2614 = vmul.f32 %v2491, %v2596
          %v2615 = vmul.f32 %v2493, %v2596
          %v2616 = vmul.f32 %v2495, %v2597
          %v2617 = vmul.f32 %v2497, %v2597
          %v2618 = vmul.f32 %v2499, %v2598
          %v2619 = vmul.f32 %v2501, %v2598
          %v2620 = vmul.f32 %v2503, %v2599
          %v2621 = vmul.f32 %v2505, %v2599
          %v2622 = vmul.f32 %v2507, %v2600
          %v2623 = vmul.f32 %v2509, %v2600
          %v2624 = vmul.f32 %v2511, %v2601
          %v2625 = vmul.f32 %v2513, %v2601
          %v2626 = vmul.f32 %v2515, %v2602
          %v2627 = vmul.f32 %v2517, %v2602
          %v2628 = vmul.f32 %v2519, %v2603
          %v2629 = vmul.f32 %v2521, %v2603
          %v2630 = vmul.f32 %v2523, %v2604
          %v2631 = vmul.f32 %v2525, %v2604
          %v2632 = vmul.f32 %v2527, %v2605
          %v2633 = vmul.f32 %v2529, %v2605
          %v2634 = vmul.f32 %v2531, %v2606
          %v2635 = vmul.f32 %v2533, %v2606
          %v2636 = vmul.f32 %v2535, %v2607
          %v2637 = vmul.f32 %v2537, %v2607
          %v2638 = vmul.f32 %v2539, %v2608
          %v2639 = vmul.f32 %v2541, %v2608
          %v2640 = vmul.f32 %v2543, %v2609
          %v2641 = vmul.f32 %v2545, %v2609
          %v2642 = vpack.c.bf16 %v2612, %v2610
          %v2643 = vpack.c.bf16 %v2613, %v2611
          %v2644 = vpack.c.bf16 %v2616, %v2614
          %v2645 = vpack.c.bf16 %v2617, %v2615
          %v2646 = vpack.c.bf16 %v2620, %v2618
          %v2647 = vpack.c.bf16 %v2621, %v2619
          %v2648 = vpack.c.bf16 %v2624, %v2622
          %v2649 = vpack.c.bf16 %v2625, %v2623
          %v2650 = vpack.c.bf16 %v2628, %v2626
          %v2651 = vpack.c.bf16 %v2629, %v2627
          %v2652 = vpack.c.bf16 %v2632, %v2630
          %v2653 = vpack.c.bf16 %v2633, %v2631
          %v2654 = vpack.c.bf16 %v2636, %v2634
          %v2655 = vpack.c.bf16 %v2637, %v2635
          %v2656 = vpack.c.bf16 %v2640, %v2638
          %v2657 = vpack.c.bf16 %v2641, %v2639
          %v2660 = vunpack.c.l.b16 %v2245
          %v2661 = vunpack.c.l.b16 %v2246
          %v2662 = vpack.c.b16 %v2661, %v2660
          %2664 = vmatpush.bf16.msra.mxu0 %v2656
          %2665 = vmatpush.bf16.msra.mxu0 %v2654
          %2666 = vmatpush.bf16.msra.mxu0 %v2652
          %2667 = vmatpush.bf16.msra.mxu0 %v2650
          %2668 = vmatpush.bf16.msra.mxu0 %v2648
          %2669 = vmatpush.bf16.msra.mxu0 %v2646
          %2670 = vmatpush.bf16.msra.mxu0 %v2644
          %2671 = vmatpush.bf16.msra.mxu0 %v2642
          %2672 = vmatmul.bf16.gmra.mxu0 %v2662
          %v2673 = vpop.f32.mrf.mxu0
          %v2674 = vadd.f32 0.0, %v2673
          %v2675 = vpop.f32.mrf.mxu0
          %v2676 = vadd.f32 0.0, %v2675
          %2677 = vdwg.mxu0
          %2678 = vmatpush.bf16.msra.mxu0 %v2657
          %2679 = vmatpush.bf16.msra.mxu0 %v2655
          %2680 = vmatpush.bf16.msra.mxu0 %v2653
          %2681 = vmatpush.bf16.msra.mxu0 %v2651
          %2682 = vmatpush.bf16.msra.mxu0 %v2649
          %2683 = vmatpush.bf16.msra.mxu0 %v2647
          %2684 = vmatpush.bf16.msra.mxu0 %v2645
          %2685 = vmatpush.bf16.msra.mxu0 %v2643
          %2686 = vmatmul.bf16.gmra.mxu0 %v2662
          %v2687 = vpop.f32.mrf.mxu0
          %v2688 = vadd.f32 0.0, %v2687
          %v2689 = vpop.f32.mrf.mxu0
          %v2690 = vadd.f32 0.0, %v2689
          %2691 = vdwg.mxu0
          %v2692 = vadd.f32 %v2234, %v2674
          %v2693 = vadd.f32 %v2235, %v2688
          %v2694 = vadd.f32 %v2236, %v2676
          %v2695 = vadd.f32 %v2237, %v2690
        $region71: #{tpu_custom_call.1} parent=51 // loop_footer
          %s2233 = sadd.s32 1, %s2229
        $region72: #{tpu_custom_call.1} parent=51 // loop_footer_branch
          %2228 = sbr.rel target = $region68
        $region73: #{tpu_custom_call.1} parent=51 // loop_exit
          _
        %v2696 = vpack.c.bf16 %v2235, %v2234
        %v2697 = vpack.c.bf16 %v2237, %v2236
        %2698 = vst [vmem:[#allocation3 + $0x20] sm:$0xff] %v2696
        %2699 = vst [vmem:[#allocation3 + $0x28] sm:$0xff] %v2697
        %v2700 = vld [vmem:[#allocation2 + $0x90] sm:$0xff]
        %v2701 = vld [vmem:[#allocation2 + $0x98] sm:$0xff]
        loop: start=0, step=1, limit=2
        $region74: #{tpu_custom_call.1} parent=51 // loop_pre_header
          _
        $region75: #{tpu_custom_call.1} parent=51 // loop_header
          %s2703 = sphi 0, %s2707
          %p2704 = scmp.ge.s32.totalorder %s2703, 2
          %v2708 = vphi 0.0, %v3166
          %v2709 = vphi 0.0, %v3167
          %v2710 = vphi 0.0, %v3168
          %v2711 = vphi 0.0, %v3169
        $region76: #{tpu_custom_call.1} parent=51 // loop_header_branch
          %2706 = sbr.rel (%p2704) target = $region80
        $region77: #{tpu_custom_call.1} parent=51 // loop_body
          %s2712 = smul.u32 %s2703, 128
          %s2713 = sshra.s32 %s2712, 7
          %s2714 = sand.u32 %s2712, 127
          %s2715 = smul.addr %s2713, 4
          %s2716 = scalar_lea.vmem [#allocation2], %s2715
          %v2717 = vld [vmem:[%s2716 + $0xa0] sm:$0xf]
          %v2718 = vld [vmem:[%s2716 + $0xa8] sm:$0xf]
          %v2719 = vld [vmem:[%s2716 + $0xb0] sm:$0xf]
          %v2720 = vld [vmem:[%s2716 + $0xb8] sm:$0xf]
          %v2723 = vunpack.c.l.b16 %v2717
          %v2724 = vunpack.c.l.b16 %v2718
          %v2725 = vpack.c.b16 %v2724, %v2723
          %2727 = vxpose.xlu0.c.b16.start [1/8] %v2725, 128
          %2728 = vxpose.xlu0.c.b16.cont [2/8] 0, 128
          %2729 = vxpose.xlu0.c.b16.cont [3/8] 0, 128
          %2730 = vxpose.xlu0.c.b16.cont [4/8] 0, 128
          %2731 = vxpose.xlu0.c.b16.cont [5/8] 0, 128
          %2732 = vxpose.xlu0.c.b16.cont [6/8] 0, 128
          %2733 = vxpose.xlu0.c.b16.cont [7/8] 0, 128
          %2734 = vxpose.xlu0.c.b16.end [8/8] 0, 128
          %v2735 = vpop.trf.xlu0
          %v2736 = vpop.trf.xlu0
          %v2737 = vpop.trf.xlu0
          %v2738 = vpop.trf.xlu0
          %v2739 = vpop.trf.xlu0
          %v2740 = vpop.trf.xlu0
          %v2741 = vpop.trf.xlu0
          %v2742 = vpop.trf.xlu0
          %v2745 = vunpack.c.l.b16 %v2700
          %v2746 = vunpack.c.h.b16 %v2700
          %v2747 = vunpack.c.l.b16 %v2701
          %v2748 = vunpack.c.h.b16 %v2701
          %v2749 = vpack.c.b16 %v2747, %v2745
          %v2750 = vpack.c.b16 %v2748, %v2746
          %vm2753 = vcmask 130048
          %v2755 = vsel %vm2753, %v2735, 0
          %v2758 = vsel %vm2753, %v2736, 0
          %v2761 = vsel %vm2753, %v2737, 0
          %v2764 = vsel %vm2753, %v2738, 0
          %v2767 = vsel %vm2753, %v2739, 0
          %v2770 = vsel %vm2753, %v2740, 0
          %v2773 = vsel %vm2753, %v2741, 0
          %v2776 = vsel %vm2753, %v2742, 0
          %2778 = vmatpush.bf16.msra.mxu0 0
          %2779 = vmatpush.bf16.msra.mxu0 0
          %2780 = vmatpush.bf16.msra.mxu0 0
          %2781 = vmatpush.bf16.msra.mxu0 0
          %2782 = vmatpush.bf16.msra.mxu0 0
          %2783 = vmatpush.bf16.msra.mxu0 0
          %2784 = vmatpush.bf16.msra.mxu0 0
          %2785 = vmatpush.bf16.msra.mxu0 %v2749
          %2786 = vmatmul.bf16.gmra.mxu0 %v2755
          %v2787 = vpop.f32.mrf.mxu0
          %v2788 = vadd.f32 0.0, %v2787
          %v2789 = vpop.f32.mrf.mxu0
          %v2790 = vadd.f32 0.0, %v2789
          %2791 = vmatmul.bf16.gmra.mxu0 %v2758
          %v2792 = vpop.f32.mrf.mxu0
          %v2793 = vadd.f32 0.0, %v2792
          %v2794 = vpop.f32.mrf.mxu0
          %v2795 = vadd.f32 0.0, %v2794
          %2796 = vmatmul.bf16.gmra.mxu0 %v2761
          %v2797 = vpop.f32.mrf.mxu0
          %v2798 = vadd.f32 0.0, %v2797
          %v2799 = vpop.f32.mrf.mxu0
          %v2800 = vadd.f32 0.0, %v2799
          %2801 = vmatmul.bf16.gmra.mxu0 %v2764
          %v2802 = vpop.f32.mrf.mxu0
          %v2803 = vadd.f32 0.0, %v2802
          %v2804 = vpop.f32.mrf.mxu0
          %v2805 = vadd.f32 0.0, %v2804
          %2806 = vmatmul.bf16.gmra.mxu0 %v2767
          %v2807 = vpop.f32.mrf.mxu0
          %v2808 = vadd.f32 0.0, %v2807
          %v2809 = vpop.f32.mrf.mxu0
          %v2810 = vadd.f32 0.0, %v2809
          %2811 = vmatmul.bf16.gmra.mxu0 %v2770
          %v2812 = vpop.f32.mrf.mxu0
          %v2813 = vadd.f32 0.0, %v2812
          %v2814 = vpop.f32.mrf.mxu0
          %v2815 = vadd.f32 0.0, %v2814
          %2816 = vmatmul.bf16.gmra.mxu0 %v2773
          %v2817 = vpop.f32.mrf.mxu0
          %v2818 = vadd.f32 0.0, %v2817
          %v2819 = vpop.f32.mrf.mxu0
          %v2820 = vadd.f32 0.0, %v2819
          %2821 = vmatmul.bf16.gmra.mxu0 %v2776
          %v2822 = vpop.f32.mrf.mxu0
          %v2823 = vadd.f32 0.0, %v2822
          %v2824 = vpop.f32.mrf.mxu0
          %v2825 = vadd.f32 0.0, %v2824
          %2826 = vdwg.mxu0
          %2827 = vmatpush.bf16.msra.mxu0 0
          %2828 = vmatpush.bf16.msra.mxu0 0
          %2829 = vmatpush.bf16.msra.mxu0 0
          %2830 = vmatpush.bf16.msra.mxu0 0
          %2831 = vmatpush.bf16.msra.mxu0 0
          %2832 = vmatpush.bf16.msra.mxu0 0
          %2833 = vmatpush.bf16.msra.mxu0 0
          %2834 = vmatpush.bf16.msra.mxu0 %v2750
          %2835 = vmatmul.bf16.gmra.mxu0 %v2755
          %v2836 = vpop.f32.mrf.mxu0
          %v2837 = vadd.f32 0.0, %v2836
          %v2838 = vpop.f32.mrf.mxu0
          %v2839 = vadd.f32 0.0, %v2838
          %2840 = vmatmul.bf16.gmra.mxu0 %v2758
          %v2841 = vpop.f32.mrf.mxu0
          %v2842 = vadd.f32 0.0, %v2841
          %v2843 = vpop.f32.mrf.mxu0
          %v2844 = vadd.f32 0.0, %v2843
          %2845 = vmatmul.bf16.gmra.mxu0 %v2761
          %v2846 = vpop.f32.mrf.mxu0
          %v2847 = vadd.f32 0.0, %v2846
          %v2848 = vpop.f32.mrf.mxu0
          %v2849 = vadd.f32 0.0, %v2848
          %2850 = vmatmul.bf16.gmra.mxu0 %v2764
          %v2851 = vpop.f32.mrf.mxu0
          %v2852 = vadd.f32 0.0, %v2851
          %v2853 = vpop.f32.mrf.mxu0
          %v2854 = vadd.f32 0.0, %v2853
          %2855 = vmatmul.bf16.gmra.mxu0 %v2767
          %v2856 = vpop.f32.mrf.mxu0
          %v2857 = vadd.f32 0.0, %v2856
          %v2858 = vpop.f32.mrf.mxu0
          %v2859 = vadd.f32 0.0, %v2858
          %2860 = vmatmul.bf16.gmra.mxu0 %v2770
          %v2861 = vpop.f32.mrf.mxu0
          %v2862 = vadd.f32 0.0, %v2861
          %v2863 = vpop.f32.mrf.mxu0
          %v2864 = vadd.f32 0.0, %v2863
          %2865 = vmatmul.bf16.gmra.mxu0 %v2773
          %v2866 = vpop.f32.mrf.mxu0
          %v2867 = vadd.f32 0.0, %v2866
          %v2868 = vpop.f32.mrf.mxu0
          %v2869 = vadd.f32 0.0, %v2868
          %2870 = vmatmul.bf16.gmra.mxu0 %v2776
          %v2871 = vpop.f32.mrf.mxu0
          %v2872 = vadd.f32 0.0, %v2871
          %v2873 = vpop.f32.mrf.mxu0
          %v2874 = vadd.f32 0.0, %v2873
          %2875 = vdwg.mxu0
          %v2876 = vmax.f32 %v2788, %v2837
          %2877 = vmax.xlane.f32.xlu0 %v2876
          %v2878 = vpop.xlane.xlu0 %2877
          %v2879 = vmax.f32 %v2790, %v2839
          %2880 = vmax.xlane.f32.xlu0 %v2879
          %v2881 = vpop.xlane.xlu0 %2880
          %v2882 = vmax.f32 %v2793, %v2842
          %2883 = vmax.xlane.f32.xlu0 %v2882
          %v2884 = vpop.xlane.xlu0 %2883
          %v2885 = vmax.f32 %v2795, %v2844
          %2886 = vmax.xlane.f32.xlu0 %v2885
          %v2887 = vpop.xlane.xlu0 %2886
          %v2888 = vmax.f32 %v2798, %v2847
          %2889 = vmax.xlane.f32.xlu0 %v2888
          %v2890 = vpop.xlane.xlu0 %2889
          %v2891 = vmax.f32 %v2800, %v2849
          %2892 = vmax.xlane.f32.xlu0 %v2891
          %v2893 = vpop.xlane.xlu0 %2892
          %v2894 = vmax.f32 %v2803, %v2852
          %2895 = vmax.xlane.f32.xlu0 %v2894
          %v2896 = vpop.xlane.xlu0 %2895
          %v2897 = vmax.f32 %v2805, %v2854
          %2898 = vmax.xlane.f32.xlu0 %v2897
          %v2899 = vpop.xlane.xlu0 %2898
          %v2900 = vmax.f32 %v2808, %v2857
          %2901 = vmax.xlane.f32.xlu0 %v2900
          %v2902 = vpop.xlane.xlu0 %2901
          %v2903 = vmax.f32 %v2810, %v2859
          %2904 = vmax.xlane.f32.xlu0 %v2903
          %v2905 = vpop.xlane.xlu0 %2904
          %v2906 = vmax.f32 %v2813, %v2862
          %2907 = vmax.xlane.f32.xlu0 %v2906
          %v2908 = vpop.xlane.xlu0 %2907
          %v2909 = vmax.f32 %v2815, %v2864
          %2910 = vmax.xlane.f32.xlu0 %v2909
          %v2911 = vpop.xlane.xlu0 %2910
          %v2912 = vmax.f32 %v2818, %v2867
          %2913 = vmax.xlane.f32.xlu0 %v2912
          %v2914 = vpop.xlane.xlu0 %2913
          %v2915 = vmax.f32 %v2820, %v2869
          %2916 = vmax.xlane.f32.xlu0 %v2915
          %v2917 = vpop.xlane.xlu0 %2916
          %v2918 = vmax.f32 %v2823, %v2872
          %2919 = vmax.xlane.f32.xlu0 %v2918
          %v2920 = vpop.xlane.xlu0 %2919
          %v2921 = vmax.f32 %v2825, %v2874
          %2922 = vmax.xlane.f32.xlu0 %v2921
          %v2923 = vpop.xlane.xlu0 %2922
          %v2924 = vsub.f32 %v2788, %v2878
          %v2925 = vsub.f32 %v2837, %v2878
          %v2926 = vsub.f32 %v2790, %v2881
          %v2927 = vsub.f32 %v2839, %v2881
          %v2928 = vsub.f32 %v2793, %v2884
          %v2929 = vsub.f32 %v2842, %v2884
          %v2930 = vsub.f32 %v2795, %v2887
          %v2931 = vsub.f32 %v2844, %v2887
          %v2932 = vsub.f32 %v2798, %v2890
          %v2933 = vsub.f32 %v2847, %v2890
          %v2934 = vsub.f32 %v2800, %v2893
          %v2935 = vsub.f32 %v2849, %v2893
          %v2936 = vsub.f32 %v2803, %v2896
          %v2937 = vsub.f32 %v2852, %v2896
          %v2938 = vsub.f32 %v2805, %v2899
          %v2939 = vsub.f32 %v2854, %v2899
          %v2940 = vsub.f32 %v2808, %v2902
          %v2941 = vsub.f32 %v2857, %v2902
          %v2942 = vsub.f32 %v2810, %v2905
          %v2943 = vsub.f32 %v2859, %v2905
          %v2944 = vsub.f32 %v2813, %v2908
          %v2945 = vsub.f32 %v2862, %v2908
          %v2946 = vsub.f32 %v2815, %v2911
          %v2947 = vsub.f32 %v2864, %v2911
          %v2948 = vsub.f32 %v2818, %v2914
          %v2949 = vsub.f32 %v2867, %v2914
          %v2950 = vsub.f32 %v2820, %v2917
          %v2951 = vsub.f32 %v2869, %v2917
          %v2952 = vsub.f32 %v2823, %v2920
          %v2953 = vsub.f32 %v2872, %v2920
          %v2954 = vsub.f32 %v2825, %v2923
          %v2955 = vsub.f32 %v2874, %v2923
          %v2956 = vmul.f32 %v2924, 1.442695
          %v2957 = vpow.pop %v2956
          %v2958 = vmul.f32 %v2925, 1.442695
          %v2959 = vpow.pop %v2958
          %v2960 = vmul.f32 %v2926, 1.442695
          %v2961 = vpow.pop %v2960
          %v2962 = vmul.f32 %v2927, 1.442695
          %v2963 = vpow.pop %v2962
          %v2964 = vmul.f32 %v2928, 1.442695
          %v2965 = vpow.pop %v2964
          %v2966 = vmul.f32 %v2929, 1.442695
          %v2967 = vpow.pop %v2966
          %v2968 = vmul.f32 %v2930, 1.442695
          %v2969 = vpow.pop %v2968
          %v2970 = vmul.f32 %v2931, 1.442695
          %v2971 = vpow.pop %v2970
          %v2972 = vmul.f32 %v2932, 1.442695
          %v2973 = vpow.pop %v2972
          %v2974 = vmul.f32 %v2933, 1.442695
          %v2975 = vpow.pop %v2974
          %v2976 = vmul.f32 %v2934, 1.442695
          %v2977 = vpow.pop %v2976
          %v2978 = vmul.f32 %v2935, 1.442695
          %v2979 = vpow.pop %v2978
          %v2980 = vmul.f32 %v2936, 1.442695
          %v2981 = vpow.pop %v2980
          %v2982 = vmul.f32 %v2937, 1.442695
          %v2983 = vpow.pop %v2982
          %v2984 = vmul.f32 %v2938, 1.442695
          %v2985 = vpow.pop %v2984
          %v2986 = vmul.f32 %v2939, 1.442695
          %v2987 = vpow.pop %v2986
          %v2988 = vmul.f32 %v2940, 1.442695
          %v2989 = vpow.pop %v2988
          %v2990 = vmul.f32 %v2941, 1.442695
          %v2991 = vpow.pop %v2990
          %v2992 = vmul.f32 %v2942, 1.442695
          %v2993 = vpow.pop %v2992
          %v2994 = vmul.f32 %v2943, 1.442695
          %v2995 = vpow.pop %v2994
          %v2996 = vmul.f32 %v2944, 1.442695
          %v2997 = vpow.pop %v2996
          %v2998 = vmul.f32 %v2945, 1.442695
          %v2999 = vpow.pop %v2998
          %v3000 = vmul.f32 %v2946, 1.442695
          %v3001 = vpow.pop %v3000
          %v3002 = vmul.f32 %v2947, 1.442695
          %v3003 = vpow.pop %v3002
          %v3004 = vmul.f32 %v2948, 1.442695
          %v3005 = vpow.pop %v3004
          %v3006 = vmul.f32 %v2949, 1.442695
          %v3007 = vpow.pop %v3006
          %v3008 = vmul.f32 %v2950, 1.442695
          %v3009 = vpow.pop %v3008
          %v3010 = vmul.f32 %v2951, 1.442695
          %v3011 = vpow.pop %v3010
          %v3012 = vmul.f32 %v2952, 1.442695
          %v3013 = vpow.pop %v3012
          %v3014 = vmul.f32 %v2953, 1.442695
          %v3015 = vpow.pop %v3014
          %v3016 = vmul.f32 %v2954, 1.442695
          %v3017 = vpow.pop %v3016
          %v3018 = vmul.f32 %v2955, 1.442695
          %v3019 = vpow.pop %v3018
          %v3020 = vadd.f32 %v2957, %v2959
          %3021 = vadd.xlane.f32.xlu0 %v3020
          %v3022 = vpop.xlane.xlu0 %3021
          %v3023 = vadd.f32 %v2961, %v2963
          %3024 = vadd.xlane.f32.xlu0 %v3023
          %v3025 = vpop.xlane.xlu0 %3024
          %v3026 = vadd.f32 %v2965, %v2967
          %3027 = vadd.xlane.f32.xlu0 %v3026
          %v3028 = vpop.xlane.xlu0 %3027
          %v3029 = vadd.f32 %v2969, %v2971
          %3030 = vadd.xlane.f32.xlu0 %v3029
          %v3031 = vpop.xlane.xlu0 %3030
          %v3032 = vadd.f32 %v2973, %v2975
          %3033 = vadd.xlane.f32.xlu0 %v3032
          %v3034 = vpop.xlane.xlu0 %3033
          %v3035 = vadd.f32 %v2977, %v2979
          %3036 = vadd.xlane.f32.xlu0 %v3035
          %v3037 = vpop.xlane.xlu0 %3036
          %v3038 = vadd.f32 %v2981, %v2983
          %3039 = vadd.xlane.f32.xlu0 %v3038
          %v3040 = vpop.xlane.xlu0 %3039
          %v3041 = vadd.f32 %v2985, %v2987
          %3042 = vadd.xlane.f32.xlu0 %v3041
          %v3043 = vpop.xlane.xlu0 %3042
          %v3044 = vadd.f32 %v2989, %v2991
          %3045 = vadd.xlane.f32.xlu0 %v3044
          %v3046 = vpop.xlane.xlu0 %3045
          %v3047 = vadd.f32 %v2993, %v2995
          %3048 = vadd.xlane.f32.xlu0 %v3047
          %v3049 = vpop.xlane.xlu0 %3048
          %v3050 = vadd.f32 %v2997, %v2999
          %3051 = vadd.xlane.f32.xlu0 %v3050
          %v3052 = vpop.xlane.xlu0 %3051
          %v3053 = vadd.f32 %v3001, %v3003
          %3054 = vadd.xlane.f32.xlu0 %v3053
          %v3055 = vpop.xlane.xlu0 %3054
          %v3056 = vadd.f32 %v3005, %v3007
          %3057 = vadd.xlane.f32.xlu0 %v3056
          %v3058 = vpop.xlane.xlu0 %3057
          %v3059 = vadd.f32 %v3009, %v3011
          %3060 = vadd.xlane.f32.xlu0 %v3059
          %v3061 = vpop.xlane.xlu0 %3060
          %v3062 = vadd.f32 %v3013, %v3015
          %3063 = vadd.xlane.f32.xlu0 %v3062
          %v3064 = vpop.xlane.xlu0 %3063
          %v3065 = vadd.f32 %v3017, %v3019
          %3066 = vadd.xlane.f32.xlu0 %v3065
          %v3067 = vpop.xlane.xlu0 %3066
          %v3068 = vrcp.pop %v3022
          %v3069 = vrcp.pop %v3025
          %v3070 = vrcp.pop %v3028
          %v3071 = vrcp.pop %v3031
          %v3072 = vrcp.pop %v3034
          %v3073 = vrcp.pop %v3037
          %v3074 = vrcp.pop %v3040
          %v3075 = vrcp.pop %v3043
          %v3076 = vrcp.pop %v3046
          %v3077 = vrcp.pop %v3049
          %v3078 = vrcp.pop %v3052
          %v3079 = vrcp.pop %v3055
          %v3080 = vrcp.pop %v3058
          %v3081 = vrcp.pop %v3061
          %v3082 = vrcp.pop %v3064
          %v3083 = vrcp.pop %v3067
          %v3084 = vmul.f32 %v2957, %v3068
          %v3085 = vmul.f32 %v2959, %v3068
          %v3086 = vmul.f32 %v2961, %v3069
          %v3087 = vmul.f32 %v2963, %v3069
          %v3088 = vmul.f32 %v2965, %v3070
          %v3089 = vmul.f32 %v2967, %v3070
          %v3090 = vmul.f32 %v2969, %v3071
          %v3091 = vmul.f32 %v2971, %v3071
          %v3092 = vmul.f32 %v2973, %v3072
          %v3093 = vmul.f32 %v2975, %v3072
          %v3094 = vmul.f32 %v2977, %v3073
          %v3095 = vmul.f32 %v2979, %v3073
          %v3096 = vmul.f32 %v2981, %v3074
          %v3097 = vmul.f32 %v2983, %v3074
          %v3098 = vmul.f32 %v2985, %v3075
          %v3099 = vmul.f32 %v2987, %v3075
          %v3100 = vmul.f32 %v2989, %v3076
          %v3101 = vmul.f32 %v2991, %v3076
          %v3102 = vmul.f32 %v2993, %v3077
          %v3103 = vmul.f32 %v2995, %v3077
          %v3104 = vmul.f32 %v2997, %v3078
          %v3105 = vmul.f32 %v2999, %v3078
          %v3106 = vmul.f32 %v3001, %v3079
          %v3107 = vmul.f32 %v3003, %v3079
          %v3108 = vmul.f32 %v3005, %v3080
          %v3109 = vmul.f32 %v3007, %v3080
          %v3110 = vmul.f32 %v3009, %v3081
          %v3111 = vmul.f32 %v3011, %v3081
          %v3112 = vmul.f32 %v3013, %v3082
          %v3113 = vmul.f32 %v3015, %v3082
          %v3114 = vmul.f32 %v3017, %v3083
          %v3115 = vmul.f32 %v3019, %v3083
          %v3116 = vpack.c.bf16 %v3086, %v3084
          %v3117 = vpack.c.bf16 %v3087, %v3085
          %v3118 = vpack.c.bf16 %v3090, %v3088
          %v3119 = vpack.c.bf16 %v3091, %v3089
          %v3120 = vpack.c.bf16 %v3094, %v3092
          %v3121 = vpack.c.bf16 %v3095, %v3093
          %v3122 = vpack.c.bf16 %v3098, %v3096
          %v3123 = vpack.c.bf16 %v3099, %v3097
          %v3124 = vpack.c.bf16 %v3102, %v3100
          %v3125 = vpack.c.bf16 %v3103, %v3101
          %v3126 = vpack.c.bf16 %v3106, %v3104
          %v3127 = vpack.c.bf16 %v3107, %v3105
          %v3128 = vpack.c.bf16 %v3110, %v3108
          %v3129 = vpack.c.bf16 %v3111, %v3109
          %v3130 = vpack.c.bf16 %v3114, %v3112
          %v3131 = vpack.c.bf16 %v3115, %v3113
          %v3134 = vunpack.c.l.b16 %v2719
          %v3135 = vunpack.c.l.b16 %v2720
          %v3136 = vpack.c.b16 %v3135, %v3134
          %3138 = vmatpush.bf16.msra.mxu0 %v3130
          %3139 = vmatpush.bf16.msra.mxu0 %v3128
          %3140 = vmatpush.bf16.msra.mxu0 %v3126
          %3141 = vmatpush.bf16.msra.mxu0 %v3124
          %3142 = vmatpush.bf16.msra.mxu0 %v3122
          %3143 = vmatpush.bf16.msra.mxu0 %v3120
          %3144 = vmatpush.bf16.msra.mxu0 %v3118
          %3145 = vmatpush.bf16.msra.mxu0 %v3116
          %3146 = vmatmul.bf16.gmra.mxu0 %v3136
          %v3147 = vpop.f32.mrf.mxu0
          %v3148 = vadd.f32 0.0, %v3147
          %v3149 = vpop.f32.mrf.mxu0
          %v3150 = vadd.f32 0.0, %v3149
          %3151 = vdwg.mxu0
          %3152 = vmatpush.bf16.msra.mxu0 %v3131
          %3153 = vmatpush.bf16.msra.mxu0 %v3129
          %3154 = vmatpush.bf16.msra.mxu0 %v3127
          %3155 = vmatpush.bf16.msra.mxu0 %v3125
          %3156 = vmatpush.bf16.msra.mxu0 %v3123
          %3157 = vmatpush.bf16.msra.mxu0 %v3121
          %3158 = vmatpush.bf16.msra.mxu0 %v3119
          %3159 = vmatpush.bf16.msra.mxu0 %v3117
          %3160 = vmatmul.bf16.gmra.mxu0 %v3136
          %v3161 = vpop.f32.mrf.mxu0
          %v3162 = vadd.f32 0.0, %v3161
          %v3163 = vpop.f32.mrf.mxu0
          %v3164 = vadd.f32 0.0, %v3163
          %3165 = vdwg.mxu0
          %v3166 = vadd.f32 %v2708, %v3148
          %v3167 = vadd.f32 %v2709, %v3162
          %v3168 = vadd.f32 %v2710, %v3150
          %v3169 = vadd.f32 %v2711, %v3164
        $region78: #{tpu_custom_call.1} parent=51 // loop_footer
          %s2707 = sadd.s32 1, %s2703
        $region79: #{tpu_custom_call.1} parent=51 // loop_footer_branch
          %2702 = sbr.rel target = $region75
        $region80: #{tpu_custom_call.1} parent=51 // loop_exit
          _
        %v3170 = vpack.c.bf16 %v2709, %v2708
        %v3171 = vpack.c.bf16 %v2711, %v2710
        %3172 = vst [vmem:[#allocation3 + $0x30] sm:$0xff] %v3170
        %3173 = vst [vmem:[#allocation3 + $0x38] sm:$0xff] %v3171
        %v3174 = vld [vmem:[%s6] sm:$0xf]
        %v3175 = vld [vmem:[%s6 + $0x4] sm:$0xf]
        %v3176 = vld [vmem:[%s6 + $0x8] sm:$0xf]
        %v3177 = vld [vmem:[%s6 + $0xc] sm:$0xf]
        %v3178 = vld [vmem:[%s6 + $0x10] sm:$0xf]
        %v3179 = vld [vmem:[%s6 + $0x14] sm:$0xf]
        %v3180 = vld [vmem:[%s6 + $0x18] sm:$0xf]
        %v3181 = vld [vmem:[%s6 + $0x1c] sm:$0xf]
        %v3182 = vld [vmem:[#allocation3] sm:$0xff]
        %v3183 = vld [vmem:[#allocation3 + $0x8] sm:$0xff]
        %v3184 = vld [vmem:[#allocation3 + $0x10] sm:$0xff]
        %v3185 = vld [vmem:[#allocation3 + $0x18] sm:$0xff]
        %v3186 = vld [vmem:[#allocation3 + $0x20] sm:$0xff]
        %v3187 = vld [vmem:[#allocation3 + $0x28] sm:$0xff]
        %v3188 = vld [vmem:[#allocation3 + $0x30] sm:$0xff]
        %v3189 = vld [vmem:[#allocation3 + $0x38] sm:$0xff]
        %v3198 = vunpack.c.l.b16 %v3174
        %v3199 = vunpack.c.l.b16 %v3175
        %v3200 = vunpack.c.l.b16 %v3176
        %v3201 = vunpack.c.l.b16 %v3177
        %v3202 = vunpack.c.l.b16 %v3178
        %v3203 = vunpack.c.l.b16 %v3179
        %v3204 = vunpack.c.l.b16 %v3180
        %v3205 = vunpack.c.l.b16 %v3181
        %v3206 = vpack.c.b16 %v3199, %v3198
        %v3207 = vpack.c.b16 %v3201, %v3200
        %v3208 = vpack.c.b16 %v3203, %v3202
        %v3209 = vpack.c.b16 %v3205, %v3204
        %v3218 = vunpack.c.l.b16 %v3182
        %v3219 = vunpack.c.h.b16 %v3182
        %v3220 = vunpack.c.l.b16 %v3183
        %v3221 = vunpack.c.h.b16 %v3183
        %v3222 = vunpack.c.l.b16 %v3184
        %v3223 = vunpack.c.h.b16 %v3184
        %v3224 = vunpack.c.l.b16 %v3185
        %v3225 = vunpack.c.h.b16 %v3185
        %v3226 = vunpack.c.l.b16 %v3186
        %v3227 = vunpack.c.h.b16 %v3186
        %v3228 = vunpack.c.l.b16 %v3187
        %v3229 = vunpack.c.h.b16 %v3187
        %v3230 = vunpack.c.l.b16 %v3188
        %v3231 = vunpack.c.h.b16 %v3188
        %v3232 = vunpack.c.l.b16 %v3189
        %v3233 = vunpack.c.h.b16 %v3189
        %v3234 = vpack.c.b16 %v3220, %v3218
        %v3235 = vpack.c.b16 %v3221, %v3219
        %v3236 = vpack.c.b16 %v3224, %v3222
        %v3237 = vpack.c.b16 %v3225, %v3223
        %v3238 = vpack.c.b16 %v3228, %v3226
        %v3239 = vpack.c.b16 %v3229, %v3227
        %v3240 = vpack.c.b16 %v3232, %v3230
        %v3241 = vpack.c.b16 %v3233, %v3231
        %v3251 = vsel %vm353, %v3206, 0
        %v3254 = vsel %vm353, %v3207, 0
        %v3257 = vsel %vm353, %v3208, 0
        %v3260 = vsel %vm353, %v3209, 0
        %3262 = vmatpush.bf16.msra.mxu0 0
        %3263 = vmatpush.bf16.msra.mxu0 0
        %3264 = vmatpush.bf16.msra.mxu0 0
        %3265 = vmatpush.bf16.msra.mxu0 0
        %3266 = vmatpush.bf16.msra.mxu0 %v3240
        %3267 = vmatpush.bf16.msra.mxu0 %v3238
        %3268 = vmatpush.bf16.msra.mxu0 %v3236
        %3269 = vmatpush.bf16.msra.mxu0 %v3234
        %3270 = vmatmul.bf16.gmra.mxu0 %v3251
        %v3271 = vpop.f32.mrf.mxu0
        %v3272 = vadd.f32 0.0, %v3271
        %v3273 = vpop.f32.mrf.mxu0
        %v3274 = vadd.f32 0.0, %v3273
        %3275 = vmatmul.bf16.gmra.mxu0 %v3254
        %v3276 = vpop.f32.mrf.mxu0
        %v3277 = vadd.f32 0.0, %v3276
        %v3278 = vpop.f32.mrf.mxu0
        %v3279 = vadd.f32 0.0, %v3278
        %3280 = vmatmul.bf16.gmra.mxu0 %v3257
        %v3281 = vpop.f32.mrf.mxu0
        %v3282 = vadd.f32 0.0, %v3281
        %v3283 = vpop.f32.mrf.mxu0
        %v3284 = vadd.f32 0.0, %v3283
        %3285 = vmatmul.bf16.gmra.mxu0 %v3260
        %v3286 = vpop.f32.mrf.mxu0
        %v3287 = vadd.f32 0.0, %v3286
        %v3288 = vpop.f32.mrf.mxu0
        %v3289 = vadd.f32 0.0, %v3288
        %3290 = vdwg.mxu0
        %3291 = vmatpush.bf16.msra.mxu0 0
        %3292 = vmatpush.bf16.msra.mxu0 0
        %3293 = vmatpush.bf16.msra.mxu0 0
        %3294 = vmatpush.bf16.msra.mxu0 0
        %3295 = vmatpush.bf16.msra.mxu0 %v3241
        %3296 = vmatpush.bf16.msra.mxu0 %v3239
        %3297 = vmatpush.bf16.msra.mxu0 %v3237
        %3298 = vmatpush.bf16.msra.mxu0 %v3235
        %3299 = vmatmul.bf16.gmra.mxu0 %v3251
        %v3300 = vpop.f32.mrf.mxu0
        %v3301 = vadd.f32 0.0, %v3300
        %v3302 = vpop.f32.mrf.mxu0
        %v3303 = vadd.f32 0.0, %v3302
        %3304 = vmatmul.bf16.gmra.mxu0 %v3254
        %v3305 = vpop.f32.mrf.mxu0
        %v3306 = vadd.f32 0.0, %v3305
        %v3307 = vpop.f32.mrf.mxu0
        %v3308 = vadd.f32 0.0, %v3307
        %3309 = vmatmul.bf16.gmra.mxu0 %v3257
        %v3310 = vpop.f32.mrf.mxu0
        %v3311 = vadd.f32 0.0, %v3310
        %v3312 = vpop.f32.mrf.mxu0
        %v3313 = vadd.f32 0.0, %v3312
        %3314 = vmatmul.bf16.gmra.mxu0 %v3260
        %v3315 = vpop.f32.mrf.mxu0
        %v3316 = vadd.f32 0.0, %v3315
        %v3317 = vpop.f32.mrf.mxu0
        %v3318 = vadd.f32 0.0, %v3317
        %3319 = vdwg.mxu0
        %v3320 = vadd.f32 %v305, %v3272
        %v3321 = vadd.f32 %v306, %v3301
        %v3322 = vadd.f32 %v307, %v3274
        %v3323 = vadd.f32 %v308, %v3303
        %v3324 = vadd.f32 %v309, %v3277
        %v3325 = vadd.f32 %v310, %v3306
        %v3326 = vadd.f32 %v311, %v3279
        %v3327 = vadd.f32 %v312, %v3308
        %v3328 = vadd.f32 %v313, %v3282
        %v3329 = vadd.f32 %v314, %v3311
        %v3330 = vadd.f32 %v315, %v3284
        %v3331 = vadd.f32 %v316, %v3313
        %v3332 = vadd.f32 %v317, %v3287
        %v3333 = vadd.f32 %v318, %v3316
        %v3334 = vadd.f32 %v319, %v3289
        %v3335 = vadd.f32 %v320, %v3318
        %v3336 = vld [vmem:[%s7] sm:$0xff]
        %v3337 = vld [vmem:[%s7 + $0x8] sm:$0xff]
        %v3338 = vld [vmem:[%s7 + $0x10] sm:$0xff]
        %v3339 = vld [vmem:[%s7 + $0x18] sm:$0xff]
        %v3340 = vld [vmem:[%s7 + $0x20] sm:$0xff]
        %v3341 = vld [vmem:[%s7 + $0x28] sm:$0xff]
        %v3342 = vld [vmem:[%s7 + $0x30] sm:$0xff]
        %v3343 = vld [vmem:[%s7 + $0x38] sm:$0xff]
        %3345 = vset.pattern.permute.xlu0 0
        %3346 = vperm.xlu0 %3345, %v3336
        %v3347 = vpop.permute.xlu0 %3346
        %3350 = vset.pattern.permute.xlu0 0
        %3351 = vperm.xlu0 %3350, %v3337
        %v3352 = vpop.permute.xlu0 %3351
        %3355 = vset.pattern.permute.xlu0 0
        %3356 = vperm.xlu0 %3355, %v3338
        %v3357 = vpop.permute.xlu0 %3356
        %3360 = vset.pattern.permute.xlu0 0
        %3361 = vperm.xlu0 %3360, %v3339
        %v3362 = vpop.permute.xlu0 %3361
        %3365 = vset.pattern.permute.xlu0 0
        %3366 = vperm.xlu0 %3365, %v3340
        %v3367 = vpop.permute.xlu0 %3366
        %3370 = vset.pattern.permute.xlu0 0
        %3371 = vperm.xlu0 %3370, %v3341
        %v3372 = vpop.permute.xlu0 %3371
        %3375 = vset.pattern.permute.xlu0 0
        %3376 = vperm.xlu0 %3375, %v3342
        %v3377 = vpop.permute.xlu0 %3376
        %3380 = vset.pattern.permute.xlu0 0
        %3381 = vperm.xlu0 %3380, %v3343
        %v3382 = vpop.permute.xlu0 %3381
        %v3384 = vadd.f32 %v3320, %v3347
        %v3385 = vadd.f32 %v3321, %v3347
        %v3386 = vadd.f32 %v3322, %v3352
        %v3387 = vadd.f32 %v3323, %v3352
        %v3388 = vadd.f32 %v3324, %v3357
        %v3389 = vadd.f32 %v3325, %v3357
        %v3390 = vadd.f32 %v3326, %v3362
        %v3391 = vadd.f32 %v3327, %v3362
        %v3392 = vadd.f32 %v3328, %v3367
        %v3393 = vadd.f32 %v3329, %v3367
        %v3394 = vadd.f32 %v3330, %v3372
        %v3395 = vadd.f32 %v3331, %v3372
        %v3396 = vadd.f32 %v3332, %v3377
        %v3397 = vadd.f32 %v3333, %v3377
        %v3398 = vadd.f32 %v3334, %v3382
        %v3399 = vadd.f32 %v3335, %v3382
        %3400 = vst [vmem:[%s298] sm:$0xff] %v3384
        %3401 = vst [vmem:[%s298 + $0x8] sm:$0xff] %v3385
        %3402 = vst [vmem:[%s298 + $0x10] sm:$0xff] %v3386
        %3403 = vst [vmem:[%s298 + $0x18] sm:$0xff] %v3387
        %3404 = vst [vmem:[%s298 + $0x20] sm:$0xff] %v3388
        %3405 = vst [vmem:[%s298 + $0x28] sm:$0xff] %v3389
        %3406 = vst [vmem:[%s298 + $0x30] sm:$0xff] %v3390
        %3407 = vst [vmem:[%s298 + $0x38] sm:$0xff] %v3391
        %3408 = vst [vmem:[%s298 + $0x40] sm:$0xff] %v3392
        %3409 = vst [vmem:[%s298 + $0x48] sm:$0xff] %v3393
        %3410 = vst [vmem:[%s298 + $0x50] sm:$0xff] %v3394
        %3411 = vst [vmem:[%s298 + $0x58] sm:$0xff] %v3395
        %3412 = vst [vmem:[%s298 + $0x60] sm:$0xff] %v3396
        %3413 = vst [vmem:[%s298 + $0x68] sm:$0xff] %v3397
        %3414 = vst [vmem:[%s298 + $0x70] sm:$0xff] %v3398
        %3415 = vst [vmem:[%s298 + $0x78] sm:$0xff] %v3399
        %s3416 = sand.u32 %s203, 1
        %s3417 = scalar_lea.sflag [#allocation5], %s3416
        %s3418 = sand.u32 %s203, 1
        %s3419 = smul.addr %s3418, 128
        %s3420 = scalar_lea.vmem [#allocation4], %s3419
        // Predicated region
        $region81: #{tpu_custom_call.1} parent=51 // pred_check
          %p3421 = pneg %p213
        $region82: #{tpu_custom_call.1} parent=51 // pred_check_branch
          %3423 = sbr.rel (%p3421) target = $region84
        $region83: #{tpu_custom_call.1} parent=51 // pred_region
          %3425 = vsyncadd %s3417, 0
          %s3426 = smul.addr %s22, 16
          %s3427 = smul.addr %s3426, 8
          %s3428 = scalar_lea.hbm %s8, %s3427
          %s3429 = sshll.u32 %s3420, 4
          %s3430 = int_to_ptr.vmem [resolvable:$true] %s3429
          %s3431 = sshll.u32 %s3428, 4
          %s3432 = int_to_ptr.hbm [resolvable:$true] %s3431
          %3437 = dma.vmem_to_hbm [thread:$0]  %s3430, 2048, %s3432, %s3417, 256, 256, 16
        $region84: #{tpu_custom_call.1} parent=51 // pred_fallthru
          _
      $region52: #{tpu_custom_call.1} parent=5 // pred_fallthru
        _
      %p3438 = scmp.le.s32.totalorder 2, %s17
      // Predicated region
      $region85: #{tpu_custom_call.1} parent=5 // pred_check
        %p3439 = pneg %p3438
      $region86: #{tpu_custom_call.1} parent=5 // pred_check_branch
        %3441 = sbr.rel (%p3439) target = $region88
      $region87: #{tpu_custom_call.1} parent=5 // pred_region
        %s3442 = ssub.s32 %s17, 2
        // Predicated region
        $region89: #{tpu_custom_call.1} parent=87 // pred_check
          %p3443 = pneg %p219
        $region90: #{tpu_custom_call.1} parent=87 // pred_check_branch
          %3445 = sbr.rel (%p3443) target = $region92
        $region91: #{tpu_custom_call.1} parent=87 // pred_region
          %s3446 = sand.u32 %s204, 1
          %s3447 = scalar_lea.sflag [#allocation5], %s3446
          %s3448 = sand.u32 %s204, 1
          %s3449 = smul.addr %s3448, 128
          %s3450 = scalar_lea.vmem [#allocation4], %s3449
          %3452 = dma.done %s3447, 2048
        $region92: #{tpu_custom_call.1} parent=87 // pred_fallthru
          _
      $region88: #{tpu_custom_call.1} parent=5 // pred_fallthru
        _
    $region6: #{tpu_custom_call.1} parent=1 // loop_footer
      %s21 = sadd.s32 1, %s17
    $region7: #{tpu_custom_call.1} parent=1 // loop_footer_branch
      %16 = sbr.rel target = $region3
    $region8: #{tpu_custom_call.1} parent=1 // loop_exit
      _
    %3453 = vsyncpa [#allocation5], 1
    %s3454 = scalar_lea.sflag [#allocation5], 1
    %3455 = vsyncpa %s3454, 1

// kernel: tpu_custom_call.1
$region0: #{tpu_custom_call.1}
  #allocation0 [shape = 'u32[]', space=smem, size = 0x4, offset = 0x4, fixed_abs, tag = 'smem constant byte address 0x4 - core index']
  #allocation1 [shape = 'u32[72,128]{1,0:T(1,128)}', space=vmem, size = 0x9000, scoped, tag = 'internal scratch']
  #allocation2 [shape = 'bf16[192,256]{1,0:T(8,128)(2,1)}', space=vmem, size = 0x18000, scoped, tag = 'scratch operand']
  #allocation3 [shape = 'bf16[64,256]{1,0:T(8,128)(2,1)}', space=vmem, size = 0x8000, scoped, tag = 'scratch operand']
  %s0 = inlined_call_operand.vmem [shape: f32[2,64,256], index: 0, kind: input, shape index: {}]
  %s1 = inlined_call_operand.vmem [shape: f32[64,1], index: 1, kind: input, shape index: {}]
  %s2 = inlined_call_operand.vmem [shape: f32[64,1], index: 2, kind: input, shape index: {}]
  %s3 = inlined_call_operand.vmem [shape: f32[64,64], index: 3, kind: input, shape index: {}]
  %s4 = inlined_call_operand.vmem [shape: bf16[192,64], index: 4, kind: input, shape index: {}]
  %s5 = inlined_call_operand.vmem [shape: f32[192,1], index: 5, kind: input, shape index: {}]
  %s6 = inlined_call_operand.vmem [shape: bf16[64,64], index: 6, kind: input, shape index: {}]
  %s7 = inlined_call_operand.vmem [shape: f32[64,1], index: 7, kind: input, shape index: {}]
  %s8 = inlined_call_operand.hbm [shape: f32[2,64,256], index: 8, kind: output, shape index: {}]
  %s9 = sld [smem:[#allocation0]]
  $region93: #{tpu_custom_call.1} parent=0
    _
  %s11 = ssub.s32 1, %s9
  %s12 = scalar_select 0, %s11, %s9
  $region1: #{tpu_custom_call.1} parent=0
    #allocation4 [shape = 'u8[131072]{0}', space=vmem, size = 0x20000, scoped, tag = 'output window, operand 0']
    #allocation5 [shape = 's32[2]{0}', space=sflag, size = 0x8, scoped, tag = 'scoped memory for tpu_custom_call.1']
    %13 = vsyncpa [#allocation5], 0
    %s14 = scalar_lea.sflag [#allocation5], 1
    %15 = vsyncpa %s14, 0
    loop: start=0, step=1, limit=4
    $region2: #{tpu_custom_call.1} parent=1 // loop_pre_header
      _
    $region3: #{tpu_custom_call.1} parent=1 // loop_header
      %s17 = sphi 0, %s21
      %p18 = scmp.ge.s32.totalorder %s17, 4
      %s27 = sphi 0, %s29
      %s30 = sphi 0, %s27
      %s31 = sphi 0, %s30
      %s47 = sphi 0, %s31
      %s51 = sphi 0, %s51
      %s53 = sphi 0, %s51
      %s54 = sphi 0, %s53
      %s68 = sphi 0, %s54
      %s72 = sphi 0, %s72
      %s74 = sphi 0, %s72
      %s75 = sphi 0, %s74
      %s89 = sphi 0, %s75
      %s93 = sphi 0, %s93
      %s95 = sphi 0, %s93
      %s96 = sphi 0, %s95
      %s110 = sphi 0, %s96
      %s114 = sphi 0, %s114
      %s116 = sphi 0, %s114
      %s117 = sphi 0, %s116
      %s131 = sphi 0, %s117
      %s135 = sphi 0, %s135
      %s137 = sphi 0, %s135
      %s138 = sphi 0, %s137
      %s152 = sphi 0, %s138
      %s156 = sphi 0, %s156
      %s158 = sphi 0, %s156
      %s159 = sphi 0, %s158
      %s173 = sphi 0, %s159
      %s177 = sphi 0, %s177
      %s179 = sphi 0, %s177
      %s180 = sphi 0, %s179
      %s194 = sphi 0, %s180
      %s200 = sphi 0, %s202
      %s203 = sphi 0, %s200
      %s204 = sphi 0, %s203
      %s220 = sphi 0, %s204
    $region4: #{tpu_custom_call.1} parent=1 // loop_header_branch
      %20 = sbr.rel (%p18) target = $region8
    $region5: #{tpu_custom_call.1} parent=1 // loop_body
      %s22 = ssub.s32 %s17, 1
      %s23 = ssub.s32 %s17, 2
      %s24 = sadd.s32 %s17, 1
      %s25 = ssub.s32 %s17, %s24
      %p26 = scmp.eq.s32.totalorder %s25, 0
      %s28 = sadd.s32 %s27, 1
      %s29 = scalar_select %p26, %s27, %s28
      %p32 = pneg %p26
      %p33 = scmp.eq.s32.totalorder %s17, 1
      %p34 = por %p32, %p33
      %p35 = scmp.ne.s32.totalorder %s27, %s30
      %p36 = scmp.eq.s32.totalorder %s17, 0
      %p37 = por %p35, %p36
      %p38 = scmp.ne.s32.totalorder %s27, %s30
      %p39 = scmp.eq.s32.totalorder %s22, 1
      %p40 = por %p38, %p39
      %p41 = scmp.ne.s32.totalorder %s30, %s31
      %p42 = scmp.eq.s32.totalorder %s22, 0
      %p43 = por %p41, %p42
      %p44 = scmp.ne.s32.totalorder %s30, %s31
      %p45 = scmp.eq.s32.totalorder %s23, 1
      %p46 = por %p44, %p45
      %p48 = scmp.ne.s32.totalorder %s31, %s47
      %p49 = scmp.eq.s32.totalorder %s23, 0
      %p50 = por %p48, %p49
      %s52 = sadd.s32 %s51, 1
      %p55 = scmp.eq.s32.totalorder %s17, 1
      %p56 = scmp.ne.s32.totalorder %s51, %s53
      %p57 = scmp.eq.s32.totalorder %s17, 0
      %p58 = por %p56, %p57
      %p59 = scmp.ne.s32.totalorder %s51, %s53
      %p60 = scmp.eq.s32.totalorder %s22, 1
      %p61 = por %p59, %p60
      %p62 = scmp.ne.s32.totalorder %s53, %s54
      %p63 = scmp.eq.s32.totalorder %s22, 0
      %p64 = por %p62, %p63
      %p65 = scmp.ne.s32.totalorder %s53, %s54
      %p66 = scmp.eq.s32.totalorder %s23, 1
      %p67 = por %p65, %p66
      %p69 = scmp.ne.s32.totalorder %s54, %s68
      %p70 = scmp.eq.s32.totalorder %s23, 0
      %p71 = por %p69, %p70
      %s73 = sadd.s32 %s72, 1
      %p76 = scmp.eq.s32.totalorder %s17, 1
      %p77 = scmp.ne.s32.totalorder %s72, %s74
      %p78 = scmp.eq.s32.totalorder %s17, 0
      %p79 = por %p77, %p78
      %p80 = scmp.ne.s32.totalorder %s72, %s74
      %p81 = scmp.eq.s32.totalorder %s22, 1
      %p82 = por %p80, %p81
      %p83 = scmp.ne.s32.totalorder %s74, %s75
      %p84 = scmp.eq.s32.totalorder %s22, 0
      %p85 = por %p83, %p84
      %p86 = scmp.ne.s32.totalorder %s74, %s75
      %p87 = scmp.eq.s32.totalorder %s23, 1
      %p88 = por %p86, %p87
      %p90 = scmp.ne.s32.totalorder %s75, %s89
      %p91 = scmp.eq.s32.totalorder %s23, 0
      %p92 = por %p90, %p91
      %s94 = sadd.s32 %s93, 1
      %p97 = scmp.eq.s32.totalorder %s17, 1
      %p98 = scmp.ne.s32.totalorder %s93, %s95
      %p99 = scmp.eq.s32.totalorder %s17, 0
      %p100 = por %p98, %p99
      %p101 = scmp.ne.s32.totalorder %s93, %s95
      %p102 = scmp.eq.s32.totalorder %s22, 1
      %p103 = por %p101, %p102
      %p104 = scmp.ne.s32.totalorder %s95, %s96
      %p105 = scmp.eq.s32.totalorder %s22, 0
      %p106 = por %p104, %p105
      %p107 = scmp.ne.s32.totalorder %s95, %s96
      %p108 = scmp.eq.s32.totalorder %s23, 1
      %p109 = por %p107, %p108
      %p111 = scmp.ne.s32.totalorder %s96, %s110
      %p112 = scmp.eq.s32.totalorder %s23, 0
      %p113 = por %p111, %p112
      %s115 = sadd.s32 %s114, 1
      %p118 = scmp.eq.s32.totalorder %s17, 1
      %p119 = scmp.ne.s32.totalorder %s114, %s116
      %p120 = scmp.eq.s32.totalorder %s17, 0
      %p121 = por %p119, %p120
      %p122 = scmp.ne.s32.totalorder %s114, %s116
      %p123 = scmp.eq.s32.totalorder %s22, 1
      %p124 = por %p122, %p123
      %p125 = scmp.ne.s32.totalorder %s116, %s117
      %p126 = scmp.eq.s32.totalorder %s22, 0
      %p127 = por %p125, %p126
      %p128 = scmp.ne.s32.totalorder %s116, %s117
      %p129 = scmp.eq.s32.totalorder %s23, 1
      %p130 = por %p128, %p129
      %p132 = scmp.ne.s32.totalorder %s117, %s131
      %p133 = scmp.eq.s32.totalorder %s23, 0
      %p134 = por %p132, %p133
      %s136 = sadd.s32 %s135, 1
      %p139 = scmp.eq.s32.totalorder %s17, 1
      %p140 = scmp.ne.s32.totalorder %s135, %s137
      %p141 = scmp.eq.s32.totalorder %s17, 0
      %p142 = por %p140, %p141
      %p143 = scmp.ne.s32.totalorder %s135, %s137
      %p144 = scmp.eq.s32.totalorder %s22, 1
      %p145 = por %p143, %p144
      %p146 = scmp.ne.s32.totalorder %s137, %s138
      %p147 = scmp.eq.s32.totalorder %s22, 0
      %p148 = por %p146, %p147
      %p149 = scmp.ne.s32.totalorder %s137, %s138
      %p150 = scmp.eq.s32.totalorder %s23, 1
      %p151 = por %p149, %p150
      %p153 = scmp.ne.s32.totalorder %s138, %s152
      %p154 = scmp.eq.s32.totalorder %s23, 0
      %p155 = por %p153, %p154
      %s157 = sadd.s32 %s156, 1
      %p160 = scmp.eq.s32.totalorder %s17, 1
      %p161 = scmp.ne.s32.totalorder %s156, %s158
      %p162 = scmp.eq.s32.totalorder %s17, 0
      %p163 = por %p161, %p162
      %p164 = scmp.ne.s32.totalorder %s156, %s158
      %p165 = scmp.eq.s32.totalorder %s22, 1
      %p166 = por %p164, %p165
      %p167 = scmp.ne.s32.totalorder %s158, %s159
      %p168 = scmp.eq.s32.totalorder %s22, 0
      %p169 = por %p167, %p168
      %p170 = scmp.ne.s32.totalorder %s158, %s159
      %p171 = scmp.eq.s32.totalorder %s23, 1
      %p172 = por %p170, %p171
      %p174 = scmp.ne.s32.totalorder %s159, %s173
      %p175 = scmp.eq.s32.totalorder %s23, 0
      %p176 = por %p174, %p175
      %s178 = sadd.s32 %s177, 1
      %p181 = scmp.eq.s32.totalorder %s17, 1
      %p182 = scmp.ne.s32.totalorder %s177, %s179
      %p183 = scmp.eq.s32.totalorder %s17, 0
      %p184 = por %p182, %p183
      %p185 = scmp.ne.s32.totalorder %s177, %s179
      %p186 = scmp.eq.s32.totalorder %s22, 1
      %p187 = por %p185, %p186
      %p188 = scmp.ne.s32.totalorder %s179, %s180
      %p189 = scmp.eq.s32.totalorder %s22, 0
      %p190 = por %p188, %p189
      %p191 = scmp.ne.s32.totalorder %s179, %s180
      %p192 = scmp.eq.s32.totalorder %s23, 1
      %p193 = por %p191, %p192
      %p195 = scmp.ne.s32.totalorder %s180, %s194
      %p196 = scmp.eq.s32.totalorder %s23, 0
      %p197 = por %p195, %p196
      %s198 = ssub.s32 %s17, %s24
      %p199 = scmp.eq.s32.totalorder %s198, 0
      %s201 = sadd.s32 %s200, 1
      %s202 = scalar_select %p199, %s200, %s201
      %p205 = pneg %p199
      %p206 = scmp.eq.s32.totalorder %s17, 1
      %p207 = por %p205, %p206
      %p208 = scmp.ne.s32.totalorder %s200, %s203
      %p209 = scmp.eq.s32.totalorder %s17, 0
      %p210 = por %p208, %p209
      %p211 = scmp.ne.s32.totalorder %s200, %s203
      %p212 = scmp.eq.s32.totalorder %s22, 1
      %p213 = por %p211, %p212
      %p214 = scmp.ne.s32.totalorder %s203, %s204
      %p215 = scmp.eq.s32.totalorder %s22, 0
      %p216 = por %p214, %p215
      %p217 = scmp.ne.s32.totalorder %s203, %s204
      %p218 = scmp.eq.s32.totalorder %s23, 1
      %p219 = por %p217, %p218
      %p221 = scmp.ne.s32.totalorder %s204, %s220
      %p222 = scmp.eq.s32.totalorder %s23, 0
      %p223 = por %p221, %p222
      %p224 = scmp.le.s32.totalorder 1, %s17
      %p225 = scmp.lt.s32.totalorder %s17, 3
      %p226 = pnand %p224, %p225
      %p227 = pneg %p226
      // Predicated region
      $region9: #{tpu_custom_call.1} parent=5 // pred_check
        _
      $region10: #{tpu_custom_call.1} parent=5 // pred_check_branch
        %229 = sbr.rel (%p226) target = $region12
      $region11: #{tpu_custom_call.1} parent=5 // pred_region
        %s230 = ssub.s32 %s17, 1
        // Predicated region
        $region13: #{tpu_custom_call.1} parent=11 // pred_check
          %p231 = pneg %p64
        $region14: #{tpu_custom_call.1} parent=11 // pred_check_branch
          %233 = sbr.rel (%p231) target = $region16
        $region15: #{tpu_custom_call.1} parent=11 // pred_region
          _
        $region16: #{tpu_custom_call.1} parent=11 // pred_fallthru
          _
        // Predicated region
        $region17: #{tpu_custom_call.1} parent=11 // pred_check
          %p234 = pneg %p85
        $region18: #{tpu_custom_call.1} parent=11 // pred_check_branch
          %236 = sbr.rel (%p234) target = $region20
        $region19: #{tpu_custom_call.1} parent=11 // pred_region
          _
        $region20: #{tpu_custom_call.1} parent=11 // pred_fallthru
          _
        // Predicated region
        $region21: #{tpu_custom_call.1} parent=11 // pred_check
          %p237 = pneg %p106
        $region22: #{tpu_custom_call.1} parent=11 // pred_check_branch
          %239 = sbr.rel (%p237) target = $region24
        $region23: #{tpu_custom_call.1} parent=11 // pred_region
          _
        $region24: #{tpu_custom_call.1} parent=11 // pred_fallthru
          _
        // Predicated region
        $region25: #{tpu_custom_call.1} parent=11 // pred_check
          %p240 = pneg %p127
        $region26: #{tpu_custom_call.1} parent=11 // pred_check_branch
          %242 = sbr.rel (%p240) target = $region28
        $region27: #{tpu_custom_call.1} parent=11 // pred_region
          _
        $region28: #{tpu_custom_call.1} parent=11 // pred_fallthru
          _
        // Predicated region
        $region29: #{tpu_custom_call.1} parent=11 // pred_check
          %p243 = pneg %p148
        $region30: #{tpu_custom_call.1} parent=11 // pred_check_branch
          %245 = sbr.rel (%p243) target = $region32
        $region31: #{tpu_custom_call.1} parent=11 // pred_region
          _
        $region32: #{tpu_custom_call.1} parent=11 // pred_fallthru
          _
        // Predicated region
        $region33: #{tpu_custom_call.1} parent=11 // pred_check
          %p246 = pneg %p169
        $region34: #{tpu_custom_call.1} parent=11 // pred_check_branch
          %248 = sbr.rel (%p246) target = $region36
        $region35: #{tpu_custom_call.1} parent=11 // pred_region
          _
        $region36: #{tpu_custom_call.1} parent=11 // pred_fallthru
          _
        // Predicated region
        $region37: #{tpu_custom_call.1} parent=11 // pred_check
          %p249 = pneg %p190
        $region38: #{tpu_custom_call.1} parent=11 // pred_check_branch
          %251 = sbr.rel (%p249) target = $region40
        $region39: #{tpu_custom_call.1} parent=11 // pred_region
          _
        $region40: #{tpu_custom_call.1} parent=11 // pred_fallthru
          _
      $region12: #{tpu_custom_call.1} parent=5 // pred_fallthru
        _
      %p252 = scmp.lt.s32.totalorder %s17, 2
      // Predicated region
      $region41: #{tpu_custom_call.1} parent=5 // pred_check
        %p253 = pneg %p252
      $region42: #{tpu_custom_call.1} parent=5 // pred_check_branch
        %255 = sbr.rel (%p253) target = $region44
      $region43: #{tpu_custom_call.1} parent=5 // pred_region
        // Predicated region
        $region45: #{tpu_custom_call.1} parent=43 // pred_check
          %p256 = pneg %p37
        $region46: #{tpu_custom_call.1} parent=43 // pred_check_branch
          %258 = sbr.rel (%p256) target = $region48
        $region47: #{tpu_custom_call.1} parent=43 // pred_region
          %p259 = scmp.lt.s32.totalorder %s17, 1
          %s260 = scalar_select %p259, %s17, 1
          %s261 = smul.addr %s260, 16
          %s262 = smul.addr %s261, 8
          %s263 = scalar_lea.vmem %s0, %s262
        $region48: #{tpu_custom_call.1} parent=43 // pred_fallthru
          _
      $region44: #{tpu_custom_call.1} parent=5 // pred_fallthru
        _
      %p264 = scmp.le.s32.totalorder 1, %s17
      %p265 = scmp.lt.s32.totalorder %s17, 3
      %p266 = pnand %p264, %p265
      %p267 = pneg %p266
      // Predicated region
      $region49: #{tpu_custom_call.1} parent=5 // pred_check
        _
      $region50: #{tpu_custom_call.1} parent=5 // pred_check_branch
        %269 = sbr.rel (%p266) target = $region52
      $region51: #{tpu_custom_call.1} parent=5 // pred_region
        %s270 = ssub.s32 %s17, 1
        %p271 = scmp.lt.s32.totalorder %s22, 1
        %s272 = scalar_select %p271, %s22, 1
        %s273 = smul.addr %s272, 16
        %s274 = smul.addr %s273, 8
        %s275 = scalar_lea.vmem %s0, %s274
        %p276 = pneg %p43
        %p277 = pneg %p40
        %p278 = pneg %p64
        %p279 = pneg %p61
        %p280 = pneg %p85
        %p281 = pneg %p82
        %p282 = pneg %p106
        %p283 = pneg %p103
        %p284 = pneg %p127
        %p285 = pneg %p124
        %p286 = pneg %p148
        %p287 = pneg %p145
        %p288 = pneg %p169
        %p289 = pneg %p166
        %p290 = pneg %p190
        %p291 = pneg %p187
        %p292 = pneg %p216
        %p293 = pneg %p213
        %s294 = sand.u32 %s203, 1
        %s295 = scalar_lea.sflag [#allocation5], %s294
        %s296 = sand.u32 %s203, 1
        %s297 = smul.addr %s296, 128
        %s298 = scalar_lea.vmem [#allocation4], %s297
        %p299 = scmp.lt.s32.totalorder %s22, 1
        %s300 = scalar_select %p299, %s22, 1
        %s301 = smul.addr %s300, 16
        %s302 = smul.addr %s301, 8
        %s303 = scalar_lea.vmem %s0, %s302
        %v305 = vld [vmem:[%s303] sm:$0xff]
        %v306 = vld [vmem:[%s303 + $0x8] sm:$0xff]
        %v307 = vld [vmem:[%s303 + $0x10] sm:$0xff]
        %v308 = vld [vmem:[%s303 + $0x18] sm:$0xff]
        %v309 = vld [vmem:[%s303 + $0x20] sm:$0xff]
        %v310 = vld [vmem:[%s303 + $0x28] sm:$0xff]
        %v311 = vld [vmem:[%s303 + $0x30] sm:$0xff]
        %v312 = vld [vmem:[%s303 + $0x38] sm:$0xff]
        %v313 = vld [vmem:[%s303 + $0x40] sm:$0xff]
        %v314 = vld [vmem:[%s303 + $0x48] sm:$0xff]
        %v315 = vld [vmem:[%s303 + $0x50] sm:$0xff]
        %v316 = vld [vmem:[%s303 + $0x58] sm:$0xff]
        %v317 = vld [vmem:[%s303 + $0x60] sm:$0xff]
        %v318 = vld [vmem:[%s303 + $0x68] sm:$0xff]
        %v319 = vld [vmem:[%s303 + $0x70] sm:$0xff]
        %v320 = vld [vmem:[%s303 + $0x78] sm:$0xff]
        %v321 = vadd.f32 %v305, %v306
        %322 = vadd.xlane.f32.xlu0 %v321
        %v323 = vpop.xlane.xlu0 %322
        %v324 = vadd.f32 %v307, %v308
        %325 = vadd.xlane.f32.xlu0 %v324
        %v326 = vpop.xlane.xlu0 %325
        %v327 = vadd.f32 %v309, %v310
        %328 = vadd.xlane.f32.xlu0 %v327
        %v329 = vpop.xlane.xlu0 %328
        %v330 = vadd.f32 %v311, %v312
        %331 = vadd.xlane.f32.xlu0 %v330
        %v332 = vpop.xlane.xlu0 %331
        %v333 = vadd.f32 %v313, %v314
        %334 = vadd.xlane.f32.xlu0 %v333
        %v335 = vpop.xlane.xlu0 %334
        %v336 = vadd.f32 %v315, %v316
        %337 = vadd.xlane.f32.xlu0 %v336
        %v338 = vpop.xlane.xlu0 %337
        %v339 = vadd.f32 %v317, %v318
        %340 = vadd.xlane.f32.xlu0 %v339
        %v341 = vpop.xlane.xlu0 %340
        %v342 = vadd.f32 %v319, %v320
        %343 = vadd.xlane.f32.xlu0 %v342
        %v344 = vpop.xlane.xlu0 %343
        %v345 = vld [vmem:[%s3] sm:$0xff]
        %v346 = vld [vmem:[%s3 + $0x8] sm:$0xff]
        %v347 = vld [vmem:[%s3 + $0x10] sm:$0xff]
        %v348 = vld [vmem:[%s3 + $0x18] sm:$0xff]
        %v349 = vld [vmem:[%s3 + $0x20] sm:$0xff]
        %v350 = vld [vmem:[%s3 + $0x28] sm:$0xff]
        %v351 = vld [vmem:[%s3 + $0x30] sm:$0xff]
        %v352 = vld [vmem:[%s3 + $0x38] sm:$0xff]
        %vm353 = vcmask 523264
        %v355 = vsel %vm353, %v345, 0
        %v358 = vsel %vm353, %v346, 0
        %v361 = vsel %vm353, %v347, 0
        %v364 = vsel %vm353, %v348, 0
        %v367 = vsel %vm353, %v349, 0
        %v370 = vsel %vm353, %v350, 0
        %v373 = vsel %vm353, %v351, 0
        %v376 = vsel %vm353, %v352, 0
        %378 = vmatpush.msra.mxu0 0.0
        %379 = vmatpush.msra.mxu0 0.0
        %380 = vmatpush.msra.mxu0 0.0
        %381 = vmatpush.msra.mxu0 0.0
        %382 = vmatpush.msra.mxu0 0.0
        %383 = vmatpush.msra.mxu0 0.0
        %384 = vmatpush.msra.mxu0 0.0
        %385 = vmatpush.msra.mxu0 0.0
        %386 = vmatpush.msra.mxu0 %v344
        %387 = vmatpush.msra.mxu0 %v341
        %388 = vmatpush.msra.mxu0 %v338
        %389 = vmatpush.msra.mxu0 %v335
        %390 = vmatpush.msra.mxu0 %v332
        %391 = vmatpush.msra.mxu0 %v329
        %392 = vmatpush.msra.mxu0 %v326
        %393 = vmatpush.msra.mxu0 %v323
        %394 = vmatmul.f32.gmra.mxu0 %v355
        %v395 = vpop.f32.mrf.mxu0
        %v396 = vadd.f32 0.0, %v395
        %397 = vmatmul.f32.gmra.mxu0 %v358
        %v398 = vpop.f32.mrf.mxu0
        %v399 = vadd.f32 0.0, %v398
        %400 = vmatmul.f32.gmra.mxu0 %v361
        %v401 = vpop.f32.mrf.mxu0
        %v402 = vadd.f32 0.0, %v401
        %403 = vmatmul.f32.gmra.mxu0 %v364
        %v404 = vpop.f32.mrf.mxu0
        %v405 = vadd.f32 0.0, %v404
        %406 = vmatmul.f32.gmra.mxu0 %v367
        %v407 = vpop.f32.mrf.mxu0
        %v408 = vadd.f32 0.0, %v407
        %409 = vmatmul.f32.gmra.mxu0 %v370
        %v410 = vpop.f32.mrf.mxu0
        %v411 = vadd.f32 0.0, %v410
        %412 = vmatmul.f32.gmra.mxu0 %v373
        %v413 = vpop.f32.mrf.mxu0
        %v414 = vadd.f32 0.0, %v413
        %415 = vmatmul.f32.gmra.mxu0 %v376
        %v416 = vpop.f32.mrf.mxu0
        %v417 = vadd.f32 0.0, %v416
        %418 = vdwg.mxu0
        %420 = vset.pattern.permute.xlu0 0
        %421 = vperm.xlu0 %420, %v396
        %v422 = vpop.permute.xlu0 %421
        %425 = vset.pattern.permute.xlu0 0
        %426 = vperm.xlu0 %425, %v399
        %v427 = vpop.permute.xlu0 %426
        %430 = vset.pattern.permute.xlu0 0
        %431 = vperm.xlu0 %430, %v402
        %v432 = vpop.permute.xlu0 %431
        %435 = vset.pattern.permute.xlu0 0
        %436 = vperm.xlu0 %435, %v405
        %v437 = vpop.permute.xlu0 %436
        %440 = vset.pattern.permute.xlu0 0
        %441 = vperm.xlu0 %440, %v408
        %v442 = vpop.permute.xlu0 %441
        %445 = vset.pattern.permute.xlu0 0
        %446 = vperm.xlu0 %445, %v411
        %v447 = vpop.permute.xlu0 %446
        %450 = vset.pattern.permute.xlu0 0
        %451 = vperm.xlu0 %450, %v414
        %v452 = vpop.permute.xlu0 %451
        %455 = vset.pattern.permute.xlu0 0
        %456 = vperm.xlu0 %455, %v417
        %v457 = vpop.permute.xlu0 %456
        %v459 = vsub.f32 %v305, %v422
        %v460 = vsub.f32 %v306, %v422
        %v461 = vsub.f32 %v307, %v427
        %v462 = vsub.f32 %v308, %v427
        %v463 = vsub.f32 %v309, %v432
        %v464 = vsub.f32 %v310, %v432
        %v465 = vsub.f32 %v311, %v437
        %v466 = vsub.f32 %v312, %v437
        %v467 = vsub.f32 %v313, %v442
        %v468 = vsub.f32 %v314, %v442
        %v469 = vsub.f32 %v315, %v447
        %v470 = vsub.f32 %v316, %v447
        %v471 = vsub.f32 %v317, %v452
        %v472 = vsub.f32 %v318, %v452
        %v473 = vsub.f32 %v319, %v457
        %v474 = vsub.f32 %v320, %v457
        %v475 = vmul.f32 %v459, %v459
        %v476 = vmul.f32 %v460, %v460
        %v477 = vmul.f32 %v461, %v461
        %v478 = vmul.f32 %v462, %v462
        %v479 = vmul.f32 %v463, %v463
        %v480 = vmul.f32 %v464, %v464
        %v481 = vmul.f32 %v465, %v465
        %v482 = vmul.f32 %v466, %v466
        %v483 = vmul.f32 %v467, %v467
        %v484 = vmul.f32 %v468, %v468
        %v485 = vmul.f32 %v469, %v469
        %v486 = vmul.f32 %v470, %v470
        %v487 = vmul.f32 %v471, %v471
        %v488 = vmul.f32 %v472, %v472
        %v489 = vmul.f32 %v473, %v473
        %v490 = vmul.f32 %v474, %v474
        %v491 = vadd.f32 %v475, %v476
        %492 = vadd.xlane.f32.xlu0 %v491
        %v493 = vpop.xlane.xlu0 %492
        %v494 = vadd.f32 %v477, %v478
        %495 = vadd.xlane.f32.xlu0 %v494
        %v496 = vpop.xlane.xlu0 %495
        %v497 = vadd.f32 %v479, %v480
        %498 = vadd.xlane.f32.xlu0 %v497
        %v499 = vpop.xlane.xlu0 %498
        %v500 = vadd.f32 %v481, %v482
        %501 = vadd.xlane.f32.xlu0 %v500
        %v502 = vpop.xlane.xlu0 %501
        %v503 = vadd.f32 %v483, %v484
        %504 = vadd.xlane.f32.xlu0 %v503
        %v505 = vpop.xlane.xlu0 %504
        %v506 = vadd.f32 %v485, %v486
        %507 = vadd.xlane.f32.xlu0 %v506
        %v508 = vpop.xlane.xlu0 %507
        %v509 = vadd.f32 %v487, %v488
        %510 = vadd.xlane.f32.xlu0 %v509
        %v511 = vpop.xlane.xlu0 %510
        %v512 = vadd.f32 %v489, %v490
        %513 = vadd.xlane.f32.xlu0 %v512
        %v514 = vpop.xlane.xlu0 %513
        %515 = vmatpush.msra.mxu0 0.0
        %516 = vmatpush.msra.mxu0 0.0
        %517 = vmatpush.msra.mxu0 0.0
        %518 = vmatpush.msra.mxu0 0.0
        %519 = vmatpush.msra.mxu0 0.0
        %520 = vmatpush.msra.mxu0 0.0
        %521 = vmatpush.msra.mxu0 0.0
        %522 = vmatpush.msra.mxu0 0.0
        %523 = vmatpush.msra.mxu0 %v514
        %524 = vmatpush.msra.mxu0 %v511
        %525 = vmatpush.msra.mxu0 %v508
        %526 = vmatpush.msra.mxu0 %v505
        %527 = vmatpush.msra.mxu0 %v502
        %528 = vmatpush.msra.mxu0 %v499
        %529 = vmatpush.msra.mxu0 %v496
        %530 = vmatpush.msra.mxu0 %v493
        %531 = vmatmul.f32.gmra.mxu0 %v355
        %v532 = vpop.f32.mrf.mxu0
        %v533 = vadd.f32 1e-05, %v532
        %534 = vmatmul.f32.gmra.mxu0 %v358
        %v535 = vpop.f32.mrf.mxu0
        %v536 = vadd.f32 1e-05, %v535
        %537 = vmatmul.f32.gmra.mxu0 %v361
        %v538 = vpop.f32.mrf.mxu0
        %v539 = vadd.f32 1e-05, %v538
        %540 = vmatmul.f32.gmra.mxu0 %v364
        %v541 = vpop.f32.mrf.mxu0
        %v542 = vadd.f32 1e-05, %v541
        %543 = vmatmul.f32.gmra.mxu0 %v367
        %v544 = vpop.f32.mrf.mxu0
        %v545 = vadd.f32 1e-05, %v544
        %546 = vmatmul.f32.gmra.mxu0 %v370
        %v547 = vpop.f32.mrf.mxu0
        %v548 = vadd.f32 1e-05, %v547
        %549 = vmatmul.f32.gmra.mxu0 %v373
        %v550 = vpop.f32.mrf.mxu0
        %v551 = vadd.f32 1e-05, %v550
        %552 = vmatmul.f32.gmra.mxu0 %v376
        %v553 = vpop.f32.mrf.mxu0
        %v554 = vadd.f32 1e-05, %v553
        %555 = vdwg.mxu0
        %v556 = vrsqrt.pop %v533
        %v557 = vmul.f32 %v556, %v533
        %v558 = vmul.f32 %v557, %v556
        %v559 = vmul.f32 0.5, %v558
        %v560 = vsub.f32 1.5, %v559
        %v561 = vmul.f32 %v556, %v560
        %vm562 = vweird.f32 %v533
        %vm563 = vweird.f32 %v556
        %vm564 = vmor %vm562, %vm563
        %v565 = vsel %vm564, %v556, %v561
        %v566 = vrsqrt.pop %v536
        %v567 = vmul.f32 %v566, %v536
        %v568 = vmul.f32 %v567, %v566
        %v569 = vmul.f32 0.5, %v568
        %v570 = vsub.f32 1.5, %v569
        %v571 = vmul.f32 %v566, %v570
        %vm572 = vweird.f32 %v536
        %vm573 = vweird.f32 %v566
        %vm574 = vmor %vm572, %vm573
        %v575 = vsel %vm574, %v566, %v571
        %v576 = vrsqrt.pop %v539
        %v577 = vmul.f32 %v576, %v539
        %v578 = vmul.f32 %v577, %v576
        %v579 = vmul.f32 0.5, %v578
        %v580 = vsub.f32 1.5, %v579
        %v581 = vmul.f32 %v576, %v580
        %vm582 = vweird.f32 %v539
        %vm583 = vweird.f32 %v576
        %vm584 = vmor %vm582, %vm583
        %v585 = vsel %vm584, %v576, %v581
        %v586 = vrsqrt.pop %v542
        %v587 = vmul.f32 %v586, %v542
        %v588 = vmul.f32 %v587, %v586
        %v589 = vmul.f32 0.5, %v588
        %v590 = vsub.f32 1.5, %v589
        %v591 = vmul.f32 %v586, %v590
        %vm592 = vweird.f32 %v542
        %vm593 = vweird.f32 %v586
        %vm594 = vmor %vm592, %vm593
        %v595 = vsel %vm594, %v586, %v591
        %v596 = vrsqrt.pop %v545
        %v597 = vmul.f32 %v596, %v545
        %v598 = vmul.f32 %v597, %v596
        %v599 = vmul.f32 0.5, %v598
        %v600 = vsub.f32 1.5, %v599
        %v601 = vmul.f32 %v596, %v600
        %vm602 = vweird.f32 %v545
        %vm603 = vweird.f32 %v596
        %vm604 = vmor %vm602, %vm603
        %v605 = vsel %vm604, %v596, %v601
        %v606 = vrsqrt.pop %v548
        %v607 = vmul.f32 %v606, %v548
        %v608 = vmul.f32 %v607, %v606
        %v609 = vmul.f32 0.5, %v608
        %v610 = vsub.f32 1.5, %v609
        %v611 = vmul.f32 %v606, %v610
        %vm612 = vweird.f32 %v548
        %vm613 = vweird.f32 %v606
        %vm614 = vmor %vm612, %vm613
        %v615 = vsel %vm614, %v606, %v611
        %v616 = vrsqrt.pop %v551
        %v617 = vmul.f32 %v616, %v551
        %v618 = vmul.f32 %v617, %v616
        %v619 = vmul.f32 0.5, %v618
        %v620 = vsub.f32 1.5, %v619
        %v621 = vmul.f32 %v616, %v620
        %vm622 = vweird.f32 %v551
        %vm623 = vweird.f32 %v616
        %vm624 = vmor %vm622, %vm623
        %v625 = vsel %vm624, %v616, %v621
        %v626 = vrsqrt.pop %v554
        %v627 = vmul.f32 %v626, %v554
        %v628 = vmul.f32 %v627, %v626
        %v629 = vmul.f32 0.5, %v628
        %v630 = vsub.f32 1.5, %v629
        %v631 = vmul.f32 %v626, %v630
        %vm632 = vweird.f32 %v554
        %vm633 = vweird.f32 %v626
        %vm634 = vmor %vm632, %vm633
        %v635 = vsel %vm634, %v626, %v631
        %637 = vset.pattern.permute.xlu0 0
        %638 = vperm.xlu0 %637, %v565
        %v639 = vpop.permute.xlu0 %638
        %642 = vset.pattern.permute.xlu0 0
        %643 = vperm.xlu0 %642, %v575
        %v644 = vpop.permute.xlu0 %643
        %647 = vset.pattern.permute.xlu0 0
        %648 = vperm.xlu0 %647, %v585
        %v649 = vpop.permute.xlu0 %648
        %652 = vset.pattern.permute.xlu0 0
        %653 = vperm.xlu0 %652, %v595
        %v654 = vpop.permute.xlu0 %653
        %657 = vset.pattern.permute.xlu0 0
        %658 = vperm.xlu0 %657, %v605
        %v659 = vpop.permute.xlu0 %658
        %662 = vset.pattern.permute.xlu0 0
        %663 = vperm.xlu0 %662, %v615
        %v664 = vpop.permute.xlu0 %663
        %667 = vset.pattern.permute.xlu0 0
        %668 = vperm.xlu0 %667, %v625
        %v669 = vpop.permute.xlu0 %668
        %672 = vset.pattern.permute.xlu0 0
        %673 = vperm.xlu0 %672, %v635
        %v674 = vpop.permute.xlu0 %673
        %v676 = vmul.f32 %v459, %v639
        %v677 = vmul.f32 %v460, %v639
        %v678 = vmul.f32 %v461, %v644
        %v679 = vmul.f32 %v462, %v644
        %v680 = vmul.f32 %v463, %v649
        %v681 = vmul.f32 %v464, %v649
        %v682 = vmul.f32 %v465, %v654
        %v683 = vmul.f32 %v466, %v654
        %v684 = vmul.f32 %v467, %v659
        %v685 = vmul.f32 %v468, %v659
        %v686 = vmul.f32 %v469, %v664
        %v687 = vmul.f32 %v470, %v664
        %v688 = vmul.f32 %v471, %v669
        %v689 = vmul.f32 %v472, %v669
        %v690 = vmul.f32 %v473, %v674
        %v691 = vmul.f32 %v474, %v674
        %v692 = vld [vmem:[%s1] sm:$0xff]
        %v693 = vld [vmem:[%s1 + $0x8] sm:$0xff]
        %v694 = vld [vmem:[%s1 + $0x10] sm:$0xff]
        %v695 = vld [vmem:[%s1 + $0x18] sm:$0xff]
        %v696 = vld [vmem:[%s1 + $0x20] sm:$0xff]
        %v697 = vld [vmem:[%s1 + $0x28] sm:$0xff]
        %v698 = vld [vmem:[%s1 + $0x30] sm:$0xff]
        %v699 = vld [vmem:[%s1 + $0x38] sm:$0xff]
        %701 = vset.pattern.permute.xlu0 0
        %702 = vperm.xlu0 %701, %v692
        %v703 = vpop.permute.xlu0 %702
        %706 = vset.pattern.permute.xlu0 0
        %707 = vperm.xlu0 %706, %v693
        %v708 = vpop.permute.xlu0 %707
        %711 = vset.pattern.permute.xlu0 0
        %712 = vperm.xlu0 %711, %v694
        %v713 = vpop.permute.xlu0 %712
        %716 = vset.pattern.permute.xlu0 0
        %717 = vperm.xlu0 %716, %v695
        %v718 = vpop.permute.xlu0 %717
        %721 = vset.pattern.permute.xlu0 0
        %722 = vperm.xlu0 %721, %v696
        %v723 = vpop.permute.xlu0 %722
        %726 = vset.pattern.permute.xlu0 0
        %727 = vperm.xlu0 %726, %v697
        %v728 = vpop.permute.xlu0 %727
        %731 = vset.pattern.permute.xlu0 0
        %732 = vperm.xlu0 %731, %v698
        %v733 = vpop.permute.xlu0 %732
        %736 = vset.pattern.permute.xlu0 0
        %737 = vperm.xlu0 %736, %v699
        %v738 = vpop.permute.xlu0 %737
        %v740 = vmul.f32 %v676, %v703
        %v741 = vmul.f32 %v677, %v703
        %v742 = vmul.f32 %v678, %v708
        %v743 = vmul.f32 %v679, %v708
        %v744 = vmul.f32 %v680, %v713
        %v745 = vmul.f32 %v681, %v713
        %v746 = vmul.f32 %v682, %v718
        %v747 = vmul.f32 %v683, %v718
        %v748 = vmul.f32 %v684, %v723
        %v749 = vmul.f32 %v685, %v723
        %v750 = vmul.f32 %v686, %v728
        %v751 = vmul.f32 %v687, %v728
        %v752 = vmul.f32 %v688, %v733
        %v753 = vmul.f32 %v689, %v733
        %v754 = vmul.f32 %v690, %v738
        %v755 = vmul.f32 %v691, %v738
        %v756 = vld [vmem:[%s2] sm:$0xff]
        %v757 = vld [vmem:[%s2 + $0x8] sm:$0xff]
        %v758 = vld [vmem:[%s2 + $0x10] sm:$0xff]
        %v759 = vld [vmem:[%s2 + $0x18] sm:$0xff]
        %v760 = vld [vmem:[%s2 + $0x20] sm:$0xff]
        %v761 = vld [vmem:[%s2 + $0x28] sm:$0xff]
        %v762 = vld [vmem:[%s2 + $0x30] sm:$0xff]
        %v763 = vld [vmem:[%s2 + $0x38] sm:$0xff]
        %765 = vset.pattern.permute.xlu0 0
        %766 = vperm.xlu0 %765, %v756
        %v767 = vpop.permute.xlu0 %766
        %770 = vset.pattern.permute.xlu0 0
        %771 = vperm.xlu0 %770, %v757
        %v772 = vpop.permute.xlu0 %771
        %775 = vset.pattern.permute.xlu0 0
        %776 = vperm.xlu0 %775, %v758
        %v777 = vpop.permute.xlu0 %776
        %780 = vset.pattern.permute.xlu0 0
        %781 = vperm.xlu0 %780, %v759
        %v782 = vpop.permute.xlu0 %781
        %785 = vset.pattern.permute.xlu0 0
        %786 = vperm.xlu0 %785, %v760
        %v787 = vpop.permute.xlu0 %786
        %790 = vset.pattern.permute.xlu0 0
        %791 = vperm.xlu0 %790, %v761
        %v792 = vpop.permute.xlu0 %791
        %795 = vset.pattern.permute.xlu0 0
        %796 = vperm.xlu0 %795, %v762
        %v797 = vpop.permute.xlu0 %796
        %800 = vset.pattern.permute.xlu0 0
        %801 = vperm.xlu0 %800, %v763
        %v802 = vpop.permute.xlu0 %801
        %v804 = vadd.f32 %v740, %v767
        %v805 = vadd.f32 %v741, %v767
        %v806 = vadd.f32 %v742, %v772
        %v807 = vadd.f32 %v743, %v772
        %v808 = vadd.f32 %v744, %v777
        %v809 = vadd.f32 %v745, %v777
        %v810 = vadd.f32 %v746, %v782
        %v811 = vadd.f32 %v747, %v782
        %v812 = vadd.f32 %v748, %v787
        %v813 = vadd.f32 %v749, %v787
        %v814 = vadd.f32 %v750, %v792
        %v815 = vadd.f32 %v751, %v792
        %v816 = vadd.f32 %v752, %v797
        %v817 = vadd.f32 %v753, %v797
        %v818 = vadd.f32 %v754, %v802
        %v819 = vadd.f32 %v755, %v802
        %v820 = vld [vmem:[%s4] sm:$0xf]
        %v821 = vld [vmem:[%s4 + $0x4] sm:$0xf]
        %v822 = vld [vmem:[%s4 + $0x8] sm:$0xf]
        %v823 = vld [vmem:[%s4 + $0xc] sm:$0xf]
        %v824 = vld [vmem:[%s4 + $0x10] sm:$0xf]
        %v825 = vld [vmem:[%s4 + $0x14] sm:$0xf]
        %v826 = vld [vmem:[%s4 + $0x18] sm:$0xf]
        %v827 = vld [vmem:[%s4 + $0x1c] sm:$0xf]
        %v828 = vld [vmem:[%s4 + $0x20] sm:$0xf]
        %v829 = vld [vmem:[%s4 + $0x24] sm:$0xf]
        %v830 = vld [vmem:[%s4 + $0x28] sm:$0xf]
        %v831 = vld [vmem:[%s4 + $0x2c] sm:$0xf]
        %v832 = vld [vmem:[%s4 + $0x30] sm:$0xf]
        %v833 = vld [vmem:[%s4 + $0x34] sm:$0xf]
        %v834 = vld [vmem:[%s4 + $0x38] sm:$0xf]
        %v835 = vld [vmem:[%s4 + $0x3c] sm:$0xf]
        %v836 = vld [vmem:[%s4 + $0x40] sm:$0xf]
        %v837 = vld [vmem:[%s4 + $0x44] sm:$0xf]
        %v838 = vld [vmem:[%s4 + $0x48] sm:$0xf]
        %v839 = vld [vmem:[%s4 + $0x4c] sm:$0xf]
        %v840 = vld [vmem:[%s4 + $0x50] sm:$0xf]
        %v841 = vld [vmem:[%s4 + $0x54] sm:$0xf]
        %v842 = vld [vmem:[%s4 + $0x58] sm:$0xf]
        %v843 = vld [vmem:[%s4 + $0x5c] sm:$0xf]
        %v844 = vpack.c.bf16 %v806, %v804
        %v845 = vpack.c.bf16 %v807, %v805
        %v846 = vpack.c.bf16 %v810, %v808
        %v847 = vpack.c.bf16 %v811, %v809
        %v848 = vpack.c.bf16 %v814, %v812
        %v849 = vpack.c.bf16 %v815, %v813
        %v850 = vpack.c.bf16 %v818, %v816
        %v851 = vpack.c.bf16 %v819, %v817
        %v852 = vld [vmem:[%s5] sm:$0xff]
        %v853 = vld [vmem:[%s5 + $0x8] sm:$0xff]
        %v854 = vld [vmem:[%s5 + $0x10] sm:$0xff]
        %v855 = vld [vmem:[%s5 + $0x18] sm:$0xff]
        %v856 = vld [vmem:[%s5 + $0x20] sm:$0xff]
        %v857 = vld [vmem:[%s5 + $0x28] sm:$0xff]
        %v858 = vld [vmem:[%s5 + $0x30] sm:$0xff]
        %v859 = vld [vmem:[%s5 + $0x38] sm:$0xff]
        %v860 = vld [vmem:[%s5 + $0x40] sm:$0xff]
        %v861 = vld [vmem:[%s5 + $0x48] sm:$0xff]
        %v862 = vld [vmem:[%s5 + $0x50] sm:$0xff]
        %v863 = vld [vmem:[%s5 + $0x58] sm:$0xff]
        %v864 = vld [vmem:[%s5 + $0x60] sm:$0xff]
        %v865 = vld [vmem:[%s5 + $0x68] sm:$0xff]
        %v866 = vld [vmem:[%s5 + $0x70] sm:$0xff]
        %v867 = vld [vmem:[%s5 + $0x78] sm:$0xff]
        %v868 = vld [vmem:[%s5 + $0x80] sm:$0xff]
        %v869 = vld [vmem:[%s5 + $0x88] sm:$0xff]
        %v870 = vld [vmem:[%s5 + $0x90] sm:$0xff]
        %v871 = vld [vmem:[%s5 + $0x98] sm:$0xff]
        %v872 = vld [vmem:[%s5 + $0xa0] sm:$0xff]
        %v873 = vld [vmem:[%s5 + $0xa8] sm:$0xff]
        %v874 = vld [vmem:[%s5 + $0xb0] sm:$0xff]
        %v875 = vld [vmem:[%s5 + $0xb8] sm:$0xff]
        %877 = vset.pattern.permute.xlu0 0
        %878 = vperm.xlu0 %877, %v852
        %v879 = vpop.permute.xlu0 %878
        %882 = vset.pattern.permute.xlu0 0
        %883 = vperm.xlu0 %882, %v853
        %v884 = vpop.permute.xlu0 %883
        %887 = vset.pattern.permute.xlu0 0
        %888 = vperm.xlu0 %887, %v854
        %v889 = vpop.permute.xlu0 %888
        %892 = vset.pattern.permute.xlu0 0
        %893 = vperm.xlu0 %892, %v855
        %v894 = vpop.permute.xlu0 %893
        %897 = vset.pattern.permute.xlu0 0
        %898 = vperm.xlu0 %897, %v856
        %v899 = vpop.permute.xlu0 %898
        %902 = vset.pattern.permute.xlu0 0
        %903 = vperm.xlu0 %902, %v857
        %v904 = vpop.permute.xlu0 %903
        %907 = vset.pattern.permute.xlu0 0
        %908 = vperm.xlu0 %907, %v858
        %v909 = vpop.permute.xlu0 %908
        %912 = vset.pattern.permute.xlu0 0
        %913 = vperm.xlu0 %912, %v859
        %v914 = vpop.permute.xlu0 %913
        %917 = vset.pattern.permute.xlu0 0
        %918 = vperm.xlu0 %917, %v860
        %v919 = vpop.permute.xlu0 %918
        %922 = vset.pattern.permute.xlu0 0
        %923 = vperm.xlu0 %922, %v861
        %v924 = vpop.permute.xlu0 %923
        %927 = vset.pattern.permute.xlu0 0
        %928 = vperm.xlu0 %927, %v862
        %v929 = vpop.permute.xlu0 %928
        %932 = vset.pattern.permute.xlu0 0
        %933 = vperm.xlu0 %932, %v863
        %v934 = vpop.permute.xlu0 %933
        %937 = vset.pattern.permute.xlu0 0
        %938 = vperm.xlu0 %937, %v864
        %v939 = vpop.permute.xlu0 %938
        %942 = vset.pattern.permute.xlu0 0
        %943 = vperm.xlu0 %942, %v865
        %v944 = vpop.permute.xlu0 %943
        %947 = vset.pattern.permute.xlu0 0
        %948 = vperm.xlu0 %947, %v866
        %v949 = vpop.permute.xlu0 %948
        %952 = vset.pattern.permute.xlu0 0
        %953 = vperm.xlu0 %952, %v867
        %v954 = vpop.permute.xlu0 %953
        %957 = vset.pattern.permute.xlu0 0
        %958 = vperm.xlu0 %957, %v868
        %v959 = vpop.permute.xlu0 %958
        %962 = vset.pattern.permute.xlu0 0
        %963 = vperm.xlu0 %962, %v869
        %v964 = vpop.permute.xlu0 %963
        %967 = vset.pattern.permute.xlu0 0
        %968 = vperm.xlu0 %967, %v870
        %v969 = vpop.permute.xlu0 %968
        %972 = vset.pattern.permute.xlu0 0
        %973 = vperm.xlu0 %972, %v871
        %v974 = vpop.permute.xlu0 %973
        %977 = vset.pattern.permute.xlu0 0
        %978 = vperm.xlu0 %977, %v872
        %v979 = vpop.permute.xlu0 %978
        %982 = vset.pattern.permute.xlu0 0
        %983 = vperm.xlu0 %982, %v873
        %v984 = vpop.permute.xlu0 %983
        %987 = vset.pattern.permute.xlu0 0
        %988 = vperm.xlu0 %987, %v874
        %v989 = vpop.permute.xlu0 %988
        %992 = vset.pattern.permute.xlu0 0
        %993 = vperm.xlu0 %992, %v875
        %v994 = vpop.permute.xlu0 %993
        %v1020 = vunpack.c.l.b16 %v820
        %v1021 = vunpack.c.l.b16 %v821
        %v1022 = vunpack.c.l.b16 %v822
        %v1023 = vunpack.c.l.b16 %v823
        %v1024 = vunpack.c.l.b16 %v824
        %v1025 = vunpack.c.l.b16 %v825
        %v1026 = vunpack.c.l.b16 %v826
        %v1027 = vunpack.c.l.b16 %v827
        %v1028 = vunpack.c.l.b16 %v828
        %v1029 = vunpack.c.l.b16 %v829
        %v1030 = vunpack.c.l.b16 %v830
        %v1031 = vunpack.c.l.b16 %v831
        %v1032 = vunpack.c.l.b16 %v832
        %v1033 = vunpack.c.l.b16 %v833
        %v1034 = vunpack.c.l.b16 %v834
        %v1035 = vunpack.c.l.b16 %v835
        %v1036 = vunpack.c.l.b16 %v836
        %v1037 = vunpack.c.l.b16 %v837
        %v1038 = vunpack.c.l.b16 %v838
        %v1039 = vunpack.c.l.b16 %v839
        %v1040 = vunpack.c.l.b16 %v840
        %v1041 = vunpack.c.l.b16 %v841
        %v1042 = vunpack.c.l.b16 %v842
        %v1043 = vunpack.c.l.b16 %v843
        %v1044 = vpack.c.b16 %v1021, %v1020
        %v1045 = vpack.c.b16 %v1023, %v1022
        %v1046 = vpack.c.b16 %v1025, %v1024
        %v1047 = vpack.c.b16 %v1027, %v1026
        %v1048 = vpack.c.b16 %v1029, %v1028
        %v1049 = vpack.c.b16 %v1031, %v1030
        %v1050 = vpack.c.b16 %v1033, %v1032
        %v1051 = vpack.c.b16 %v1035, %v1034
        %v1052 = vpack.c.b16 %v1037, %v1036
        %v1053 = vpack.c.b16 %v1039, %v1038
        %v1054 = vpack.c.b16 %v1041, %v1040
        %v1055 = vpack.c.b16 %v1043, %v1042
        %v1057 = vsel %vm353, %v1044, 0
        %v1060 = vsel %vm353, %v1045, 0
        %v1063 = vsel %vm353, %v1046, 0
        %v1066 = vsel %vm353, %v1047, 0
        %v1069 = vsel %vm353, %v1048, 0
        %v1072 = vsel %vm353, %v1049, 0
        %v1075 = vsel %vm353, %v1050, 0
        %v1078 = vsel %vm353, %v1051, 0
        %v1081 = vsel %vm353, %v1052, 0
        %v1084 = vsel %vm353, %v1053, 0
        %v1087 = vsel %vm353, %v1054, 0
        %v1090 = vsel %vm353, %v1055, 0
        %1092 = vmatpush.bf16.msra.mxu0 0
        %1093 = vmatpush.bf16.msra.mxu0 0
        %1094 = vmatpush.bf16.msra.mxu0 0
        %1095 = vmatpush.bf16.msra.mxu0 0
        %1096 = vmatpush.bf16.msra.mxu0 %v850
        %1097 = vmatpush.bf16.msra.mxu0 %v848
        %1098 = vmatpush.bf16.msra.mxu0 %v846
        %1099 = vmatpush.bf16.msra.mxu0 %v844
        %1100 = vmatmul.bf16.gmra.mxu0 %v1057
        %v1101 = vpop.f32.mrf.mxu0
        %v1102 = vadd.f32 %v879, %v1101
        %v1103 = vpop.f32.mrf.mxu0
        %v1104 = vadd.f32 %v884, %v1103
        %1105 = vmatmul.bf16.gmra.mxu0 %v1060
        %v1106 = vpop.f32.mrf.mxu0
        %v1107 = vadd.f32 %v889, %v1106
        %v1108 = vpop.f32.mrf.mxu0
        %v1109 = vadd.f32 %v894, %v1108
        %1110 = vmatmul.bf16.gmra.mxu0 %v1063
        %v1111 = vpop.f32.mrf.mxu0
        %v1112 = vadd.f32 %v899, %v1111
        %v1113 = vpop.f32.mrf.mxu0
        %v1114 = vadd.f32 %v904, %v1113
        %1115 = vmatmul.bf16.gmra.mxu0 %v1066
        %v1116 = vpop.f32.mrf.mxu0
        %v1117 = vadd.f32 %v909, %v1116
        %v1118 = vpop.f32.mrf.mxu0
        %v1119 = vadd.f32 %v914, %v1118
        %1120 = vmatmul.bf16.gmra.mxu0 %v1069
        %v1121 = vpop.f32.mrf.mxu0
        %v1122 = vadd.f32 %v919, %v1121
        %v1123 = vpop.f32.mrf.mxu0
        %v1124 = vadd.f32 %v924, %v1123
        %1125 = vmatmul.bf16.gmra.mxu0 %v1072
        %v1126 = vpop.f32.mrf.mxu0
        %v1127 = vadd.f32 %v929, %v1126
        %v1128 = vpop.f32.mrf.mxu0
        %v1129 = vadd.f32 %v934, %v1128
        %1130 = vmatmul.bf16.gmra.mxu0 %v1075
        %v1131 = vpop.f32.mrf.mxu0
        %v1132 = vadd.f32 %v939, %v1131
        %v1133 = vpop.f32.mrf.mxu0
        %v1134 = vadd.f32 %v944, %v1133
        %1135 = vmatmul.bf16.gmra.mxu0 %v1078
        %v1136 = vpop.f32.mrf.mxu0
        %v1137 = vadd.f32 %v949, %v1136
        %v1138 = vpop.f32.mrf.mxu0
        %v1139 = vadd.f32 %v954, %v1138
        %1140 = vmatmul.bf16.gmra.mxu0 %v1081
        %v1141 = vpop.f32.mrf.mxu0
        %v1142 = vadd.f32 %v959, %v1141
        %v1143 = vpop.f32.mrf.mxu0
        %v1144 = vadd.f32 %v964, %v1143
        %1145 = vmatmul.bf16.gmra.mxu0 %v1084
        %v1146 = vpop.f32.mrf.mxu0
        %v1147 = vadd.f32 %v969, %v1146
        %v1148 = vpop.f32.mrf.mxu0
        %v1149 = vadd.f32 %v974, %v1148
        %1150 = vmatmul.bf16.gmra.mxu0 %v1087
        %v1151 = vpop.f32.mrf.mxu0
        %v1152 = vadd.f32 %v979, %v1151
        %v1153 = vpop.f32.mrf.mxu0
        %v1154 = vadd.f32 %v984, %v1153
        %1155 = vmatmul.bf16.gmra.mxu0 %v1090
        %v1156 = vpop.f32.mrf.mxu0
        %v1157 = vadd.f32 %v989, %v1156
        %v1158 = vpop.f32.mrf.mxu0
        %v1159 = vadd.f32 %v994, %v1158
        %1160 = vdwg.mxu0
        %1161 = vmatpush.bf16.msra.mxu0 0
        %1162 = vmatpush.bf16.msra.mxu0 0
        %1163 = vmatpush.bf16.msra.mxu0 0
        %1164 = vmatpush.bf16.msra.mxu0 0
        %1165 = vmatpush.bf16.msra.mxu0 %v851
        %1166 = vmatpush.bf16.msra.mxu0 %v849
        %1167 = vmatpush.bf16.msra.mxu0 %v847
        %1168 = vmatpush.bf16.msra.mxu0 %v845
        %1169 = vmatmul.bf16.gmra.mxu0 %v1057
        %v1170 = vpop.f32.mrf.mxu0
        %v1171 = vadd.f32 %v879, %v1170
        %v1172 = vpop.f32.mrf.mxu0
        %v1173 = vadd.f32 %v884, %v1172
        %1174 = vmatmul.bf16.gmra.mxu0 %v1060
        %v1175 = vpop.f32.mrf.mxu0
        %v1176 = vadd.f32 %v889, %v1175
        %v1177 = vpop.f32.mrf.mxu0
        %v1178 = vadd.f32 %v894, %v1177
        %1179 = vmatmul.bf16.gmra.mxu0 %v1063
        %v1180 = vpop.f32.mrf.mxu0
        %v1181 = vadd.f32 %v899, %v1180
        %v1182 = vpop.f32.mrf.mxu0
        %v1183 = vadd.f32 %v904, %v1182
        %1184 = vmatmul.bf16.gmra.mxu0 %v1066
        %v1185 = vpop.f32.mrf.mxu0
        %v1186 = vadd.f32 %v909, %v1185
        %v1187 = vpop.f32.mrf.mxu0
        %v1188 = vadd.f32 %v914, %v1187
        %1189 = vmatmul.bf16.gmra.mxu0 %v1069
        %v1190 = vpop.f32.mrf.mxu0
        %v1191 = vadd.f32 %v919, %v1190
        %v1192 = vpop.f32.mrf.mxu0
        %v1193 = vadd.f32 %v924, %v1192
        %1194 = vmatmul.bf16.gmra.mxu0 %v1072
        %v1195 = vpop.f32.mrf.mxu0
        %v1196 = vadd.f32 %v929, %v1195
        %v1197 = vpop.f32.mrf.mxu0
        %v1198 = vadd.f32 %v934, %v1197
        %1199 = vmatmul.bf16.gmra.mxu0 %v1075
        %v1200 = vpop.f32.mrf.mxu0
        %v1201 = vadd.f32 %v939, %v1200
        %v1202 = vpop.f32.mrf.mxu0
        %v1203 = vadd.f32 %v944, %v1202
        %1204 = vmatmul.bf16.gmra.mxu0 %v1078
        %v1205 = vpop.f32.mrf.mxu0
        %v1206 = vadd.f32 %v949, %v1205
        %v1207 = vpop.f32.mrf.mxu0
        %v1208 = vadd.f32 %v954, %v1207
        %1209 = vmatmul.bf16.gmra.mxu0 %v1081
        %v1210 = vpop.f32.mrf.mxu0
        %v1211 = vadd.f32 %v959, %v1210
        %v1212 = vpop.f32.mrf.mxu0
        %v1213 = vadd.f32 %v964, %v1212
        %1214 = vmatmul.bf16.gmra.mxu0 %v1084
        %v1215 = vpop.f32.mrf.mxu0
        %v1216 = vadd.f32 %v969, %v1215
        %v1217 = vpop.f32.mrf.mxu0
        %v1218 = vadd.f32 %v974, %v1217
        %1219 = vmatmul.bf16.gmra.mxu0 %v1087
        %v1220 = vpop.f32.mrf.mxu0
        %v1221 = vadd.f32 %v979, %v1220
        %v1222 = vpop.f32.mrf.mxu0
        %v1223 = vadd.f32 %v984, %v1222
        %1224 = vmatmul.bf16.gmra.mxu0 %v1090
        %v1225 = vpop.f32.mrf.mxu0
        %v1226 = vadd.f32 %v989, %v1225
        %v1227 = vpop.f32.mrf.mxu0
        %v1228 = vadd.f32 %v994, %v1227
        %1229 = vdwg.mxu0
        %v1230 = vpack.c.bf16 %v1171, %v1102
        %v1231 = vpack.c.bf16 %v1173, %v1104
        %v1232 = vpack.c.bf16 %v1176, %v1107
        %v1233 = vpack.c.bf16 %v1178, %v1109
        %v1234 = vpack.c.bf16 %v1181, %v1112
        %v1235 = vpack.c.bf16 %v1183, %v1114
        %v1236 = vpack.c.bf16 %v1186, %v1117
        %v1237 = vpack.c.bf16 %v1188, %v1119
        %v1238 = vpack.c.bf16 %v1191, %v1122
        %v1239 = vpack.c.bf16 %v1193, %v1124
        %v1240 = vpack.c.bf16 %v1196, %v1127
        %v1241 = vpack.c.bf16 %v1198, %v1129
        %v1242 = vpack.c.bf16 %v1201, %v1132
        %v1243 = vpack.c.bf16 %v1203, %v1134
        %v1244 = vpack.c.bf16 %v1206, %v1137
        %v1245 = vpack.c.bf16 %v1208, %v1139
        %v1246 = vpack.c.bf16 %v1211, %v1142
        %v1247 = vpack.c.bf16 %v1213, %v1144
        %v1248 = vpack.c.bf16 %v1216, %v1147
        %v1249 = vpack.c.bf16 %v1218, %v1149
        %v1250 = vpack.c.bf16 %v1221, %v1152
        %v1251 = vpack.c.bf16 %v1223, %v1154
        %v1252 = vpack.c.bf16 %v1226, %v1157
        %v1253 = vpack.c.bf16 %v1228, %v1159
        %1254 = vst [vmem:[#allocation2] sm:$0xff] %v1230
        %1255 = vst [vmem:[#allocation2 + $0x8] sm:$0xff] %v1231
        %1256 = vst [vmem:[#allocation2 + $0x10] sm:$0xff] %v1232
        %1257 = vst [vmem:[#allocation2 + $0x18] sm:$0xff] %v1233
        %1258 = vst [vmem:[#allocation2 + $0x20] sm:$0xff] %v1234
        %1259 = vst [vmem:[#allocation2 + $0x28] sm:$0xff] %v1235
        %1260 = vst [vmem:[#allocation2 + $0x30] sm:$0xff] %v1236
        %1261 = vst [vmem:[#allocation2 + $0x38] sm:$0xff] %v1237
        %1262 = vst [vmem:[#allocation2 + $0x40] sm:$0xff] %v1238
        %1263 = vst [vmem:[#allocation2 + $0x48] sm:$0xff] %v1239
        %1264 = vst [vmem:[#allocation2 + $0x50] sm:$0xff] %v1240
        %1265 = vst [vmem:[#allocation2 + $0x58] sm:$0xff] %v1241
        %1266 = vst [vmem:[#allocation2 + $0x60] sm:$0xff] %v1242
        %1267 = vst [vmem:[#allocation2 + $0x68] sm:$0xff] %v1243
        %1268 = vst [vmem:[#allocation2 + $0x70] sm:$0xff] %v1244
        %1269 = vst [vmem:[#allocation2 + $0x78] sm:$0xff] %v1245
        %1270 = vst [vmem:[#allocation2 + $0x80] sm:$0xff] %v1246
        %1271 = vst [vmem:[#allocation2 + $0x88] sm:$0xff] %v1247
        %1272 = vst [vmem:[#allocation2 + $0x90] sm:$0xff] %v1248
        %1273 = vst [vmem:[#allocation2 + $0x98] sm:$0xff] %v1249
        %1274 = vst [vmem:[#allocation2 + $0xa0] sm:$0xff] %v1250
        %1275 = vst [vmem:[#allocation2 + $0xa8] sm:$0xff] %v1251
        %1276 = vst [vmem:[#allocation2 + $0xb0] sm:$0xff] %v1252
        %1277 = vst [vmem:[#allocation2 + $0xb8] sm:$0xff] %v1253
        %v1278 = vld [vmem:[#allocation2] sm:$0xff]
        %v1279 = vld [vmem:[#allocation2 + $0x8] sm:$0xff]
        loop: start=0, step=1, limit=2
        $region53: #{tpu_custom_call.1} parent=51 // loop_pre_header
          _
        $region54: #{tpu_custom_call.1} parent=51 // loop_header
          %s1281 = sphi 0, %s1285
          %p1282 = scmp.ge.s32.totalorder %s1281, 2
          %v1286 = vphi 0.0, %v1744
          %v1287 = vphi 0.0, %v1745
          %v1288 = vphi 0.0, %v1746
          %v1289 = vphi 0.0, %v1747
        $region55: #{tpu_custom_call.1} parent=51 // loop_header_branch
          %1284 = sbr.rel (%p1282) target = $region59
        $region56: #{tpu_custom_call.1} parent=51 // loop_body
          %s1290 = smul.u32 %s1281, 128
          %s1291 = sshra.s32 %s1290, 7
          %s1292 = sand.u32 %s1290, 127
          %s1293 = smul.addr %s1291, 4
          %s1294 = scalar_lea.vmem [#allocation2], %s1293
          %v1295 = vld [vmem:[%s1294 + $0x10] sm:$0xf]
          %v1296 = vld [vmem:[%s1294 + $0x18] sm:$0xf]
          %v1297 = vld [vmem:[%s1294 + $0x20] sm:$0xf]
          %v1298 = vld [vmem:[%s1294 + $0x28] sm:$0xf]
          %v1301 = vunpack.c.l.b16 %v1295
          %v1302 = vunpack.c.l.b16 %v1296
          %v1303 = vpack.c.b16 %v1302, %v1301
          %1305 = vxpose.xlu0.c.b16.start [1/8] %v1303, 128
          %1306 = vxpose.xlu0.c.b16.cont [2/8] 0, 128
          %1307 = vxpose.xlu0.c.b16.cont [3/8] 0, 128
          %1308 = vxpose.xlu0.c.b16.cont [4/8] 0, 128
          %1309 = vxpose.xlu0.c.b16.cont [5/8] 0, 128
          %1310 = vxpose.xlu0.c.b16.cont [6/8] 0, 128
          %1311 = vxpose.xlu0.c.b16.cont [7/8] 0, 128
          %1312 = vxpose.xlu0.c.b16.end [8/8] 0, 128
          %v1313 = vpop.trf.xlu0
          %v1314 = vpop.trf.xlu0
          %v1315 = vpop.trf.xlu0
          %v1316 = vpop.trf.xlu0
          %v1317 = vpop.trf.xlu0
          %v1318 = vpop.trf.xlu0
          %v1319 = vpop.trf.xlu0
          %v1320 = vpop.trf.xlu0
          %v1323 = vunpack.c.l.b16 %v1278
          %v1324 = vunpack.c.h.b16 %v1278
          %v1325 = vunpack.c.l.b16 %v1279
          %v1326 = vunpack.c.h.b16 %v1279
          %v1327 = vpack.c.b16 %v1325, %v1323
          %v1328 = vpack.c.b16 %v1326, %v1324
          %vm1331 = vcmask 130048
          %v1333 = vsel %vm1331, %v1313, 0
          %v1336 = vsel %vm1331, %v1314, 0
          %v1339 = vsel %vm1331, %v1315, 0
          %v1342 = vsel %vm1331, %v1316, 0
          %v1345 = vsel %vm1331, %v1317, 0
          %v1348 = vsel %vm1331, %v1318, 0
          %v1351 = vsel %vm1331, %v1319, 0
          %v1354 = vsel %vm1331, %v1320, 0
          %1356 = vmatpush.bf16.msra.mxu0 0
          %1357 = vmatpush.bf16.msra.mxu0 0
          %1358 = vmatpush.bf16.msra.mxu0 0
          %1359 = vmatpush.bf16.msra.mxu0 0
          %1360 = vmatpush.bf16.msra.mxu0 0
          %1361 = vmatpush.bf16.msra.mxu0 0
          %1362 = vmatpush.bf16.msra.mxu0 0
          %1363 = vmatpush.bf16.msra.mxu0 %v1327
          %1364 = vmatmul.bf16.gmra.mxu0 %v1333
          %v1365 = vpop.f32.mrf.mxu0
          %v1366 = vadd.f32 0.0, %v1365
          %v1367 = vpop.f32.mrf.mxu0
          %v1368 = vadd.f32 0.0, %v1367
          %1369 = vmatmul.bf16.gmra.mxu0 %v1336
          %v1370 = vpop.f32.mrf.mxu0
          %v1371 = vadd.f32 0.0, %v1370
          %v1372 = vpop.f32.mrf.mxu0
          %v1373 = vadd.f32 0.0, %v1372
          %1374 = vmatmul.bf16.gmra.mxu0 %v1339
          %v1375 = vpop.f32.mrf.mxu0
          %v1376 = vadd.f32 0.0, %v1375
          %v1377 = vpop.f32.mrf.mxu0
          %v1378 = vadd.f32 0.0, %v1377
          %1379 = vmatmul.bf16.gmra.mxu0 %v1342
          %v1380 = vpop.f32.mrf.mxu0
          %v1381 = vadd.f32 0.0, %v1380
          %v1382 = vpop.f32.mrf.mxu0
          %v1383 = vadd.f32 0.0, %v1382
          %1384 = vmatmul.bf16.gmra.mxu0 %v1345
          %v1385 = vpop.f32.mrf.mxu0
          %v1386 = vadd.f32 0.0, %v1385
          %v1387 = vpop.f32.mrf.mxu0
          %v1388 = vadd.f32 0.0, %v1387
          %1389 = vmatmul.bf16.gmra.mxu0 %v1348
          %v1390 = vpop.f32.mrf.mxu0
          %v1391 = vadd.f32 0.0, %v1390
          %v1392 = vpop.f32.mrf.mxu0
          %v1393 = vadd.f32 0.0, %v1392
          %1394 = vmatmul.bf16.gmra.mxu0 %v1351
          %v1395 = vpop.f32.mrf.mxu0
          %v1396 = vadd.f32 0.0, %v1395
          %v1397 = vpop.f32.mrf.mxu0
          %v1398 = vadd.f32 0.0, %v1397
          %1399 = vmatmul.bf16.gmra.mxu0 %v1354
          %v1400 = vpop.f32.mrf.mxu0
          %v1401 = vadd.f32 0.0, %v1400
          %v1402 = vpop.f32.mrf.mxu0
          %v1403 = vadd.f32 0.0, %v1402
          %1404 = vdwg.mxu0
          %1405 = vmatpush.bf16.msra.mxu0 0
          %1406 = vmatpush.bf16.msra.mxu0 0
          %1407 = vmatpush.bf16.msra.mxu0 0
          %1408 = vmatpush.bf16.msra.mxu0 0
          %1409 = vmatpush.bf16.msra.mxu0 0
          %1410 = vmatpush.bf16.msra.mxu0 0
          %1411 = vmatpush.bf16.msra.mxu0 0
          %1412 = vmatpush.bf16.msra.mxu0 %v1328
          %1413 = vmatmul.bf16.gmra.mxu0 %v1333
          %v1414 = vpop.f32.mrf.mxu0
          %v1415 = vadd.f32 0.0, %v1414
          %v1416 = vpop.f32.mrf.mxu0
          %v1417 = vadd.f32 0.0, %v1416
          %1418 = vmatmul.bf16.gmra.mxu0 %v1336
          %v1419 = vpop.f32.mrf.mxu0
          %v1420 = vadd.f32 0.0, %v1419
          %v1421 = vpop.f32.mrf.mxu0
          %v1422 = vadd.f32 0.0, %v1421
          %1423 = vmatmul.bf16.gmra.mxu0 %v1339
          %v1424 = vpop.f32.mrf.mxu0
          %v1425 = vadd.f32 0.0, %v1424
          %v1426 = vpop.f32.mrf.mxu0
          %v1427 = vadd.f32 0.0, %v1426
          %1428 = vmatmul.bf16.gmra.mxu0 %v1342
          %v1429 = vpop.f32.mrf.mxu0
          %v1430 = vadd.f32 0.0, %v1429
          %v1431 = vpop.f32.mrf.mxu0
          %v1432 = vadd.f32 0.0, %v1431
          %1433 = vmatmul.bf16.gmra.mxu0 %v1345
          %v1434 = vpop.f32.mrf.mxu0
          %v1435 = vadd.f32 0.0, %v1434
          %v1436 = vpop.f32.mrf.mxu0
          %v1437 = vadd.f32 0.0, %v1436
          %1438 = vmatmul.bf16.gmra.mxu0 %v1348
          %v1439 = vpop.f32.mrf.mxu0
          %v1440 = vadd.f32 0.0, %v1439
          %v1441 = vpop.f32.mrf.mxu0
          %v1442 = vadd.f32 0.0, %v1441
          %1443 = vmatmul.bf16.gmra.mxu0 %v1351
          %v1444 = vpop.f32.mrf.mxu0
          %v1445 = vadd.f32 0.0, %v1444
          %v1446 = vpop.f32.mrf.mxu0
          %v1447 = vadd.f32 0.0, %v1446
          %1448 = vmatmul.bf16.gmra.mxu0 %v1354
          %v1449 = vpop.f32.mrf.mxu0
          %v1450 = vadd.f32 0.0, %v1449
          %v1451 = vpop.f32.mrf.mxu0
          %v1452 = vadd.f32 0.0, %v1451
          %1453 = vdwg.mxu0
          %v1454 = vmax.f32 %v1366, %v1415
          %1455 = vmax.xlane.f32.xlu0 %v1454
          %v1456 = vpop.xlane.xlu0 %1455
          %v1457 = vmax.f32 %v1368, %v1417
          %1458 = vmax.xlane.f32.xlu0 %v1457
          %v1459 = vpop.xlane.xlu0 %1458
          %v1460 = vmax.f32 %v1371, %v1420
          %1461 = vmax.xlane.f32.xlu0 %v1460
          %v1462 = vpop.xlane.xlu0 %1461
          %v1463 = vmax.f32 %v1373, %v1422
          %1464 = vmax.xlane.f32.xlu0 %v1463
          %v1465 = vpop.xlane.xlu0 %1464
          %v1466 = vmax.f32 %v1376, %v1425
          %1467 = vmax.xlane.f32.xlu0 %v1466
          %v1468 = vpop.xlane.xlu0 %1467
          %v1469 = vmax.f32 %v1378, %v1427
          %1470 = vmax.xlane.f32.xlu0 %v1469
          %v1471 = vpop.xlane.xlu0 %1470
          %v1472 = vmax.f32 %v1381, %v1430
          %1473 = vmax.xlane.f32.xlu0 %v1472
          %v1474 = vpop.xlane.xlu0 %1473
          %v1475 = vmax.f32 %v1383, %v1432
          %1476 = vmax.xlane.f32.xlu0 %v1475
          %v1477 = vpop.xlane.xlu0 %1476
          %v1478 = vmax.f32 %v1386, %v1435
          %1479 = vmax.xlane.f32.xlu0 %v1478
          %v1480 = vpop.xlane.xlu0 %1479
          %v1481 = vmax.f32 %v1388, %v1437
          %1482 = vmax.xlane.f32.xlu0 %v1481
          %v1483 = vpop.xlane.xlu0 %1482
          %v1484 = vmax.f32 %v1391, %v1440
          %1485 = vmax.xlane.f32.xlu0 %v1484
          %v1486 = vpop.xlane.xlu0 %1485
          %v1487 = vmax.f32 %v1393, %v1442
          %1488 = vmax.xlane.f32.xlu0 %v1487
          %v1489 = vpop.xlane.xlu0 %1488
          %v1490 = vmax.f32 %v1396, %v1445
          %1491 = vmax.xlane.f32.xlu0 %v1490
          %v1492 = vpop.xlane.xlu0 %1491
          %v1493 = vmax.f32 %v1398, %v1447
          %1494 = vmax.xlane.f32.xlu0 %v1493
          %v1495 = vpop.xlane.xlu0 %1494
          %v1496 = vmax.f32 %v1401, %v1450
          %1497 = vmax.xlane.f32.xlu0 %v1496
          %v1498 = vpop.xlane.xlu0 %1497
          %v1499 = vmax.f32 %v1403, %v1452
          %1500 = vmax.xlane.f32.xlu0 %v1499
          %v1501 = vpop.xlane.xlu0 %1500
          %v1502 = vsub.f32 %v1366, %v1456
          %v1503 = vsub.f32 %v1415, %v1456
          %v1504 = vsub.f32 %v1368, %v1459
          %v1505 = vsub.f32 %v1417, %v1459
          %v1506 = vsub.f32 %v1371, %v1462
          %v1507 = vsub.f32 %v1420, %v1462
          %v1508 = vsub.f32 %v1373, %v1465
          %v1509 = vsub.f32 %v1422, %v1465
          %v1510 = vsub.f32 %v1376, %v1468
          %v1511 = vsub.f32 %v1425, %v1468
          %v1512 = vsub.f32 %v1378, %v1471
          %v1513 = vsub.f32 %v1427, %v1471
          %v1514 = vsub.f32 %v1381, %v1474
          %v1515 = vsub.f32 %v1430, %v1474
          %v1516 = vsub.f32 %v1383, %v1477
          %v1517 = vsub.f32 %v1432, %v1477
          %v1518 = vsub.f32 %v1386, %v1480
          %v1519 = vsub.f32 %v1435, %v1480
          %v1520 = vsub.f32 %v1388, %v1483
          %v1521 = vsub.f32 %v1437, %v1483
          %v1522 = vsub.f32 %v1391, %v1486
          %v1523 = vsub.f32 %v1440, %v1486
          %v1524 = vsub.f32 %v1393, %v1489
          %v1525 = vsub.f32 %v1442, %v1489
          %v1526 = vsub.f32 %v1396, %v1492
          %v1527 = vsub.f32 %v1445, %v1492
          %v1528 = vsub.f32 %v1398, %v1495
          %v1529 = vsub.f32 %v1447, %v1495
          %v1530 = vsub.f32 %v1401, %v1498
          %v1531 = vsub.f32 %v1450, %v1498
          %v1532 = vsub.f32 %v1403, %v1501
          %v1533 = vsub.f32 %v1452, %v1501
          %v1534 = vmul.f32 %v1502, 1.442695
          %v1535 = vpow.pop %v1534
          %v1536 = vmul.f32 %v1503, 1.442695
          %v1537 = vpow.pop %v1536
          %v1538 = vmul.f32 %v1504, 1.442695
          %v1539 = vpow.pop %v1538
          %v1540 = vmul.f32 %v1505, 1.442695
          %v1541 = vpow.pop %v1540
          %v1542 = vmul.f32 %v1506, 1.442695
          %v1543 = vpow.pop %v1542
          %v1544 = vmul.f32 %v1507, 1.442695
          %v1545 = vpow.pop %v1544
          %v1546 = vmul.f32 %v1508, 1.442695
          %v1547 = vpow.pop %v1546
          %v1548 = vmul.f32 %v1509, 1.442695
          %v1549 = vpow.pop %v1548
          %v1550 = vmul.f32 %v1510, 1.442695
          %v1551 = vpow.pop %v1550
          %v1552 = vmul.f32 %v1511, 1.442695
          %v1553 = vpow.pop %v1552
          %v1554 = vmul.f32 %v1512, 1.442695
          %v1555 = vpow.pop %v1554
          %v1556 = vmul.f32 %v1513, 1.442695
          %v1557 = vpow.pop %v1556
          %v1558 = vmul.f32 %v1514, 1.442695
          %v1559 = vpow.pop %v1558
          %v1560 = vmul.f32 %v1515, 1.442695
          %v1561 = vpow.pop %v1560
          %v1562 = vmul.f32 %v1516, 1.442695
          %v1563 = vpow.pop %v1562
          %v1564 = vmul.f32 %v1517, 1.442695
          %v1565 = vpow.pop %v1564
          %v1566 = vmul.f32 %v1518, 1.442695
          %v1567 = vpow.pop %v1566
          %v1568 = vmul.f32 %v1519, 1.442695
          %v1569 = vpow.pop %v1568
          %v1570 = vmul.f32 %v1520, 1.442695
          %v1571 = vpow.pop %v1570
          %v1572 = vmul.f32 %v1521, 1.442695
          %v1573 = vpow.pop %v1572
          %v1574 = vmul.f32 %v1522, 1.442695
          %v1575 = vpow.pop %v1574
          %v1576 = vmul.f32 %v1523, 1.442695
          %v1577 = vpow.pop %v1576
          %v1578 = vmul.f32 %v1524, 1.442695
          %v1579 = vpow.pop %v1578
          %v1580 = vmul.f32 %v1525, 1.442695
          %v1581 = vpow.pop %v1580
          %v1582 = vmul.f32 %v1526, 1.442695
          %v1583 = vpow.pop %v1582
          %v1584 = vmul.f32 %v1527, 1.442695
          %v1585 = vpow.pop %v1584
          %v1586 = vmul.f32 %v1528, 1.442695
          %v1587 = vpow.pop %v1586
          %v1588 = vmul.f32 %v1529, 1.442695
          %v1589 = vpow.pop %v1588
          %v1590 = vmul.f32 %v1530, 1.442695
          %v1591 = vpow.pop %v1590
          %v1592 = vmul.f32 %v1531, 1.442695
          %v1593 = vpow.pop %v1592
          %v1594 = vmul.f32 %v1532, 1.442695
          %v1595 = vpow.pop %v1594
          %v1596 = vmul.f32 %v1533, 1.442695
          %v1597 = vpow.pop %v1596
          %v1598 = vadd.f32 %v1535, %v1537
          %1599 = vadd.xlane.f32.xlu0 %v1598
          %v1600 = vpop.xlane.xlu0 %1599
          %v1601 = vadd.f32 %v1539, %v1541
          %1602 = vadd.xlane.f32.xlu0 %v1601
          %v1603 = vpop.xlane.xlu0 %1602
          %v1604 = vadd.f32 %v1543, %v1545
          %1605 = vadd.xlane.f32.xlu0 %v1604
          %v1606 = vpop.xlane.xlu0 %1605
          %v1607 = vadd.f32 %v1547, %v1549
          %1608 = vadd.xlane.f32.xlu0 %v1607
          %v1609 = vpop.xlane.xlu0 %1608
          %v1610 = vadd.f32 %v1551, %v1553
          %1611 = vadd.xlane.f32.xlu0 %v1610
          %v1612 = vpop.xlane.xlu0 %1611
          %v1613 = vadd.f32 %v1555, %v1557
          %1614 = vadd.xlane.f32.xlu0 %v1613
          %v1615 = vpop.xlane.xlu0 %1614
          %v1616 = vadd.f32 %v1559, %v1561
          %1617 = vadd.xlane.f32.xlu0 %v1616
          %v1618 = vpop.xlane.xlu0 %1617
          %v1619 = vadd.f32 %v1563, %v1565
          %1620 = vadd.xlane.f32.xlu0 %v1619
          %v1621 = vpop.xlane.xlu0 %1620
          %v1622 = vadd.f32 %v1567, %v1569
          %1623 = vadd.xlane.f32.xlu0 %v1622
          %v1624 = vpop.xlane.xlu0 %1623
          %v1625 = vadd.f32 %v1571, %v1573
          %1626 = vadd.xlane.f32.xlu0 %v1625
          %v1627 = vpop.xlane.xlu0 %1626
          %v1628 = vadd.f32 %v1575, %v1577
          %1629 = vadd.xlane.f32.xlu0 %v1628
          %v1630 = vpop.xlane.xlu0 %1629
          %v1631 = vadd.f32 %v1579, %v1581
          %1632 = vadd.xlane.f32.xlu0 %v1631
          %v1633 = vpop.xlane.xlu0 %1632
          %v1634 = vadd.f32 %v1583, %v1585
          %1635 = vadd.xlane.f32.xlu0 %v1634
          %v1636 = vpop.xlane.xlu0 %1635
          %v1637 = vadd.f32 %v1587, %v1589
          %1638 = vadd.xlane.f32.xlu0 %v1637
          %v1639 = vpop.xlane.xlu0 %1638
          %v1640 = vadd.f32 %v1591, %v1593
          %1641 = vadd.xlane.f32.xlu0 %v1640
          %v1642 = vpop.xlane.xlu0 %1641
          %v1643 = vadd.f32 %v1595, %v1597
          %1644 = vadd.xlane.f32.xlu0 %v1643
          %v1645 = vpop.xlane.xlu0 %1644
          %v1646 = vrcp.pop %v1600
          %v1647 = vrcp.pop %v1603
          %v1648 = vrcp.pop %v1606
          %v1649 = vrcp.pop %v1609
          %v1650 = vrcp.pop %v1612
          %v1651 = vrcp.pop %v1615
          %v1652 = vrcp.pop %v1618
          %v1653 = vrcp.pop %v1621
          %v1654 = vrcp.pop %v1624
          %v1655 = vrcp.pop %v1627
          %v1656 = vrcp.pop %v1630
          %v1657 = vrcp.pop %v1633
          %v1658 = vrcp.pop %v1636
          %v1659 = vrcp.pop %v1639
          %v1660 = vrcp.pop %v1642
          %v1661 = vrcp.pop %v1645
          %v1662 = vmul.f32 %v1535, %v1646
          %v1663 = vmul.f32 %v1537, %v1646
          %v1664 = vmul.f32 %v1539, %v1647
          %v1665 = vmul.f32 %v1541, %v1647
          %v1666 = vmul.f32 %v1543, %v1648
          %v1667 = vmul.f32 %v1545, %v1648
          %v1668 = vmul.f32 %v1547, %v1649
          %v1669 = vmul.f32 %v1549, %v1649
          %v1670 = vmul.f32 %v1551, %v1650
          %v1671 = vmul.f32 %v1553, %v1650
          %v1672 = vmul.f32 %v1555, %v1651
          %v1673 = vmul.f32 %v1557, %v1651
          %v1674 = vmul.f32 %v1559, %v1652
          %v1675 = vmul.f32 %v1561, %v1652
          %v1676 = vmul.f32 %v1563, %v1653
          %v1677 = vmul.f32 %v1565, %v1653
          %v1678 = vmul.f32 %v1567, %v1654
          %v1679 = vmul.f32 %v1569, %v1654
          %v1680 = vmul.f32 %v1571, %v1655
          %v1681 = vmul.f32 %v1573, %v1655
          %v1682 = vmul.f32 %v1575, %v1656
          %v1683 = vmul.f32 %v1577, %v1656
          %v1684 = vmul.f32 %v1579, %v1657
          %v1685 = vmul.f32 %v1581, %v1657
          %v1686 = vmul.f32 %v1583, %v1658
          %v1687 = vmul.f32 %v1585, %v1658
          %v1688 = vmul.f32 %v1587, %v1659
          %v1689 = vmul.f32 %v1589, %v1659
          %v1690 = vmul.f32 %v1591, %v1660
          %v1691 = vmul.f32 %v1593, %v1660
          %v1692 = vmul.f32 %v1595, %v1661
          %v1693 = vmul.f32 %v1597, %v1661
          %v1694 = vpack.c.bf16 %v1664, %v1662
          %v1695 = vpack.c.bf16 %v1665, %v1663
          %v1696 = vpack.c.bf16 %v1668, %v1666
          %v1697 = vpack.c.bf16 %v1669, %v1667
          %v1698 = vpack.c.bf16 %v1672, %v1670
          %v1699 = vpack.c.bf16 %v1673, %v1671
          %v1700 = vpack.c.bf16 %v1676, %v1674
          %v1701 = vpack.c.bf16 %v1677, %v1675
          %v1702 = vpack.c.bf16 %v1680, %v1678
          %v1703 = vpack.c.bf16 %v1681, %v1679
          %v1704 = vpack.c.bf16 %v1684, %v1682
          %v1705 = vpack.c.bf16 %v1685, %v1683
          %v1706 = vpack.c.bf16 %v1688, %v1686
          %v1707 = vpack.c.bf16 %v1689, %v1687
          %v1708 = vpack.c.bf16 %v1692, %v1690
          %v1709 = vpack.c.bf16 %v1693, %v1691
          %v1712 = vunpack.c.l.b16 %v1297
          %v1713 = vunpack.c.l.b16 %v1298
          %v1714 = vpack.c.b16 %v1713, %v1712
          %1716 = vmatpush.bf16.msra.mxu0 %v1708
          %1717 = vmatpush.bf16.msra.mxu0 %v1706
          %1718 = vmatpush.bf16.msra.mxu0 %v1704
          %1719 = vmatpush.bf16.msra.mxu0 %v1702
          %1720 = vmatpush.bf16.msra.mxu0 %v1700
          %1721 = vmatpush.bf16.msra.mxu0 %v1698
          %1722 = vmatpush.bf16.msra.mxu0 %v1696
          %1723 = vmatpush.bf16.msra.mxu0 %v1694
          %1724 = vmatmul.bf16.gmra.mxu0 %v1714
          %v1725 = vpop.f32.mrf.mxu0
          %v1726 = vadd.f32 0.0, %v1725
          %v1727 = vpop.f32.mrf.mxu0
          %v1728 = vadd.f32 0.0, %v1727
          %1729 = vdwg.mxu0
          %1730 = vmatpush.bf16.msra.mxu0 %v1709
          %1731 = vmatpush.bf16.msra.mxu0 %v1707
          %1732 = vmatpush.bf16.msra.mxu0 %v1705
          %1733 = vmatpush.bf16.msra.mxu0 %v1703
          %1734 = vmatpush.bf16.msra.mxu0 %v1701
          %1735 = vmatpush.bf16.msra.mxu0 %v1699
          %1736 = vmatpush.bf16.msra.mxu0 %v1697
          %1737 = vmatpush.bf16.msra.mxu0 %v1695
          %1738 = vmatmul.bf16.gmra.mxu0 %v1714
          %v1739 = vpop.f32.mrf.mxu0
          %v1740 = vadd.f32 0.0, %v1739
          %v1741 = vpop.f32.mrf.mxu0
          %v1742 = vadd.f32 0.0, %v1741
          %1743 = vdwg.mxu0
          %v1744 = vadd.f32 %v1286, %v1726
          %v1745 = vadd.f32 %v1287, %v1740
          %v1746 = vadd.f32 %v1288, %v1728
          %v1747 = vadd.f32 %v1289, %v1742
        $region57: #{tpu_custom_call.1} parent=51 // loop_footer
          %s1285 = sadd.s32 1, %s1281
        $region58: #{tpu_custom_call.1} parent=51 // loop_footer_branch
          %1280 = sbr.rel target = $region54
        $region59: #{tpu_custom_call.1} parent=51 // loop_exit
          _
        %v1748 = vpack.c.bf16 %v1287, %v1286
        %v1749 = vpack.c.bf16 %v1289, %v1288
        %1750 = vst [vmem:[#allocation3] sm:$0xff] %v1748
        %1751 = vst [vmem:[#allocation3 + $0x8] sm:$0xff] %v1749
        %v1752 = vld [vmem:[#allocation2 + $0x30] sm:$0xff]
        %v1753 = vld [vmem:[#allocation2 + $0x38] sm:$0xff]
        loop: start=0, step=1, limit=2
        $region60: #{tpu_custom_call.1} parent=51 // loop_pre_header
          _
        $region61: #{tpu_custom_call.1} parent=51 // loop_header
          %s1755 = sphi 0, %s1759
          %p1756 = scmp.ge.s32.totalorder %s1755, 2
          %v1760 = vphi 0.0, %v2218
          %v1761 = vphi 0.0, %v2219
          %v1762 = vphi 0.0, %v2220
          %v1763 = vphi 0.0, %v2221
        $region62: #{tpu_custom_call.1} parent=51 // loop_header_branch
          %1758 = sbr.rel (%p1756) target = $region66
        $region63: #{tpu_custom_call.1} parent=51 // loop_body
          %s1764 = smul.u32 %s1755, 128
          %s1765 = sshra.s32 %s1764, 7
          %s1766 = sand.u32 %s1764, 127
          %s1767 = smul.addr %s1765, 4
          %s1768 = scalar_lea.vmem [#allocation2], %s1767
          %v1769 = vld [vmem:[%s1768 + $0x40] sm:$0xf]
          %v1770 = vld [vmem:[%s1768 + $0x48] sm:$0xf]
          %v1771 = vld [vmem:[%s1768 + $0x50] sm:$0xf]
          %v1772 = vld [vmem:[%s1768 + $0x58] sm:$0xf]
          %v1775 = vunpack.c.l.b16 %v1769
          %v1776 = vunpack.c.l.b16 %v1770
          %v1777 = vpack.c.b16 %v1776, %v1775
          %1779 = vxpose.xlu0.c.b16.start [1/8] %v1777, 128
          %1780 = vxpose.xlu0.c.b16.cont [2/8] 0, 128
          %1781 = vxpose.xlu0.c.b16.cont [3/8] 0, 128
          %1782 = vxpose.xlu0.c.b16.cont [4/8] 0, 128
          %1783 = vxpose.xlu0.c.b16.cont [5/8] 0, 128
          %1784 = vxpose.xlu0.c.b16.cont [6/8] 0, 128
          %1785 = vxpose.xlu0.c.b16.cont [7/8] 0, 128
          %1786 = vxpose.xlu0.c.b16.end [8/8] 0, 128
          %v1787 = vpop.trf.xlu0
          %v1788 = vpop.trf.xlu0
          %v1789 = vpop.trf.xlu0
          %v1790 = vpop.trf.xlu0
          %v1791 = vpop.trf.xlu0
          %v1792 = vpop.trf.xlu0
          %v1793 = vpop.trf.xlu0
          %v1794 = vpop.trf.xlu0
          %v1797 = vunpack.c.l.b16 %v1752
          %v1798 = vunpack.c.h.b16 %v1752
          %v1799 = vunpack.c.l.b16 %v1753
          %v1800 = vunpack.c.h.b16 %v1753
          %v1801 = vpack.c.b16 %v1799, %v1797
          %v1802 = vpack.c.b16 %v1800, %v1798
          %vm1805 = vcmask 130048
          %v1807 = vsel %vm1805, %v1787, 0
          %v1810 = vsel %vm1805, %v1788, 0
          %v1813 = vsel %vm1805, %v1789, 0
          %v1816 = vsel %vm1805, %v1790, 0
          %v1819 = vsel %vm1805, %v1791, 0
          %v1822 = vsel %vm1805, %v1792, 0
          %v1825 = vsel %vm1805, %v1793, 0
          %v1828 = vsel %vm1805, %v1794, 0
          %1830 = vmatpush.bf16.msra.mxu0 0
          %1831 = vmatpush.bf16.msra.mxu0 0
          %1832 = vmatpush.bf16.msra.mxu0 0
          %1833 = vmatpush.bf16.msra.mxu0 0
          %1834 = vmatpush.bf16.msra.mxu0 0
          %1835 = vmatpush.bf16.msra.mxu0 0
          %1836 = vmatpush.bf16.msra.mxu0 0
          %1837 = vmatpush.bf16.msra.mxu0 %v1801
          %1838 = vmatmul.bf16.gmra.mxu0 %v1807
          %v1839 = vpop.f32.mrf.mxu0
          %v1840 = vadd.f32 0.0, %v1839
          %v1841 = vpop.f32.mrf.mxu0
          %v1842 = vadd.f32 0.0, %v1841
          %1843 = vmatmul.bf16.gmra.mxu0 %v1810
          %v1844 = vpop.f32.mrf.mxu0
          %v1845 = vadd.f32 0.0, %v1844
          %v1846 = vpop.f32.mrf.mxu0
          %v1847 = vadd.f32 0.0, %v1846
          %1848 = vmatmul.bf16.gmra.mxu0 %v1813
          %v1849 = vpop.f32.mrf.mxu0
          %v1850 = vadd.f32 0.0, %v1849
          %v1851 = vpop.f32.mrf.mxu0
          %v1852 = vadd.f32 0.0, %v1851
          %1853 = vmatmul.bf16.gmra.mxu0 %v1816
          %v1854 = vpop.f32.mrf.mxu0
          %v1855 = vadd.f32 0.0, %v1854
          %v1856 = vpop.f32.mrf.mxu0
          %v1857 = vadd.f32 0.0, %v1856
          %1858 = vmatmul.bf16.gmra.mxu0 %v1819
          %v1859 = vpop.f32.mrf.mxu0
          %v1860 = vadd.f32 0.0, %v1859
          %v1861 = vpop.f32.mrf.mxu0
          %v1862 = vadd.f32 0.0, %v1861
          %1863 = vmatmul.bf16.gmra.mxu0 %v1822
          %v1864 = vpop.f32.mrf.mxu0
          %v1865 = vadd.f32 0.0, %v1864
          %v1866 = vpop.f32.mrf.mxu0
          %v1867 = vadd.f32 0.0, %v1866
          %1868 = vmatmul.bf16.gmra.mxu0 %v1825
          %v1869 = vpop.f32.mrf.mxu0
          %v1870 = vadd.f32 0.0, %v1869
          %v1871 = vpop.f32.mrf.mxu0
          %v1872 = vadd.f32 0.0, %v1871
          %1873 = vmatmul.bf16.gmra.mxu0 %v1828
          %v1874 = vpop.f32.mrf.mxu0
          %v1875 = vadd.f32 0.0, %v1874
          %v1876 = vpop.f32.mrf.mxu0
          %v1877 = vadd.f32 0.0, %v1876
          %1878 = vdwg.mxu0
          %1879 = vmatpush.bf16.msra.mxu0 0
          %1880 = vmatpush.bf16.msra.mxu0 0
          %1881 = vmatpush.bf16.msra.mxu0 0
          %1882 = vmatpush.bf16.msra.mxu0 0
          %1883 = vmatpush.bf16.msra.mxu0 0
          %1884 = vmatpush.bf16.msra.mxu0 0
          %1885 = vmatpush.bf16.msra.mxu0 0
          %1886 = vmatpush.bf16.msra.mxu0 %v1802
          %1887 = vmatmul.bf16.gmra.mxu0 %v1807
          %v1888 = vpop.f32.mrf.mxu0
          %v1889 = vadd.f32 0.0, %v1888
          %v1890 = vpop.f32.mrf.mxu0
          %v1891 = vadd.f32 0.0, %v1890
          %1892 = vmatmul.bf16.gmra.mxu0 %v1810
          %v1893 = vpop.f32.mrf.mxu0
          %v1894 = vadd.f32 0.0, %v1893
          %v1895 = vpop.f32.mrf.mxu0
          %v1896 = vadd.f32 0.0, %v1895
          %1897 = vmatmul.bf16.gmra.mxu0 %v1813
          %v1898 = vpop.f32.mrf.mxu0
          %v1899 = vadd.f32 0.0, %v1898
          %v1900 = vpop.f32.mrf.mxu0
          %v1901 = vadd.f32 0.0, %v1900
          %1902 = vmatmul.bf16.gmra.mxu0 %v1816
          %v1903 = vpop.f32.mrf.mxu0
          %v1904 = vadd.f32 0.0, %v1903
          %v1905 = vpop.f32.mrf.mxu0
          %v1906 = vadd.f32 0.0, %v1905
          %1907 = vmatmul.bf16.gmra.mxu0 %v1819
          %v1908 = vpop.f32.mrf.mxu0
          %v1909 = vadd.f32 0.0, %v1908
          %v1910 = vpop.f32.mrf.mxu0
          %v1911 = vadd.f32 0.0, %v1910
          %1912 = vmatmul.bf16.gmra.mxu0 %v1822
          %v1913 = vpop.f32.mrf.mxu0
          %v1914 = vadd.f32 0.0, %v1913
          %v1915 = vpop.f32.mrf.mxu0
          %v1916 = vadd.f32 0.0, %v1915
          %1917 = vmatmul.bf16.gmra.mxu0 %v1825
          %v1918 = vpop.f32.mrf.mxu0
          %v1919 = vadd.f32 0.0, %v1918
          %v1920 = vpop.f32.mrf.mxu0
          %v1921 = vadd.f32 0.0, %v1920
          %1922 = vmatmul.bf16.gmra.mxu0 %v1828
          %v1923 = vpop.f32.mrf.mxu0
          %v1924 = vadd.f32 0.0, %v1923
          %v1925 = vpop.f32.mrf.mxu0
          %v1926 = vadd.f32 0.0, %v1925
          %1927 = vdwg.mxu0
          %v1928 = vmax.f32 %v1840, %v1889
          %1929 = vmax.xlane.f32.xlu0 %v1928
          %v1930 = vpop.xlane.xlu0 %1929
          %v1931 = vmax.f32 %v1842, %v1891
          %1932 = vmax.xlane.f32.xlu0 %v1931
          %v1933 = vpop.xlane.xlu0 %1932
          %v1934 = vmax.f32 %v1845, %v1894
          %1935 = vmax.xlane.f32.xlu0 %v1934
          %v1936 = vpop.xlane.xlu0 %1935
          %v1937 = vmax.f32 %v1847, %v1896
          %1938 = vmax.xlane.f32.xlu0 %v1937
          %v1939 = vpop.xlane.xlu0 %1938
          %v1940 = vmax.f32 %v1850, %v1899
          %1941 = vmax.xlane.f32.xlu0 %v1940
          %v1942 = vpop.xlane.xlu0 %1941
          %v1943 = vmax.f32 %v1852, %v1901
          %1944 = vmax.xlane.f32.xlu0 %v1943
          %v1945 = vpop.xlane.xlu0 %1944
          %v1946 = vmax.f32 %v1855, %v1904
          %1947 = vmax.xlane.f32.xlu0 %v1946
          %v1948 = vpop.xlane.xlu0 %1947
          %v1949 = vmax.f32 %v1857, %v1906
          %1950 = vmax.xlane.f32.xlu0 %v1949
          %v1951 = vpop.xlane.xlu0 %1950
          %v1952 = vmax.f32 %v1860, %v1909
          %1953 = vmax.xlane.f32.xlu0 %v1952
          %v1954 = vpop.xlane.xlu0 %1953
          %v1955 = vmax.f32 %v1862, %v1911
          %1956 = vmax.xlane.f32.xlu0 %v1955
          %v1957 = vpop.xlane.xlu0 %1956
          %v1958 = vmax.f32 %v1865, %v1914
          %1959 = vmax.xlane.f32.xlu0 %v1958
          %v1960 = vpop.xlane.xlu0 %1959
          %v1961 = vmax.f32 %v1867, %v1916
          %1962 = vmax.xlane.f32.xlu0 %v1961
          %v1963 = vpop.xlane.xlu0 %1962
          %v1964 = vmax.f32 %v1870, %v1919
          %1965 = vmax.xlane.f32.xlu0 %v1964
          %v1966 = vpop.xlane.xlu0 %1965
          %v1967 = vmax.f32 %v1872, %v1921
          %1968 = vmax.xlane.f32.xlu0 %v1967
          %v1969 = vpop.xlane.xlu0 %1968
          %v1970 = vmax.f32 %v1875, %v1924
          %1971 = vmax.xlane.f32.xlu0 %v1970
          %v1972 = vpop.xlane.xlu0 %1971
          %v1973 = vmax.f32 %v1877, %v1926
          %1974 = vmax.xlane.f32.xlu0 %v1973
          %v1975 = vpop.xlane.xlu0 %1974
          %v1976 = vsub.f32 %v1840, %v1930
          %v1977 = vsub.f32 %v1889, %v1930
          %v1978 = vsub.f32 %v1842, %v1933
          %v1979 = vsub.f32 %v1891, %v1933
          %v1980 = vsub.f32 %v1845, %v1936
          %v1981 = vsub.f32 %v1894, %v1936
          %v1982 = vsub.f32 %v1847, %v1939
          %v1983 = vsub.f32 %v1896, %v1939
          %v1984 = vsub.f32 %v1850, %v1942
          %v1985 = vsub.f32 %v1899, %v1942
          %v1986 = vsub.f32 %v1852, %v1945
          %v1987 = vsub.f32 %v1901, %v1945
          %v1988 = vsub.f32 %v1855, %v1948
          %v1989 = vsub.f32 %v1904, %v1948
          %v1990 = vsub.f32 %v1857, %v1951
          %v1991 = vsub.f32 %v1906, %v1951
          %v1992 = vsub.f32 %v1860, %v1954
          %v1993 = vsub.f32 %v1909, %v1954
          %v1994 = vsub.f32 %v1862, %v1957
          %v1995 = vsub.f32 %v1911, %v1957
          %v1996 = vsub.f32 %v1865, %v1960
          %v1997 = vsub.f32 %v1914, %v1960
          %v1998 = vsub.f32 %v1867, %v1963
          %v1999 = vsub.f32 %v1916, %v1963
          %v2000 = vsub.f32 %v1870, %v1966
          %v2001 = vsub.f32 %v1919, %v1966
          %v2002 = vsub.f32 %v1872, %v1969
          %v2003 = vsub.f32 %v1921, %v1969
          %v2004 = vsub.f32 %v1875, %v1972
          %v2005 = vsub.f32 %v1924, %v1972
          %v2006 = vsub.f32 %v1877, %v1975
          %v2007 = vsub.f32 %v1926, %v1975
          %v2008 = vmul.f32 %v1976, 1.442695
          %v2009 = vpow.pop %v2008
          %v2010 = vmul.f32 %v1977, 1.442695
          %v2011 = vpow.pop %v2010
          %v2012 = vmul.f32 %v1978, 1.442695
          %v2013 = vpow.pop %v2012
          %v2014 = vmul.f32 %v1979, 1.442695
          %v2015 = vpow.pop %v2014
          %v2016 = vmul.f32 %v1980, 1.442695
          %v2017 = vpow.pop %v2016
          %v2018 = vmul.f32 %v1981, 1.442695
          %v2019 = vpow.pop %v2018
          %v2020 = vmul.f32 %v1982, 1.442695
          %v2021 = vpow.pop %v2020
          %v2022 = vmul.f32 %v1983, 1.442695
          %v2023 = vpow.pop %v2022
          %v2024 = vmul.f32 %v1984, 1.442695
          %v2025 = vpow.pop %v2024
          %v2026 = vmul.f32 %v1985, 1.442695
          %v2027 = vpow.pop %v2026
          %v2028 = vmul.f32 %v1986, 1.442695
          %v2029 = vpow.pop %v2028
          %v2030 = vmul.f32 %v1987, 1.442695
          %v2031 = vpow.pop %v2030
          %v2032 = vmul.f32 %v1988, 1.442695
          %v2033 = vpow.pop %v2032
          %v2034 = vmul.f32 %v1989, 1.442695
          %v2035 = vpow.pop %v2034
          %v2036 = vmul.f32 %v1990, 1.442695
          %v2037 = vpow.pop %v2036
          %v2038 = vmul.f32 %v1991, 1.442695
          %v2039 = vpow.pop %v2038
          %v2040 = vmul.f32 %v1992, 1.442695
          %v2041 = vpow.pop %v2040
          %v2042 = vmul.f32 %v1993, 1.442695
          %v2043 = vpow.pop %v2042
          %v2044 = vmul.f32 %v1994, 1.442695
          %v2045 = vpow.pop %v2044
          %v2046 = vmul.f32 %v1995, 1.442695
          %v2047 = vpow.pop %v2046
          %v2048 = vmul.f32 %v1996, 1.442695
          %v2049 = vpow.pop %v2048
          %v2050 = vmul.f32 %v1997, 1.442695
          %v2051 = vpow.pop %v2050
          %v2052 = vmul.f32 %v1998, 1.442695
          %v2053 = vpow.pop %v2052
          %v2054 = vmul.f32 %v1999, 1.442695
          %v2055 = vpow.pop %v2054
          %v2056 = vmul.f32 %v2000, 1.442695
          %v2057 = vpow.pop %v2056
          %v2058 = vmul.f32 %v2001, 1.442695
          %v2059 = vpow.pop %v2058
          %v2060 = vmul.f32 %v2002, 1.442695
          %v2061 = vpow.pop %v2060
          %v2062 = vmul.f32 %v2003, 1.442695
          %v2063 = vpow.pop %v2062
          %v2064 = vmul.f32 %v2004, 1.442695
          %v2065 = vpow.pop %v2064
          %v2066 = vmul.f32 %v2005, 1.442695
          %v2067 = vpow.pop %v2066
          %v2068 = vmul.f32 %v2006, 1.442695
          %v2069 = vpow.pop %v2068
          %v2070 = vmul.f32 %v2007, 1.442695
          %v2071 = vpow.pop %v2070
          %v2072 = vadd.f32 %v2009, %v2011
          %2073 = vadd.xlane.f32.xlu0 %v2072
          %v2074 = vpop.xlane.xlu0 %2073
          %v2075 = vadd.f32 %v2013, %v2015
          %2076 = vadd.xlane.f32.xlu0 %v2075
          %v2077 = vpop.xlane.xlu0 %2076
          %v2078 = vadd.f32 %v2017, %v2019
          %2079 = vadd.xlane.f32.xlu0 %v2078
          %v2080 = vpop.xlane.xlu0 %2079
          %v2081 = vadd.f32 %v2021, %v2023
          %2082 = vadd.xlane.f32.xlu0 %v2081
          %v2083 = vpop.xlane.xlu0 %2082
          %v2084 = vadd.f32 %v2025, %v2027
          %2085 = vadd.xlane.f32.xlu0 %v2084
          %v2086 = vpop.xlane.xlu0 %2085
          %v2087 = vadd.f32 %v2029, %v2031
          %2088 = vadd.xlane.f32.xlu0 %v2087
          %v2089 = vpop.xlane.xlu0 %2088
          %v2090 = vadd.f32 %v2033, %v2035
          %2091 = vadd.xlane.f32.xlu0 %v2090
          %v2092 = vpop.xlane.xlu0 %2091
          %v2093 = vadd.f32 %v2037, %v2039
          %2094 = vadd.xlane.f32.xlu0 %v2093
          %v2095 = vpop.xlane.xlu0 %2094
          %v2096 = vadd.f32 %v2041, %v2043
          %2097 = vadd.xlane.f32.xlu0 %v2096
          %v2098 = vpop.xlane.xlu0 %2097
          %v2099 = vadd.f32 %v2045, %v2047
          %2100 = vadd.xlane.f32.xlu0 %v2099
          %v2101 = vpop.xlane.xlu0 %2100
          %v2102 = vadd.f32 %v2049, %v2051
          %2103 = vadd.xlane.f32.xlu0 %v2102
          %v2104 = vpop.xlane.xlu0 %2103
          %v2105 = vadd.f32 %v2053, %v2055
          %2106 = vadd.xlane.f32.xlu0 %v2105
          %v2107 = vpop.xlane.xlu0 %2106
          %v2108 = vadd.f32 %v2057, %v2059
          %2109 = vadd.xlane.f32.xlu0 %v2108
          %v2110 = vpop.xlane.xlu0 %2109
          %v2111 = vadd.f32 %v2061, %v2063
          %2112 = vadd.xlane.f32.xlu0 %v2111
          %v2113 = vpop.xlane.xlu0 %2112
          %v2114 = vadd.f32 %v2065, %v2067
          %2115 = vadd.xlane.f32.xlu0 %v2114
          %v2116 = vpop.xlane.xlu0 %2115
          %v2117 = vadd.f32 %v2069, %v2071
          %2118 = vadd.xlane.f32.xlu0 %v2117
          %v2119 = vpop.xlane.xlu0 %2118
          %v2120 = vrcp.pop %v2074
          %v2121 = vrcp.pop %v2077
          %v2122 = vrcp.pop %v2080
          %v2123 = vrcp.pop %v2083
          %v2124 = vrcp.pop %v2086
          %v2125 = vrcp.pop %v2089
          %v2126 = vrcp.pop %v2092
          %v2127 = vrcp.pop %v2095
          %v2128 = vrcp.pop %v2098
          %v2129 = vrcp.pop %v2101
          %v2130 = vrcp.pop %v2104
          %v2131 = vrcp.pop %v2107
          %v2132 = vrcp.pop %v2110
          %v2133 = vrcp.pop %v2113
          %v2134 = vrcp.pop %v2116
          %v2135 = vrcp.pop %v2119
          %v2136 = vmul.f32 %v2009, %v2120
          %v2137 = vmul.f32 %v2011, %v2120
          %v2138 = vmul.f32 %v2013, %v2121
          %v2139 = vmul.f32 %v2015, %v2121
          %v2140 = vmul.f32 %v2017, %v2122
          %v2141 = vmul.f32 %v2019, %v2122
          %v2142 = vmul.f32 %v2021, %v2123
          %v2143 = vmul.f32 %v2023, %v2123
          %v2144 = vmul.f32 %v2025, %v2124
          %v2145 = vmul.f32 %v2027, %v2124
          %v2146 = vmul.f32 %v2029, %v2125
          %v2147 = vmul.f32 %v2031, %v2125
          %v2148 = vmul.f32 %v2033, %v2126
          %v2149 = vmul.f32 %v2035, %v2126
          %v2150 = vmul.f32 %v2037, %v2127
          %v2151 = vmul.f32 %v2039, %v2127
          %v2152 = vmul.f32 %v2041, %v2128
          %v2153 = vmul.f32 %v2043, %v2128
          %v2154 = vmul.f32 %v2045, %v2129
          %v2155 = vmul.f32 %v2047, %v2129
          %v2156 = vmul.f32 %v2049, %v2130
          %v2157 = vmul.f32 %v2051, %v2130
          %v2158 = vmul.f32 %v2053, %v2131
          %v2159 = vmul.f32 %v2055, %v2131
          %v2160 = vmul.f32 %v2057, %v2132
          %v2161 = vmul.f32 %v2059, %v2132
          %v2162 = vmul.f32 %v2061, %v2133
          %v2163 = vmul.f32 %v2063, %v2133
          %v2164 = vmul.f32 %v2065, %v2134
          %v2165 = vmul.f32 %v2067, %v2134
          %v2166 = vmul.f32 %v2069, %v2135
          %v2167 = vmul.f32 %v2071, %v2135
          %v2168 = vpack.c.bf16 %v2138, %v2136
          %v2169 = vpack.c.bf16 %v2139, %v2137
          %v2170 = vpack.c.bf16 %v2142, %v2140
          %v2171 = vpack.c.bf16 %v2143, %v2141
          %v2172 = vpack.c.bf16 %v2146, %v2144
          %v2173 = vpack.c.bf16 %v2147, %v2145
          %v2174 = vpack.c.bf16 %v2150, %v2148
          %v2175 = vpack.c.bf16 %v2151, %v2149
          %v2176 = vpack.c.bf16 %v2154, %v2152
          %v2177 = vpack.c.bf16 %v2155, %v2153
          %v2178 = vpack.c.bf16 %v2158, %v2156
          %v2179 = vpack.c.bf16 %v2159, %v2157
          %v2180 = vpack.c.bf16 %v2162, %v2160
          %v2181 = vpack.c.bf16 %v2163, %v2161
          %v2182 = vpack.c.bf16 %v2166, %v2164
          %v2183 = vpack.c.bf16 %v2167, %v2165
          %v2186 = vunpack.c.l.b16 %v1771
          %v2187 = vunpack.c.l.b16 %v1772
          %v2188 = vpack.c.b16 %v2187, %v2186
          %2190 = vmatpush.bf16.msra.mxu0 %v2182
          %2191 = vmatpush.bf16.msra.mxu0 %v2180
          %2192 = vmatpush.bf16.msra.mxu0 %v2178
          %2193 = vmatpush.bf16.msra.mxu0 %v2176
          %2194 = vmatpush.bf16.msra.mxu0 %v2174
          %2195 = vmatpush.bf16.msra.mxu0 %v2172
          %2196 = vmatpush.bf16.msra.mxu0 %v2170
          %2197 = vmatpush.bf16.msra.mxu0 %v2168
          %2198 = vmatmul.bf16.gmra.mxu0 %v2188
          %v2199 = vpop.f32.mrf.mxu0
          %v2200 = vadd.f32 0.0, %v2199
          %v2201 = vpop.f32.mrf.mxu0
          %v2202 = vadd.f32 0.0, %v2201
          %2203 = vdwg.mxu0
          %2204 = vmatpush.bf16.msra.mxu0 %v2183
          %2205 = vmatpush.bf16.msra.mxu0 %v2181
          %2206 = vmatpush.bf16.msra.mxu0 %v2179
          %2207 = vmatpush.bf16.msra.mxu0 %v2177
          %2208 = vmatpush.bf16.msra.mxu0 %v2175
          %2209 = vmatpush.bf16.msra.mxu0 %v2173
          %2210 = vmatpush.bf16.msra.mxu0 %v2171
          %2211 = vmatpush.bf16.msra.mxu0 %v2169
          %2212 = vmatmul.bf16.gmra.mxu0 %v2188
          %v2213 = vpop.f32.mrf.mxu0
          %v2214 = vadd.f32 0.0, %v2213
          %v2215 = vpop.f32.mrf.mxu0
          %v2216 = vadd.f32 0.0, %v2215
          %2217 = vdwg.mxu0
          %v2218 = vadd.f32 %v1760, %v2200
          %v2219 = vadd.f32 %v1761, %v2214
          %v2220 = vadd.f32 %v1762, %v2202
          %v2221 = vadd.f32 %v1763, %v2216
        $region64: #{tpu_custom_call.1} parent=51 // loop_footer
          %s1759 = sadd.s32 1, %s1755
        $region65: #{tpu_custom_call.1} parent=51 // loop_footer_branch
          %1754 = sbr.rel target = $region61
        $region66: #{tpu_custom_call.1} parent=51 // loop_exit
          _
        %v2222 = vpack.c.bf16 %v1761, %v1760
        %v2223 = vpack.c.bf16 %v1763, %v1762
        %2224 = vst [vmem:[#allocation3 + $0x10] sm:$0xff] %v2222
        %2225 = vst [vmem:[#allocation3 + $0x18] sm:$0xff] %v2223
        %v2226 = vld [vmem:[#allocation2 + $0x60] sm:$0xff]
        %v2227 = vld [vmem:[#allocation2 + $0x68] sm:$0xff]
        loop: start=0, step=1, limit=2
        $region67: #{tpu_custom_call.1} parent=51 // loop_pre_header
          _
        $region68: #{tpu_custom_call.1} parent=51 // loop_header
          %s2229 = sphi 0, %s2233
          %p2230 = scmp.ge.s32.totalorder %s2229, 2
          %v2234 = vphi 0.0, %v2692
          %v2235 = vphi 0.0, %v2693
          %v2236 = vphi 0.0, %v2694
          %v2237 = vphi 0.0, %v2695
        $region69: #{tpu_custom_call.1} parent=51 // loop_header_branch
          %2232 = sbr.rel (%p2230) target = $region73
        $region70: #{tpu_custom_call.1} parent=51 // loop_body
          %s2238 = smul.u32 %s2229, 128
          %s2239 = sshra.s32 %s2238, 7
          %s2240 = sand.u32 %s2238, 127
          %s2241 = smul.addr %s2239, 4
          %s2242 = scalar_lea.vmem [#allocation2], %s2241
          %v2243 = vld [vmem:[%s2242 + $0x70] sm:$0xf]
          %v2244 = vld [vmem:[%s2242 + $0x78] sm:$0xf]
          %v2245 = vld [vmem:[%s2242 + $0x80] sm:$0xf]
          %v2246 = vld [vmem:[%s2242 + $0x88] sm:$0xf]
          %v2249 = vunpack.c.l.b16 %v2243
          %v2250 = vunpack.c.l.b16 %v2244
          %v2251 = vpack.c.b16 %v2250, %v2249
          %2253 = vxpose.xlu0.c.b16.start [1/8] %v2251, 128
          %2254 = vxpose.xlu0.c.b16.cont [2/8] 0, 128
          %2255 = vxpose.xlu0.c.b16.cont [3/8] 0, 128
          %2256 = vxpose.xlu0.c.b16.cont [4/8] 0, 128
          %2257 = vxpose.xlu0.c.b16.cont [5/8] 0, 128
          %2258 = vxpose.xlu0.c.b16.cont [6/8] 0, 128
          %2259 = vxpose.xlu0.c.b16.cont [7/8] 0, 128
          %2260 = vxpose.xlu0.c.b16.end [8/8] 0, 128
          %v2261 = vpop.trf.xlu0
          %v2262 = vpop.trf.xlu0
          %v2263 = vpop.trf.xlu0
          %v2264 = vpop.trf.xlu0
          %v2265 = vpop.trf.xlu0
          %v2266 = vpop.trf.xlu0
          %v2267 = vpop.trf.xlu0
          %v2268 = vpop.trf.xlu0
          %v2271 = vunpack.c.l.b16 %v2226
          %v2272 = vunpack.c.h.b16 %v2226
          %v2273 = vunpack.c.l.b16 %v2227
          %v2274 = vunpack.c.h.b16 %v2227
          %v2275 = vpack.c.b16 %v2273, %v2271
          %v2276 = vpack.c.b16 %v2274, %v2272
          %vm2279 = vcmask 130048
          %v2281 = vsel %vm2279, %v2261, 0
          %v2284 = vsel %vm2279, %v2262, 0
          %v2287 = vsel %vm2279, %v2263, 0
          %v2290 = vsel %vm2279, %v2264, 0
          %v2293 = vsel %vm2279, %v2265, 0
          %v2296 = vsel %vm2279, %v2266, 0
          %v2299 = vsel %vm2279, %v2267, 0
          %v2302 = vsel %vm2279, %v2268, 0
          %2304 = vmatpush.bf16.msra.mxu0 0
          %2305 = vmatpush.bf16.msra.mxu0 0
          %2306 = vmatpush.bf16.msra.mxu0 0
          %2307 = vmatpush.bf16.msra.mxu0 0
          %2308 = vmatpush.bf16.msra.mxu0 0
          %2309 = vmatpush.bf16.msra.mxu0 0
          %2310 = vmatpush.bf16.msra.mxu0 0
          %2311 = vmatpush.bf16.msra.mxu0 %v2275
          %2312 = vmatmul.bf16.gmra.mxu0 %v2281
          %v2313 = vpop.f32.mrf.mxu0
          %v2314 = vadd.f32 0.0, %v2313
          %v2315 = vpop.f32.mrf.mxu0
          %v2316 = vadd.f32 0.0, %v2315
          %2317 = vmatmul.bf16.gmra.mxu0 %v2284
          %v2318 = vpop.f32.mrf.mxu0
          %v2319 = vadd.f32 0.0, %v2318
          %v2320 = vpop.f32.mrf.mxu0
          %v2321 = vadd.f32 0.0, %v2320
          %2322 = vmatmul.bf16.gmra.mxu0 %v2287
          %v2323 = vpop.f32.mrf.mxu0
          %v2324 = vadd.f32 0.0, %v2323
          %v2325 = vpop.f32.mrf.mxu0
          %v2326 = vadd.f32 0.0, %v2325
          %2327 = vmatmul.bf16.gmra.mxu0 %v2290
          %v2328 = vpop.f32.mrf.mxu0
          %v2329 = vadd.f32 0.0, %v2328
          %v2330 = vpop.f32.mrf.mxu0
          %v2331 = vadd.f32 0.0, %v2330
          %2332 = vmatmul.bf16.gmra.mxu0 %v2293
          %v2333 = vpop.f32.mrf.mxu0
          %v2334 = vadd.f32 0.0, %v2333
          %v2335 = vpop.f32.mrf.mxu0
          %v2336 = vadd.f32 0.0, %v2335
          %2337 = vmatmul.bf16.gmra.mxu0 %v2296
          %v2338 = vpop.f32.mrf.mxu0
          %v2339 = vadd.f32 0.0, %v2338
          %v2340 = vpop.f32.mrf.mxu0
          %v2341 = vadd.f32 0.0, %v2340
          %2342 = vmatmul.bf16.gmra.mxu0 %v2299
          %v2343 = vpop.f32.mrf.mxu0
          %v2344 = vadd.f32 0.0, %v2343
          %v2345 = vpop.f32.mrf.mxu0
          %v2346 = vadd.f32 0.0, %v2345
          %2347 = vmatmul.bf16.gmra.mxu0 %v2302
          %v2348 = vpop.f32.mrf.mxu0
          %v2349 = vadd.f32 0.0, %v2348
          %v2350 = vpop.f32.mrf.mxu0
          %v2351 = vadd.f32 0.0, %v2350
          %2352 = vdwg.mxu0
          %2353 = vmatpush.bf16.msra.mxu0 0
          %2354 = vmatpush.bf16.msra.mxu0 0
          %2355 = vmatpush.bf16.msra.mxu0 0
          %2356 = vmatpush.bf16.msra.mxu0 0
          %2357 = vmatpush.bf16.msra.mxu0 0
          %2358 = vmatpush.bf16.msra.mxu0 0
          %2359 = vmatpush.bf16.msra.mxu0 0
          %2360 = vmatpush.bf16.msra.mxu0 %v2276
          %2361 = vmatmul.bf16.gmra.mxu0 %v2281
          %v2362 = vpop.f32.mrf.mxu0
          %v2363 = vadd.f32 0.0, %v2362
          %v2364 = vpop.f32.mrf.mxu0
          %v2365 = vadd.f32 0.0, %v2364
          %2366 = vmatmul.bf16.gmra.mxu0 %v2284
          %v2367 = vpop.f32.mrf.mxu0
          %v2368 = vadd.f32 0.0, %v2367
          %v2369 = vpop.f32.mrf.mxu0
          %v2370 = vadd.f32 0.0, %v2369
          %2371 = vmatmul.bf16.gmra.mxu0 %v2287
          %v2372 = vpop.f32.mrf.mxu0
          %v2373 = vadd.f32 0.0, %v2372
          %v2374 = vpop.f32.mrf.mxu0
          %v2375 = vadd.f32 0.0, %v2374
          %2376 = vmatmul.bf16.gmra.mxu0 %v2290
          %v2377 = vpop.f32.mrf.mxu0
          %v2378 = vadd.f32 0.0, %v2377
          %v2379 = vpop.f32.mrf.mxu0
          %v2380 = vadd.f32 0.0, %v2379
          %2381 = vmatmul.bf16.gmra.mxu0 %v2293
          %v2382 = vpop.f32.mrf.mxu0
          %v2383 = vadd.f32 0.0, %v2382
          %v2384 = vpop.f32.mrf.mxu0
          %v2385 = vadd.f32 0.0, %v2384
          %2386 = vmatmul.bf16.gmra.mxu0 %v2296
          %v2387 = vpop.f32.mrf.mxu0
          %v2388 = vadd.f32 0.0, %v2387
          %v2389 = vpop.f32.mrf.mxu0
          %v2390 = vadd.f32 0.0, %v2389
          %2391 = vmatmul.bf16.gmra.mxu0 %v2299
          %v2392 = vpop.f32.mrf.mxu0
          %v2393 = vadd.f32 0.0, %v2392
          %v2394 = vpop.f32.mrf.mxu0
          %v2395 = vadd.f32 0.0, %v2394
          %2396 = vmatmul.bf16.gmra.mxu0 %v2302
          %v2397 = vpop.f32.mrf.mxu0
          %v2398 = vadd.f32 0.0, %v2397
          %v2399 = vpop.f32.mrf.mxu0
          %v2400 = vadd.f32 0.0, %v2399
          %2401 = vdwg.mxu0
          %v2402 = vmax.f32 %v2314, %v2363
          %2403 = vmax.xlane.f32.xlu0 %v2402
          %v2404 = vpop.xlane.xlu0 %2403
          %v2405 = vmax.f32 %v2316, %v2365
          %2406 = vmax.xlane.f32.xlu0 %v2405
          %v2407 = vpop.xlane.xlu0 %2406
          %v2408 = vmax.f32 %v2319, %v2368
          %2409 = vmax.xlane.f32.xlu0 %v2408
          %v2410 = vpop.xlane.xlu0 %2409
          %v2411 = vmax.f32 %v2321, %v2370
          %2412 = vmax.xlane.f32.xlu0 %v2411
          %v2413 = vpop.xlane.xlu0 %2412
          %v2414 = vmax.f32 %v2324, %v2373
          %2415 = vmax.xlane.f32.xlu0 %v2414
          %v2416 = vpop.xlane.xlu0 %2415
          %v2417 = vmax.f32 %v2326, %v2375
          %2418 = vmax.xlane.f32.xlu0 %v2417
          %v2419 = vpop.xlane.xlu0 %2418
          %v2420 = vmax.f32 %v2329, %v2378
          %2421 = vmax.xlane.f32.xlu0 %v2420
          %v2422 = vpop.xlane.xlu0 %2421
          %v2423 = vmax.f32 %v2331, %v2380
          %2424 = vmax.xlane.f32.xlu0 %v2423
          %v2425 = vpop.xlane.xlu0 %2424
          %v2426 = vmax.f32 %v2334, %v2383
          %2427 = vmax.xlane.f32.xlu0 %v2426
          %v2428 = vpop.xlane.xlu0 %2427
          %v2429 = vmax.f32 %v2336, %v2385
          %2430 = vmax.xlane.f32.xlu0 %v2429
          %v2431 = vpop.xlane.xlu0 %2430
          %v2432 = vmax.f32 %v2339, %v2388
          %2433 = vmax.xlane.f32.xlu0 %v2432
          %v2434 = vpop.xlane.xlu0 %2433
          %v2435 = vmax.f32 %v2341, %v2390
          %2436 = vmax.xlane.f32.xlu0 %v2435
          %v2437 = vpop.xlane.xlu0 %2436
          %v2438 = vmax.f32 %v2344, %v2393
          %2439 = vmax.xlane.f32.xlu0 %v2438
          %v2440 = vpop.xlane.xlu0 %2439
          %v2441 = vmax.f32 %v2346, %v2395
          %2442 = vmax.xlane.f32.xlu0 %v2441
          %v2443 = vpop.xlane.xlu0 %2442
          %v2444 = vmax.f32 %v2349, %v2398
          %2445 = vmax.xlane.f32.xlu0 %v2444
          %v2446 = vpop.xlane.xlu0 %2445
          %v2447 = vmax.f32 %v2351, %v2400
          %2448 = vmax.xlane.f32.xlu0 %v2447
          %v2449 = vpop.xlane.xlu0 %2448
          %v2450 = vsub.f32 %v2314, %v2404
          %v2451 = vsub.f32 %v2363, %v2404
          %v2452 = vsub.f32 %v2316, %v2407
          %v2453 = vsub.f32 %v2365, %v2407
          %v2454 = vsub.f32 %v2319, %v2410
          %v2455 = vsub.f32 %v2368, %v2410
          %v2456 = vsub.f32 %v2321, %v2413
          %v2457 = vsub.f32 %v2370, %v2413
          %v2458 = vsub.f32 %v2324, %v2416
          %v2459 = vsub.f32 %v2373, %v2416
          %v2460 = vsub.f32 %v2326, %v2419
          %v2461 = vsub.f32 %v2375, %v2419
          %v2462 = vsub.f32 %v2329, %v2422
          %v2463 = vsub.f32 %v2378, %v2422
          %v2464 = vsub.f32 %v2331, %v2425
          %v2465 = vsub.f32 %v2380, %v2425
          %v2466 = vsub.f32 %v2334, %v2428
          %v2467 = vsub.f32 %v2383, %v2428
          %v2468 = vsub.f32 %v2336, %v2431
          %v2469 = vsub.f32 %v2385, %v2431
          %v2470 = vsub.f32 %v2339, %v2434
          %v2471 = vsub.f32 %v2388, %v2434
          %v2472 = vsub.f32 %v2341, %v2437
          %v2473 = vsub.f32 %v2390, %v2437
          %v2474 = vsub.f32 %v2344, %v2440
          %v2475 = vsub.f32 %v2393, %v2440
          %v2476 = vsub.f32 %v2346, %v2443
          %v2477 = vsub.f32 %v2395, %v2443
          %v2478 = vsub.f32 %v2349, %v2446
          %v2479 = vsub.f32 %v2398, %v2446
          %v2480 = vsub.f32 %v2351, %v2449
          %v2481 = vsub.f32 %v2400, %v2449
          %v2482 = vmul.f32 %v2450, 1.442695
          %v2483 = vpow.pop %v2482
          %v2484 = vmul.f32 %v2451, 1.442695
          %v2485 = vpow.pop %v2484
          %v2486 = vmul.f32 %v2452, 1.442695
          %v2487 = vpow.pop %v2486
          %v2488 = vmul.f32 %v2453, 1.442695
          %v2489 = vpow.pop %v2488
          %v2490 = vmul.f32 %v2454, 1.442695
          %v2491 = vpow.pop %v2490
          %v2492 = vmul.f32 %v2455, 1.442695
          %v2493 = vpow.pop %v2492
          %v2494 = vmul.f32 %v2456, 1.442695
          %v2495 = vpow.pop %v2494
          %v2496 = vmul.f32 %v2457, 1.442695
          %v2497 = vpow.pop %v2496
          %v2498 = vmul.f32 %v2458, 1.442695
          %v2499 = vpow.pop %v2498
          %v2500 = vmul.f32 %v2459, 1.442695
          %v2501 = vpow.pop %v2500
          %v2502 = vmul.f32 %v2460, 1.442695
          %v2503 = vpow.pop %v2502
          %v2504 = vmul.f32 %v2461, 1.442695
          %v2505 = vpow.pop %v2504
          %v2506 = vmul.f32 %v2462, 1.442695
          %v2507 = vpow.pop %v2506
          %v2508 = vmul.f32 %v2463, 1.442695
          %v2509 = vpow.pop %v2508
          %v2510 = vmul.f32 %v2464, 1.442695
          %v2511 = vpow.pop %v2510
          %v2512 = vmul.f32 %v2465, 1.442695
          %v2513 = vpow.pop %v2512
          %v2514 = vmul.f32 %v2466, 1.442695
          %v2515 = vpow.pop %v2514
          %v2516 = vmul.f32 %v2467, 1.442695
          %v2517 = vpow.pop %v2516
          %v2518 = vmul.f32 %v2468, 1.442695
          %v2519 = vpow.pop %v2518
          %v2520 = vmul.f32 %v2469, 1.442695
          %v2521 = vpow.pop %v2520
          %v2522 = vmul.f32 %v2470, 1.442695
          %v2523 = vpow.pop %v2522
          %v2524 = vmul.f32 %v2471, 1.442695
          %v2525 = vpow.pop %v2524
          %v2526 = vmul.f32 %v2472, 1.442695
          %v2527 = vpow.pop %v2526
          %v2528 = vmul.f32 %v2473, 1.442695
          %v2529 = vpow.pop %v2528
          %v2530 = vmul.f32 %v2474, 1.442695
          %v2531 = vpow.pop %v2530
          %v2532 = vmul.f32 %v2475, 1.442695
          %v2533 = vpow.pop %v2532
          %v2534 = vmul.f32 %v2476, 1.442695
          %v2535 = vpow.pop %v2534
          %v2536 = vmul.f32 %v2477, 1.442695
          %v2537 = vpow.pop %v2536
          %v2538 = vmul.f32 %v2478, 1.442695
          %v2539 = vpow.pop %v2538
          %v2540 = vmul.f32 %v2479, 1.442695
          %v2541 = vpow.pop %v2540
          %v2542 = vmul.f32 %v2480, 1.442695
          %v2543 = vpow.pop %v2542
          %v2544 = vmul.f32 %v2481, 1.442695
          %v2545 = vpow.pop %v2544
          %v2546 = vadd.f32 %v2483, %v2485
          %2547 = vadd.xlane.f32.xlu0 %v2546
          %v2548 = vpop.xlane.xlu0 %2547
          %v2549 = vadd.f32 %v2487, %v2489
          %2550 = vadd.xlane.f32.xlu0 %v2549
          %v2551 = vpop.xlane.xlu0 %2550
          %v2552 = vadd.f32 %v2491, %v2493
          %2553 = vadd.xlane.f32.xlu0 %v2552
          %v2554 = vpop.xlane.xlu0 %2553
          %v2555 = vadd.f32 %v2495, %v2497
          %2556 = vadd.xlane.f32.xlu0 %v2555
          %v2557 = vpop.xlane.xlu0 %2556
          %v2558 = vadd.f32 %v2499, %v2501
          %2559 = vadd.xlane.f32.xlu0 %v2558
          %v2560 = vpop.xlane.xlu0 %2559
          %v2561 = vadd.f32 %v2503, %v2505
          %2562 = vadd.xlane.f32.xlu0 %v2561
          %v2563 = vpop.xlane.xlu0 %2562
          %v2564 = vadd.f32 %v2507, %v2509
          %2565 = vadd.xlane.f32.xlu0 %v2564
          %v2566 = vpop.xlane.xlu0 %2565
          %v2567 = vadd.f32 %v2511, %v2513
          %2568 = vadd.xlane.f32.xlu0 %v2567
          %v2569 = vpop.xlane.xlu0 %2568
          %v2570 = vadd.f32 %v2515, %v2517
          %2571 = vadd.xlane.f32.xlu0 %v2570
          %v2572 = vpop.xlane.xlu0 %2571
          %v2573 = vadd.f32 %v2519, %v2521
          %2574 = vadd.xlane.f32.xlu0 %v2573
          %v2575 = vpop.xlane.xlu0 %2574
          %v2576 = vadd.f32 %v2523, %v2525
          %2577 = vadd.xlane.f32.xlu0 %v2576
          %v2578 = vpop.xlane.xlu0 %2577
          %v2579 = vadd.f32 %v2527, %v2529
          %2580 = vadd.xlane.f32.xlu0 %v2579
          %v2581 = vpop.xlane.xlu0 %2580
          %v2582 = vadd.f32 %v2531, %v2533
          %2583 = vadd.xlane.f32.xlu0 %v2582
          %v2584 = vpop.xlane.xlu0 %2583
          %v2585 = vadd.f32 %v2535, %v2537
          %2586 = vadd.xlane.f32.xlu0 %v2585
          %v2587 = vpop.xlane.xlu0 %2586
          %v2588 = vadd.f32 %v2539, %v2541
          %2589 = vadd.xlane.f32.xlu0 %v2588
          %v2590 = vpop.xlane.xlu0 %2589
          %v2591 = vadd.f32 %v2543, %v2545
          %2592 = vadd.xlane.f32.xlu0 %v2591
          %v2593 = vpop.xlane.xlu0 %2592
          %v2594 = vrcp.pop %v2548
          %v2595 = vrcp.pop %v2551
          %v2596 = vrcp.pop %v2554
          %v2597 = vrcp.pop %v2557
          %v2598 = vrcp.pop %v2560
          %v2599 = vrcp.pop %v2563
          %v2600 = vrcp.pop %v2566
          %v2601 = vrcp.pop %v2569
          %v2602 = vrcp.pop %v2572
          %v2603 = vrcp.pop %v2575
          %v2604 = vrcp.pop %v2578
          %v2605 = vrcp.pop %v2581
          %v2606 = vrcp.pop %v2584
          %v2607 = vrcp.pop %v2587
          %v2608 = vrcp.pop %v2590
          %v2609 = vrcp.pop %v2593
          %v2610 = vmul.f32 %v2483, %v2594
          %v2611 = vmul.f32 %v2485, %v2594
          %v2612 = vmul.f32 %v2487, %v2595
          %v2613 = vmul.f32 %v2489, %v2595
          %v2614 = vmul.f32 %v2491, %v2596
          %v2615 = vmul.f32 %v2493, %v2596
          %v2616 = vmul.f32 %v2495, %v2597
          %v2617 = vmul.f32 %v2497, %v2597
          %v2618 = vmul.f32 %v2499, %v2598
          %v2619 = vmul.f32 %v2501, %v2598
          %v2620 = vmul.f32 %v2503, %v2599
          %v2621 = vmul.f32 %v2505, %v2599
          %v2622 = vmul.f32 %v2507, %v2600
          %v2623 = vmul.f32 %v2509, %v2600
          %v2624 = vmul.f32 %v2511, %v2601
          %v2625 = vmul.f32 %v2513, %v2601
          %v2626 = vmul.f32 %v2515, %v2602
          %v2627 = vmul.f32 %v2517, %v2602
          %v2628 = vmul.f32 %v2519, %v2603
          %v2629 = vmul.f32 %v2521, %v2603
          %v2630 = vmul.f32 %v2523, %v2604
          %v2631 = vmul.f32 %v2525, %v2604
          %v2632 = vmul.f32 %v2527, %v2605
          %v2633 = vmul.f32 %v2529, %v2605
          %v2634 = vmul.f32 %v2531, %v2606
          %v2635 = vmul.f32 %v2533, %v2606
          %v2636 = vmul.f32 %v2535, %v2607
          %v2637 = vmul.f32 %v2537, %v2607
          %v2638 = vmul.f32 %v2539, %v2608
          %v2639 = vmul.f32 %v2541, %v2608
          %v2640 = vmul.f32 %v2543, %v2609
          %v2641 = vmul.f32 %v2545, %v2609
          %v2642 = vpack.c.bf16 %v2612, %v2610
          %v2643 = vpack.c.bf16 %v2613, %v2611
          %v2644 = vpack.c.bf16 %v2616, %v2614
          %v2645 = vpack.c.bf16 %v2617, %v2615
          %v2646 = vpack.c.bf16 %v2620, %v2618
          %v2647 = vpack.c.bf16 %v2621, %v2619
          %v2648 = vpack.c.bf16 %v2624, %v2622
          %v2649 = vpack.c.bf16 %v2625, %v2623
          %v2650 = vpack.c.bf16 %v2628, %v2626
          %v2651 = vpack.c.bf16 %v2629, %v2627
          %v2652 = vpack.c.bf16 %v2632, %v2630
          %v2653 = vpack.c.bf16 %v2633, %v2631
          %v2654 = vpack.c.bf16 %v2636, %v2634
          %v2655 = vpack.c.bf16 %v2637, %v2635
          %v2656 = vpack.c.bf16 %v2640, %v2638
          %v2657 = vpack.c.bf16 %v2641, %v2639
          %v2660 = vunpack.c.l.b16 %v2245
          %v2661 = vunpack.c.l.b16 %v2246
          %v2662 = vpack.c.b16 %v2661, %v2660
          %2664 = vmatpush.bf16.msra.mxu0 %v2656
          %2665 = vmatpush.bf16.msra.mxu0 %v2654
          %2666 = vmatpush.bf16.msra.mxu0 %v2652
          %2667 = vmatpush.bf16.msra.mxu0 %v2650
          %2668 = vmatpush.bf16.msra.mxu0 %v2648
          %2669 = vmatpush.bf16.msra.mxu0 %v2646
          %2670 = vmatpush.bf16.msra.mxu0 %v2644
          %2671 = vmatpush.bf16.msra.mxu0 %v2642
          %2672 = vmatmul.bf16.gmra.mxu0 %v2662
          %v2673 = vpop.f32.mrf.mxu0
          %v2674 = vadd.f32 0.0, %v2673
          %v2675 = vpop.f32.mrf.mxu0
          %v2676 = vadd.f32 0.0, %v2675
          %2677 = vdwg.mxu0
          %2678 = vmatpush.bf16.msra.mxu0 %v2657
          %2679 = vmatpush.bf16.msra.mxu0 %v2655
          %2680 = vmatpush.bf16.msra.mxu0 %v2653
          %2681 = vmatpush.bf16.msra.mxu0 %v2651
          %2682 = vmatpush.bf16.msra.mxu0 %v2649
          %2683 = vmatpush.bf16.msra.mxu0 %v2647
          %2684 = vmatpush.bf16.msra.mxu0 %v2645
          %2685 = vmatpush.bf16.msra.mxu0 %v2643
          %2686 = vmatmul.bf16.gmra.mxu0 %v2662
          %v2687 = vpop.f32.mrf.mxu0
          %v2688 = vadd.f32 0.0, %v2687
          %v2689 = vpop.f32.mrf.mxu0
          %v2690 = vadd.f32 0.0, %v2689
          %2691 = vdwg.mxu0
          %v2692 = vadd.f32 %v2234, %v2674
          %v2693 = vadd.f32 %v2235, %v2688
          %v2694 = vadd.f32 %v2236, %v2676
          %v2695 = vadd.f32 %v2237, %v2690
        $region71: #{tpu_custom_call.1} parent=51 // loop_footer
          %s2233 = sadd.s32 1, %s2229
        $region72: #{tpu_custom_call.1} parent=51 // loop_footer_branch
          %2228 = sbr.rel target = $region68
        $region73: #{tpu_custom_call.1} parent=51 // loop_exit
          _
        %v2696 = vpack.c.bf16 %v2235, %v2234
        %v2697 = vpack.c.bf16 %v2237, %v2236
        %2698 = vst [vmem:[#allocation3 + $0x20] sm:$0xff] %v2696
        %2699 = vst [vmem:[#allocation3 + $0x28] sm:$0xff] %v2697
        %v2700 = vld [vmem:[#allocation2 + $0x90] sm:$0xff]
        %v2701 = vld [vmem:[#allocation2 + $0x98] sm:$0xff]
        loop: start=0, step=1, limit=2
        $region74: #{tpu_custom_call.1} parent=51 // loop_pre_header
          _
        $region75: #{tpu_custom_call.1} parent=51 // loop_header
          %s2703 = sphi 0, %s2707
          %p2704 = scmp.ge.s32.totalorder %s2703, 2
          %v2708 = vphi 0.0, %v3166
          %v2709 = vphi 0.0, %v3167
          %v2710 = vphi 0.0, %v3168
          %v2711 = vphi 0.0, %v3169
        $region76: #{tpu_custom_call.1} parent=51 // loop_header_branch
          %2706 = sbr.rel (%p2704) target = $region80
        $region77: #{tpu_custom_call.1} parent=51 // loop_body
          %s2712 = smul.u32 %s2703, 128
          %s2713 = sshra.s32 %s2712, 7
          %s2714 = sand.u32 %s2712, 127
          %s2715 = smul.addr %s2713, 4
          %s2716 = scalar_lea.vmem [#allocation2], %s2715
          %v2717 = vld [vmem:[%s2716 + $0xa0] sm:$0xf]
          %v2718 = vld [vmem:[%s2716 + $0xa8] sm:$0xf]
          %v2719 = vld [vmem:[%s2716 + $0xb0] sm:$0xf]
          %v2720 = vld [vmem:[%s2716 + $0xb8] sm:$0xf]
          %v2723 = vunpack.c.l.b16 %v2717
          %v2724 = vunpack.c.l.b16 %v2718
          %v2725 = vpack.c.b16 %v2724, %v2723
          %2727 = vxpose.xlu0.c.b16.start [1/8] %v2725, 128
          %2728 = vxpose.xlu0.c.b16.cont [2/8] 0, 128
          %2729 = vxpose.xlu0.c.b16.cont [3/8] 0, 128
          %2730 = vxpose.xlu0.c.b16.cont [4/8] 0, 128
          %2731 = vxpose.xlu0.c.b16.cont [5/8] 0, 128
          %2732 = vxpose.xlu0.c.b16.cont [6/8] 0, 128
          %2733 = vxpose.xlu0.c.b16.cont [7/8] 0, 128
          %2734 = vxpose.xlu0.c.b16.end [8/8] 0, 128
          %v2735 = vpop.trf.xlu0
          %v2736 = vpop.trf.xlu0
          %v2737 = vpop.trf.xlu0
          %v2738 = vpop.trf.xlu0
          %v2739 = vpop.trf.xlu0
          %v2740 = vpop.trf.xlu0
          %v2741 = vpop.trf.xlu0
          %v2742 = vpop.trf.xlu0
          %v2745 = vunpack.c.l.b16 %v2700
          %v2746 = vunpack.c.h.b16 %v2700
          %v2747 = vunpack.c.l.b16 %v2701
          %v2748 = vunpack.c.h.b16 %v2701
          %v2749 = vpack.c.b16 %v2747, %v2745
          %v2750 = vpack.c.b16 %v2748, %v2746
          %vm2753 = vcmask 130048
          %v2755 = vsel %vm2753, %v2735, 0
          %v2758 = vsel %vm2753, %v2736, 0
          %v2761 = vsel %vm2753, %v2737, 0
          %v2764 = vsel %vm2753, %v2738, 0
          %v2767 = vsel %vm2753, %v2739, 0
          %v2770 = vsel %vm2753, %v2740, 0
          %v2773 = vsel %vm2753, %v2741, 0
          %v2776 = vsel %vm2753, %v2742, 0
          %2778 = vmatpush.bf16.msra.mxu0 0
          %2779 = vmatpush.bf16.msra.mxu0 0
          %2780 = vmatpush.bf16.msra.mxu0 0
          %2781 = vmatpush.bf16.msra.mxu0 0
          %2782 = vmatpush.bf16.msra.mxu0 0
          %2783 = vmatpush.bf16.msra.mxu0 0
          %2784 = vmatpush.bf16.msra.mxu0 0
          %2785 = vmatpush.bf16.msra.mxu0 %v2749
          %2786 = vmatmul.bf16.gmra.mxu0 %v2755
          %v2787 = vpop.f32.mrf.mxu0
          %v2788 = vadd.f32 0.0, %v2787
          %v2789 = vpop.f32.mrf.mxu0
          %v2790 = vadd.f32 0.0, %v2789
          %2791 = vmatmul.bf16.gmra.mxu0 %v2758
          %v2792 = vpop.f32.mrf.mxu0
          %v2793 = vadd.f32 0.0, %v2792
          %v2794 = vpop.f32.mrf.mxu0
          %v2795 = vadd.f32 0.0, %v2794
          %2796 = vmatmul.bf16.gmra.mxu0 %v2761
          %v2797 = vpop.f32.mrf.mxu0
          %v2798 = vadd.f32 0.0, %v2797
          %v2799 = vpop.f32.mrf.mxu0
          %v2800 = vadd.f32 0.0, %v2799
          %2801 = vmatmul.bf16.gmra.mxu0 %v2764
          %v2802 = vpop.f32.mrf.mxu0
          %v2803 = vadd.f32 0.0, %v2802
          %v2804 = vpop.f32.mrf.mxu0
          %v2805 = vadd.f32 0.0, %v2804
          %2806 = vmatmul.bf16.gmra.mxu0 %v2767
          %v2807 = vpop.f32.mrf.mxu0
          %v2808 = vadd.f32 0.0, %v2807
          %v2809 = vpop.f32.mrf.mxu0
          %v2810 = vadd.f32 0.0, %v2809
          %2811 = vmatmul.bf16.gmra.mxu0 %v2770
          %v2812 = vpop.f32.mrf.mxu0
          %v2813 = vadd.f32 0.0, %v2812
          %v2814 = vpop.f32.mrf.mxu0
          %v2815 = vadd.f32 0.0, %v2814
          %2816 = vmatmul.bf16.gmra.mxu0 %v2773
          %v2817 = vpop.f32.mrf.mxu0
          %v2818 = vadd.f32 0.0, %v2817
          %v2819 = vpop.f32.mrf.mxu0
          %v2820 = vadd.f32 0.0, %v2819
          %2821 = vmatmul.bf16.gmra.mxu0 %v2776
          %v2822 = vpop.f32.mrf.mxu0
          %v2823 = vadd.f32 0.0, %v2822
          %v2824 = vpop.f32.mrf.mxu0
          %v2825 = vadd.f32 0.0, %v2824
          %2826 = vdwg.mxu0
          %2827 = vmatpush.bf16.msra.mxu0 0
          %2828 = vmatpush.bf16.msra.mxu0 0
          %2829 = vmatpush.bf16.msra.mxu0 0
          %2830 = vmatpush.bf16.msra.mxu0 0
          %2831 = vmatpush.bf16.msra.mxu0 0
          %2832 = vmatpush.bf16.msra.mxu0 0
          %2833 = vmatpush.bf16.msra.mxu0 0
          %2834 = vmatpush.bf16.msra.mxu0 %v2750
          %2835 = vmatmul.bf16.gmra.mxu0 %v2755
          %v2836 = vpop.f32.mrf.mxu0
          %v2837 = vadd.f32 0.0, %v2836
          %v2838 = vpop.f32.mrf.mxu0
          %v2839 = vadd.f32 0.0, %v2838
          %2840 = vmatmul.bf16.gmra.mxu0 %v2758
          %v2841 = vpop.f32.mrf.mxu0
          %v2842 = vadd.f32 0.0, %v2841
          %v2843 = vpop.f32.mrf.mxu0
          %v2844 = vadd.f32 0.0, %v2843
          %2845 = vmatmul.bf16.gmra.mxu0 %v2761
          %v2846 = vpop.f32.mrf.mxu0
          %v2847 = vadd.f32 0.0, %v2846
          %v2848 = vpop.f32.mrf.mxu0
          %v2849 = vadd.f32 0.0, %v2848
          %2850 = vmatmul.bf16.gmra.mxu0 %v2764
          %v2851 = vpop.f32.mrf.mxu0
          %v2852 = vadd.f32 0.0, %v2851
          %v2853 = vpop.f32.mrf.mxu0
          %v2854 = vadd.f32 0.0, %v2853
          %2855 = vmatmul.bf16.gmra.mxu0 %v2767
          %v2856 = vpop.f32.mrf.mxu0
          %v2857 = vadd.f32 0.0, %v2856
          %v2858 = vpop.f32.mrf.mxu0
          %v2859 = vadd.f32 0.0, %v2858
          %2860 = vmatmul.bf16.gmra.mxu0 %v2770
          %v2861 = vpop.f32.mrf.mxu0
          %v2862 = vadd.f32 0.0, %v2861
          %v2863 = vpop.f32.mrf.mxu0
          %v2864 = vadd.f32 0.0, %v2863
          %2865 = vmatmul.bf16.gmra.mxu0 %v2773
          %v2866 = vpop.f32.mrf.mxu0
          %v2867 = vadd.f32 0.0, %v2866
          %v2868 = vpop.f32.mrf.mxu0
          %v2869 = vadd.f32 0.0, %v2868
          %2870 = vmatmul.bf16.gmra.mxu0 %v2776
          %v2871 = vpop.f32.mrf.mxu0
          %v2872 = vadd.f32 0.0, %v2871
          %v2873 = vpop.f32.mrf.mxu0
          %v2874 = vadd.f32 0.0, %v2873
          %2875 = vdwg.mxu0
          %v2876 = vmax.f32 %v2788, %v2837
          %2877 = vmax.xlane.f32.xlu0 %v2876
          %v2878 = vpop.xlane.xlu0 %2877
          %v2879 = vmax.f32 %v2790, %v2839
          %2880 = vmax.xlane.f32.xlu0 %v2879
          %v2881 = vpop.xlane.xlu0 %2880
          %v2882 = vmax.f32 %v2793, %v2842
          %2883 = vmax.xlane.f32.xlu0 %v2882
          %v2884 = vpop.xlane.xlu0 %2883
          %v2885 = vmax.f32 %v2795, %v2844
          %2886 = vmax.xlane.f32.xlu0 %v2885
          %v2887 = vpop.xlane.xlu0 %2886
          %v2888 = vmax.f32 %v2798, %v2847
          %2889 = vmax.xlane.f32.xlu0 %v2888
          %v2890 = vpop.xlane.xlu0 %2889
          %v2891 = vmax.f32 %v2800, %v2849
          %2892 = vmax.xlane.f32.xlu0 %v2891
          %v2893 = vpop.xlane.xlu0 %2892
          %v2894 = vmax.f32 %v2803, %v2852
          %2895 = vmax.xlane.f32.xlu0 %v2894
          %v2896 = vpop.xlane.xlu0 %2895
          %v2897 = vmax.f32 %v2805, %v2854
          %2898 = vmax.xlane.f32.xlu0 %v2897
          %v2899 = vpop.xlane.xlu0 %2898
          %v2900 = vmax.f32 %v2808, %v2857
          %2901 = vmax.xlane.f32.xlu0 %v2900
          %v2902 = vpop.xlane.xlu0 %2901
          %v2903 = vmax.f32 %v2810, %v2859
          %2904 = vmax.xlane.f32.xlu0 %v2903
          %v2905 = vpop.xlane.xlu0 %2904
          %v2906 = vmax.f32 %v2813, %v2862
          %2907 = vmax.xlane.f32.xlu0 %v2906
          %v2908 = vpop.xlane.xlu0 %2907
          %v2909 = vmax.f32 %v2815, %v2864
          %2910 = vmax.xlane.f32.xlu0 %v2909
          %v2911 = vpop.xlane.xlu0 %2910
          %v2912 = vmax.f32 %v2818, %v2867
          %2913 = vmax.xlane.f32.xlu0 %v2912
          %v2914 = vpop.xlane.xlu0 %2913
          %v2915 = vmax.f32 %v2820, %v2869
          %2916 = vmax.xlane.f32.xlu0 %v2915
          %v2917 = vpop.xlane.xlu0 %2916
          %v2918 = vmax.f32 %v2823, %v2872
          %2919 = vmax.xlane.f32.xlu0 %v2918
          %v2920 = vpop.xlane.xlu0 %2919
          %v2921 = vmax.f32 %v2825, %v2874
          %2922 = vmax.xlane.f32.xlu0 %v2921
          %v2923 = vpop.xlane.xlu0 %2922
          %v2924 = vsub.f32 %v2788, %v2878
          %v2925 = vsub.f32 %v2837, %v2878
          %v2926 = vsub.f32 %v2790, %v2881
          %v2927 = vsub.f32 %v2839, %v2881
          %v2928 = vsub.f32 %v2793, %v2884
          %v2929 = vsub.f32 %v2842, %v2884
          %v2930 = vsub.f32 %v2795, %v2887
          %v2931 = vsub.f32 %v2844, %v2887
          %v2932 = vsub.f32 %v2798, %v2890
          %v2933 = vsub.f32 %v2847, %v2890
          %v2934 = vsub.f32 %v2800, %v2893
          %v2935 = vsub.f32 %v2849, %v2893
          %v2936 = vsub.f32 %v2803, %v2896
          %v2937 = vsub.f32 %v2852, %v2896
          %v2938 = vsub.f32 %v2805, %v2899
          %v2939 = vsub.f32 %v2854, %v2899
          %v2940 = vsub.f32 %v2808, %v2902
          %v2941 = vsub.f32 %v2857, %v2902
          %v2942 = vsub.f32 %v2810, %v2905
          %v2943 = vsub.f32 %v2859, %v2905
          %v2944 = vsub.f32 %v2813, %v2908
          %v2945 = vsub.f32 %v2862, %v2908
          %v2946 = vsub.f32 %v2815, %v2911
          %v2947 = vsub.f32 %v2864, %v2911
          %v2948 = vsub.f32 %v2818, %v2914
          %v2949 = vsub.f32 %v2867, %v2914
          %v2950 = vsub.f32 %v2820, %v2917
          %v2951 = vsub.f32 %v2869, %v2917
          %v2952 = vsub.f32 %v2823, %v2920
          %v2953 = vsub.f32 %v2872, %v2920
          %v2954 = vsub.f32 %v2825, %v2923
          %v2955 = vsub.f32 %v2874, %v2923
          %v2956 = vmul.f32 %v2924, 1.442695
          %v2957 = vpow.pop %v2956
          %v2958 = vmul.f32 %v2925, 1.442695
          %v2959 = vpow.pop %v2958
          %v2960 = vmul.f32 %v2926, 1.442695
          %v2961 = vpow.pop %v2960
          %v2962 = vmul.f32 %v2927, 1.442695
          %v2963 = vpow.pop %v2962
          %v2964 = vmul.f32 %v2928, 1.442695
          %v2965 = vpow.pop %v2964
          %v2966 = vmul.f32 %v2929, 1.442695
          %v2967 = vpow.pop %v2966
          %v2968 = vmul.f32 %v2930, 1.442695
          %v2969 = vpow.pop %v2968
          %v2970 = vmul.f32 %v2931, 1.442695
          %v2971 = vpow.pop %v2970
          %v2972 = vmul.f32 %v2932, 1.442695
          %v2973 = vpow.pop %v2972
          %v2974 = vmul.f32 %v2933, 1.442695
          %v2975 = vpow.pop %v2974
          %v2976 = vmul.f32 %v2934, 1.442695
          %v2977 = vpow.pop %v2976
          %v2978 = vmul.f32 %v2935, 1.442695
          %v2979 = vpow.pop %v2978
          %v2980 = vmul.f32 %v2936, 1.442695
          %v2981 = vpow.pop %v2980
          %v2982 = vmul.f32 %v2937, 1.442695
          %v2983 = vpow.pop %v2982
          %v2984 = vmul.f32 %v2938, 1.442695
          %v2985 = vpow.pop %v2984
          %v2986 = vmul.f32 %v2939, 1.442695
          %v2987 = vpow.pop %v2986
          %v2988 = vmul.f32 %v2940, 1.442695
          %v2989 = vpow.pop %v2988
          %v2990 = vmul.f32 %v2941, 1.442695
          %v2991 = vpow.pop %v2990
          %v2992 = vmul.f32 %v2942, 1.442695
          %v2993 = vpow.pop %v2992
          %v2994 = vmul.f32 %v2943, 1.442695
          %v2995 = vpow.pop %v2994
          %v2996 = vmul.f32 %v2944, 1.442695
          %v2997 = vpow.pop %v2996
          %v2998 = vmul.f32 %v2945, 1.442695
          %v2999 = vpow.pop %v2998
          %v3000 = vmul.f32 %v2946, 1.442695
          %v3001 = vpow.pop %v3000
          %v3002 = vmul.f32 %v2947, 1.442695
          %v3003 = vpow.pop %v3002
          %v3004 = vmul.f32 %v2948, 1.442695
          %v3005 = vpow.pop %v3004
          %v3006 = vmul.f32 %v2949, 1.442695
          %v3007 = vpow.pop %v3006
          %v3008 = vmul.f32 %v2950, 1.442695
          %v3009 = vpow.pop %v3008
          %v3010 = vmul.f32 %v2951, 1.442695
          %v3011 = vpow.pop %v3010
          %v3012 = vmul.f32 %v2952, 1.442695
          %v3013 = vpow.pop %v3012
          %v3014 = vmul.f32 %v2953, 1.442695
          %v3015 = vpow.pop %v3014
          %v3016 = vmul.f32 %v2954, 1.442695
          %v3017 = vpow.pop %v3016
          %v3018 = vmul.f32 %v2955, 1.442695
          %v3019 = vpow.pop %v3018
          %v3020 = vadd.f32 %v2957, %v2959
          %3021 = vadd.xlane.f32.xlu0 %v3020
          %v3022 = vpop.xlane.xlu0 %3021
          %v3023 = vadd.f32 %v2961, %v2963
          %3024 = vadd.xlane.f32.xlu0 %v3023
          %v3025 = vpop.xlane.xlu0 %3024
          %v3026 = vadd.f32 %v2965, %v2967
          %3027 = vadd.xlane.f32.xlu0 %v3026
          %v3028 = vpop.xlane.xlu0 %3027
          %v3029 = vadd.f32 %v2969, %v2971
          %3030 = vadd.xlane.f32.xlu0 %v3029
          %v3031 = vpop.xlane.xlu0 %3030
          %v3032 = vadd.f32 %v2973, %v2975
          %3033 = vadd.xlane.f32.xlu0 %v3032
          %v3034 = vpop.xlane.xlu0 %3033
          %v3035 = vadd.f32 %v2977, %v2979
          %3036 = vadd.xlane.f32.xlu0 %v3035
          %v3037 = vpop.xlane.xlu0 %3036
          %v3038 = vadd.f32 %v2981, %v2983
          %3039 = vadd.xlane.f32.xlu0 %v3038
          %v3040 = vpop.xlane.xlu0 %3039
          %v3041 = vadd.f32 %v2985, %v2987
          %3042 = vadd.xlane.f32.xlu0 %v3041
          %v3043 = vpop.xlane.xlu0 %3042
          %v3044 = vadd.f32 %v2989, %v2991
          %3045 = vadd.xlane.f32.xlu0 %v3044
          %v3046 = vpop.xlane.xlu0 %3045
          %v3047 = vadd.f32 %v2993, %v2995
          %3048 = vadd.xlane.f32.xlu0 %v3047
          %v3049 = vpop.xlane.xlu0 %3048
          %v3050 = vadd.f32 %v2997, %v2999
          %3051 = vadd.xlane.f32.xlu0 %v3050
          %v3052 = vpop.xlane.xlu0 %3051
          %v3053 = vadd.f32 %v3001, %v3003
          %3054 = vadd.xlane.f32.xlu0 %v3053
          %v3055 = vpop.xlane.xlu0 %3054
          %v3056 = vadd.f32 %v3005, %v3007
          %3057 = vadd.xlane.f32.xlu0 %v3056
          %v3058 = vpop.xlane.xlu0 %3057
          %v3059 = vadd.f32 %v3009, %v3011
          %3060 = vadd.xlane.f32.xlu0 %v3059
          %v3061 = vpop.xlane.xlu0 %3060
          %v3062 = vadd.f32 %v3013, %v3015
          %3063 = vadd.xlane.f32.xlu0 %v3062
          %v3064 = vpop.xlane.xlu0 %3063
          %v3065 = vadd.f32 %v3017, %v3019
          %3066 = vadd.xlane.f32.xlu0 %v3065
          %v3067 = vpop.xlane.xlu0 %3066
          %v3068 = vrcp.pop %v3022
          %v3069 = vrcp.pop %v3025
          %v3070 = vrcp.pop %v3028
          %v3071 = vrcp.pop %v3031
          %v3072 = vrcp.pop %v3034
          %v3073 = vrcp.pop %v3037
          %v3074 = vrcp.pop %v3040
          %v3075 = vrcp.pop %v3043
          %v3076 = vrcp.pop %v3046
          %v3077 = vrcp.pop %v3049
          %v3078 = vrcp.pop %v3052
          %v3079 = vrcp.pop %v3055
          %v3080 = vrcp.pop %v3058
          %v3081 = vrcp.pop %v3061
          %v3082 = vrcp.pop %v3064
          %v3083 = vrcp.pop %v3067
          %v3084 = vmul.f32 %v2957, %v3068
          %v3085 = vmul.f32 %v2959, %v3068
          %v3086 = vmul.f32 %v2961, %v3069
          %v3087 = vmul.f32 %v2963, %v3069
          %v3088 = vmul.f32 %v2965, %v3070
          %v3089 = vmul.f32 %v2967, %v3070
          %v3090 = vmul.f32 %v2969, %v3071
          %v3091 = vmul.f32 %v2971, %v3071
          %v3092 = vmul.f32 %v2973, %v3072
          %v3093 = vmul.f32 %v2975, %v3072
          %v3094 = vmul.f32 %v2977, %v3073
          %v3095 = vmul.f32 %v2979, %v3073
          %v3096 = vmul.f32 %v2981, %v3074
          %v3097 = vmul.f32 %v2983, %v3074
          %v3098 = vmul.f32 %v2985, %v3075
          %v3099 = vmul.f32 %v2987, %v3075
          %v3100 = vmul.f32 %v2989, %v3076
          %v3101 = vmul.f32 %v2991, %v3076
          %v3102 = vmul.f32 %v2993, %v3077
          %v3103 = vmul.f32 %v2995, %v3077
          %v3104 = vmul.f32 %v2997, %v3078
          %v3105 = vmul.f32 %v2999, %v3078
          %v3106 = vmul.f32 %v3001, %v3079
          %v3107 = vmul.f32 %v3003, %v3079
          %v3108 = vmul.f32 %v3005, %v3080
          %v3109 = vmul.f32 %v3007, %v3080
          %v3110 = vmul.f32 %v3009, %v3081
          %v3111 = vmul.f32 %v3011, %v3081
          %v3112 = vmul.f32 %v3013, %v3082
          %v3113 = vmul.f32 %v3015, %v3082
          %v3114 = vmul.f32 %v3017, %v3083
          %v3115 = vmul.f32 %v3019, %v3083
          %v3116 = vpack.c.bf16 %v3086, %v3084
          %v3117 = vpack.c.bf16 %v3087, %v3085
          %v3118 = vpack.c.bf16 %v3090, %v3088
          %v3119 = vpack.c.bf16 %v3091, %v3089
          %v3120 = vpack.c.bf16 %v3094, %v3092
          %v3121 = vpack.c.bf16 %v3095, %v3093
          %v3122 = vpack.c.bf16 %v3098, %v3096
          %v3123 = vpack.c.bf16 %v3099, %v3097
          %v3124 = vpack.c.bf16 %v3102, %v3100
          %v3125 = vpack.c.bf16 %v3103, %v3101
          %v3126 = vpack.c.bf16 %v3106, %v3104
          %v3127 = vpack.c.bf16 %v3107, %v3105
          %v3128 = vpack.c.bf16 %v3110, %v3108
          %v3129 = vpack.c.bf16 %v3111, %v3109
          %v3130 = vpack.c.bf16 %v3114, %v3112
          %v3131 = vpack.c.bf16 %v3115, %v3113
          %v3134 = vunpack.c.l.b16 %v2719
          %v3135 = vunpack.c.l.b16 %v2720
          %v3136 = vpack.c.b16 %v3135, %v3134
          %3138 = vmatpush.bf16.msra.mxu0 %v3130
          %3139 = vmatpush.bf16.msra.mxu0 %v3128
          %3140 = vmatpush.bf16.msra.mxu0 %v3126
          %3141 = vmatpush.bf16.msra.mxu0 %v3124
          %3142 = vmatpush.bf16.msra.mxu0 %v3122
          %3143 = vmatpush.bf16.msra.mxu0 %v3120
          %3144 = vmatpush.bf16.msra.mxu0 %v3118
          %3145 = vmatpush.bf16.msra.mxu0 %v3116
          %3146 = vmatmul.bf16.gmra.mxu0 %v3136
          %v3147 = vpop.f32.mrf.mxu0
          %v3148 = vadd.f32 0.0, %v3147
          %v3149 = vpop.f32.mrf.mxu0
          %v3150 = vadd.f32 0.0, %v3149
          %3151 = vdwg.mxu0
          %3152 = vmatpush.bf16.msra.mxu0 %v3131
          %3153 = vmatpush.bf16.msra.mxu0 %v3129
          %3154 = vmatpush.bf16.msra.mxu0 %v3127
          %3155 = vmatpush.bf16.msra.mxu0 %v3125
          %3156 = vmatpush.bf16.msra.mxu0 %v3123
          %3157 = vmatpush.bf16.msra.mxu0 %v3121
          %3158 = vmatpush.bf16.msra.mxu0 %v3119
          %3159 = vmatpush.bf16.msra.mxu0 %v3117
          %3160 = vmatmul.bf16.gmra.mxu0 %v3136
          %v3161 = vpop.f32.mrf.mxu0
          %v3162 = vadd.f32 0.0, %v3161
          %v3163 = vpop.f32.mrf.mxu0
          %v3164 = vadd.f32 0.0, %v3163
          %3165 = vdwg.mxu0
          %v3166 = vadd.f32 %v2708, %v3148
          %v3167 = vadd.f32 %v2709, %v3162
          %v3168 = vadd.f32 %v2710, %v3150
          %v3169 = vadd.f32 %v2711, %v3164
        $region78: #{tpu_custom_call.1} parent=51 // loop_footer
          %s2707 = sadd.s32 1, %s2703
        $region79: #{tpu_custom_call.1} parent=51 // loop_footer_branch
          %2702 = sbr.rel target = $region75
        $region80: #{tpu_custom_call.1} parent=51 // loop_exit
          _
        %v3170 = vpack.c.bf16 %v2709, %v2708
        %v3171 = vpack.c.bf16 %v2711, %v2710
        %3172 = vst [vmem:[#allocation3 + $0x30] sm:$0xff] %v3170
        %3173 = vst [vmem:[#allocation3 + $0x38] sm:$0xff] %v3171
        %v3174 = vld [vmem:[%s6] sm:$0xf]
        %v3175 = vld [vmem:[%s6 + $0x4] sm:$0xf]
        %v3176 = vld [vmem:[%s6 + $0x8] sm:$0xf]
        %v3177 = vld [vmem:[%s6 + $0xc] sm:$0xf]
        %v3178 = vld [vmem:[%s6 + $0x10] sm:$0xf]
        %v3179 = vld [vmem:[%s6 + $0x14] sm:$0xf]
        %v3180 = vld [vmem:[%s6 + $0x18] sm:$0xf]
        %v3181 = vld [vmem:[%s6 + $0x1c] sm:$0xf]
        %v3182 = vld [vmem:[#allocation3] sm:$0xff]
        %v3183 = vld [vmem:[#allocation3 + $0x8] sm:$0xff]
        %v3184 = vld [vmem:[#allocation3 + $0x10] sm:$0xff]
        %v3185 = vld [vmem:[#allocation3 + $0x18] sm:$0xff]
        %v3186 = vld [vmem:[#allocation3 + $0x20] sm:$0xff]
        %v3187 = vld [vmem:[#allocation3 + $0x28] sm:$0xff]
        %v3188 = vld [vmem:[#allocation3 + $0x30] sm:$0xff]
        %v3189 = vld [vmem:[#allocation3 + $0x38] sm:$0xff]
        %v3198 = vunpack.c.l.b16 %v3174
        %v3199 = vunpack.c.l.b16 %v3175
        %v3200 = vunpack.c.l.b16 %v3176
        %v3201 = vunpack.c.l.b16 %v3177
        %v3202 = vunpack.c.l.b16 %v3178
        %v3203 = vunpack.c.l.b16 %v3179
        %v3204 = vunpack.c.l.b16 %v3180
        %v3205 = vunpack.c.l.b16 %v3181
        %v3206 = vpack.c.b16 %v3199, %v3198
        %v3207 = vpack.c.b16 %v3201, %v3200
        %v3208 = vpack.c.b16 %v3203, %v3202
        %v3209 = vpack.c.b16 %v3205, %v3204
        %v3218 = vunpack.c.l.b16 %v3182
        %v3219 = vunpack.c.h.b16 %v3182
        %v3220 = vunpack.c.l.b16 %v3183
        %v3221 = vunpack.c.h.b16 %v3183
        %v3222 = vunpack.c.l.b16 %v3184
        %v3223 = vunpack.c.h.b16 %v3184
        %v3224 = vunpack.c.l.b16 %v3185
        %v3225 = vunpack.c.h.b16 %v3185
        %v3226 = vunpack.c.l.b16 %v3186
        %v3227 = vunpack.c.h.b16 %v3186
        %v3228 = vunpack.c.l.b16 %v3187
        %v3229 = vunpack.c.h.b16 %v3187
        %v3230 = vunpack.c.l.b16 %v3188
        %v3231 = vunpack.c.h.b16 %v3188
        %v3232 = vunpack.c.l.b16 %v3189
        %v3233 = vunpack.c.h.b16 %v3189
        %v3234 = vpack.c.b16 %v3220, %v3218
        %v3235 = vpack.c.b16 %v3221, %v3219
        %v3236 = vpack.c.b16 %v3224, %v3222
        %v3237 = vpack.c.b16 %v3225, %v3223
        %v3238 = vpack.c.b16 %v3228, %v3226
        %v3239 = vpack.c.b16 %v3229, %v3227
        %v3240 = vpack.c.b16 %v3232, %v3230
        %v3241 = vpack.c.b16 %v3233, %v3231
        %v3251 = vsel %vm353, %v3206, 0
        %v3254 = vsel %vm353, %v3207, 0
        %v3257 = vsel %vm353, %v3208, 0
        %v3260 = vsel %vm353, %v3209, 0
        %3262 = vmatpush.bf16.msra.mxu0 0
        %3263 = vmatpush.bf16.msra.mxu0 0
        %3264 = vmatpush.bf16.msra.mxu0 0
        %3265 = vmatpush.bf16.msra.mxu0 0
        %3266 = vmatpush.bf16.msra.mxu0 %v3240
        %3267 = vmatpush.bf16.msra.mxu0 %v3238
        %3268 = vmatpush.bf16.msra.mxu0 %v3236
        %3269 = vmatpush.bf16.msra.mxu0 %v3234
        %3270 = vmatmul.bf16.gmra.mxu0 %v3251
        %v3271 = vpop.f32.mrf.mxu0
        %v3272 = vadd.f32 0.0, %v3271
        %v3273 = vpop.f32.mrf.mxu0
        %v3274 = vadd.f32 0.0, %v3273
        %3275 = vmatmul.bf16.gmra.mxu0 %v3254
        %v3276 = vpop.f32.mrf.mxu0
        %v3277 = vadd.f32 0.0, %v3276
        %v3278 = vpop.f32.mrf.mxu0
        %v3279 = vadd.f32 0.0, %v3278
        %3280 = vmatmul.bf16.gmra.mxu0 %v3257
        %v3281 = vpop.f32.mrf.mxu0
        %v3282 = vadd.f32 0.0, %v3281
        %v3283 = vpop.f32.mrf.mxu0
        %v3284 = vadd.f32 0.0, %v3283
        %3285 = vmatmul.bf16.gmra.mxu0 %v3260
        %v3286 = vpop.f32.mrf.mxu0
        %v3287 = vadd.f32 0.0, %v3286
        %v3288 = vpop.f32.mrf.mxu0
        %v3289 = vadd.f32 0.0, %v3288
        %3290 = vdwg.mxu0
        %3291 = vmatpush.bf16.msra.mxu0 0
        %3292 = vmatpush.bf16.msra.mxu0 0
        %3293 = vmatpush.bf16.msra.mxu0 0
        %3294 = vmatpush.bf16.msra.mxu0 0
        %3295 = vmatpush.bf16.msra.mxu0 %v3241
        %3296 = vmatpush.bf16.msra.mxu0 %v3239
        %3297 = vmatpush.bf16.msra.mxu0 %v3237
        %3298 = vmatpush.bf16.msra.mxu0 %v3235
        %3299 = vmatmul.bf16.gmra.mxu0 %v3251
        %v3300 = vpop.f32.mrf.mxu0
        %v3301 = vadd.f32 0.0, %v3300
        %v3302 = vpop.f32.mrf.mxu0
        %v3303 = vadd.f32 0.0, %v3302
        %3304 = vmatmul.bf16.gmra.mxu0 %v3254
        %v3305 = vpop.f32.mrf.mxu0
        %v3306 = vadd.f32 0.0, %v3305
        %v3307 = vpop.f32.mrf.mxu0
        %v3308 = vadd.f32 0.0, %v3307
        %3309 = vmatmul.bf16.gmra.mxu0 %v3257
        %v3310 = vpop.f32.mrf.mxu0
        %v3311 = vadd.f32 0.0, %v3310
        %v3312 = vpop.f32.mrf.mxu0
        %v3313 = vadd.f32 0.0, %v3312
        %3314 = vmatmul.bf16.gmra.mxu0 %v3260
        %v3315 = vpop.f32.mrf.mxu0
        %v3316 = vadd.f32 0.0, %v3315
        %v3317 = vpop.f32.mrf.mxu0
        %v3318 = vadd.f32 0.0, %v3317
        %3319 = vdwg.mxu0
        %v3320 = vadd.f32 %v305, %v3272
        %v3321 = vadd.f32 %v306, %v3301
        %v3322 = vadd.f32 %v307, %v3274
        %v3323 = vadd.f32 %v308, %v3303
        %v3324 = vadd.f32 %v309, %v3277
        %v3325 = vadd.f32 %v310, %v3306
        %v3326 = vadd.f32 %v311, %v3279
        %v3327 = vadd.f32 %v312, %v3308
        %v3328 = vadd.f32 %v313, %v3282
        %v3329 = vadd.f32 %v314, %v3311
        %v3330 = vadd.f32 %v315, %v3284
        %v3331 = vadd.f32 %v316, %v3313
        %v3332 = vadd.f32 %v317, %v3287
        %v3333 = vadd.f32 %v318, %v3316
        %v3334 = vadd.f32 %v319, %v3289
        %v3335 = vadd.f32 %v320, %v3318
        %v3336 = vld [vmem:[%s7] sm:$0xff]
        %v3337 = vld [vmem:[%s7 + $0x8] sm:$0xff]
        %v3338 = vld [vmem:[%s7 + $0x10] sm:$0xff]
        %v3339 = vld [vmem:[%s7 + $0x18] sm:$0xff]
        %v3340 = vld [vmem:[%s7 + $0x20] sm:$0xff]
        %v3341 = vld [vmem:[%s7 + $0x28] sm:$0xff]
        %v3342 = vld [vmem:[%s7 + $0x30] sm:$0xff]
        %v3343 = vld [vmem:[%s7 + $0x38] sm:$0xff]
        %3345 = vset.pattern.permute.xlu0 0
        %3346 = vperm.xlu0 %3345, %v3336
        %v3347 = vpop.permute.xlu0 %3346
        %3350 = vset.pattern.permute.xlu0 0
        %3351 = vperm.xlu0 %3350, %v3337
        %v3352 = vpop.permute.xlu0 %3351
        %3355 = vset.pattern.permute.xlu0 0
        %3356 = vperm.xlu0 %3355, %v3338
        %v3357 = vpop.permute.xlu0 %3356
        %3360 = vset.pattern.permute.xlu0 0
        %3361 = vperm.xlu0 %3360, %v3339
        %v3362 = vpop.permute.xlu0 %3361
        %3365 = vset.pattern.permute.xlu0 0
        %3366 = vperm.xlu0 %3365, %v3340
        %v3367 = vpop.permute.xlu0 %3366
        %3370 = vset.pattern.permute.xlu0 0
        %3371 = vperm.xlu0 %3370, %v3341
        %v3372 = vpop.permute.xlu0 %3371
        %3375 = vset.pattern.permute.xlu0 0
        %3376 = vperm.xlu0 %3375, %v3342
        %v3377 = vpop.permute.xlu0 %3376
        %3380 = vset.pattern.permute.xlu0 0
        %3381 = vperm.xlu0 %3380, %v3343
        %v3382 = vpop.permute.xlu0 %3381
        %v3384 = vadd.f32 %v3320, %v3347
        %v3385 = vadd.f32 %v3321, %v3347
        %v3386 = vadd.f32 %v3322, %v3352
        %v3387 = vadd.f32 %v3323, %v3352
        %v3388 = vadd.f32 %v3324, %v3357
        %v3389 = vadd.f32 %v3325, %v3357
        %v3390 = vadd.f32 %v3326, %v3362
        %v3391 = vadd.f32 %v3327, %v3362
        %v3392 = vadd.f32 %v3328, %v3367
        %v3393 = vadd.f32 %v3329, %v3367
        %v3394 = vadd.f32 %v3330, %v3372
        %v3395 = vadd.f32 %v3331, %v3372
        %v3396 = vadd.f32 %v3332, %v3377
        %v3397 = vadd.f32 %v3333, %v3377
        %v3398 = vadd.f32 %v3334, %v3382
        %v3399 = vadd.f32 %v3335, %v3382
        %3400 = vst [vmem:[%s298] sm:$0xff] %v3384
        %3401 = vst [vmem:[%s298 + $0x8] sm:$0xff] %v3385
        %3402 = vst [vmem:[%s298 + $0x10] sm:$0xff] %v3386
        %3403 = vst [vmem:[%s298 + $0x18] sm:$0xff] %v3387
        %3404 = vst [vmem:[%s298 + $0x20] sm:$0xff] %v3388
        %3405 = vst [vmem:[%s298 + $0x28] sm:$0xff] %v3389
        %3406 = vst [vmem:[%s298 + $0x30] sm:$0xff] %v3390
        %3407 = vst [vmem:[%s298 + $0x38] sm:$0xff] %v3391
        %3408 = vst [vmem:[%s298 + $0x40] sm:$0xff] %v3392
        %3409 = vst [vmem:[%s298 + $0x48] sm:$0xff] %v3393
        %3410 = vst [vmem:[%s298 + $0x50] sm:$0xff] %v3394
        %3411 = vst [vmem:[%s298 + $0x58] sm:$0xff] %v3395
        %3412 = vst [vmem:[%s298 + $0x60] sm:$0xff] %v3396
        %3413 = vst [vmem:[%s298 + $0x68] sm:$0xff] %v3397
        %3414 = vst [vmem:[%s298 + $0x70] sm:$0xff] %v3398
        %3415 = vst [vmem:[%s298 + $0x78] sm:$0xff] %v3399
        %s3416 = sand.u32 %s203, 1
        %s3417 = scalar_lea.sflag [#allocation5], %s3416
        %s3418 = sand.u32 %s203, 1
        %s3419 = smul.addr %s3418, 128
        %s3420 = scalar_lea.vmem [#allocation4], %s3419
        // Predicated region
        $region81: #{tpu_custom_call.1} parent=51 // pred_check
          %p3421 = pneg %p213
        $region82: #{tpu_custom_call.1} parent=51 // pred_check_branch
          %3423 = sbr.rel (%p3421) target = $region84
        $region83: #{tpu_custom_call.1} parent=51 // pred_region
          %3425 = vsyncadd %s3417, 0
          %s3426 = smul.addr %s22, 16
          %s3427 = smul.addr %s3426, 8
          %s3428 = scalar_lea.hbm %s8, %s3427
          %s3429 = sshll.u32 %s3420, 4
          %s3430 = int_to_ptr.vmem [resolvable:$true] %s3429
          %s3431 = sshll.u32 %s3428, 4
          %s3432 = int_to_ptr.hbm [resolvable:$true] %s3431
          %3437 = dma.vmem_to_hbm [thread:$0]  %s3430, 2048, %s3432, %s3417, 256, 256, 16
        $region84: #{tpu_custom_call.1} parent=51 // pred_fallthru
          _
      $region52: #{tpu_custom_call.1} parent=5 // pred_fallthru
        _
      %p3438 = scmp.le.s32.totalorder 2, %s17
      // Predicated region
      $region85: #{tpu_custom_call.1} parent=5 // pred_check
        %p3439 = pneg %p3438
      $region86: #{tpu_custom_call.1} parent=5 // pred_check_branch
        %3441 = sbr.rel (%p3439) target = $region88
      $region87: #{tpu_custom_call.1} parent=5 // pred_region
        %s3442 = ssub.s32 %s17, 2
        // Predicated region
        $region89: #{tpu_custom_call.1} parent=87 // pred_check
          %p3443 = pneg %p219
        $region90: #{tpu_custom_call.1} parent=87 // pred_check_branch
          %3445 = sbr.rel (%p3443) target = $region92
        $region91: #{tpu_custom_call.1} parent=87 // pred_region
          %s3446 = sand.u32 %s204, 1
          %s3447 = scalar_lea.sflag [#allocation5], %s3446
          %s3448 = sand.u32 %s204, 1
          %s3449 = smul.addr %s3448, 128
          %s3450 = scalar_lea.vmem [#allocation4], %s3449
          %3452 = dma.done %s3447, 2048
        $region92: #{tpu_custom_call.1} parent=87 // pred_fallthru
          _
      $region88: #{tpu_custom_call.1} parent=5 // pred_fallthru
        _
    $region6: #{tpu_custom_call.1} parent=1 // loop_footer
      %s21 = sadd.s32 1, %s17
    $region7: #{tpu_custom_call.1} parent=1 // loop_footer_branch
      %16 = sbr.rel target = $region3
    $region8: #{tpu_custom_call.1} parent=1 // loop_exit
      _
    %3453 = vsyncpa [#allocation5], 1
    %s3454 = scalar_lea.sflag [#allocation5], 1
    %3455 = vsyncpa %s3454, 1

</llo_original>
